<compile_context>
chip_gen: v7x
topology: tpu7x:2x2x1
jax: 0.10.0
libtpu: 0.0.40
codegen_flags: <defaults>
</compile_context>

<pallas_src>
import jax
import jax.numpy as jnp
from jax.experimental import pallas as pl
from jax.experimental.pallas import tpu as pltpu

BN_EPS = 1e-5
CP = 128            # padded channel width (lane-dense last dim)


def _round_up(x, m):
    return ((x + m - 1) // m) * m


# ------------------------------ Pallas kernel -------------------------------

def _make_block_kernel(n, oh, ow, owp, pool, ph):
    """Fused Conv3x3/s2 + BatchNorm(train) + ReLU (+ MaxPool3x3/s2) kernel.

    n        : batch
    oh, ow   : real conv output height / width
    owp      : conv output width padded to a multiple of 8 (fake cols are 0)
    pool, ph : fuse MaxPool2d(3,2,1); ph = pooled output height
    """
    m = n * oh * owp
    taps = [(di, dj) for di in range(3) for dj in range(3)]

    def kernel(p00_ref, p01_ref, p10_ref, p11_ref, w_ref, gamma_ref, beta_ref,
               out_ref, *scratch):
        phase_refs = (p00_ref, p01_ref, p10_ref, p11_ref)

        # ---- convolution: 9 shifted phase matmuls, f32 accumulation (MXU) ---
        acc = jnp.zeros((m, CP), jnp.float32)
        for t, (di, dj) in enumerate(taps):
            pref = phase_refs[2 * (di % 2) + (dj % 2)]   # input-parity phase
            a, b = di // 2, dj // 2                      # offset inside phase
            sl = pref[:, a:a + oh, b:b + owp, :]         # (n, oh, owp, CP) f32
            lhs = sl.reshape(m, CP).astype(jnp.bfloat16)
            acc = acc + jnp.dot(lhs, w_ref[t],
                                preferred_element_type=jnp.float32)

        # ---- fused BatchNorm (training-mode batch stats) + affine + ReLU ----
        if owp != ow:
            # Mask the fake (zero-padded) columns so the statistics only see
            # the n*oh*ow real activations.
            col = jax.lax.broadcasted_iota(jnp.int32, (m, 1), 0) % owp
            valid = (col < ow).astype(jnp.float32)               # (m, 1)
            count = float(n * oh * ow)
            s1 = jnp.sum(acc * valid, axis=0, keepdims=True)
            s2 = jnp.sum(acc * acc * valid, axis=0, keepdims=True)
        else:
            valid = None
            count = float(m)
            s1 = jnp.sum(acc, axis=0, keepdims=True)
            s2 = jnp.sum(acc * acc, axis=0, keepdims=True)
        mean = s1 * (1.0 / count)
        var = s2 * (1.0 / count) - mean * mean                   # biased (torch)
        scale = gamma_ref[...] * jax.lax.rsqrt(var + BN_EPS)     # (1, CP)
        shift = beta_ref[...] - mean * scale
        y = jnp.maximum(acc * scale + shift, 0.0)                # ReLU
        if valid is not None:
            y = y * valid                                        # fake cols -> 0

        if not pool:
            out_ref[...] = y
            return

        # ---- fused MaxPool2d(kernel=3, stride=2, padding=1) -----------------
        # Post-ReLU values are >= 0, so a zero border is equivalent to torch's
        # -inf padding.  ys = y with a 1-element zero border (W border kept
        # 8-wide for layout friendliness).
        ys_ref = scratch[0]                                      # (n, oh+2, owp+8, CP)
        ys_ref[...] = jnp.zeros_like(ys_ref)
        ys_ref[:, 1:oh + 1, 1:owp + 1, :] = y.reshape(n, oh, owp, CP)
        # 3-tap max along W (column j = window centred at y column j).
        wmax = jnp.maximum(
            jnp.maximum(ys_ref[:, :, 0:owp, :], ys_ref[:, :, 1:owp + 1, :]),
            ys_ref[:, :, 2:owp + 2, :])                          # (n, oh+2, owp, CP)
        # stride-2 3-tap max along H via an even/odd leading-dim split.
        r = wmax.reshape(n, (oh + 2) // 2, 2, owp, CP)
        out_ref[...] = jnp.maximum(
            jnp.maximum(r[:, 0:ph, 0], r[:, 0:ph, 1]), r[:, 1:ph + 1, 0])

    return kernel


# --------------------------------- wrapper ----------------------------------

def _vmem_spec():
    return pl.BlockSpec(memory_space=pltpu.MemorySpace.VMEM)


def cnn_basic_block(x, w, gamma, beta, pool):
    """One CNN_BasicBlock on channel-padded NHWC data.

    x     : (N, H, W, CP) float32, real channels in x[..., :cin], rest zero.
    w     : (cout, cin, 3, 3) conv weight (torch layout); bias is dropped
            because training-mode BN cancels it exactly.
    Returns (N, H', W', CP) float32 with channels >= cout exactly zero.
    """
    n, h, wd, cp = x.shape
    assert cp == CP
    cout, cin, kh, kw = w.shape
    assert (kh, kw) == (3, 3) and cout <= CP and cin <= CP

    oh = (h + 2 - 3) // 2 + 1          # conv output size (stride 2, pad 1)
    ow = (wd + 2 - 3) // 2 + 1
    owp = _round_up(ow, 8)             # sublane-friendly padded output width
    hpad = 2 * (oh + 1)                # even -> 4 equal-shape stride-2 phases
    wpad = 2 * (owp + 1)

    # Conv zero-padding (+ extra zero rows/cols for alignment) and the
    # stride-2 phase decomposition: same byte count as the input, no 9x
    # im2col is ever materialised in HBM.
    xp = jnp.pad(x, ((0, 0), (1, hpad - h - 1), (1, wpad - wd - 1), (0, 0)))
    phases = [xp[:, a::2, b::2, :] for a in (0, 1) for b in (0, 1)]

    # Weights: (cout, cin, 3, 3) -> 9 zero-padded (CP, CP) bf16 tap matrices.
    wt = jnp.transpose(w, (2, 3, 1, 0)).reshape(9, cin, cout)
    wt = jnp.pad(wt, ((0, 0), (0, CP - cin), (0, CP - cout))).astype(jnp.bfloat16)
    gam = jnp.pad(gamma, (0, CP - cout), constant_values=1.0)
    gam = gam.reshape(1, CP).astype(jnp.float32)
    bet = jnp.pad(beta, (0, CP - cout)).reshape(1, CP).astype(jnp.float32)

    ph = (oh - 1) // 2 + 1             # MaxPool2d(3,2,1) output height
    pw = (ow - 1) // 2 + 1             # ... and width
    kernel = _make_block_kernel(n, oh, ow, owp, pool, ph)
    cparams = pltpu.CompilerParams(vmem_limit_bytes=32 * 1024 * 1024)

    if pool:
        assert oh % 2 == 0
        out = pl.pallas_call(
            kernel,
            out_shape=jax.ShapeDtypeStruct((n, ph, owp, CP), jnp.float32),
            in_specs=[_vmem_spec()] * 7,
            out_specs=_vmem_spec(),
            scratch_shapes=[pltpu.VMEM((n, oh + 2, owp + 8, CP), jnp.float32)],
            compiler_params=cparams,
        )(*phases, wt, gam, bet)
        # H is already pooled in-kernel; compact W (stride 2) in the wrapper.
        return out[:, :, ::2, :][:, :, :pw, :]

    out = pl.pallas_call(
        kernel,
        out_shape=jax.ShapeDtypeStruct((n * oh * owp, CP), jnp.float32),
        in_specs=[_vmem_spec()] * 7,
        out_specs=_vmem_spec(),
        compiler_params=cparams,
    )(*phases, wt, gam, bet)
    return out.reshape(n, oh, owp, CP)[:, :, :ow, :]


def make_cnn2d_params(key, inplane, patch_size):
    """Deterministic synthetic parameters matching CNN2D.__init__ shapes."""
    num_block = 1
    i = patch_size[0] / 4
    while i / 4 > 1:
        i /= 4
        num_block += 1
    params = []
    in_p, plane = inplane, 32
    for bi in range(num_block):
        key, k1, k2, k3, k4 = jax.random.split(key, 5)
        fan_in = in_p * 3 * 3
        w = jax.random.normal(k1, (plane, in_p, 3, 3), jnp.float32) / jnp.sqrt(fan_in)
        b = 0.1 * jax.random.normal(k2, (plane,), jnp.float32)
        gamma = 1.0 + 0.1 * jax.random.normal(k3, (plane,), jnp.float32)
        beta = 0.1 * jax.random.normal(k4, (plane,), jnp.float32)
        pool = bi != num_block - 1          # last block has no pooling
        params.append((w, b, gamma, beta, pool))
        in_p, plane = plane, plane * 2
    out_dim = plane // 2
    return params, out_dim


def cnn2d_forward(x_nchw, params):
    x = jnp.transpose(x_nchw, (0, 2, 3, 1)).astype(jnp.float32)   # NCHW -> NHWC
    x = jnp.pad(x, ((0, 0), (0, 0), (0, 0), (0, CP - x.shape[-1])))
    last_cout = None
    for (w, b, gamma, beta, pool) in params:
        # Conv bias `b` is intentionally unused: training-mode BatchNorm's
        # per-channel mean subtraction cancels it exactly (forward unchanged).
        x = cnn_basic_block(x, w, gamma, beta, pool)
        last_cout = w.shape[0]
    x = x[..., :last_cout]                                        # drop channel pad
    return jnp.transpose(x, (0, 3, 1, 2))                         # NHWC -> NCHW


# TODO(synk): CNN2D.__init__'s `dropout` arg is never used in forward; omitted.

if __name__ == "__main__":
    key = jax.random.PRNGKey(0)
    kx, kp = jax.random.split(key)

    inplane = 4
    patch_size = (32, 32)                 # -> num_block = 2, out_dim = 64
    x = jax.random.normal(kx, (2, inplane, patch_size[0], patch_size[1]),
                          jnp.float32)

    params, out_dim = make_cnn2d_params(kp, inplane, patch_size)

    y = jax.jit(lambda inp: cnn2d_forward(inp, params))(x)
    y = jax.block_until_ready(y)

    # 32 --conv s2--> 16 --maxpool s2--> 8 --conv s2--> 4
    assert y.shape == (2, out_dim, 4, 4), y.shape
    assert y.dtype == jnp.float32
    assert bool(jnp.all(jnp.isfinite(y)))
    print("KERNEL_OK")
</pallas_src>

<mosaic_0001>
module attributes {stable_mosaic.version = 11 : i64} {
  func.func @kernel(%arg0: memref<2x17x17x128xf32, #tpu.memory_space<vmem>>, %arg1: memref<2x17x17x128xf32, #tpu.memory_space<vmem>>, %arg2: memref<2x17x17x128xf32, #tpu.memory_space<vmem>>, %arg3: memref<2x17x17x128xf32, #tpu.memory_space<vmem>>, %arg4: memref<9x128x128xbf16, #tpu.memory_space<vmem>>, %arg5: memref<1x128xf32, #tpu.memory_space<vmem>>, %arg6: memref<1x128xf32, #tpu.memory_space<vmem>>, %arg7: memref<2x8x16x128xf32, #tpu.memory_space<vmem>>, %arg8: memref<2x18x24x128xf32, #tpu.memory_space<vmem>>) attributes {dimension_semantics = [], scalar_prefetch = 0 : i64, scratch_operands = 1 : i64, tpu.core_type = #tpu.core_type<tc>} {
    %cst = arith.constant 0.000000e+00 : f32
    %0 = vector.broadcast %cst : f32 to vector<512x128xf32>
    %c0 = arith.constant 0 : index
    %c0_0 = arith.constant 0 : index
    %c0_1 = arith.constant 0 : index
    %c0_2 = arith.constant 0 : index
    %1 = vector.load %arg0[%c0, %c0_0, %c0_1, %c0_2] : memref<2x17x17x128xf32, #tpu.memory_space<vmem>>, vector<2x16x16x128xf32>
    %2 = vector.shape_cast %1 : vector<2x16x16x128xf32> to vector<512x128xf32>
    %3 = arith.truncf %2 : vector<512x128xf32> to vector<512x128xbf16>
    %c0_3 = arith.constant 0 : index
    %c0_4 = arith.constant 0 : index
    %c0_5 = arith.constant 0 : index
    %4 = vector.load %arg4[%c0_3, %c0_4, %c0_5] : memref<9x128x128xbf16, #tpu.memory_space<vmem>>, vector<1x128x128xbf16>
    %5 = vector.shape_cast %4 : vector<1x128x128xbf16> to vector<128x128xbf16>
    %cst_6 = arith.constant dense<0.000000e+00> : vector<512x128xf32>
    %6 = tpu.matmul %3, %5, %cst_6 {dimension_numbers = #tpu.dot_dimension_numbers<[1], [0], [0], [1], [0, 0, 1, 1], [], []>} : vector<512x128xbf16>, vector<128x128xbf16>, vector<512x128xf32> -> vector<512x128xf32>
    %7 = arith.addf %0, %6 : vector<512x128xf32>
    %c0_7 = arith.constant 0 : index
    %c0_8 = arith.constant 0 : index
    %c0_9 = arith.constant 0 : index
    %c0_10 = arith.constant 0 : index
    %8 = vector.load %arg1[%c0_7, %c0_8, %c0_9, %c0_10] : memref<2x17x17x128xf32, #tpu.memory_space<vmem>>, vector<2x16x16x128xf32>
    %9 = vector.shape_cast %8 : vector<2x16x16x128xf32> to vector<512x128xf32>
    %10 = arith.truncf %9 : vector<512x128xf32> to vector<512x128xbf16>
    %c1 = arith.constant 1 : index
    %c0_11 = arith.constant 0 : index
    %c0_12 = arith.constant 0 : index
    %11 = vector.load %arg4[%c1, %c0_11, %c0_12] : memref<9x128x128xbf16, #tpu.memory_space<vmem>>, vector<1x128x128xbf16>
    %12 = vector.shape_cast %11 : vector<1x128x128xbf16> to vector<128x128xbf16>
    %cst_13 = arith.constant dense<0.000000e+00> : vector<512x128xf32>
    %13 = tpu.matmul %10, %12, %cst_13 {dimension_numbers = #tpu.dot_dimension_numbers<[1], [0], [0], [1], [0, 0, 1, 1], [], []>} : vector<512x128xbf16>, vector<128x128xbf16>, vector<512x128xf32> -> vector<512x128xf32>
    %14 = arith.addf %7, %13 : vector<512x128xf32>
    %c0_14 = arith.constant 0 : index
    %c0_15 = arith.constant 0 : index
    %c1_16 = arith.constant 1 : index
    %c0_17 = arith.constant 0 : index
    %15 = vector.load %arg0[%c0_14, %c0_15, %c1_16, %c0_17] : memref<2x17x17x128xf32, #tpu.memory_space<vmem>>, vector<2x16x16x128xf32>
    %16 = vector.shape_cast %15 : vector<2x16x16x128xf32> to vector<512x128xf32>
    %17 = arith.truncf %16 : vector<512x128xf32> to vector<512x128xbf16>
    %c2 = arith.constant 2 : index
    %c0_18 = arith.constant 0 : index
    %c0_19 = arith.constant 0 : index
    %18 = vector.load %arg4[%c2, %c0_18, %c0_19] : memref<9x128x128xbf16, #tpu.memory_space<vmem>>, vector<1x128x128xbf16>
    %19 = vector.shape_cast %18 : vector<1x128x128xbf16> to vector<128x128xbf16>
    %cst_20 = arith.constant dense<0.000000e+00> : vector<512x128xf32>
    %20 = tpu.matmul %17, %19, %cst_20 {dimension_numbers = #tpu.dot_dimension_numbers<[1], [0], [0], [1], [0, 0, 1, 1], [], []>} : vector<512x128xbf16>, vector<128x128xbf16>, vector<512x128xf32> -> vector<512x128xf32>
    %21 = arith.addf %14, %20 : vector<512x128xf32>
    %c0_21 = arith.constant 0 : index
    %c0_22 = arith.constant 0 : index
    %c0_23 = arith.constant 0 : index
    %c0_24 = arith.constant 0 : index
    %22 = vector.load %arg2[%c0_21, %c0_22, %c0_23, %c0_24] : memref<2x17x17x128xf32, #tpu.memory_space<vmem>>, vector<2x16x16x128xf32>
    %23 = vector.shape_cast %22 : vector<2x16x16x128xf32> to vector<512x128xf32>
    %24 = arith.truncf %23 : vector<512x128xf32> to vector<512x128xbf16>
    %c3 = arith.constant 3 : index
    %c0_25 = arith.constant 0 : index
    %c0_26 = arith.constant 0 : index
    %25 = vector.load %arg4[%c3, %c0_25, %c0_26] : memref<9x128x128xbf16, #tpu.memory_space<vmem>>, vector<1x128x128xbf16>
    %26 = vector.shape_cast %25 : vector<1x128x128xbf16> to vector<128x128xbf16>
    %cst_27 = arith.constant dense<0.000000e+00> : vector<512x128xf32>
    %27 = tpu.matmul %24, %26, %cst_27 {dimension_numbers = #tpu.dot_dimension_numbers<[1], [0], [0], [1], [0, 0, 1, 1], [], []>} : vector<512x128xbf16>, vector<128x128xbf16>, vector<512x128xf32> -> vector<512x128xf32>
    %28 = arith.addf %21, %27 : vector<512x128xf32>
    %c0_28 = arith.constant 0 : index
    %c0_29 = arith.constant 0 : index
    %c0_30 = arith.constant 0 : index
    %c0_31 = arith.constant 0 : index
    %29 = vector.load %arg3[%c0_28, %c0_29, %c0_30, %c0_31] : memref<2x17x17x128xf32, #tpu.memory_space<vmem>>, vector<2x16x16x128xf32>
    %30 = vector.shape_cast %29 : vector<2x16x16x128xf32> to vector<512x128xf32>
    %31 = arith.truncf %30 : vector<512x128xf32> to vector<512x128xbf16>
    %c4 = arith.constant 4 : index
    %c0_32 = arith.constant 0 : index
    %c0_33 = arith.constant 0 : index
    %32 = vector.load %arg4[%c4, %c0_32, %c0_33] : memref<9x128x128xbf16, #tpu.memory_space<vmem>>, vector<1x128x128xbf16>
    %33 = vector.shape_cast %32 : vector<1x128x128xbf16> to vector<128x128xbf16>
    %cst_34 = arith.constant dense<0.000000e+00> : vector<512x128xf32>
    %34 = tpu.matmul %31, %33, %cst_34 {dimension_numbers = #tpu.dot_dimension_numbers<[1], [0], [0], [1], [0, 0, 1, 1], [], []>} : vector<512x128xbf16>, vector<128x128xbf16>, vector<512x128xf32> -> vector<512x128xf32>
    %35 = arith.addf %28, %34 : vector<512x128xf32>
    %c0_35 = arith.constant 0 : index
    %c0_36 = arith.constant 0 : index
    %c1_37 = arith.constant 1 : index
    %c0_38 = arith.constant 0 : index
    %36 = vector.load %arg2[%c0_35, %c0_36, %c1_37, %c0_38] : memref<2x17x17x128xf32, #tpu.memory_space<vmem>>, vector<2x16x16x128xf32>
    %37 = vector.shape_cast %36 : vector<2x16x16x128xf32> to vector<512x128xf32>
    %38 = arith.truncf %37 : vector<512x128xf32> to vector<512x128xbf16>
    %c5 = arith.constant 5 : index
    %c0_39 = arith.constant 0 : index
    %c0_40 = arith.constant 0 : index
    %39 = vector.load %arg4[%c5, %c0_39, %c0_40] : memref<9x128x128xbf16, #tpu.memory_space<vmem>>, vector<1x128x128xbf16>
    %40 = vector.shape_cast %39 : vector<1x128x128xbf16> to vector<128x128xbf16>
    %cst_41 = arith.constant dense<0.000000e+00> : vector<512x128xf32>
    %41 = tpu.matmul %38, %40, %cst_41 {dimension_numbers = #tpu.dot_dimension_numbers<[1], [0], [0], [1], [0, 0, 1, 1], [], []>} : vector<512x128xbf16>, vector<128x128xbf16>, vector<512x128xf32> -> vector<512x128xf32>
    %42 = arith.addf %35, %41 : vector<512x128xf32>
    %c0_42 = arith.constant 0 : index
    %c1_43 = arith.constant 1 : index
    %c0_44 = arith.constant 0 : index
    %c0_45 = arith.constant 0 : index
    %43 = vector.load %arg0[%c0_42, %c1_43, %c0_44, %c0_45] : memref<2x17x17x128xf32, #tpu.memory_space<vmem>>, vector<2x16x16x128xf32>
    %44 = vector.shape_cast %43 : vector<2x16x16x128xf32> to vector<512x128xf32>
    %45 = arith.truncf %44 : vector<512x128xf32> to vector<512x128xbf16>
    %c6 = arith.constant 6 : index
    %c0_46 = arith.constant 0 : index
    %c0_47 = arith.constant 0 : index
    %46 = vector.load %arg4[%c6, %c0_46, %c0_47] : memref<9x128x128xbf16, #tpu.memory_space<vmem>>, vector<1x128x128xbf16>
    %47 = vector.shape_cast %46 : vector<1x128x128xbf16> to vector<128x128xbf16>
    %cst_48 = arith.constant dense<0.000000e+00> : vector<512x128xf32>
    %48 = tpu.matmul %45, %47, %cst_48 {dimension_numbers = #tpu.dot_dimension_numbers<[1], [0], [0], [1], [0, 0, 1, 1], [], []>} : vector<512x128xbf16>, vector<128x128xbf16>, vector<512x128xf32> -> vector<512x128xf32>
    %49 = arith.addf %42, %48 : vector<512x128xf32>
    %c0_49 = arith.constant 0 : index
    %c1_50 = arith.constant 1 : index
    %c0_51 = arith.constant 0 : index
    %c0_52 = arith.constant 0 : index
    %50 = vector.load %arg1[%c0_49, %c1_50, %c0_51, %c0_52] : memref<2x17x17x128xf32, #tpu.memory_space<vmem>>, vector<2x16x16x128xf32>
    %51 = vector.shape_cast %50 : vector<2x16x16x128xf32> to vector<512x128xf32>
    %52 = arith.truncf %51 : vector<512x128xf32> to vector<512x128xbf16>
    %c7 = arith.constant 7 : index
    %c0_53 = arith.constant 0 : index
    %c0_54 = arith.constant 0 : index
    %53 = vector.load %arg4[%c7, %c0_53, %c0_54] : memref<9x128x128xbf16, #tpu.memory_space<vmem>>, vector<1x128x128xbf16>
    %54 = vector.shape_cast %53 : vector<1x128x128xbf16> to vector<128x128xbf16>
    %cst_55 = arith.constant dense<0.000000e+00> : vector<512x128xf32>
    %55 = tpu.matmul %52, %54, %cst_55 {dimension_numbers = #tpu.dot_dimension_numbers<[1], [0], [0], [1], [0, 0, 1, 1], [], []>} : vector<512x128xbf16>, vector<128x128xbf16>, vector<512x128xf32> -> vector<512x128xf32>
    %56 = arith.addf %49, %55 : vector<512x128xf32>
    %c0_56 = arith.constant 0 : index
    %c1_57 = arith.constant 1 : index
    %c1_58 = arith.constant 1 : index
    %c0_59 = arith.constant 0 : index
    %57 = vector.load %arg0[%c0_56, %c1_57, %c1_58, %c0_59] : memref<2x17x17x128xf32, #tpu.memory_space<vmem>>, vector<2x16x16x128xf32>
    %58 = vector.shape_cast %57 : vector<2x16x16x128xf32> to vector<512x128xf32>
    %59 = arith.truncf %58 : vector<512x128xf32> to vector<512x128xbf16>
    %c8 = arith.constant 8 : index
    %c0_60 = arith.constant 0 : index
    %c0_61 = arith.constant 0 : index
    %60 = vector.load %arg4[%c8, %c0_60, %c0_61] : memref<9x128x128xbf16, #tpu.memory_space<vmem>>, vector<1x128x128xbf16>
    %61 = vector.shape_cast %60 : vector<1x128x128xbf16> to vector<128x128xbf16>
    %cst_62 = arith.constant dense<0.000000e+00> : vector<512x128xf32>
    %62 = tpu.matmul %59, %61, %cst_62 {dimension_numbers = #tpu.dot_dimension_numbers<[1], [0], [0], [1], [0, 0, 1, 1], [], []>} : vector<512x128xbf16>, vector<128x128xbf16>, vector<512x128xf32> -> vector<512x128xf32>
    %63 = arith.addf %56, %62 : vector<512x128xf32>
    %cst_63 = arith.constant dense<0.000000e+00> : vector<128xf32>
    %64 = vector.multi_reduction <add>, %63, %cst_63 [0] : vector<512x128xf32> to vector<128xf32>
    %65 = vector.shape_cast %64 : vector<128xf32> to vector<1x128xf32>
    %66 = arith.mulf %63, %63 : vector<512x128xf32>
    %cst_64 = arith.constant dense<0.000000e+00> : vector<128xf32>
    %67 = vector.multi_reduction <add>, %66, %cst_64 [0] : vector<512x128xf32> to vector<128xf32>
    %68 = vector.shape_cast %67 : vector<128xf32> to vector<1x128xf32>
    %cst_65 = arith.constant 0.001953125 : f32
    %69 = vector.broadcast %cst_65 : f32 to vector<1x128xf32>
    %70 = arith.mulf %65, %69 : vector<1x128xf32>
    %cst_66 = arith.constant 0.001953125 : f32
    %71 = vector.broadcast %cst_66 : f32 to vector<1x128xf32>
    %72 = arith.mulf %68, %71 : vector<1x128xf32>
    %73 = arith.mulf %70, %70 : vector<1x128xf32>
    %74 = arith.subf %72, %73 : vector<1x128xf32>
    %c0_67 = arith.constant 0 : index
    %c0_68 = arith.constant 0 : index
    %75 = vector.load %arg5[%c0_67, %c0_68] : memref<1x128xf32, #tpu.memory_space<vmem>>, vector<1x128xf32>
    %cst_69 = arith.constant 9.99999974E-6 : f32
    %76 = vector.broadcast %cst_69 : f32 to vector<1x128xf32>
    %77 = arith.addf %74, %76 : vector<1x128xf32>
    %78 = math.rsqrt %77 : vector<1x128xf32>
    %79 = arith.mulf %75, %78 : vector<1x128xf32>
    %c0_70 = arith.constant 0 : index
    %c0_71 = arith.constant 0 : index
    %80 = vector.load %arg6[%c0_70, %c0_71] : memref<1x128xf32, #tpu.memory_space<vmem>>, vector<1x128xf32>
    %81 = arith.mulf %70, %79 : vector<1x128xf32>
    %82 = arith.subf %80, %81 : vector<1x128xf32>
    %83 = vector.broadcast %79 : vector<1x128xf32> to vector<512x128xf32>
    %84 = arith.mulf %63, %83 : vector<512x128xf32>
    %85 = vector.broadcast %82 : vector<1x128xf32> to vector<512x128xf32>
    %86 = arith.addf %84, %85 : vector<512x128xf32>
    %cst_72 = arith.constant 0.000000e+00 : f32
    %87 = vector.broadcast %cst_72 : f32 to vector<512x128xf32>
    %88 = arith.maximumf %86, %87 : vector<512x128xf32>
    %cst_73 = arith.constant 0.000000e+00 : f32
    %89 = vector.broadcast %cst_73 : f32 to vector<2x18x24x128xf32>
    %c0_74 = arith.constant 0 : index
    %c0_75 = arith.constant 0 : index
    %c0_76 = arith.constant 0 : index
    %c0_77 = arith.constant 0 : index
    %90 = vector.load %arg8[%c0_74, %c0_75, %c0_76, %c0_77] : memref<2x18x24x128xf32, #tpu.memory_space<vmem>>, vector<2x18x24x128xf32>
    tpu.vector_store %arg8[%c0_74, %c0_75, %c0_76, %c0_77], %89 {strides = array<i32>} : memref<2x18x24x128xf32, #tpu.memory_space<vmem>>, vector<2x18x24x128xf32>,
    %91 = vector.shape_cast %88 : vector<512x128xf32> to vector<2x16x16x128xf32>
    %c0_78 = arith.constant 0 : index
    %c1_79 = arith.constant 1 : index
    %c1_80 = arith.constant 1 : index
    %c0_81 = arith.constant 0 : index
    %92 = vector.load %arg8[%c0_78, %c1_79, %c1_80, %c0_81] : memref<2x18x24x128xf32, #tpu.memory_space<vmem>>, vector<2x16x16x128xf32>
    tpu.vector_store %arg8[%c0_78, %c1_79, %c1_80, %c0_81], %91 {strides = array<i32>} : memref<2x18x24x128xf32, #tpu.memory_space<vmem>>, vector<2x16x16x128xf32>,
    %c0_82 = arith.constant 0 : index
    %c0_83 = arith.constant 0 : index
    %c0_84 = arith.constant 0 : index
    %c0_85 = arith.constant 0 : index
    %93 = vector.load %arg8[%c0_82, %c0_83, %c0_84, %c0_85] : memref<2x18x24x128xf32, #tpu.memory_space<vmem>>, vector<2x18x16x128xf32>
    %c0_86 = arith.constant 0 : index
    %c0_87 = arith.constant 0 : index
    %c1_88 = arith.constant 1 : index
    %c0_89 = arith.constant 0 : index
    %94 = vector.load %arg8[%c0_86, %c0_87, %c1_88, %c0_89] : memref<2x18x24x128xf32, #tpu.memory_space<vmem>>, vector<2x18x16x128xf32>
    %95 = arith.maximumf %93, %94 : vector<2x18x16x128xf32>
    %c0_90 = arith.constant 0 : index
    %c0_91 = arith.constant 0 : index
    %c2_92 = arith.constant 2 : index
    %c0_93 = arith.constant 0 : index
    %96 = vector.load %arg8[%c0_90, %c0_91, %c2_92, %c0_93] : memref<2x18x24x128xf32, #tpu.memory_space<vmem>>, vector<2x18x16x128xf32>
    %97 = arith.maximumf %95, %96 : vector<2x18x16x128xf32>
    %98 = vector.shape_cast %97 : vector<2x18x16x128xf32> to vector<2x9x2x16x128xf32>
    %99 = vector.extract_strided_slice %98 {offsets = [0, 0, 0, 0, 0], sizes = [2, 8, 1, 16, 128], strides = [1, 1, 1, 1, 1]} : vector<2x9x2x16x128xf32> to vector<2x8x1x16x128xf32>
    %100 = vector.shape_cast %99 : vector<2x8x1x16x128xf32> to vector<2x8x16x128xf32>
    %101 = vector.extract_strided_slice %98 {offsets = [0, 0, 1, 0, 0], sizes = [2, 8, 1, 16, 128], strides = [1, 1, 1, 1, 1]} : vector<2x9x2x16x128xf32> to vector<2x8x1x16x128xf32>
    %102 = vector.shape_cast %101 : vector<2x8x1x16x128xf32> to vector<2x8x16x128xf32>
    %103 = arith.maximumf %100, %102 : vector<2x8x16x128xf32>
    %104 = vector.extract_strided_slice %98 {offsets = [0, 1, 0, 0, 0], sizes = [2, 8, 1, 16, 128], strides = [1, 1, 1, 1, 1]} : vector<2x9x2x16x128xf32> to vector<2x8x1x16x128xf32>
    %105 = vector.shape_cast %104 : vector<2x8x1x16x128xf32> to vector<2x8x16x128xf32>
    %106 = arith.maximumf %103, %105 : vector<2x8x16x128xf32>
    %c0_94 = arith.constant 0 : index
    %c0_95 = arith.constant 0 : index
    %c0_96 = arith.constant 0 : index
    %c0_97 = arith.constant 0 : index
    %107 = vector.load %arg7[%c0_94, %c0_95, %c0_96, %c0_97] : memref<2x8x16x128xf32, #tpu.memory_space<vmem>>, vector<2x8x16x128xf32>
    tpu.vector_store %arg7[%c0_94, %c0_95, %c0_96, %c0_97], %106 {strides = array<i32>} : memref<2x8x16x128xf32, #tpu.memory_space<vmem>>, vector<2x8x16x128xf32>,
    return
  }
}

module attributes {stable_mosaic.version = 11 : i64} {
  func.func @kernel(%arg0: memref<2x5x9x128xf32, #tpu.memory_space<vmem>>, %arg1: memref<2x5x9x128xf32, #tpu.memory_space<vmem>>, %arg2: memref<2x5x9x128xf32, #tpu.memory_space<vmem>>, %arg3: memref<2x5x9x128xf32, #tpu.memory_space<vmem>>, %arg4: memref<9x128x128xbf16, #tpu.memory_space<vmem>>, %arg5: memref<1x128xf32, #tpu.memory_space<vmem>>, %arg6: memref<1x128xf32, #tpu.memory_space<vmem>>, %arg7: memref<64x128xf32, #tpu.memory_space<vmem>>) attributes {dimension_semantics = [], scalar_prefetch = 0 : i64, scratch_operands = 0 : i64, tpu.core_type = #tpu.core_type<tc>} {
    %cst = arith.constant 0.000000e+00 : f32
    %0 = vector.broadcast %cst : f32 to vector<64x128xf32>
    %c0 = arith.constant 0 : index
    %c0_0 = arith.constant 0 : index
    %c0_1 = arith.constant 0 : index
    %c0_2 = arith.constant 0 : index
    %1 = vector.load %arg0[%c0, %c0_0, %c0_1, %c0_2] : memref<2x5x9x128xf32, #tpu.memory_space<vmem>>, vector<2x4x8x128xf32>
    %2 = vector.shape_cast %1 : vector<2x4x8x128xf32> to vector<64x128xf32>
    %3 = arith.truncf %2 : vector<64x128xf32> to vector<64x128xbf16>
    %c0_3 = arith.constant 0 : index
    %c0_4 = arith.constant 0 : index
    %c0_5 = arith.constant 0 : index
    %4 = vector.load %arg4[%c0_3, %c0_4, %c0_5] : memref<9x128x128xbf16, #tpu.memory_space<vmem>>, vector<1x128x128xbf16>
    %5 = vector.shape_cast %4 : vector<1x128x128xbf16> to vector<128x128xbf16>
    %cst_6 = arith.constant dense<0.000000e+00> : vector<64x128xf32>
    %6 = tpu.matmul %3, %5, %cst_6 {dimension_numbers = #tpu.dot_dimension_numbers<[1], [0], [0], [1], [0, 0, 1, 1], [], []>} : vector<64x128xbf16>, vector<128x128xbf16>, vector<64x128xf32> -> vector<64x128xf32>
    %7 = arith.addf %0, %6 : vector<64x128xf32>
    %c0_7 = arith.constant 0 : index
    %c0_8 = arith.constant 0 : index
    %c0_9 = arith.constant 0 : index
    %c0_10 = arith.constant 0 : index
    %8 = vector.load %arg1[%c0_7, %c0_8, %c0_9, %c0_10] : memref<2x5x9x128xf32, #tpu.memory_space<vmem>>, vector<2x4x8x128xf32>
    %9 = vector.shape_cast %8 : vector<2x4x8x128xf32> to vector<64x128xf32>
    %10 = arith.truncf %9 : vector<64x128xf32> to vector<64x128xbf16>
    %c1 = arith.constant 1 : index
    %c0_11 = arith.constant 0 : index
    %c0_12 = arith.constant 0 : index
    %11 = vector.load %arg4[%c1, %c0_11, %c0_12] : memref<9x128x128xbf16, #tpu.memory_space<vmem>>, vector<1x128x128xbf16>
    %12 = vector.shape_cast %11 : vector<1x128x128xbf16> to vector<128x128xbf16>
    %cst_13 = arith.constant dense<0.000000e+00> : vector<64x128xf32>
    %13 = tpu.matmul %10, %12, %cst_13 {dimension_numbers = #tpu.dot_dimension_numbers<[1], [0], [0], [1], [0, 0, 1, 1], [], []>} : vector<64x128xbf16>, vector<128x128xbf16>, vector<64x128xf32> -> vector<64x128xf32>
    %14 = arith.addf %7, %13 : vector<64x128xf32>
    %c0_14 = arith.constant 0 : index
    %c0_15 = arith.constant 0 : index
    %c1_16 = arith.constant 1 : index
    %c0_17 = arith.constant 0 : index
    %15 = vector.load %arg0[%c0_14, %c0_15, %c1_16, %c0_17] : memref<2x5x9x128xf32, #tpu.memory_space<vmem>>, vector<2x4x8x128xf32>
    %16 = vector.shape_cast %15 : vector<2x4x8x128xf32> to vector<64x128xf32>
    %17 = arith.truncf %16 : vector<64x128xf32> to vector<64x128xbf16>
    %c2 = arith.constant 2 : index
    %c0_18 = arith.constant 0 : index
    %c0_19 = arith.constant 0 : index
    %18 = vector.load %arg4[%c2, %c0_18, %c0_19] : memref<9x128x128xbf16, #tpu.memory_space<vmem>>, vector<1x128x128xbf16>
    %19 = vector.shape_cast %18 : vector<1x128x128xbf16> to vector<128x128xbf16>
    %cst_20 = arith.constant dense<0.000000e+00> : vector<64x128xf32>
    %20 = tpu.matmul %17, %19, %cst_20 {dimension_numbers = #tpu.dot_dimension_numbers<[1], [0], [0], [1], [0, 0, 1, 1], [], []>} : vector<64x128xbf16>, vector<128x128xbf16>, vector<64x128xf32> -> vector<64x128xf32>
    %21 = arith.addf %14, %20 : vector<64x128xf32>
    %c0_21 = arith.constant 0 : index
    %c0_22 = arith.constant 0 : index
    %c0_23 = arith.constant 0 : index
    %c0_24 = arith.constant 0 : index
    %22 = vector.load %arg2[%c0_21, %c0_22, %c0_23, %c0_24] : memref<2x5x9x128xf32, #tpu.memory_space<vmem>>, vector<2x4x8x128xf32>
    %23 = vector.shape_cast %22 : vector<2x4x8x128xf32> to vector<64x128xf32>
    %24 = arith.truncf %23 : vector<64x128xf32> to vector<64x128xbf16>
    %c3 = arith.constant 3 : index
    %c0_25 = arith.constant 0 : index
    %c0_26 = arith.constant 0 : index
    %25 = vector.load %arg4[%c3, %c0_25, %c0_26] : memref<9x128x128xbf16, #tpu.memory_space<vmem>>, vector<1x128x128xbf16>
    %26 = vector.shape_cast %25 : vector<1x128x128xbf16> to vector<128x128xbf16>
    %cst_27 = arith.constant dense<0.000000e+00> : vector<64x128xf32>
    %27 = tpu.matmul %24, %26, %cst_27 {dimension_numbers = #tpu.dot_dimension_numbers<[1], [0], [0], [1], [0, 0, 1, 1], [], []>} : vector<64x128xbf16>, vector<128x128xbf16>, vector<64x128xf32> -> vector<64x128xf32>
    %28 = arith.addf %21, %27 : vector<64x128xf32>
    %c0_28 = arith.constant 0 : index
    %c0_29 = arith.constant 0 : index
    %c0_30 = arith.constant 0 : index
    %c0_31 = arith.constant 0 : index
    %29 = vector.load %arg3[%c0_28, %c0_29, %c0_30, %c0_31] : memref<2x5x9x128xf32, #tpu.memory_space<vmem>>, vector<2x4x8x128xf32>
    %30 = vector.shape_cast %29 : vector<2x4x8x128xf32> to vector<64x128xf32>
    %31 = arith.truncf %30 : vector<64x128xf32> to vector<64x128xbf16>
    %c4 = arith.constant 4 : index
    %c0_32 = arith.constant 0 : index
    %c0_33 = arith.constant 0 : index
    %32 = vector.load %arg4[%c4, %c0_32, %c0_33] : memref<9x128x128xbf16, #tpu.memory_space<vmem>>, vector<1x128x128xbf16>
    %33 = vector.shape_cast %32 : vector<1x128x128xbf16> to vector<128x128xbf16>
    %cst_34 = arith.constant dense<0.000000e+00> : vector<64x128xf32>
    %34 = tpu.matmul %31, %33, %cst_34 {dimension_numbers = #tpu.dot_dimension_numbers<[1], [0], [0], [1], [0, 0, 1, 1], [], []>} : vector<64x128xbf16>, vector<128x128xbf16>, vector<64x128xf32> -> vector<64x128xf32>
    %35 = arith.addf %28, %34 : vector<64x128xf32>
    %c0_35 = arith.constant 0 : index
    %c0_36 = arith.constant 0 : index
    %c1_37 = arith.constant 1 : index
    %c0_38 = arith.constant 0 : index
    %36 = vector.load %arg2[%c0_35, %c0_36, %c1_37, %c0_38] : memref<2x5x9x128xf32, #tpu.memory_space<vmem>>, vector<2x4x8x128xf32>
    %37 = vector.shape_cast %36 : vector<2x4x8x128xf32> to vector<64x128xf32>
    %38 = arith.truncf %37 : vector<64x128xf32> to vector<64x128xbf16>
    %c5 = arith.constant 5 : index
    %c0_39 = arith.constant 0 : index
    %c0_40 = arith.constant 0 : index
    %39 = vector.load %arg4[%c5, %c0_39, %c0_40] : memref<9x128x128xbf16, #tpu.memory_space<vmem>>, vector<1x128x128xbf16>
    %40 = vector.shape_cast %39 : vector<1x128x128xbf16> to vector<128x128xbf16>
    %cst_41 = arith.constant dense<0.000000e+00> : vector<64x128xf32>
    %41 = tpu.matmul %38, %40, %cst_41 {dimension_numbers = #tpu.dot_dimension_numbers<[1], [0], [0], [1], [0, 0, 1, 1], [], []>} : vector<64x128xbf16>, vector<128x128xbf16>, vector<64x128xf32> -> vector<64x128xf32>
    %42 = arith.addf %35, %41 : vector<64x128xf32>
    %c0_42 = arith.constant 0 : index
    %c1_43 = arith.constant 1 : index
    %c0_44 = arith.constant 0 : index
    %c0_45 = arith.constant 0 : index
    %43 = vector.load %arg0[%c0_42, %c1_43, %c0_44, %c0_45] : memref<2x5x9x128xf32, #tpu.memory_space<vmem>>, vector<2x4x8x128xf32>
    %44 = vector.shape_cast %43 : vector<2x4x8x128xf32> to vector<64x128xf32>
    %45 = arith.truncf %44 : vector<64x128xf32> to vector<64x128xbf16>
    %c6 = arith.constant 6 : index
    %c0_46 = arith.constant 0 : index
    %c0_47 = arith.constant 0 : index
    %46 = vector.load %arg4[%c6, %c0_46, %c0_47] : memref<9x128x128xbf16, #tpu.memory_space<vmem>>, vector<1x128x128xbf16>
    %47 = vector.shape_cast %46 : vector<1x128x128xbf16> to vector<128x128xbf16>
    %cst_48 = arith.constant dense<0.000000e+00> : vector<64x128xf32>
    %48 = tpu.matmul %45, %47, %cst_48 {dimension_numbers = #tpu.dot_dimension_numbers<[1], [0], [0], [1], [0, 0, 1, 1], [], []>} : vector<64x128xbf16>, vector<128x128xbf16>, vector<64x128xf32> -> vector<64x128xf32>
    %49 = arith.addf %42, %48 : vector<64x128xf32>
    %c0_49 = arith.constant 0 : index
    %c1_50 = arith.constant 1 : index
    %c0_51 = arith.constant 0 : index
    %c0_52 = arith.constant 0 : index
    %50 = vector.load %arg1[%c0_49, %c1_50, %c0_51, %c0_52] : memref<2x5x9x128xf32, #tpu.memory_space<vmem>>, vector<2x4x8x128xf32>
    %51 = vector.shape_cast %50 : vector<2x4x8x128xf32> to vector<64x128xf32>
    %52 = arith.truncf %51 : vector<64x128xf32> to vector<64x128xbf16>
    %c7 = arith.constant 7 : index
    %c0_53 = arith.constant 0 : index
    %c0_54 = arith.constant 0 : index
    %53 = vector.load %arg4[%c7, %c0_53, %c0_54] : memref<9x128x128xbf16, #tpu.memory_space<vmem>>, vector<1x128x128xbf16>
    %54 = vector.shape_cast %53 : vector<1x128x128xbf16> to vector<128x128xbf16>
    %cst_55 = arith.constant dense<0.000000e+00> : vector<64x128xf32>
    %55 = tpu.matmul %52, %54, %cst_55 {dimension_numbers = #tpu.dot_dimension_numbers<[1], [0], [0], [1], [0, 0, 1, 1], [], []>} : vector<64x128xbf16>, vector<128x128xbf16>, vector<64x128xf32> -> vector<64x128xf32>
    %56 = arith.addf %49, %55 : vector<64x128xf32>
    %c0_56 = arith.constant 0 : index
    %c1_57 = arith.constant 1 : index
    %c1_58 = arith.constant 1 : index
    %c0_59 = arith.constant 0 : index
    %57 = vector.load %arg0[%c0_56, %c1_57, %c1_58, %c0_59] : memref<2x5x9x128xf32, #tpu.memory_space<vmem>>, vector<2x4x8x128xf32>
    %58 = vector.shape_cast %57 : vector<2x4x8x128xf32> to vector<64x128xf32>
    %59 = arith.truncf %58 : vector<64x128xf32> to vector<64x128xbf16>
    %c8 = arith.constant 8 : index
    %c0_60 = arith.constant 0 : index
    %c0_61 = arith.constant 0 : index
    %60 = vector.load %arg4[%c8, %c0_60, %c0_61] : memref<9x128x128xbf16, #tpu.memory_space<vmem>>, vector<1x128x128xbf16>
    %61 = vector.shape_cast %60 : vector<1x128x128xbf16> to vector<128x128xbf16>
    %cst_62 = arith.constant dense<0.000000e+00> : vector<64x128xf32>
    %62 = tpu.matmul %59, %61, %cst_62 {dimension_numbers = #tpu.dot_dimension_numbers<[1], [0], [0], [1], [0, 0, 1, 1], [], []>} : vector<64x128xbf16>, vector<128x128xbf16>, vector<64x128xf32> -> vector<64x128xf32>
    %63 = arith.addf %56, %62 : vector<64x128xf32>
    %64 = tpu.iota {dimensions = array<i32: 0>} : vector<64x1xi32>
    %c8_i32 = arith.constant 8 : i32
    %c0_i32 = arith.constant 0 : i32
    %65 = arith.cmpi eq, %c8_i32, %c0_i32 : i32
    %c1_i32 = arith.constant 1 : i32
    %66 = arith.select %65, %c1_i32, %c8_i32 : i32
    %67 = vector.broadcast %66 : i32 to vector<64x1xi32>
    %68 = arith.remsi %64, %67 : vector<64x1xi32>
    %c0_i32_63 = arith.constant 0 : i32
    %69 = vector.broadcast %c0_i32_63 : i32 to vector<64x1xi32>
    %70 = arith.cmpi ne, %68, %69 : vector<64x1xi32>
    %c0_i32_64 = arith.constant 0 : i32
    %71 = vector.broadcast %c0_i32_64 : i32 to vector<64x1xi32>
    %72 = arith.cmpi slt, %68, %71 : vector<64x1xi32>
    %c0_i32_65 = arith.constant 0 : i32
    %73 = arith.cmpi slt, %66, %c0_i32_65 : i32
    %74 = vector.broadcast %73 : i1 to vector<64x1xi1>
    %75 = vector.broadcast %74 : vector<64x1xi1> to vector<64x1xi1>
    %76 = arith.xori %72, %75 : vector<64x1xi1>
    %77 = arith.andi %76, %70 : vector<64x1xi1>
    %78 = vector.broadcast %66 : i32 to vector<64x1xi32>
    %79 = arith.addi %68, %78 : vector<64x1xi32>
    %80 = arith.select %77, %79, %68 : vector<64x1xi1>, vector<64x1xi32>
    %c4_i32 = arith.constant 4 : i32
    %81 = vector.broadcast %c4_i32 : i32 to vector<64x1xi32>
    %82 = arith.cmpi slt, %80, %81 : vector<64x1xi32>
    %83 = arith.extui %82 : vector<64x1xi1> to vector<64x1xi32>
    %84 = arith.sitofp %83 : vector<64x1xi32> to vector<64x1xf32>
    %85 = vector.broadcast %84 : vector<64x1xf32> to vector<64x128xf32>
    %86 = arith.mulf %63, %85 : vector<64x128xf32>
    %cst_66 = arith.constant dense<0.000000e+00> : vector<128xf32>
    %87 = vector.multi_reduction <add>, %86, %cst_66 [0] : vector<64x128xf32> to vector<128xf32>
    %88 = vector.shape_cast %87 : vector<128xf32> to vector<1x128xf32>
    %89 = arith.mulf %63, %63 : vector<64x128xf32>
    %90 = vector.broadcast %84 : vector<64x1xf32> to vector<64x128xf32>
    %91 = arith.mulf %89, %90 : vector<64x128xf32>
    %cst_67 = arith.constant dense<0.000000e+00> : vector<128xf32>
    %92 = vector.multi_reduction <add>, %91, %cst_67 [0] : vector<64x128xf32> to vector<128xf32>
    %93 = vector.shape_cast %92 : vector<128xf32> to vector<1x128xf32>
    %cst_68 = arith.constant 3.125000e-02 : f32
    %94 = vector.broadcast %cst_68 : f32 to vector<1x128xf32>
    %95 = arith.mulf %88, %94 : vector<1x128xf32>
    %cst_69 = arith.constant 3.125000e-02 : f32
    %96 = vector.broadcast %cst_69 : f32 to vector<1x128xf32>
    %97 = arith.mulf %93, %96 : vector<1x128xf32>
    %98 = arith.mulf %95, %95 : vector<1x128xf32>
    %99 = arith.subf %97, %98 : vector<1x128xf32>
    %c0_70 = arith.constant 0 : index
    %c0_71 = arith.constant 0 : index
    %100 = vector.load %arg5[%c0_70, %c0_71] : memref<1x128xf32, #tpu.memory_space<vmem>>, vector<1x128xf32>
    %cst_72 = arith.constant 9.99999974E-6 : f32
    %101 = vector.broadcast %cst_72 : f32 to vector<1x128xf32>
    %102 = arith.addf %99, %101 : vector<1x128xf32>
    %103 = math.rsqrt %102 : vector<1x128xf32>
    %104 = arith.mulf %100, %103 : vector<1x128xf32>
    %c0_73 = arith.constant 0 : index
    %c0_74 = arith.constant 0 : index
    %105 = vector.load %arg6[%c0_73, %c0_74] : memref<1x128xf32, #tpu.memory_space<vmem>>, vector<1x128xf32>
    %106 = arith.mulf %95, %104 : vector<1x128xf32>
    %107 = arith.subf %105, %106 : vector<1x128xf32>
    %108 = vector.broadcast %104 : vector<1x128xf32> to vector<64x128xf32>
    %109 = arith.mulf %63, %108 : vector<64x128xf32>
    %110 = vector.broadcast %107 : vector<1x128xf32> to vector<64x128xf32>
    %111 = arith.addf %109, %110 : vector<64x128xf32>
    %cst_75 = arith.constant 0.000000e+00 : f32
    %112 = vector.broadcast %cst_75 : f32 to vector<64x128xf32>
    %113 = arith.maximumf %111, %112 : vector<64x128xf32>
    %114 = vector.broadcast %84 : vector<64x1xf32> to vector<64x128xf32>
    %115 = arith.mulf %113, %114 : vector<64x128xf32>
    %c0_76 = arith.constant 0 : index
    %c0_77 = arith.constant 0 : index
    %116 = vector.load %arg7[%c0_76, %c0_77] : memref<64x128xf32, #tpu.memory_space<vmem>>, vector<64x128xf32>
    tpu.vector_store %arg7[%c0_76, %c0_77], %115 {strides = array<i32>} : memref<64x128xf32, #tpu.memory_space<vmem>>, vector<64x128xf32>,
    return
  }
}

</mosaic_0001>

<llo_original>
// kernel: _lambda_.3
$region0: #{_lambda_.3}
  #allocation0 [shape = 'u32[]', space=smem, size = 0x4, offset = 0x4, fixed_abs, tag = 'smem constant byte address 0x4 - core index']
  #allocation1 [shape = 'u32[144,128]{1,0:T(1,128)}', space=vmem, size = 0x12000, scoped, tag = 'internal scratch']
  %s0 = inlined_call_operand.vmem [shape: f32[2,5,9,128], index: 0, kind: input, shape index: {}]
  %s1 = inlined_call_operand.vmem [shape: f32[2,5,9,128], index: 1, kind: input, shape index: {}]
  %s2 = inlined_call_operand.vmem [shape: f32[2,5,9,128], index: 2, kind: input, shape index: {}]
  %s3 = inlined_call_operand.vmem [shape: f32[2,5,9,128], index: 3, kind: input, shape index: {}]
  %s4 = inlined_call_operand.vmem [shape: bf16[9,128,128], index: 4, kind: input, shape index: {}]
  %s5 = inlined_call_operand.vmem [shape: f32[1,128], index: 5, kind: input, shape index: {}]
  %s6 = inlined_call_operand.vmem [shape: f32[1,128], index: 6, kind: input, shape index: {}]
  %s7 = inlined_call_operand.vmem [shape: f32[64,128], index: 7, kind: output, shape index: {}]
  %s8 = sld [smem:[#allocation0]]
  $region38: #{_lambda_.3} parent=0
    _
  %s10 = ssub.s32 1, %s8
  %s11 = scalar_select 0, %s10, %s8
  // Predicated region
  $region2: #{_lambda_.3} parent=0 // pred_check
    _
  $region3: #{_lambda_.3} parent=0 // pred_check_branch
    %13 = sbr.rel (0) target = $region5
  $region4: #{_lambda_.3} parent=0 // pred_region
    _
  $region5: #{_lambda_.3} parent=0 // pred_fallthru
    _
  // Predicated region
  $region6: #{_lambda_.3} parent=0 // pred_check
    _
  $region7: #{_lambda_.3} parent=0 // pred_check_branch
    %15 = sbr.rel (0) target = $region9
  $region8: #{_lambda_.3} parent=0 // pred_region
    _
  $region9: #{_lambda_.3} parent=0 // pred_fallthru
    _
  // Predicated region
  $region10: #{_lambda_.3} parent=0 // pred_check
    _
  $region11: #{_lambda_.3} parent=0 // pred_check_branch
    %17 = sbr.rel (0) target = $region13
  $region12: #{_lambda_.3} parent=0 // pred_region
    _
  $region13: #{_lambda_.3} parent=0 // pred_fallthru
    _
  // Predicated region
  $region14: #{_lambda_.3} parent=0 // pred_check
    _
  $region15: #{_lambda_.3} parent=0 // pred_check_branch
    %19 = sbr.rel (0) target = $region17
  $region16: #{_lambda_.3} parent=0 // pred_region
    _
  $region17: #{_lambda_.3} parent=0 // pred_fallthru
    _
  // Predicated region
  $region18: #{_lambda_.3} parent=0 // pred_check
    _
  $region19: #{_lambda_.3} parent=0 // pred_check_branch
    %21 = sbr.rel (0) target = $region21
  $region20: #{_lambda_.3} parent=0 // pred_region
    _
  $region21: #{_lambda_.3} parent=0 // pred_fallthru
    _
  // Predicated region
  $region22: #{_lambda_.3} parent=0 // pred_check
    _
  $region23: #{_lambda_.3} parent=0 // pred_check_branch
    %23 = sbr.rel (0) target = $region25
  $region24: #{_lambda_.3} parent=0 // pred_region
    _
  $region25: #{_lambda_.3} parent=0 // pred_fallthru
    _
  // Predicated region
  $region26: #{_lambda_.3} parent=0 // pred_check
    _
  $region27: #{_lambda_.3} parent=0 // pred_check_branch
    %25 = sbr.rel (0) target = $region29
  $region28: #{_lambda_.3} parent=0 // pred_region
    _
  $region29: #{_lambda_.3} parent=0 // pred_fallthru
    _
  %v27 = vld [vmem:[%s0] sm:$0xff]
  %v28 = vld [vmem:[%s0 + $0x10] sm:$0xff]
  %v29 = vld [vmem:[%s0 + $0x20] sm:$0xff]
  %v30 = vld [vmem:[%s0 + $0x30] sm:$0xff]
  %v31 = vld [vmem:[%s0 + $0x50] sm:$0xff]
  %v32 = vld [vmem:[%s0 + $0x60] sm:$0xff]
  %v33 = vld [vmem:[%s0 + $0x70] sm:$0xff]
  %v34 = vld [vmem:[%s0 + $0x80] sm:$0xff]
  %v35 = vpack.c.bf16 %v28, %v27
  %v36 = vpack.c.bf16 %v30, %v29
  %v37 = vpack.c.bf16 %v32, %v31
  %v38 = vpack.c.bf16 %v34, %v33
  %v39 = vld [vmem:[%s4] sm:$0xf]
  %v40 = vld [vmem:[%s4 + $0x4] sm:$0xf]
  %v41 = vld [vmem:[%s4 + $0x8] sm:$0xf]
  %v42 = vld [vmem:[%s4 + $0xc] sm:$0xf]
  %v43 = vld [vmem:[%s4 + $0x10] sm:$0xf]
  %v44 = vld [vmem:[%s4 + $0x14] sm:$0xf]
  %v45 = vld [vmem:[%s4 + $0x18] sm:$0xf]
  %v46 = vld [vmem:[%s4 + $0x1c] sm:$0xf]
  %v47 = vld [vmem:[%s4 + $0x20] sm:$0xf]
  %v48 = vld [vmem:[%s4 + $0x24] sm:$0xf]
  %v49 = vld [vmem:[%s4 + $0x28] sm:$0xf]
  %v50 = vld [vmem:[%s4 + $0x2c] sm:$0xf]
  %v51 = vld [vmem:[%s4 + $0x30] sm:$0xf]
  %v52 = vld [vmem:[%s4 + $0x34] sm:$0xf]
  %v53 = vld [vmem:[%s4 + $0x38] sm:$0xf]
  %v54 = vld [vmem:[%s4 + $0x3c] sm:$0xf]
  %v55 = vld [vmem:[%s1] sm:$0xff]
  %v56 = vld [vmem:[%s1 + $0x10] sm:$0xff]
  %v57 = vld [vmem:[%s1 + $0x20] sm:$0xff]
  %v58 = vld [vmem:[%s1 + $0x30] sm:$0xff]
  %v59 = vld [vmem:[%s1 + $0x50] sm:$0xff]
  %v60 = vld [vmem:[%s1 + $0x60] sm:$0xff]
  %v61 = vld [vmem:[%s1 + $0x70] sm:$0xff]
  %v62 = vld [vmem:[%s1 + $0x80] sm:$0xff]
  %v63 = vpack.c.bf16 %v56, %v55
  %v64 = vpack.c.bf16 %v58, %v57
  %v65 = vpack.c.bf16 %v60, %v59
  %v66 = vpack.c.bf16 %v62, %v61
  %s67 = scalar_lea.vmem %s4, 64
  %v68 = vld [vmem:[%s67] sm:$0xf]
  %v69 = vld [vmem:[%s67 + $0x4] sm:$0xf]
  %v70 = vld [vmem:[%s67 + $0x8] sm:$0xf]
  %v71 = vld [vmem:[%s67 + $0xc] sm:$0xf]
  %v72 = vld [vmem:[%s67 + $0x10] sm:$0xf]
  %v73 = vld [vmem:[%s67 + $0x14] sm:$0xf]
  %v74 = vld [vmem:[%s67 + $0x18] sm:$0xf]
  %v75 = vld [vmem:[%s67 + $0x1c] sm:$0xf]
  %v76 = vld [vmem:[%s67 + $0x20] sm:$0xf]
  %v77 = vld [vmem:[%s67 + $0x24] sm:$0xf]
  %v78 = vld [vmem:[%s67 + $0x28] sm:$0xf]
  %v79 = vld [vmem:[%s67 + $0x2c] sm:$0xf]
  %v80 = vld [vmem:[%s67 + $0x30] sm:$0xf]
  %v81 = vld [vmem:[%s67 + $0x34] sm:$0xf]
  %v82 = vld [vmem:[%s67 + $0x38] sm:$0xf]
  %v83 = vld [vmem:[%s67 + $0x3c] sm:$0xf]
  %v100 = vunpack.c.l.b16 %v68
  %v101 = vunpack.c.l.b16 %v69
  %v102 = vunpack.c.l.b16 %v70
  %v103 = vunpack.c.l.b16 %v71
  %v104 = vunpack.c.l.b16 %v72
  %v105 = vunpack.c.l.b16 %v73
  %v106 = vunpack.c.l.b16 %v74
  %v107 = vunpack.c.l.b16 %v75
  %v108 = vunpack.c.l.b16 %v76
  %v109 = vunpack.c.l.b16 %v77
  %v110 = vunpack.c.l.b16 %v78
  %v111 = vunpack.c.l.b16 %v79
  %v112 = vunpack.c.l.b16 %v80
  %v113 = vunpack.c.l.b16 %v81
  %v114 = vunpack.c.l.b16 %v82
  %v115 = vunpack.c.l.b16 %v83
  %v116 = vpack.c.b16 %v101, %v100
  %v117 = vpack.c.b16 %v103, %v102
  %v118 = vpack.c.b16 %v105, %v104
  %v119 = vpack.c.b16 %v107, %v106
  %v120 = vpack.c.b16 %v109, %v108
  %v121 = vpack.c.b16 %v111, %v110
  %v122 = vpack.c.b16 %v113, %v112
  %v123 = vpack.c.b16 %v115, %v114
  %132 = vmatprep.subr.bf16.mxu0 0
  %133 = vmatpush1.bf16.msra.mxu0 %v116
  %134 = vmatprep.subr.bf16.mxu0 0
  %135 = vmatpush1.bf16.msra.mxu0 %v117
  %136 = vmatprep.subr.bf16.mxu0 0
  %137 = vmatpush1.bf16.msra.mxu0 %v118
  %138 = vmatprep.subr.bf16.mxu0 0
  %139 = vmatpush1.bf16.msra.mxu0 %v119
  %140 = vmatprep.subr.bf16.mxu0 0
  %141 = vmatpush1.bf16.msra.mxu0 %v120
  %142 = vmatprep.subr.bf16.mxu0 0
  %143 = vmatpush1.bf16.msra.mxu0 %v121
  %144 = vmatprep.subr.bf16.mxu0 0
  %145 = vmatpush1.bf16.msra.mxu0 %v122
  %146 = vmatprep.subr.bf16.mxu0 0
  %147 = vmatpush1.bf16.msra.mxu0 %v123
  %148 = vmatprep.subr.bf16.mxu0 0
  %149 = vmatpush1.bf16.msra.mxu0 0
  %150 = vmatprep.subr.bf16.mxu0 0
  %151 = vmatpush1.bf16.msra.mxu0 0
  %152 = vmatprep.subr.bf16.mxu0 0
  %153 = vmatpush1.bf16.msra.mxu0 0
  %154 = vmatprep.subr.bf16.mxu0 0
  %155 = vmatpush1.bf16.msra.mxu0 0
  %156 = vmatprep.subr.bf16.mxu0 0
  %157 = vmatpush1.bf16.msra.mxu0 0
  %158 = vmatprep.subr.bf16.mxu0 0
  %159 = vmatpush1.bf16.msra.mxu0 0
  %160 = vmatprep.subr.bf16.mxu0 0
  %161 = vmatpush1.bf16.msra.mxu0 0
  %162 = vmatprep.subr.bf16.mxu0 0
  %163 = vmatpush1.bf16.msra.mxu0 0
  %164 = vmatprep.mubr.bf16.mxu0 0
  %165 = vmatmul.mubr.bf16.gmra.mrb[0].mxu0 %v63
  %v166 = vpop.f32.mrb[0].mxu0
  %v167 = vadd.f32 0.0, %v166
  %v168 = vpop.f32.mrb[0].mxu0
  %v169 = vpop.f32.mrb[0].mxu0
  %v170 = vadd.f32 0.0, %v169
  %v171 = vpop.f32.mrb[0].mxu0
  %172 = vmatprep.mubr.bf16.mxu0 0
  %173 = vmatmul.mubr.bf16.gmra.mrb[0].mxu0 %v64
  %v174 = vpop.f32.mrb[0].mxu0
  %v175 = vadd.f32 0.0, %v174
  %v176 = vpop.f32.mrb[0].mxu0
  %v177 = vpop.f32.mrb[0].mxu0
  %v178 = vadd.f32 0.0, %v177
  %v179 = vpop.f32.mrb[0].mxu0
  %180 = vmatprep.mubr.bf16.mxu0 0
  %181 = vmatmul.mubr.bf16.gmra.mrb[0].mxu0 %v65
  %v182 = vpop.f32.mrb[0].mxu0
  %v183 = vadd.f32 0.0, %v182
  %v184 = vpop.f32.mrb[0].mxu0
  %v185 = vpop.f32.mrb[0].mxu0
  %v186 = vadd.f32 0.0, %v185
  %v187 = vpop.f32.mrb[0].mxu0
  %188 = vmatprep.mubr.bf16.mxu0 0
  %189 = vmatmul.mubr.bf16.gmra.mrb[0].mxu0 %v66
  %v190 = vpop.f32.mrb[0].mxu0
  %v191 = vadd.f32 0.0, %v190
  %v192 = vpop.f32.mrb[0].mxu0
  %v193 = vpop.f32.mrb[0].mxu0
  %v194 = vadd.f32 0.0, %v193
  %v195 = vpop.f32.mrb[0].mxu0
  %196 = vdwg.mxu0
  %v213 = vunpack.c.l.b16 %v39
  %v214 = vunpack.c.l.b16 %v40
  %v215 = vunpack.c.l.b16 %v41
  %v216 = vunpack.c.l.b16 %v42
  %v217 = vunpack.c.l.b16 %v43
  %v218 = vunpack.c.l.b16 %v44
  %v219 = vunpack.c.l.b16 %v45
  %v220 = vunpack.c.l.b16 %v46
  %v221 = vunpack.c.l.b16 %v47
  %v222 = vunpack.c.l.b16 %v48
  %v223 = vunpack.c.l.b16 %v49
  %v224 = vunpack.c.l.b16 %v50
  %v225 = vunpack.c.l.b16 %v51
  %v226 = vunpack.c.l.b16 %v52
  %v227 = vunpack.c.l.b16 %v53
  %v228 = vunpack.c.l.b16 %v54
  %v229 = vpack.c.b16 %v214, %v213
  %v230 = vpack.c.b16 %v216, %v215
  %v231 = vpack.c.b16 %v218, %v217
  %v232 = vpack.c.b16 %v220, %v219
  %v233 = vpack.c.b16 %v222, %v221
  %v234 = vpack.c.b16 %v224, %v223
  %v235 = vpack.c.b16 %v226, %v225
  %v236 = vpack.c.b16 %v228, %v227
  %245 = vmatprep.subr.bf16.mxu0 0
  %246 = vmatpush1.bf16.msra.mxu0 %v229
  %247 = vmatprep.subr.bf16.mxu0 0
  %248 = vmatpush1.bf16.msra.mxu0 %v230
  %249 = vmatprep.subr.bf16.mxu0 0
  %250 = vmatpush1.bf16.msra.mxu0 %v231
  %251 = vmatprep.subr.bf16.mxu0 0
  %252 = vmatpush1.bf16.msra.mxu0 %v232
  %253 = vmatprep.subr.bf16.mxu0 0
  %254 = vmatpush1.bf16.msra.mxu0 %v233
  %255 = vmatprep.subr.bf16.mxu0 0
  %256 = vmatpush1.bf16.msra.mxu0 %v234
  %257 = vmatprep.subr.bf16.mxu0 0
  %258 = vmatpush1.bf16.msra.mxu0 %v235
  %259 = vmatprep.subr.bf16.mxu0 0
  %260 = vmatpush1.bf16.msra.mxu0 %v236
  %261 = vmatprep.subr.bf16.mxu0 0
  %262 = vmatpush1.bf16.msra.mxu0 0
  %263 = vmatprep.subr.bf16.mxu0 0
  %264 = vmatpush1.bf16.msra.mxu0 0
  %265 = vmatprep.subr.bf16.mxu0 0
  %266 = vmatpush1.bf16.msra.mxu0 0
  %267 = vmatprep.subr.bf16.mxu0 0
  %268 = vmatpush1.bf16.msra.mxu0 0
  %269 = vmatprep.subr.bf16.mxu0 0
  %270 = vmatpush1.bf16.msra.mxu0 0
  %271 = vmatprep.subr.bf16.mxu0 0
  %272 = vmatpush1.bf16.msra.mxu0 0
  %273 = vmatprep.subr.bf16.mxu0 0
  %274 = vmatpush1.bf16.msra.mxu0 0
  %275 = vmatprep.subr.bf16.mxu0 0
  %276 = vmatpush1.bf16.msra.mxu0 0
  %277 = vmatprep.mubr.bf16.mxu0 0
  %278 = vmatmul.mubr.bf16.gmra.mrb[0].mxu0 %v35
  %v279 = vpop.f32.mrb[0].mxu0
  %v280 = vadd.f32 %v167, %v279
  %v281 = vpop.f32.mrb[0].mxu0
  %v282 = vpop.f32.mrb[0].mxu0
  %v283 = vadd.f32 %v170, %v282
  %v284 = vpop.f32.mrb[0].mxu0
  %285 = vmatprep.mubr.bf16.mxu0 0
  %286 = vmatmul.mubr.bf16.gmra.mrb[0].mxu0 %v36
  %v287 = vpop.f32.mrb[0].mxu0
  %v288 = vadd.f32 %v175, %v287
  %v289 = vpop.f32.mrb[0].mxu0
  %v290 = vpop.f32.mrb[0].mxu0
  %v291 = vadd.f32 %v178, %v290
  %v292 = vpop.f32.mrb[0].mxu0
  %293 = vmatprep.mubr.bf16.mxu0 0
  %294 = vmatmul.mubr.bf16.gmra.mrb[0].mxu0 %v37
  %v295 = vpop.f32.mrb[0].mxu0
  %v296 = vadd.f32 %v183, %v295
  %v297 = vpop.f32.mrb[0].mxu0
  %v298 = vpop.f32.mrb[0].mxu0
  %v299 = vadd.f32 %v186, %v298
  %v300 = vpop.f32.mrb[0].mxu0
  %301 = vmatprep.mubr.bf16.mxu0 0
  %302 = vmatmul.mubr.bf16.gmra.mrb[0].mxu0 %v38
  %v303 = vpop.f32.mrb[0].mxu0
  %v304 = vadd.f32 %v191, %v303
  %v305 = vpop.f32.mrb[0].mxu0
  %v306 = vpop.f32.mrb[0].mxu0
  %v307 = vadd.f32 %v194, %v306
  %v308 = vpop.f32.mrb[0].mxu0
  %309 = vdwg.mxu0
  %v310 = vld [vmem:[%s0 + $0x1] sm:$0xff]
  %v311 = vld [vmem:[%s0 + $0x11] sm:$0xff]
  %v312 = vld [vmem:[%s0 + $0x21] sm:$0xff]
  %v313 = vld [vmem:[%s0 + $0x31] sm:$0xff]
  %v314 = vld [vmem:[%s0 + $0x51] sm:$0xff]
  %v315 = vld [vmem:[%s0 + $0x61] sm:$0xff]
  %v316 = vld [vmem:[%s0 + $0x71] sm:$0xff]
  %v317 = vld [vmem:[%s0 + $0x81] sm:$0xff]
  %v318 = vpack.c.bf16 %v311, %v310
  %v319 = vpack.c.bf16 %v313, %v312
  %v320 = vpack.c.bf16 %v315, %v314
  %v321 = vpack.c.bf16 %v317, %v316
  %s322 = scalar_lea.vmem %s4, 128
  %v323 = vld [vmem:[%s322] sm:$0xf]
  %v324 = vld [vmem:[%s322 + $0x4] sm:$0xf]
  %v325 = vld [vmem:[%s322 + $0x8] sm:$0xf]
  %v326 = vld [vmem:[%s322 + $0xc] sm:$0xf]
  %v327 = vld [vmem:[%s322 + $0x10] sm:$0xf]
  %v328 = vld [vmem:[%s322 + $0x14] sm:$0xf]
  %v329 = vld [vmem:[%s322 + $0x18] sm:$0xf]
  %v330 = vld [vmem:[%s322 + $0x1c] sm:$0xf]
  %v331 = vld [vmem:[%s322 + $0x20] sm:$0xf]
  %v332 = vld [vmem:[%s322 + $0x24] sm:$0xf]
  %v333 = vld [vmem:[%s322 + $0x28] sm:$0xf]
  %v334 = vld [vmem:[%s322 + $0x2c] sm:$0xf]
  %v335 = vld [vmem:[%s322 + $0x30] sm:$0xf]
  %v336 = vld [vmem:[%s322 + $0x34] sm:$0xf]
  %v337 = vld [vmem:[%s322 + $0x38] sm:$0xf]
  %v338 = vld [vmem:[%s322 + $0x3c] sm:$0xf]
  %v355 = vunpack.c.l.b16 %v323
  %v356 = vunpack.c.l.b16 %v324
  %v357 = vunpack.c.l.b16 %v325
  %v358 = vunpack.c.l.b16 %v326
  %v359 = vunpack.c.l.b16 %v327
  %v360 = vunpack.c.l.b16 %v328
  %v361 = vunpack.c.l.b16 %v329
  %v362 = vunpack.c.l.b16 %v330
  %v363 = vunpack.c.l.b16 %v331
  %v364 = vunpack.c.l.b16 %v332
  %v365 = vunpack.c.l.b16 %v333
  %v366 = vunpack.c.l.b16 %v334
  %v367 = vunpack.c.l.b16 %v335
  %v368 = vunpack.c.l.b16 %v336
  %v369 = vunpack.c.l.b16 %v337
  %v370 = vunpack.c.l.b16 %v338
  %v371 = vpack.c.b16 %v356, %v355
  %v372 = vpack.c.b16 %v358, %v357
  %v373 = vpack.c.b16 %v360, %v359
  %v374 = vpack.c.b16 %v362, %v361
  %v375 = vpack.c.b16 %v364, %v363
  %v376 = vpack.c.b16 %v366, %v365
  %v377 = vpack.c.b16 %v368, %v367
  %v378 = vpack.c.b16 %v370, %v369
  %387 = vmatprep.subr.bf16.mxu0 0
  %388 = vmatpush1.bf16.msra.mxu0 %v371
  %389 = vmatprep.subr.bf16.mxu0 0
  %390 = vmatpush1.bf16.msra.mxu0 %v372
  %391 = vmatprep.subr.bf16.mxu0 0
  %392 = vmatpush1.bf16.msra.mxu0 %v373
  %393 = vmatprep.subr.bf16.mxu0 0
  %394 = vmatpush1.bf16.msra.mxu0 %v374
  %395 = vmatprep.subr.bf16.mxu0 0
  %396 = vmatpush1.bf16.msra.mxu0 %v375
  %397 = vmatprep.subr.bf16.mxu0 0
  %398 = vmatpush1.bf16.msra.mxu0 %v376
  %399 = vmatprep.subr.bf16.mxu0 0
  %400 = vmatpush1.bf16.msra.mxu0 %v377
  %401 = vmatprep.subr.bf16.mxu0 0
  %402 = vmatpush1.bf16.msra.mxu0 %v378
  %403 = vmatprep.subr.bf16.mxu0 0
  %404 = vmatpush1.bf16.msra.mxu0 0
  %405 = vmatprep.subr.bf16.mxu0 0
  %406 = vmatpush1.bf16.msra.mxu0 0
  %407 = vmatprep.subr.bf16.mxu0 0
  %408 = vmatpush1.bf16.msra.mxu0 0
  %409 = vmatprep.subr.bf16.mxu0 0
  %410 = vmatpush1.bf16.msra.mxu0 0
  %411 = vmatprep.subr.bf16.mxu0 0
  %412 = vmatpush1.bf16.msra.mxu0 0
  %413 = vmatprep.subr.bf16.mxu0 0
  %414 = vmatpush1.bf16.msra.mxu0 0
  %415 = vmatprep.subr.bf16.mxu0 0
  %416 = vmatpush1.bf16.msra.mxu0 0
  %417 = vmatprep.subr.bf16.mxu0 0
  %418 = vmatpush1.bf16.msra.mxu0 0
  %419 = vmatprep.mubr.bf16.mxu0 0
  %420 = vmatmul.mubr.bf16.gmra.mrb[0].mxu0 %v318
  %v421 = vpop.f32.mrb[0].mxu0
  %v422 = vadd.f32 0.0, %v421
  %v423 = vpop.f32.mrb[0].mxu0
  %v424 = vpop.f32.mrb[0].mxu0
  %v425 = vadd.f32 0.0, %v424
  %v426 = vpop.f32.mrb[0].mxu0
  %427 = vmatprep.mubr.bf16.mxu0 0
  %428 = vmatmul.mubr.bf16.gmra.mrb[0].mxu0 %v319
  %v429 = vpop.f32.mrb[0].mxu0
  %v430 = vadd.f32 0.0, %v429
  %v431 = vpop.f32.mrb[0].mxu0
  %v432 = vpop.f32.mrb[0].mxu0
  %v433 = vadd.f32 0.0, %v432
  %v434 = vpop.f32.mrb[0].mxu0
  %435 = vmatprep.mubr.bf16.mxu0 0
  %436 = vmatmul.mubr.bf16.gmra.mrb[0].mxu0 %v320
  %v437 = vpop.f32.mrb[0].mxu0
  %v438 = vadd.f32 0.0, %v437
  %v439 = vpop.f32.mrb[0].mxu0
  %v440 = vpop.f32.mrb[0].mxu0
  %v441 = vadd.f32 0.0, %v440
  %v442 = vpop.f32.mrb[0].mxu0
  %443 = vmatprep.mubr.bf16.mxu0 0
  %444 = vmatmul.mubr.bf16.gmra.mrb[0].mxu0 %v321
  %v445 = vpop.f32.mrb[0].mxu0
  %v446 = vadd.f32 0.0, %v445
  %v447 = vpop.f32.mrb[0].mxu0
  %v448 = vpop.f32.mrb[0].mxu0
  %v449 = vadd.f32 0.0, %v448
  %v450 = vpop.f32.mrb[0].mxu0
  %451 = vdwg.mxu0
  %v452 = vadd.f32 %v280, %v422
  %v453 = vadd.f32 %v283, %v425
  %v454 = vadd.f32 %v288, %v430
  %v455 = vadd.f32 %v291, %v433
  %v456 = vadd.f32 %v296, %v438
  %v457 = vadd.f32 %v299, %v441
  %v458 = vadd.f32 %v304, %v446
  %v459 = vadd.f32 %v307, %v449
  %v460 = vld [vmem:[%s2] sm:$0xff]
  %v461 = vld [vmem:[%s2 + $0x10] sm:$0xff]
  %v462 = vld [vmem:[%s2 + $0x20] sm:$0xff]
  %v463 = vld [vmem:[%s2 + $0x30] sm:$0xff]
  %v464 = vld [vmem:[%s2 + $0x50] sm:$0xff]
  %v465 = vld [vmem:[%s2 + $0x60] sm:$0xff]
  %v466 = vld [vmem:[%s2 + $0x70] sm:$0xff]
  %v467 = vld [vmem:[%s2 + $0x80] sm:$0xff]
  %v468 = vpack.c.bf16 %v461, %v460
  %v469 = vpack.c.bf16 %v463, %v462
  %v470 = vpack.c.bf16 %v465, %v464
  %v471 = vpack.c.bf16 %v467, %v466
  %s472 = scalar_lea.vmem %s4, 192
  %v473 = vld [vmem:[%s472] sm:$0xf]
  %v474 = vld [vmem:[%s472 + $0x4] sm:$0xf]
  %v475 = vld [vmem:[%s472 + $0x8] sm:$0xf]
  %v476 = vld [vmem:[%s472 + $0xc] sm:$0xf]
  %v477 = vld [vmem:[%s472 + $0x10] sm:$0xf]
  %v478 = vld [vmem:[%s472 + $0x14] sm:$0xf]
  %v479 = vld [vmem:[%s472 + $0x18] sm:$0xf]
  %v480 = vld [vmem:[%s472 + $0x1c] sm:$0xf]
  %v481 = vld [vmem:[%s472 + $0x20] sm:$0xf]
  %v482 = vld [vmem:[%s472 + $0x24] sm:$0xf]
  %v483 = vld [vmem:[%s472 + $0x28] sm:$0xf]
  %v484 = vld [vmem:[%s472 + $0x2c] sm:$0xf]
  %v485 = vld [vmem:[%s472 + $0x30] sm:$0xf]
  %v486 = vld [vmem:[%s472 + $0x34] sm:$0xf]
  %v487 = vld [vmem:[%s472 + $0x38] sm:$0xf]
  %v488 = vld [vmem:[%s472 + $0x3c] sm:$0xf]
  %v505 = vunpack.c.l.b16 %v473
  %v506 = vunpack.c.l.b16 %v474
  %v507 = vunpack.c.l.b16 %v475
  %v508 = vunpack.c.l.b16 %v476
  %v509 = vunpack.c.l.b16 %v477
  %v510 = vunpack.c.l.b16 %v478
  %v511 = vunpack.c.l.b16 %v479
  %v512 = vunpack.c.l.b16 %v480
  %v513 = vunpack.c.l.b16 %v481
  %v514 = vunpack.c.l.b16 %v482
  %v515 = vunpack.c.l.b16 %v483
  %v516 = vunpack.c.l.b16 %v484
  %v517 = vunpack.c.l.b16 %v485
  %v518 = vunpack.c.l.b16 %v486
  %v519 = vunpack.c.l.b16 %v487
  %v520 = vunpack.c.l.b16 %v488
  %v521 = vpack.c.b16 %v506, %v505
  %v522 = vpack.c.b16 %v508, %v507
  %v523 = vpack.c.b16 %v510, %v509
  %v524 = vpack.c.b16 %v512, %v511
  %v525 = vpack.c.b16 %v514, %v513
  %v526 = vpack.c.b16 %v516, %v515
  %v527 = vpack.c.b16 %v518, %v517
  %v528 = vpack.c.b16 %v520, %v519
  %537 = vmatprep.subr.bf16.mxu0 0
  %538 = vmatpush1.bf16.msra.mxu0 %v521
  %539 = vmatprep.subr.bf16.mxu0 0
  %540 = vmatpush1.bf16.msra.mxu0 %v522
  %541 = vmatprep.subr.bf16.mxu0 0
  %542 = vmatpush1.bf16.msra.mxu0 %v523
  %543 = vmatprep.subr.bf16.mxu0 0
  %544 = vmatpush1.bf16.msra.mxu0 %v524
  %545 = vmatprep.subr.bf16.mxu0 0
  %546 = vmatpush1.bf16.msra.mxu0 %v525
  %547 = vmatprep.subr.bf16.mxu0 0
  %548 = vmatpush1.bf16.msra.mxu0 %v526
  %549 = vmatprep.subr.bf16.mxu0 0
  %550 = vmatpush1.bf16.msra.mxu0 %v527
  %551 = vmatprep.subr.bf16.mxu0 0
  %552 = vmatpush1.bf16.msra.mxu0 %v528
  %553 = vmatprep.subr.bf16.mxu0 0
  %554 = vmatpush1.bf16.msra.mxu0 0
  %555 = vmatprep.subr.bf16.mxu0 0
  %556 = vmatpush1.bf16.msra.mxu0 0
  %557 = vmatprep.subr.bf16.mxu0 0
  %558 = vmatpush1.bf16.msra.mxu0 0
  %559 = vmatprep.subr.bf16.mxu0 0
  %560 = vmatpush1.bf16.msra.mxu0 0
  %561 = vmatprep.subr.bf16.mxu0 0
  %562 = vmatpush1.bf16.msra.mxu0 0
  %563 = vmatprep.subr.bf16.mxu0 0
  %564 = vmatpush1.bf16.msra.mxu0 0
  %565 = vmatprep.subr.bf16.mxu0 0
  %566 = vmatpush1.bf16.msra.mxu0 0
  %567 = vmatprep.subr.bf16.mxu0 0
  %568 = vmatpush1.bf16.msra.mxu0 0
  %569 = vmatprep.mubr.bf16.mxu0 0
  %570 = vmatmul.mubr.bf16.gmra.mrb[0].mxu0 %v468
  %v571 = vpop.f32.mrb[0].mxu0
  %v572 = vadd.f32 0.0, %v571
  %v573 = vpop.f32.mrb[0].mxu0
  %v574 = vpop.f32.mrb[0].mxu0
  %v575 = vadd.f32 0.0, %v574
  %v576 = vpop.f32.mrb[0].mxu0
  %577 = vmatprep.mubr.bf16.mxu0 0
  %578 = vmatmul.mubr.bf16.gmra.mrb[0].mxu0 %v469
  %v579 = vpop.f32.mrb[0].mxu0
  %v580 = vadd.f32 0.0, %v579
  %v581 = vpop.f32.mrb[0].mxu0
  %v582 = vpop.f32.mrb[0].mxu0
  %v583 = vadd.f32 0.0, %v582
  %v584 = vpop.f32.mrb[0].mxu0
  %585 = vmatprep.mubr.bf16.mxu0 0
  %586 = vmatmul.mubr.bf16.gmra.mrb[0].mxu0 %v470
  %v587 = vpop.f32.mrb[0].mxu0
  %v588 = vadd.f32 0.0, %v587
  %v589 = vpop.f32.mrb[0].mxu0
  %v590 = vpop.f32.mrb[0].mxu0
  %v591 = vadd.f32 0.0, %v590
  %v592 = vpop.f32.mrb[0].mxu0
  %593 = vmatprep.mubr.bf16.mxu0 0
  %594 = vmatmul.mubr.bf16.gmra.mrb[0].mxu0 %v471
  %v595 = vpop.f32.mrb[0].mxu0
  %v596 = vadd.f32 0.0, %v595
  %v597 = vpop.f32.mrb[0].mxu0
  %v598 = vpop.f32.mrb[0].mxu0
  %v599 = vadd.f32 0.0, %v598
  %v600 = vpop.f32.mrb[0].mxu0
  %601 = vdwg.mxu0
  %v602 = vadd.f32 %v452, %v572
  %v603 = vadd.f32 %v453, %v575
  %v604 = vadd.f32 %v454, %v580
  %v605 = vadd.f32 %v455, %v583
  %v606 = vadd.f32 %v456, %v588
  %v607 = vadd.f32 %v457, %v591
  %v608 = vadd.f32 %v458, %v596
  %v609 = vadd.f32 %v459, %v599
  %v610 = vld [vmem:[%s3] sm:$0xff]
  %v611 = vld [vmem:[%s3 + $0x10] sm:$0xff]
  %v612 = vld [vmem:[%s3 + $0x20] sm:$0xff]
  %v613 = vld [vmem:[%s3 + $0x30] sm:$0xff]
  %v614 = vld [vmem:[%s3 + $0x50] sm:$0xff]
  %v615 = vld [vmem:[%s3 + $0x60] sm:$0xff]
  %v616 = vld [vmem:[%s3 + $0x70] sm:$0xff]
  %v617 = vld [vmem:[%s3 + $0x80] sm:$0xff]
  %v618 = vpack.c.bf16 %v611, %v610
  %v619 = vpack.c.bf16 %v613, %v612
  %v620 = vpack.c.bf16 %v615, %v614
  %v621 = vpack.c.bf16 %v617, %v616
  %s622 = scalar_lea.vmem %s4, 256
  %v623 = vld [vmem:[%s622] sm:$0xf]
  %v624 = vld [vmem:[%s622 + $0x4] sm:$0xf]
  %v625 = vld [vmem:[%s622 + $0x8] sm:$0xf]
  %v626 = vld [vmem:[%s622 + $0xc] sm:$0xf]
  %v627 = vld [vmem:[%s622 + $0x10] sm:$0xf]
  %v628 = vld [vmem:[%s622 + $0x14] sm:$0xf]
  %v629 = vld [vmem:[%s622 + $0x18] sm:$0xf]
  %v630 = vld [vmem:[%s622 + $0x1c] sm:$0xf]
  %v631 = vld [vmem:[%s622 + $0x20] sm:$0xf]
  %v632 = vld [vmem:[%s622 + $0x24] sm:$0xf]
  %v633 = vld [vmem:[%s622 + $0x28] sm:$0xf]
  %v634 = vld [vmem:[%s622 + $0x2c] sm:$0xf]
  %v635 = vld [vmem:[%s622 + $0x30] sm:$0xf]
  %v636 = vld [vmem:[%s622 + $0x34] sm:$0xf]
  %v637 = vld [vmem:[%s622 + $0x38] sm:$0xf]
  %v638 = vld [vmem:[%s622 + $0x3c] sm:$0xf]
  %v655 = vunpack.c.l.b16 %v623
  %v656 = vunpack.c.l.b16 %v624
  %v657 = vunpack.c.l.b16 %v625
  %v658 = vunpack.c.l.b16 %v626
  %v659 = vunpack.c.l.b16 %v627
  %v660 = vunpack.c.l.b16 %v628
  %v661 = vunpack.c.l.b16 %v629
  %v662 = vunpack.c.l.b16 %v630
  %v663 = vunpack.c.l.b16 %v631
  %v664 = vunpack.c.l.b16 %v632
  %v665 = vunpack.c.l.b16 %v633
  %v666 = vunpack.c.l.b16 %v634
  %v667 = vunpack.c.l.b16 %v635
  %v668 = vunpack.c.l.b16 %v636
  %v669 = vunpack.c.l.b16 %v637
  %v670 = vunpack.c.l.b16 %v638
  %v671 = vpack.c.b16 %v656, %v655
  %v672 = vpack.c.b16 %v658, %v657
  %v673 = vpack.c.b16 %v660, %v659
  %v674 = vpack.c.b16 %v662, %v661
  %v675 = vpack.c.b16 %v664, %v663
  %v676 = vpack.c.b16 %v666, %v665
  %v677 = vpack.c.b16 %v668, %v667
  %v678 = vpack.c.b16 %v670, %v669
  %687 = vmatprep.subr.bf16.mxu0 0
  %688 = vmatpush1.bf16.msra.mxu0 %v671
  %689 = vmatprep.subr.bf16.mxu0 0
  %690 = vmatpush1.bf16.msra.mxu0 %v672
  %691 = vmatprep.subr.bf16.mxu0 0
  %692 = vmatpush1.bf16.msra.mxu0 %v673
  %693 = vmatprep.subr.bf16.mxu0 0
  %694 = vmatpush1.bf16.msra.mxu0 %v674
  %695 = vmatprep.subr.bf16.mxu0 0
  %696 = vmatpush1.bf16.msra.mxu0 %v675
  %697 = vmatprep.subr.bf16.mxu0 0
  %698 = vmatpush1.bf16.msra.mxu0 %v676
  %699 = vmatprep.subr.bf16.mxu0 0
  %700 = vmatpush1.bf16.msra.mxu0 %v677
  %701 = vmatprep.subr.bf16.mxu0 0
  %702 = vmatpush1.bf16.msra.mxu0 %v678
  %703 = vmatprep.subr.bf16.mxu0 0
  %704 = vmatpush1.bf16.msra.mxu0 0
  %705 = vmatprep.subr.bf16.mxu0 0
  %706 = vmatpush1.bf16.msra.mxu0 0
  %707 = vmatprep.subr.bf16.mxu0 0
  %708 = vmatpush1.bf16.msra.mxu0 0
  %709 = vmatprep.subr.bf16.mxu0 0
  %710 = vmatpush1.bf16.msra.mxu0 0
  %711 = vmatprep.subr.bf16.mxu0 0
  %712 = vmatpush1.bf16.msra.mxu0 0
  %713 = vmatprep.subr.bf16.mxu0 0
  %714 = vmatpush1.bf16.msra.mxu0 0
  %715 = vmatprep.subr.bf16.mxu0 0
  %716 = vmatpush1.bf16.msra.mxu0 0
  %717 = vmatprep.subr.bf16.mxu0 0
  %718 = vmatpush1.bf16.msra.mxu0 0
  %719 = vmatprep.mubr.bf16.mxu0 0
  %720 = vmatmul.mubr.bf16.gmra.mrb[0].mxu0 %v618
  %v721 = vpop.f32.mrb[0].mxu0
  %v722 = vadd.f32 0.0, %v721
  %v723 = vpop.f32.mrb[0].mxu0
  %v724 = vpop.f32.mrb[0].mxu0
  %v725 = vadd.f32 0.0, %v724
  %v726 = vpop.f32.mrb[0].mxu0
  %727 = vmatprep.mubr.bf16.mxu0 0
  %728 = vmatmul.mubr.bf16.gmra.mrb[0].mxu0 %v619
  %v729 = vpop.f32.mrb[0].mxu0
  %v730 = vadd.f32 0.0, %v729
  %v731 = vpop.f32.mrb[0].mxu0
  %v732 = vpop.f32.mrb[0].mxu0
  %v733 = vadd.f32 0.0, %v732
  %v734 = vpop.f32.mrb[0].mxu0
  %735 = vmatprep.mubr.bf16.mxu0 0
  %736 = vmatmul.mubr.bf16.gmra.mrb[0].mxu0 %v620
  %v737 = vpop.f32.mrb[0].mxu0
  %v738 = vadd.f32 0.0, %v737
  %v739 = vpop.f32.mrb[0].mxu0
  %v740 = vpop.f32.mrb[0].mxu0
  %v741 = vadd.f32 0.0, %v740
  %v742 = vpop.f32.mrb[0].mxu0
  %743 = vmatprep.mubr.bf16.mxu0 0
  %744 = vmatmul.mubr.bf16.gmra.mrb[0].mxu0 %v621
  %v745 = vpop.f32.mrb[0].mxu0
  %v746 = vadd.f32 0.0, %v745
  %v747 = vpop.f32.mrb[0].mxu0
  %v748 = vpop.f32.mrb[0].mxu0
  %v749 = vadd.f32 0.0, %v748
  %v750 = vpop.f32.mrb[0].mxu0
  %751 = vdwg.mxu0
  %v752 = vadd.f32 %v602, %v722
  %v753 = vadd.f32 %v603, %v725
  %v754 = vadd.f32 %v604, %v730
  %v755 = vadd.f32 %v605, %v733
  %v756 = vadd.f32 %v606, %v738
  %v757 = vadd.f32 %v607, %v741
  %v758 = vadd.f32 %v608, %v746
  %v759 = vadd.f32 %v609, %v749
  %v760 = vld [vmem:[%s2 + $0x1] sm:$0xff]
  %v761 = vld [vmem:[%s2 + $0x11] sm:$0xff]
  %v762 = vld [vmem:[%s2 + $0x21] sm:$0xff]
  %v763 = vld [vmem:[%s2 + $0x31] sm:$0xff]
  %v764 = vld [vmem:[%s2 + $0x51] sm:$0xff]
  %v765 = vld [vmem:[%s2 + $0x61] sm:$0xff]
  %v766 = vld [vmem:[%s2 + $0x71] sm:$0xff]
  %v767 = vld [vmem:[%s2 + $0x81] sm:$0xff]
  %v768 = vpack.c.bf16 %v761, %v760
  %v769 = vpack.c.bf16 %v763, %v762
  %v770 = vpack.c.bf16 %v765, %v764
  %v771 = vpack.c.bf16 %v767, %v766
  %s772 = scalar_lea.vmem %s4, 320
  %v773 = vld [vmem:[%s772] sm:$0xf]
  %v774 = vld [vmem:[%s772 + $0x4] sm:$0xf]
  %v775 = vld [vmem:[%s772 + $0x8] sm:$0xf]
  %v776 = vld [vmem:[%s772 + $0xc] sm:$0xf]
  %v777 = vld [vmem:[%s772 + $0x10] sm:$0xf]
  %v778 = vld [vmem:[%s772 + $0x14] sm:$0xf]
  %v779 = vld [vmem:[%s772 + $0x18] sm:$0xf]
  %v780 = vld [vmem:[%s772 + $0x1c] sm:$0xf]
  %v781 = vld [vmem:[%s772 + $0x20] sm:$0xf]
  %v782 = vld [vmem:[%s772 + $0x24] sm:$0xf]
  %v783 = vld [vmem:[%s772 + $0x28] sm:$0xf]
  %v784 = vld [vmem:[%s772 + $0x2c] sm:$0xf]
  %v785 = vld [vmem:[%s772 + $0x30] sm:$0xf]
  %v786 = vld [vmem:[%s772 + $0x34] sm:$0xf]
  %v787 = vld [vmem:[%s772 + $0x38] sm:$0xf]
  %v788 = vld [vmem:[%s772 + $0x3c] sm:$0xf]
  %v805 = vunpack.c.l.b16 %v773
  %v806 = vunpack.c.l.b16 %v774
  %v807 = vunpack.c.l.b16 %v775
  %v808 = vunpack.c.l.b16 %v776
  %v809 = vunpack.c.l.b16 %v777
  %v810 = vunpack.c.l.b16 %v778
  %v811 = vunpack.c.l.b16 %v779
  %v812 = vunpack.c.l.b16 %v780
  %v813 = vunpack.c.l.b16 %v781
  %v814 = vunpack.c.l.b16 %v782
  %v815 = vunpack.c.l.b16 %v783
  %v816 = vunpack.c.l.b16 %v784
  %v817 = vunpack.c.l.b16 %v785
  %v818 = vunpack.c.l.b16 %v786
  %v819 = vunpack.c.l.b16 %v787
  %v820 = vunpack.c.l.b16 %v788
  %v821 = vpack.c.b16 %v806, %v805
  %v822 = vpack.c.b16 %v808, %v807
  %v823 = vpack.c.b16 %v810, %v809
  %v824 = vpack.c.b16 %v812, %v811
  %v825 = vpack.c.b16 %v814, %v813
  %v826 = vpack.c.b16 %v816, %v815
  %v827 = vpack.c.b16 %v818, %v817
  %v828 = vpack.c.b16 %v820, %v819
  %837 = vmatprep.subr.bf16.mxu0 0
  %838 = vmatpush1.bf16.msra.mxu0 %v821
  %839 = vmatprep.subr.bf16.mxu0 0
  %840 = vmatpush1.bf16.msra.mxu0 %v822
  %841 = vmatprep.subr.bf16.mxu0 0
  %842 = vmatpush1.bf16.msra.mxu0 %v823
  %843 = vmatprep.subr.bf16.mxu0 0
  %844 = vmatpush1.bf16.msra.mxu0 %v824
  %845 = vmatprep.subr.bf16.mxu0 0
  %846 = vmatpush1.bf16.msra.mxu0 %v825
  %847 = vmatprep.subr.bf16.mxu0 0
  %848 = vmatpush1.bf16.msra.mxu0 %v826
  %849 = vmatprep.subr.bf16.mxu0 0
  %850 = vmatpush1.bf16.msra.mxu0 %v827
  %851 = vmatprep.subr.bf16.mxu0 0
  %852 = vmatpush1.bf16.msra.mxu0 %v828
  %853 = vmatprep.subr.bf16.mxu0 0
  %854 = vmatpush1.bf16.msra.mxu0 0
  %855 = vmatprep.subr.bf16.mxu0 0
  %856 = vmatpush1.bf16.msra.mxu0 0
  %857 = vmatprep.subr.bf16.mxu0 0
  %858 = vmatpush1.bf16.msra.mxu0 0
  %859 = vmatprep.subr.bf16.mxu0 0
  %860 = vmatpush1.bf16.msra.mxu0 0
  %861 = vmatprep.subr.bf16.mxu0 0
  %862 = vmatpush1.bf16.msra.mxu0 0
  %863 = vmatprep.subr.bf16.mxu0 0
  %864 = vmatpush1.bf16.msra.mxu0 0
  %865 = vmatprep.subr.bf16.mxu0 0
  %866 = vmatpush1.bf16.msra.mxu0 0
  %867 = vmatprep.subr.bf16.mxu0 0
  %868 = vmatpush1.bf16.msra.mxu0 0
  %869 = vmatprep.mubr.bf16.mxu0 0
  %870 = vmatmul.mubr.bf16.gmra.mrb[0].mxu0 %v768
  %v871 = vpop.f32.mrb[0].mxu0
  %v872 = vadd.f32 0.0, %v871
  %v873 = vpop.f32.mrb[0].mxu0
  %v874 = vpop.f32.mrb[0].mxu0
  %v875 = vadd.f32 0.0, %v874
  %v876 = vpop.f32.mrb[0].mxu0
  %877 = vmatprep.mubr.bf16.mxu0 0
  %878 = vmatmul.mubr.bf16.gmra.mrb[0].mxu0 %v769
  %v879 = vpop.f32.mrb[0].mxu0
  %v880 = vadd.f32 0.0, %v879
  %v881 = vpop.f32.mrb[0].mxu0
  %v882 = vpop.f32.mrb[0].mxu0
  %v883 = vadd.f32 0.0, %v882
  %v884 = vpop.f32.mrb[0].mxu0
  %885 = vmatprep.mubr.bf16.mxu0 0
  %886 = vmatmul.mubr.bf16.gmra.mrb[0].mxu0 %v770
  %v887 = vpop.f32.mrb[0].mxu0
  %v888 = vadd.f32 0.0, %v887
  %v889 = vpop.f32.mrb[0].mxu0
  %v890 = vpop.f32.mrb[0].mxu0
  %v891 = vadd.f32 0.0, %v890
  %v892 = vpop.f32.mrb[0].mxu0
  %893 = vmatprep.mubr.bf16.mxu0 0
  %894 = vmatmul.mubr.bf16.gmra.mrb[0].mxu0 %v771
  %v895 = vpop.f32.mrb[0].mxu0
  %v896 = vadd.f32 0.0, %v895
  %v897 = vpop.f32.mrb[0].mxu0
  %v898 = vpop.f32.mrb[0].mxu0
  %v899 = vadd.f32 0.0, %v898
  %v900 = vpop.f32.mrb[0].mxu0
  %901 = vdwg.mxu0
  %v902 = vadd.f32 %v752, %v872
  %v903 = vadd.f32 %v753, %v875
  %v904 = vadd.f32 %v754, %v880
  %v905 = vadd.f32 %v755, %v883
  %v906 = vadd.f32 %v756, %v888
  %v907 = vadd.f32 %v757, %v891
  %v908 = vadd.f32 %v758, %v896
  %v909 = vadd.f32 %v759, %v899
  %s910 = scalar_lea.vmem %s0, 16
  %v911 = vld [vmem:[%s910] sm:$0xff]
  %v912 = vld [vmem:[%s910 + $0x10] sm:$0xff]
  %v913 = vld [vmem:[%s910 + $0x20] sm:$0xff]
  %v914 = vld [vmem:[%s910 + $0x30] sm:$0xff]
  %v915 = vld [vmem:[%s910 + $0x50] sm:$0xff]
  %v916 = vld [vmem:[%s910 + $0x60] sm:$0xff]
  %v917 = vld [vmem:[%s910 + $0x70] sm:$0xff]
  %v918 = vld [vmem:[%s910 + $0x80] sm:$0xff]
  %v919 = vpack.c.bf16 %v912, %v911
  %v920 = vpack.c.bf16 %v914, %v913
  %v921 = vpack.c.bf16 %v916, %v915
  %v922 = vpack.c.bf16 %v918, %v917
  %s923 = scalar_lea.vmem %s4, 384
  %v924 = vld [vmem:[%s923] sm:$0xf]
  %v925 = vld [vmem:[%s923 + $0x4] sm:$0xf]
  %v926 = vld [vmem:[%s923 + $0x8] sm:$0xf]
  %v927 = vld [vmem:[%s923 + $0xc] sm:$0xf]
  %v928 = vld [vmem:[%s923 + $0x10] sm:$0xf]
  %v929 = vld [vmem:[%s923 + $0x14] sm:$0xf]
  %v930 = vld [vmem:[%s923 + $0x18] sm:$0xf]
  %v931 = vld [vmem:[%s923 + $0x1c] sm:$0xf]
  %v932 = vld [vmem:[%s923 + $0x20] sm:$0xf]
  %v933 = vld [vmem:[%s923 + $0x24] sm:$0xf]
  %v934 = vld [vmem:[%s923 + $0x28] sm:$0xf]
  %v935 = vld [vmem:[%s923 + $0x2c] sm:$0xf]
  %v936 = vld [vmem:[%s923 + $0x30] sm:$0xf]
  %v937 = vld [vmem:[%s923 + $0x34] sm:$0xf]
  %v938 = vld [vmem:[%s923 + $0x38] sm:$0xf]
  %v939 = vld [vmem:[%s923 + $0x3c] sm:$0xf]
  %v956 = vunpack.c.l.b16 %v924
  %v957 = vunpack.c.l.b16 %v925
  %v958 = vunpack.c.l.b16 %v926
  %v959 = vunpack.c.l.b16 %v927
  %v960 = vunpack.c.l.b16 %v928
  %v961 = vunpack.c.l.b16 %v929
  %v962 = vunpack.c.l.b16 %v930
  %v963 = vunpack.c.l.b16 %v931
  %v964 = vunpack.c.l.b16 %v932
  %v965 = vunpack.c.l.b16 %v933
  %v966 = vunpack.c.l.b16 %v934
  %v967 = vunpack.c.l.b16 %v935
  %v968 = vunpack.c.l.b16 %v936
  %v969 = vunpack.c.l.b16 %v937
  %v970 = vunpack.c.l.b16 %v938
  %v971 = vunpack.c.l.b16 %v939
  %v972 = vpack.c.b16 %v957, %v956
  %v973 = vpack.c.b16 %v959, %v958
  %v974 = vpack.c.b16 %v961, %v960
  %v975 = vpack.c.b16 %v963, %v962
  %v976 = vpack.c.b16 %v965, %v964
  %v977 = vpack.c.b16 %v967, %v966
  %v978 = vpack.c.b16 %v969, %v968
  %v979 = vpack.c.b16 %v971, %v970
  %988 = vmatprep.subr.bf16.mxu0 0
  %989 = vmatpush1.bf16.msra.mxu0 %v972
  %990 = vmatprep.subr.bf16.mxu0 0
  %991 = vmatpush1.bf16.msra.mxu0 %v973
  %992 = vmatprep.subr.bf16.mxu0 0
  %993 = vmatpush1.bf16.msra.mxu0 %v974
  %994 = vmatprep.subr.bf16.mxu0 0
  %995 = vmatpush1.bf16.msra.mxu0 %v975
  %996 = vmatprep.subr.bf16.mxu0 0
  %997 = vmatpush1.bf16.msra.mxu0 %v976
  %998 = vmatprep.subr.bf16.mxu0 0
  %999 = vmatpush1.bf16.msra.mxu0 %v977
  %1000 = vmatprep.subr.bf16.mxu0 0
  %1001 = vmatpush1.bf16.msra.mxu0 %v978
  %1002 = vmatprep.subr.bf16.mxu0 0
  %1003 = vmatpush1.bf16.msra.mxu0 %v979
  %1004 = vmatprep.subr.bf16.mxu0 0
  %1005 = vmatpush1.bf16.msra.mxu0 0
  %1006 = vmatprep.subr.bf16.mxu0 0
  %1007 = vmatpush1.bf16.msra.mxu0 0
  %1008 = vmatprep.subr.bf16.mxu0 0
  %1009 = vmatpush1.bf16.msra.mxu0 0
  %1010 = vmatprep.subr.bf16.mxu0 0
  %1011 = vmatpush1.bf16.msra.mxu0 0
  %1012 = vmatprep.subr.bf16.mxu0 0
  %1013 = vmatpush1.bf16.msra.mxu0 0
  %1014 = vmatprep.subr.bf16.mxu0 0
  %1015 = vmatpush1.bf16.msra.mxu0 0
  %1016 = vmatprep.subr.bf16.mxu0 0
  %1017 = vmatpush1.bf16.msra.mxu0 0
  %1018 = vmatprep.subr.bf16.mxu0 0
  %1019 = vmatpush1.bf16.msra.mxu0 0
  %1020 = vmatprep.mubr.bf16.mxu0 0
  %1021 = vmatmul.mubr.bf16.gmra.mrb[0].mxu0 %v919
  %v1022 = vpop.f32.mrb[0].mxu0
  %v1023 = vadd.f32 0.0, %v1022
  %v1024 = vpop.f32.mrb[0].mxu0
  %v1025 = vpop.f32.mrb[0].mxu0
  %v1026 = vadd.f32 0.0, %v1025
  %v1027 = vpop.f32.mrb[0].mxu0
  %1028 = vmatprep.mubr.bf16.mxu0 0
  %1029 = vmatmul.mubr.bf16.gmra.mrb[0].mxu0 %v920
  %v1030 = vpop.f32.mrb[0].mxu0
  %v1031 = vadd.f32 0.0, %v1030
  %v1032 = vpop.f32.mrb[0].mxu0
  %v1033 = vpop.f32.mrb[0].mxu0
  %v1034 = vadd.f32 0.0, %v1033
  %v1035 = vpop.f32.mrb[0].mxu0
  %1036 = vmatprep.mubr.bf16.mxu0 0
  %1037 = vmatmul.mubr.bf16.gmra.mrb[0].mxu0 %v921
  %v1038 = vpop.f32.mrb[0].mxu0
  %v1039 = vadd.f32 0.0, %v1038
  %v1040 = vpop.f32.mrb[0].mxu0
  %v1041 = vpop.f32.mrb[0].mxu0
  %v1042 = vadd.f32 0.0, %v1041
  %v1043 = vpop.f32.mrb[0].mxu0
  %1044 = vmatprep.mubr.bf16.mxu0 0
  %1045 = vmatmul.mubr.bf16.gmra.mrb[0].mxu0 %v922
  %v1046 = vpop.f32.mrb[0].mxu0
  %v1047 = vadd.f32 0.0, %v1046
  %v1048 = vpop.f32.mrb[0].mxu0
  %v1049 = vpop.f32.mrb[0].mxu0
  %v1050 = vadd.f32 0.0, %v1049
  %v1051 = vpop.f32.mrb[0].mxu0
  %1052 = vdwg.mxu0
  %v1053 = vadd.f32 %v902, %v1023
  %v1054 = vadd.f32 %v903, %v1026
  %v1055 = vadd.f32 %v904, %v1031
  %v1056 = vadd.f32 %v905, %v1034
  %v1057 = vadd.f32 %v906, %v1039
  %v1058 = vadd.f32 %v907, %v1042
  %v1059 = vadd.f32 %v908, %v1047
  %v1060 = vadd.f32 %v909, %v1050
  %s1061 = scalar_lea.vmem %s1, 16
  %v1062 = vld [vmem:[%s1061] sm:$0xff]
  %v1063 = vld [vmem:[%s1061 + $0x10] sm:$0xff]
  %v1064 = vld [vmem:[%s1061 + $0x20] sm:$0xff]
  %v1065 = vld [vmem:[%s1061 + $0x30] sm:$0xff]
  %v1066 = vld [vmem:[%s1061 + $0x50] sm:$0xff]
  %v1067 = vld [vmem:[%s1061 + $0x60] sm:$0xff]
  %v1068 = vld [vmem:[%s1061 + $0x70] sm:$0xff]
  %v1069 = vld [vmem:[%s1061 + $0x80] sm:$0xff]
  %v1070 = vpack.c.bf16 %v1063, %v1062
  %v1071 = vpack.c.bf16 %v1065, %v1064
  %v1072 = vpack.c.bf16 %v1067, %v1066
  %v1073 = vpack.c.bf16 %v1069, %v1068
  %s1074 = scalar_lea.vmem %s4, 448
  %v1075 = vld [vmem:[%s1074] sm:$0xf]
  %v1076 = vld [vmem:[%s1074 + $0x4] sm:$0xf]
  %v1077 = vld [vmem:[%s1074 + $0x8] sm:$0xf]
  %v1078 = vld [vmem:[%s1074 + $0xc] sm:$0xf]
  %v1079 = vld [vmem:[%s1074 + $0x10] sm:$0xf]
  %v1080 = vld [vmem:[%s1074 + $0x14] sm:$0xf]
  %v1081 = vld [vmem:[%s1074 + $0x18] sm:$0xf]
  %v1082 = vld [vmem:[%s1074 + $0x1c] sm:$0xf]
  %v1083 = vld [vmem:[%s1074 + $0x20] sm:$0xf]
  %v1084 = vld [vmem:[%s1074 + $0x24] sm:$0xf]
  %v1085 = vld [vmem:[%s1074 + $0x28] sm:$0xf]
  %v1086 = vld [vmem:[%s1074 + $0x2c] sm:$0xf]
  %v1087 = vld [vmem:[%s1074 + $0x30] sm:$0xf]
  %v1088 = vld [vmem:[%s1074 + $0x34] sm:$0xf]
  %v1089 = vld [vmem:[%s1074 + $0x38] sm:$0xf]
  %v1090 = vld [vmem:[%s1074 + $0x3c] sm:$0xf]
  %v1107 = vunpack.c.l.b16 %v1075
  %v1108 = vunpack.c.l.b16 %v1076
  %v1109 = vunpack.c.l.b16 %v1077
  %v1110 = vunpack.c.l.b16 %v1078
  %v1111 = vunpack.c.l.b16 %v1079
  %v1112 = vunpack.c.l.b16 %v1080
  %v1113 = vunpack.c.l.b16 %v1081
  %v1114 = vunpack.c.l.b16 %v1082
  %v1115 = vunpack.c.l.b16 %v1083
  %v1116 = vunpack.c.l.b16 %v1084
  %v1117 = vunpack.c.l.b16 %v1085
  %v1118 = vunpack.c.l.b16 %v1086
  %v1119 = vunpack.c.l.b16 %v1087
  %v1120 = vunpack.c.l.b16 %v1088
  %v1121 = vunpack.c.l.b16 %v1089
  %v1122 = vunpack.c.l.b16 %v1090
  %v1123 = vpack.c.b16 %v1108, %v1107
  %v1124 = vpack.c.b16 %v1110, %v1109
  %v1125 = vpack.c.b16 %v1112, %v1111
  %v1126 = vpack.c.b16 %v1114, %v1113
  %v1127 = vpack.c.b16 %v1116, %v1115
  %v1128 = vpack.c.b16 %v1118, %v1117
  %v1129 = vpack.c.b16 %v1120, %v1119
  %v1130 = vpack.c.b16 %v1122, %v1121
  %1139 = vmatprep.subr.bf16.mxu0 0
  %1140 = vmatpush1.bf16.msra.mxu0 %v1123
  %1141 = vmatprep.subr.bf16.mxu0 0
  %1142 = vmatpush1.bf16.msra.mxu0 %v1124
  %1143 = vmatprep.subr.bf16.mxu0 0
  %1144 = vmatpush1.bf16.msra.mxu0 %v1125
  %1145 = vmatprep.subr.bf16.mxu0 0
  %1146 = vmatpush1.bf16.msra.mxu0 %v1126
  %1147 = vmatprep.subr.bf16.mxu0 0
  %1148 = vmatpush1.bf16.msra.mxu0 %v1127
  %1149 = vmatprep.subr.bf16.mxu0 0
  %1150 = vmatpush1.bf16.msra.mxu0 %v1128
  %1151 = vmatprep.subr.bf16.mxu0 0
  %1152 = vmatpush1.bf16.msra.mxu0 %v1129
  %1153 = vmatprep.subr.bf16.mxu0 0
  %1154 = vmatpush1.bf16.msra.mxu0 %v1130
  %1155 = vmatprep.subr.bf16.mxu0 0
  %1156 = vmatpush1.bf16.msra.mxu0 0
  %1157 = vmatprep.subr.bf16.mxu0 0
  %1158 = vmatpush1.bf16.msra.mxu0 0
  %1159 = vmatprep.subr.bf16.mxu0 0
  %1160 = vmatpush1.bf16.msra.mxu0 0
  %1161 = vmatprep.subr.bf16.mxu0 0
  %1162 = vmatpush1.bf16.msra.mxu0 0
  %1163 = vmatprep.subr.bf16.mxu0 0
  %1164 = vmatpush1.bf16.msra.mxu0 0
  %1165 = vmatprep.subr.bf16.mxu0 0
  %1166 = vmatpush1.bf16.msra.mxu0 0
  %1167 = vmatprep.subr.bf16.mxu0 0
  %1168 = vmatpush1.bf16.msra.mxu0 0
  %1169 = vmatprep.subr.bf16.mxu0 0
  %1170 = vmatpush1.bf16.msra.mxu0 0
  %1171 = vmatprep.mubr.bf16.mxu0 0
  %1172 = vmatmul.mubr.bf16.gmra.mrb[0].mxu0 %v1070
  %v1173 = vpop.f32.mrb[0].mxu0
  %v1174 = vadd.f32 0.0, %v1173
  %v1175 = vpop.f32.mrb[0].mxu0
  %v1176 = vpop.f32.mrb[0].mxu0
  %v1177 = vadd.f32 0.0, %v1176
  %v1178 = vpop.f32.mrb[0].mxu0
  %1179 = vmatprep.mubr.bf16.mxu0 0
  %1180 = vmatmul.mubr.bf16.gmra.mrb[0].mxu0 %v1071
  %v1181 = vpop.f32.mrb[0].mxu0
  %v1182 = vadd.f32 0.0, %v1181
  %v1183 = vpop.f32.mrb[0].mxu0
  %v1184 = vpop.f32.mrb[0].mxu0
  %v1185 = vadd.f32 0.0, %v1184
  %v1186 = vpop.f32.mrb[0].mxu0
  %1187 = vmatprep.mubr.bf16.mxu0 0
  %1188 = vmatmul.mubr.bf16.gmra.mrb[0].mxu0 %v1072
  %v1189 = vpop.f32.mrb[0].mxu0
  %v1190 = vadd.f32 0.0, %v1189
  %v1191 = vpop.f32.mrb[0].mxu0
  %v1192 = vpop.f32.mrb[0].mxu0
  %v1193 = vadd.f32 0.0, %v1192
  %v1194 = vpop.f32.mrb[0].mxu0
  %1195 = vmatprep.mubr.bf16.mxu0 0
  %1196 = vmatmul.mubr.bf16.gmra.mrb[0].mxu0 %v1073
  %v1197 = vpop.f32.mrb[0].mxu0
  %v1198 = vadd.f32 0.0, %v1197
  %v1199 = vpop.f32.mrb[0].mxu0
  %v1200 = vpop.f32.mrb[0].mxu0
  %v1201 = vadd.f32 0.0, %v1200
  %v1202 = vpop.f32.mrb[0].mxu0
  %1203 = vdwg.mxu0
  %v1204 = vadd.f32 %v1053, %v1174
  %v1205 = vadd.f32 %v1054, %v1177
  %v1206 = vadd.f32 %v1055, %v1182
  %v1207 = vadd.f32 %v1056, %v1185
  %v1208 = vadd.f32 %v1057, %v1190
  %v1209 = vadd.f32 %v1058, %v1193
  %v1210 = vadd.f32 %v1059, %v1198
  %v1211 = vadd.f32 %v1060, %v1201
  %v1212 = vld [vmem:[%s910 + $0x1] sm:$0xff]
  %v1213 = vld [vmem:[%s910 + $0x11] sm:$0xff]
  %v1214 = vld [vmem:[%s910 + $0x21] sm:$0xff]
  %v1215 = vld [vmem:[%s910 + $0x31] sm:$0xff]
  %v1216 = vld [vmem:[%s910 + $0x51] sm:$0xff]
  %v1217 = vld [vmem:[%s910 + $0x61] sm:$0xff]
  %v1218 = vld [vmem:[%s910 + $0x71] sm:$0xff]
  %v1219 = vld [vmem:[%s910 + $0x81] sm:$0xff]
  %v1220 = vpack.c.bf16 %v1213, %v1212
  %v1221 = vpack.c.bf16 %v1215, %v1214
  %v1222 = vpack.c.bf16 %v1217, %v1216
  %v1223 = vpack.c.bf16 %v1219, %v1218
  %s1224 = scalar_lea.vmem %s4, 512
  %v1225 = vld [vmem:[%s1224] sm:$0xf]
  %v1226 = vld [vmem:[%s1224 + $0x4] sm:$0xf]
  %v1227 = vld [vmem:[%s1224 + $0x8] sm:$0xf]
  %v1228 = vld [vmem:[%s1224 + $0xc] sm:$0xf]
  %v1229 = vld [vmem:[%s1224 + $0x10] sm:$0xf]
  %v1230 = vld [vmem:[%s1224 + $0x14] sm:$0xf]
  %v1231 = vld [vmem:[%s1224 + $0x18] sm:$0xf]
  %v1232 = vld [vmem:[%s1224 + $0x1c] sm:$0xf]
  %v1233 = vld [vmem:[%s1224 + $0x20] sm:$0xf]
  %v1234 = vld [vmem:[%s1224 + $0x24] sm:$0xf]
  %v1235 = vld [vmem:[%s1224 + $0x28] sm:$0xf]
  %v1236 = vld [vmem:[%s1224 + $0x2c] sm:$0xf]
  %v1237 = vld [vmem:[%s1224 + $0x30] sm:$0xf]
  %v1238 = vld [vmem:[%s1224 + $0x34] sm:$0xf]
  %v1239 = vld [vmem:[%s1224 + $0x38] sm:$0xf]
  %v1240 = vld [vmem:[%s1224 + $0x3c] sm:$0xf]
  %v1257 = vunpack.c.l.b16 %v1225
  %v1258 = vunpack.c.l.b16 %v1226
  %v1259 = vunpack.c.l.b16 %v1227
  %v1260 = vunpack.c.l.b16 %v1228
  %v1261 = vunpack.c.l.b16 %v1229
  %v1262 = vunpack.c.l.b16 %v1230
  %v1263 = vunpack.c.l.b16 %v1231
  %v1264 = vunpack.c.l.b16 %v1232
  %v1265 = vunpack.c.l.b16 %v1233
  %v1266 = vunpack.c.l.b16 %v1234
  %v1267 = vunpack.c.l.b16 %v1235
  %v1268 = vunpack.c.l.b16 %v1236
  %v1269 = vunpack.c.l.b16 %v1237
  %v1270 = vunpack.c.l.b16 %v1238
  %v1271 = vunpack.c.l.b16 %v1239
  %v1272 = vunpack.c.l.b16 %v1240
  %v1273 = vpack.c.b16 %v1258, %v1257
  %v1274 = vpack.c.b16 %v1260, %v1259
  %v1275 = vpack.c.b16 %v1262, %v1261
  %v1276 = vpack.c.b16 %v1264, %v1263
  %v1277 = vpack.c.b16 %v1266, %v1265
  %v1278 = vpack.c.b16 %v1268, %v1267
  %v1279 = vpack.c.b16 %v1270, %v1269
  %v1280 = vpack.c.b16 %v1272, %v1271
  %1289 = vmatprep.subr.bf16.mxu0 0
  %1290 = vmatpush1.bf16.msra.mxu0 %v1273
  %1291 = vmatprep.subr.bf16.mxu0 0
  %1292 = vmatpush1.bf16.msra.mxu0 %v1274
  %1293 = vmatprep.subr.bf16.mxu0 0
  %1294 = vmatpush1.bf16.msra.mxu0 %v1275
  %1295 = vmatprep.subr.bf16.mxu0 0
  %1296 = vmatpush1.bf16.msra.mxu0 %v1276
  %1297 = vmatprep.subr.bf16.mxu0 0
  %1298 = vmatpush1.bf16.msra.mxu0 %v1277
  %1299 = vmatprep.subr.bf16.mxu0 0
  %1300 = vmatpush1.bf16.msra.mxu0 %v1278
  %1301 = vmatprep.subr.bf16.mxu0 0
  %1302 = vmatpush1.bf16.msra.mxu0 %v1279
  %1303 = vmatprep.subr.bf16.mxu0 0
  %1304 = vmatpush1.bf16.msra.mxu0 %v1280
  %1305 = vmatprep.subr.bf16.mxu0 0
  %1306 = vmatpush1.bf16.msra.mxu0 0
  %1307 = vmatprep.subr.bf16.mxu0 0
  %1308 = vmatpush1.bf16.msra.mxu0 0
  %1309 = vmatprep.subr.bf16.mxu0 0
  %1310 = vmatpush1.bf16.msra.mxu0 0
  %1311 = vmatprep.subr.bf16.mxu0 0
  %1312 = vmatpush1.bf16.msra.mxu0 0
  %1313 = vmatprep.subr.bf16.mxu0 0
  %1314 = vmatpush1.bf16.msra.mxu0 0
  %1315 = vmatprep.subr.bf16.mxu0 0
  %1316 = vmatpush1.bf16.msra.mxu0 0
  %1317 = vmatprep.subr.bf16.mxu0 0
  %1318 = vmatpush1.bf16.msra.mxu0 0
  %1319 = vmatprep.subr.bf16.mxu0 0
  %1320 = vmatpush1.bf16.msra.mxu0 0
  %1321 = vmatprep.mubr.bf16.mxu0 0
  %1322 = vmatmul.mubr.bf16.gmra.mrb[0].mxu0 %v1220
  %v1323 = vpop.f32.mrb[0].mxu0
  %v1324 = vadd.f32 0.0, %v1323
  %v1325 = vpop.f32.mrb[0].mxu0
  %v1326 = vpop.f32.mrb[0].mxu0
  %v1327 = vadd.f32 0.0, %v1326
  %v1328 = vpop.f32.mrb[0].mxu0
  %1329 = vmatprep.mubr.bf16.mxu0 0
  %1330 = vmatmul.mubr.bf16.gmra.mrb[0].mxu0 %v1221
  %v1331 = vpop.f32.mrb[0].mxu0
  %v1332 = vadd.f32 0.0, %v1331
  %v1333 = vpop.f32.mrb[0].mxu0
  %v1334 = vpop.f32.mrb[0].mxu0
  %v1335 = vadd.f32 0.0, %v1334
  %v1336 = vpop.f32.mrb[0].mxu0
  %1337 = vmatprep.mubr.bf16.mxu0 0
  %1338 = vmatmul.mubr.bf16.gmra.mrb[0].mxu0 %v1222
  %v1339 = vpop.f32.mrb[0].mxu0
  %v1340 = vadd.f32 0.0, %v1339
  %v1341 = vpop.f32.mrb[0].mxu0
  %v1342 = vpop.f32.mrb[0].mxu0
  %v1343 = vadd.f32 0.0, %v1342
  %v1344 = vpop.f32.mrb[0].mxu0
  %1345 = vmatprep.mubr.bf16.mxu0 0
  %1346 = vmatmul.mubr.bf16.gmra.mrb[0].mxu0 %v1223
  %v1347 = vpop.f32.mrb[0].mxu0
  %v1348 = vadd.f32 0.0, %v1347
  %v1349 = vpop.f32.mrb[0].mxu0
  %v1350 = vpop.f32.mrb[0].mxu0
  %v1351 = vadd.f32 0.0, %v1350
  %v1352 = vpop.f32.mrb[0].mxu0
  %1353 = vdwg.mxu0
  %v1354 = vadd.f32 %v1204, %v1324
  %v1355 = vadd.f32 %v1205, %v1327
  %v1356 = vadd.f32 %v1206, %v1332
  %v1357 = vadd.f32 %v1207, %v1335
  %v1358 = vadd.f32 %v1208, %v1340
  %v1359 = vadd.f32 %v1209, %v1343
  %v1360 = vadd.f32 %v1210, %v1348
  %v1361 = vadd.f32 %v1211, %v1351
  %v1362 = vlaneseq
  %v1363 = vshrl.u32 %v1362, 7
  %v1364 = vadd.s32 %v1363, 8
  %v1365 = vadd.s32 %v1363, 16
  %v1366 = vadd.s32 %v1363, 24
  %v1367 = vadd.s32 %v1363, 32
  %v1368 = vadd.s32 %v1363, 40
  %v1369 = vadd.s32 %v1363, 48
  %v1370 = vadd.s32 %v1363, 56
  %vm1371 = vcmp.lt.s32.totalorder %v1363, 0
  %v1372 = vsub.s32 0, %v1363
  %v1373 = vsel %vm1371, %v1372, %v1363
  %v1374 = vshrl.u32 %v1373, 3
  %v1375 = vand.u32 %v1373, 7
  %v1376 = vsub.s32 0, %v1375
  %v1377 = vsel %vm1371, %v1376, %v1375
  %vm1378 = vcmp.lt.s32.totalorder %v1364, 0
  %v1379 = vsub.s32 0, %v1364
  %v1380 = vsel %vm1378, %v1379, %v1364
  %v1381 = vshrl.u32 %v1380, 3
  %v1382 = vand.u32 %v1380, 7
  %v1383 = vsub.s32 0, %v1382
  %v1384 = vsel %vm1378, %v1383, %v1382
  %vm1385 = vcmp.lt.s32.totalorder %v1365, 0
  %v1386 = vsub.s32 0, %v1365
  %v1387 = vsel %vm1385, %v1386, %v1365
  %v1388 = vshrl.u32 %v1387, 3
  %v1389 = vand.u32 %v1387, 7
  %v1390 = vsub.s32 0, %v1389
  %v1391 = vsel %vm1385, %v1390, %v1389
  %vm1392 = vcmp.lt.s32.totalorder %v1366, 0
  %v1393 = vsub.s32 0, %v1366
  %v1394 = vsel %vm1392, %v1393, %v1366
  %v1395 = vshrl.u32 %v1394, 3
  %v1396 = vand.u32 %v1394, 7
  %v1397 = vsub.s32 0, %v1396
  %v1398 = vsel %vm1392, %v1397, %v1396
  %vm1399 = vcmp.lt.s32.totalorder %v1367, 0
  %v1400 = vsub.s32 0, %v1367
  %v1401 = vsel %vm1399, %v1400, %v1367
  %v1402 = vshrl.u32 %v1401, 3
  %v1403 = vand.u32 %v1401, 7
  %v1404 = vsub.s32 0, %v1403
  %v1405 = vsel %vm1399, %v1404, %v1403
  %vm1406 = vcmp.lt.s32.totalorder %v1368, 0
  %v1407 = vsub.s32 0, %v1368
  %v1408 = vsel %vm1406, %v1407, %v1368
  %v1409 = vshrl.u32 %v1408, 3
  %v1410 = vand.u32 %v1408, 7
  %v1411 = vsub.s32 0, %v1410
  %v1412 = vsel %vm1406, %v1411, %v1410
  %vm1413 = vcmp.lt.s32.totalorder %v1369, 0
  %v1414 = vsub.s32 0, %v1369
  %v1415 = vsel %vm1413, %v1414, %v1369
  %v1416 = vshrl.u32 %v1415, 3
  %v1417 = vand.u32 %v1415, 7
  %v1418 = vsub.s32 0, %v1417
  %v1419 = vsel %vm1413, %v1418, %v1417
  %vm1420 = vcmp.lt.s32.totalorder %v1370, 0
  %v1421 = vsub.s32 0, %v1370
  %v1422 = vsel %vm1420, %v1421, %v1370
  %v1423 = vshrl.u32 %v1422, 3
  %v1424 = vand.u32 %v1422, 7
  %v1425 = vsub.s32 0, %v1424
  %v1426 = vsel %vm1420, %v1425, %v1424
  %vm1427 = vcmp.ne.s32.totalorder %v1377, 0
  %vm1428 = vcmp.ne.s32.totalorder %v1384, 0
  %vm1429 = vcmp.ne.s32.totalorder %v1391, 0
  %vm1430 = vcmp.ne.s32.totalorder %v1398, 0
  %vm1431 = vcmp.ne.s32.totalorder %v1405, 0
  %vm1432 = vcmp.ne.s32.totalorder %v1412, 0
  %vm1433 = vcmp.ne.s32.totalorder %v1419, 0
  %vm1434 = vcmp.ne.s32.totalorder %v1426, 0
  %vm1435 = vcmp.lt.s32.totalorder %v1377, 0
  %vm1436 = vcmp.lt.s32.totalorder %v1384, 0
  %vm1437 = vcmp.lt.s32.totalorder %v1391, 0
  %vm1438 = vcmp.lt.s32.totalorder %v1398, 0
  %vm1439 = vcmp.lt.s32.totalorder %v1405, 0
  %vm1440 = vcmp.lt.s32.totalorder %v1412, 0
  %vm1441 = vcmp.lt.s32.totalorder %v1419, 0
  %vm1442 = vcmp.lt.s32.totalorder %v1426, 0
  %vm1443 = vmand %vm1435, %vm1427
  %vm1444 = vmand %vm1436, %vm1428
  %vm1445 = vmand %vm1437, %vm1429
  %vm1446 = vmand %vm1438, %vm1430
  %vm1447 = vmand %vm1439, %vm1431
  %vm1448 = vmand %vm1440, %vm1432
  %vm1449 = vmand %vm1441, %vm1433
  %vm1450 = vmand %vm1442, %vm1434
  %v1451 = vadd.s32 %v1377, 8
  %v1452 = vadd.s32 %v1384, 8
  %v1453 = vadd.s32 %v1391, 8
  %v1454 = vadd.s32 %v1398, 8
  %v1455 = vadd.s32 %v1405, 8
  %v1456 = vadd.s32 %v1412, 8
  %v1457 = vadd.s32 %v1419, 8
  %v1458 = vadd.s32 %v1426, 8
  %v1459 = vsel %vm1443, %v1451, %v1377
  %v1460 = vsel %vm1444, %v1452, %v1384
  %v1461 = vsel %vm1445, %v1453, %v1391
  %v1462 = vsel %vm1446, %v1454, %v1398
  %v1463 = vsel %vm1447, %v1455, %v1405
  %v1464 = vsel %vm1448, %v1456, %v1412
  %v1465 = vsel %vm1449, %v1457, %v1419
  %v1466 = vsel %vm1450, %v1458, %v1426
  %vm1467 = vcmp.lt.s32.totalorder %v1459, 4
  %vm1468 = vcmp.lt.s32.totalorder %v1460, 4
  %vm1469 = vcmp.lt.s32.totalorder %v1461, 4
  %vm1470 = vcmp.lt.s32.totalorder %v1462, 4
  %vm1471 = vcmp.lt.s32.totalorder %v1463, 4
  %vm1472 = vcmp.lt.s32.totalorder %v1464, 4
  %vm1473 = vcmp.lt.s32.totalorder %v1465, 4
  %vm1474 = vcmp.lt.s32.totalorder %v1466, 4
  %v1475 = vsel %vm1467, 1, 0
  %v1476 = vsel %vm1468, 1, 0
  %v1477 = vsel %vm1469, 1, 0
  %v1478 = vsel %vm1470, 1, 0
  %v1479 = vsel %vm1471, 1, 0
  %v1480 = vsel %vm1472, 1, 0
  %v1481 = vsel %vm1473, 1, 0
  %v1482 = vsel %vm1474, 1, 0
  %v1483 = vcvt.s32.f32 %v1475
  %v1484 = vcvt.s32.f32 %v1476
  %v1485 = vcvt.s32.f32 %v1477
  %v1486 = vcvt.s32.f32 %v1478
  %v1487 = vcvt.s32.f32 %v1479
  %v1488 = vcvt.s32.f32 %v1480
  %v1489 = vcvt.s32.f32 %v1481
  %v1490 = vcvt.s32.f32 %v1482
  %v1491 = vmul.f32 %v1354, %v1483
  %v1492 = vmul.f32 %v1355, %v1484
  %v1493 = vmul.f32 %v1356, %v1485
  %v1494 = vmul.f32 %v1357, %v1486
  %v1495 = vmul.f32 %v1358, %v1487
  %v1496 = vmul.f32 %v1359, %v1488
  %v1497 = vmul.f32 %v1360, %v1489
  %v1498 = vmul.f32 %v1361, %v1490
  %v1499 = vadd.f32 %v1491, %v1492
  %v1500 = vadd.f32 %v1499, %v1493
  %v1501 = vadd.f32 %v1500, %v1494
  %v1502 = vadd.f32 %v1501, %v1495
  %v1503 = vadd.f32 %v1502, %v1496
  %v1504 = vadd.f32 %v1503, %v1497
  %v1505 = vadd.f32 %v1504, %v1498
  %v1506 = vrot.slane %v1505, 4
  %v1507 = vadd.f32 %v1505, %v1506
  %v1508 = vrot.slane %v1507, 2
  %v1509 = vadd.f32 %v1507, %v1508
  %v1510 = vrot.slane %v1509, 1
  %v1511 = vadd.f32 %v1509, %v1510
  %v1512 = vmul.f32 %v1354, %v1354
  %v1513 = vmul.f32 %v1355, %v1355
  %v1514 = vmul.f32 %v1356, %v1356
  %v1515 = vmul.f32 %v1357, %v1357
  %v1516 = vmul.f32 %v1358, %v1358
  %v1517 = vmul.f32 %v1359, %v1359
  %v1518 = vmul.f32 %v1360, %v1360
  %v1519 = vmul.f32 %v1361, %v1361
  %v1520 = vmul.f32 %v1512, %v1483
  %v1521 = vmul.f32 %v1513, %v1484
  %v1522 = vmul.f32 %v1514, %v1485
  %v1523 = vmul.f32 %v1515, %v1486
  %v1524 = vmul.f32 %v1516, %v1487
  %v1525 = vmul.f32 %v1517, %v1488
  %v1526 = vmul.f32 %v1518, %v1489
  %v1527 = vmul.f32 %v1519, %v1490
  %v1528 = vadd.f32 %v1520, %v1521
  %v1529 = vadd.f32 %v1528, %v1522
  %v1530 = vadd.f32 %v1529, %v1523
  %v1531 = vadd.f32 %v1530, %v1524
  %v1532 = vadd.f32 %v1531, %v1525
  %v1533 = vadd.f32 %v1532, %v1526
  %v1534 = vadd.f32 %v1533, %v1527
  %v1535 = vrot.slane %v1534, 4
  %v1536 = vadd.f32 %v1534, %v1535
  %v1537 = vrot.slane %v1536, 2
  %v1538 = vadd.f32 %v1536, %v1537
  %v1539 = vrot.slane %v1538, 1
  %v1540 = vadd.f32 %v1538, %v1539
  %v1541 = vmul.f32 %v1511, 0.03125
  %v1542 = vmul.f32 %v1540, 0.03125
  %v1543 = vmul.f32 %v1541, %v1541
  %v1544 = vsub.f32 %v1542, %v1543
  %v1545 = vld [vmem:[%s5] sm:$0x1]
  %v1546 = vadd.f32 %v1544, 1e-05
  %v1547 = vrsqrt.pop %v1546
  %v1548 = vmul.f32 %v1545, %v1547
  %v1549 = vld [vmem:[%s6] sm:$0x1]
  %v1550 = vmul.f32 %v1541, %v1548
  %v1551 = vsub.f32 %v1549, %v1550
  %v1553 = vlaneseq
  %v1554 = vshrl.u32 %v1553, 7
  %v1555 = vsub.s32 0, %v1554
  %v1556 = vrot.slane %v1548, %v1555
  %v1558 = vmul.f32 %v1354, %v1556
  %v1559 = vmul.f32 %v1355, %v1556
  %v1560 = vmul.f32 %v1356, %v1556
  %v1561 = vmul.f32 %v1357, %v1556
  %v1562 = vmul.f32 %v1358, %v1556
  %v1563 = vmul.f32 %v1359, %v1556
  %v1564 = vmul.f32 %v1360, %v1556
  %v1565 = vmul.f32 %v1361, %v1556
  %v1567 = vlaneseq
  %v1568 = vshrl.u32 %v1567, 7
  %v1569 = vsub.s32 0, %v1568
  %v1570 = vrot.slane %v1551, %v1569
  %v1572 = vadd.f32 %v1558, %v1570
  %v1573 = vadd.f32 %v1559, %v1570
  %v1574 = vadd.f32 %v1560, %v1570
  %v1575 = vadd.f32 %v1561, %v1570
  %v1576 = vadd.f32 %v1562, %v1570
  %v1577 = vadd.f32 %v1563, %v1570
  %v1578 = vadd.f32 %v1564, %v1570
  %v1579 = vadd.f32 %v1565, %v1570
  %v1580 = vmax.f32 %v1572, 0.0
  %v1581 = vmax.f32 %v1573, 0.0
  %v1582 = vmax.f32 %v1574, 0.0
  %v1583 = vmax.f32 %v1575, 0.0
  %v1584 = vmax.f32 %v1576, 0.0
  %v1585 = vmax.f32 %v1577, 0.0
  %v1586 = vmax.f32 %v1578, 0.0
  %v1587 = vmax.f32 %v1579, 0.0
  %v1588 = vmul.f32 %v1580, %v1483
  %v1589 = vmul.f32 %v1581, %v1484
  %v1590 = vmul.f32 %v1582, %v1485
  %v1591 = vmul.f32 %v1583, %v1486
  %v1592 = vmul.f32 %v1584, %v1487
  %v1593 = vmul.f32 %v1585, %v1488
  %v1594 = vmul.f32 %v1586, %v1489
  %v1595 = vmul.f32 %v1587, %v1490
  %1596 = vst [vmem:[%s7] sm:$0xff] %v1588
  %1597 = vst [vmem:[%s7 + $0x8] sm:$0xff] %v1589
  %1598 = vst [vmem:[%s7 + $0x10] sm:$0xff] %v1590
  %1599 = vst [vmem:[%s7 + $0x18] sm:$0xff] %v1591
  %1600 = vst [vmem:[%s7 + $0x20] sm:$0xff] %v1592
  %1601 = vst [vmem:[%s7 + $0x28] sm:$0xff] %v1593
  %1602 = vst [vmem:[%s7 + $0x30] sm:$0xff] %v1594
  %1603 = vst [vmem:[%s7 + $0x38] sm:$0xff] %v1595
  // Predicated region
  $region30: #{_lambda_.3} parent=0 // pred_check
    _
  $region31: #{_lambda_.3} parent=0 // pred_check_branch
    %1605 = sbr.rel (0) target = $region33
  $region32: #{_lambda_.3} parent=0 // pred_region
    _
  $region33: #{_lambda_.3} parent=0 // pred_fallthru
    _
  // Predicated region
  $region34: #{_lambda_.3} parent=0 // pred_check
    _
  $region35: #{_lambda_.3} parent=0 // pred_check_branch
    %1607 = sbr.rel (0) target = $region37
  $region36: #{_lambda_.3} parent=0 // pred_region
    _
  $region37: #{_lambda_.3} parent=0 // pred_fallthru
    _

// kernel: _lambda_.2
$region0: #{_lambda_.2}
  #allocation0 [shape = 'u32[]', space=smem, size = 0x4, offset = 0x4, fixed_abs, tag = 'smem constant byte address 0x4 - core index']
  #allocation1 [shape = 'u32[144,128]{1,0:T(1,128)}', space=vmem, size = 0x12000, scoped, tag = 'internal scratch']
  #allocation2 [shape = 'f32[2,18,24,128]{3,2,1,0:T(8,128)}', space=vmem, size = 0x6c000, scoped, tag = 'scratch operand']
  %s0 = inlined_call_operand.vmem [shape: f32[2,17,17,128], index: 0, kind: input, shape index: {}]
  %s1 = inlined_call_operand.vmem [shape: f32[2,17,17,128], index: 1, kind: input, shape index: {}]
  %s2 = inlined_call_operand.vmem [shape: f32[2,17,17,128], index: 2, kind: input, shape index: {}]
  %s3 = inlined_call_operand.vmem [shape: f32[2,17,17,128], index: 3, kind: input, shape index: {}]
  %s4 = inlined_call_operand.vmem [shape: bf16[9,128,128], index: 4, kind: input, shape index: {}]
  %s5 = inlined_call_operand.vmem [shape: f32[1,128], index: 5, kind: input, shape index: {}]
  %s6 = inlined_call_operand.vmem [shape: f32[1,128], index: 6, kind: input, shape index: {}]
  %s7 = inlined_call_operand.vmem [shape: f32[2,8,16,128], index: 7, kind: output, shape index: {}]
  %s8 = sld [smem:[#allocation0]]
  $region38: #{_lambda_.2} parent=0
    _
  %s10 = ssub.s32 1, %s8
  %s11 = scalar_select 0, %s10, %s8
  // Predicated region
  $region2: #{_lambda_.2} parent=0 // pred_check
    _
  $region3: #{_lambda_.2} parent=0 // pred_check_branch
    %13 = sbr.rel (0) target = $region5
  $region4: #{_lambda_.2} parent=0 // pred_region
    _
  $region5: #{_lambda_.2} parent=0 // pred_fallthru
    _
  // Predicated region
  $region6: #{_lambda_.2} parent=0 // pred_check
    _
  $region7: #{_lambda_.2} parent=0 // pred_check_branch
    %15 = sbr.rel (0) target = $region9
  $region8: #{_lambda_.2} parent=0 // pred_region
    _
  $region9: #{_lambda_.2} parent=0 // pred_fallthru
    _
  // Predicated region
  $region10: #{_lambda_.2} parent=0 // pred_check
    _
  $region11: #{_lambda_.2} parent=0 // pred_check_branch
    %17 = sbr.rel (0) target = $region13
  $region12: #{_lambda_.2} parent=0 // pred_region
    _
  $region13: #{_lambda_.2} parent=0 // pred_fallthru
    _
  // Predicated region
  $region14: #{_lambda_.2} parent=0 // pred_check
    _
  $region15: #{_lambda_.2} parent=0 // pred_check_branch
    %19 = sbr.rel (0) target = $region17
  $region16: #{_lambda_.2} parent=0 // pred_region
    _
  $region17: #{_lambda_.2} parent=0 // pred_fallthru
    _
  // Predicated region
  $region18: #{_lambda_.2} parent=0 // pred_check
    _
  $region19: #{_lambda_.2} parent=0 // pred_check_branch
    %21 = sbr.rel (0) target = $region21
  $region20: #{_lambda_.2} parent=0 // pred_region
    _
  $region21: #{_lambda_.2} parent=0 // pred_fallthru
    _
  // Predicated region
  $region22: #{_lambda_.2} parent=0 // pred_check
    _
  $region23: #{_lambda_.2} parent=0 // pred_check_branch
    %23 = sbr.rel (0) target = $region25
  $region24: #{_lambda_.2} parent=0 // pred_region
    _
  $region25: #{_lambda_.2} parent=0 // pred_fallthru
    _
  // Predicated region
  $region26: #{_lambda_.2} parent=0 // pred_check
    _
  $region27: #{_lambda_.2} parent=0 // pred_check_branch
    %25 = sbr.rel (0) target = $region29
  $region28: #{_lambda_.2} parent=0 // pred_region
    _
  $region29: #{_lambda_.2} parent=0 // pred_fallthru
    _
  %v27 = vld [vmem:[%s0] sm:$0xff]
  %v28 = vld [vmem:[%s0 + $0x8] sm:$0xff]
  %v29 = vld [vmem:[%s0 + $0x18] sm:$0xff]
  %v30 = vld [vmem:[%s0 + $0x20] sm:$0xff]
  %v31 = vld [vmem:[%s0 + $0x30] sm:$0xff]
  %v32 = vld [vmem:[%s0 + $0x38] sm:$0xff]
  %v33 = vld [vmem:[%s0 + $0x48] sm:$0xff]
  %v34 = vld [vmem:[%s0 + $0x50] sm:$0xff]
  %v35 = vld [vmem:[%s0 + $0x60] sm:$0xff]
  %v36 = vld [vmem:[%s0 + $0x68] sm:$0xff]
  %v37 = vld [vmem:[%s0 + $0x78] sm:$0xff]
  %v38 = vld [vmem:[%s0 + $0x80] sm:$0xff]
  %v39 = vld [vmem:[%s0 + $0x90] sm:$0xff]
  %v40 = vld [vmem:[%s0 + $0x98] sm:$0xff]
  %v41 = vld [vmem:[%s0 + $0xa8] sm:$0xff]
  %v42 = vld [vmem:[%s0 + $0xb0] sm:$0xff]
  %v43 = vld [vmem:[%s0 + $0xc0] sm:$0xff]
  %v44 = vld [vmem:[%s0 + $0xc8] sm:$0xff]
  %v45 = vld [vmem:[%s0 + $0xd8] sm:$0xff]
  %v46 = vld [vmem:[%s0 + $0xe0] sm:$0xff]
  %v47 = vld [vmem:[%s0 + $0xf0] sm:$0xff]
  %v48 = vld [vmem:[%s0 + $0xf8] sm:$0xff]
  %v49 = vld [vmem:[%s0 + $0x108] sm:$0xff]
  %v50 = vld [vmem:[%s0 + $0x110] sm:$0xff]
  %v51 = vld [vmem:[%s0 + $0x120] sm:$0xff]
  %v52 = vld [vmem:[%s0 + $0x128] sm:$0xff]
  %v53 = vld [vmem:[%s0 + $0x138] sm:$0xff]
  %v54 = vld [vmem:[%s0 + $0x140] sm:$0xff]
  %v55 = vld [vmem:[%s0 + $0x150] sm:$0xff]
  %v56 = vld [vmem:[%s0 + $0x158] sm:$0xff]
  %v57 = vld [vmem:[%s0 + $0x168] sm:$0xff]
  %v58 = vld [vmem:[%s0 + $0x170] sm:$0xff]
  %v59 = vld [vmem:[%s0 + $0x198] sm:$0xff]
  %v60 = vld [vmem:[%s0 + $0x1a0] sm:$0xff]
  %v61 = vld [vmem:[%s0 + $0x1b0] sm:$0xff]
  %v62 = vld [vmem:[%s0 + $0x1b8] sm:$0xff]
  %v63 = vld [vmem:[%s0 + $0x1c8] sm:$0xff]
  %v64 = vld [vmem:[%s0 + $0x1d0] sm:$0xff]
  %v65 = vld [vmem:[%s0 + $0x1e0] sm:$0xff]
  %v66 = vld [vmem:[%s0 + $0x1e8] sm:$0xff]
  %v67 = vld [vmem:[%s0 + $0x1f8] sm:$0xff]
  %v68 = vld [vmem:[%s0 + $0x200] sm:$0xff]
  %v69 = vld [vmem:[%s0 + $0x210] sm:$0xff]
  %v70 = vld [vmem:[%s0 + $0x218] sm:$0xff]
  %v71 = vld [vmem:[%s0 + $0x228] sm:$0xff]
  %v72 = vld [vmem:[%s0 + $0x230] sm:$0xff]
  %v73 = vld [vmem:[%s0 + $0x240] sm:$0xff]
  %v74 = vld [vmem:[%s0 + $0x248] sm:$0xff]
  %v75 = vld [vmem:[%s0 + $0x258] sm:$0xff]
  %v76 = vld [vmem:[%s0 + $0x260] sm:$0xff]
  %v77 = vld [vmem:[%s0 + $0x270] sm:$0xff]
  %v78 = vld [vmem:[%s0 + $0x278] sm:$0xff]
  %v79 = vld [vmem:[%s0 + $0x288] sm:$0xff]
  %v80 = vld [vmem:[%s0 + $0x290] sm:$0xff]
  %v81 = vld [vmem:[%s0 + $0x2a0] sm:$0xff]
  %v82 = vld [vmem:[%s0 + $0x2a8] sm:$0xff]
  %v83 = vld [vmem:[%s0 + $0x2b8] sm:$0xff]
  %v84 = vld [vmem:[%s0 + $0x2c0] sm:$0xff]
  %v85 = vld [vmem:[%s0 + $0x2d0] sm:$0xff]
  %v86 = vld [vmem:[%s0 + $0x2d8] sm:$0xff]
  %v87 = vld [vmem:[%s0 + $0x2e8] sm:$0xff]
  %v88 = vld [vmem:[%s0 + $0x2f0] sm:$0xff]
  %v89 = vld [vmem:[%s0 + $0x300] sm:$0xff]
  %v90 = vld [vmem:[%s0 + $0x308] sm:$0xff]
  %v91 = vpack.c.bf16 %v28, %v27
  %v92 = vpack.c.bf16 %v30, %v29
  %v93 = vpack.c.bf16 %v32, %v31
  %v94 = vpack.c.bf16 %v34, %v33
  %v95 = vpack.c.bf16 %v36, %v35
  %v96 = vpack.c.bf16 %v38, %v37
  %v97 = vpack.c.bf16 %v40, %v39
  %v98 = vpack.c.bf16 %v42, %v41
  %v99 = vpack.c.bf16 %v44, %v43
  %v100 = vpack.c.bf16 %v46, %v45
  %v101 = vpack.c.bf16 %v48, %v47
  %v102 = vpack.c.bf16 %v50, %v49
  %v103 = vpack.c.bf16 %v52, %v51
  %v104 = vpack.c.bf16 %v54, %v53
  %v105 = vpack.c.bf16 %v56, %v55
  %v106 = vpack.c.bf16 %v58, %v57
  %v107 = vpack.c.bf16 %v60, %v59
  %v108 = vpack.c.bf16 %v62, %v61
  %v109 = vpack.c.bf16 %v64, %v63
  %v110 = vpack.c.bf16 %v66, %v65
  %v111 = vpack.c.bf16 %v68, %v67
  %v112 = vpack.c.bf16 %v70, %v69
  %v113 = vpack.c.bf16 %v72, %v71
  %v114 = vpack.c.bf16 %v74, %v73
  %v115 = vpack.c.bf16 %v76, %v75
  %v116 = vpack.c.bf16 %v78, %v77
  %v117 = vpack.c.bf16 %v80, %v79
  %v118 = vpack.c.bf16 %v82, %v81
  %v119 = vpack.c.bf16 %v84, %v83
  %v120 = vpack.c.bf16 %v86, %v85
  %v121 = vpack.c.bf16 %v88, %v87
  %v122 = vpack.c.bf16 %v90, %v89
  %v123 = vld [vmem:[%s4] sm:$0xf]
  %v124 = vld [vmem:[%s4 + $0x4] sm:$0xf]
  %v125 = vld [vmem:[%s4 + $0x8] sm:$0xf]
  %v126 = vld [vmem:[%s4 + $0xc] sm:$0xf]
  %v127 = vld [vmem:[%s4 + $0x10] sm:$0xf]
  %v128 = vld [vmem:[%s4 + $0x14] sm:$0xf]
  %v129 = vld [vmem:[%s4 + $0x18] sm:$0xf]
  %v130 = vld [vmem:[%s4 + $0x1c] sm:$0xf]
  %v131 = vld [vmem:[%s4 + $0x20] sm:$0xf]
  %v132 = vld [vmem:[%s4 + $0x24] sm:$0xf]
  %v133 = vld [vmem:[%s4 + $0x28] sm:$0xf]
  %v134 = vld [vmem:[%s4 + $0x2c] sm:$0xf]
  %v135 = vld [vmem:[%s4 + $0x30] sm:$0xf]
  %v136 = vld [vmem:[%s4 + $0x34] sm:$0xf]
  %v137 = vld [vmem:[%s4 + $0x38] sm:$0xf]
  %v138 = vld [vmem:[%s4 + $0x3c] sm:$0xf]
  %v139 = vld [vmem:[%s1] sm:$0xff]
  %v140 = vld [vmem:[%s1 + $0x8] sm:$0xff]
  %v141 = vld [vmem:[%s1 + $0x18] sm:$0xff]
  %v142 = vld [vmem:[%s1 + $0x20] sm:$0xff]
  %v143 = vld [vmem:[%s1 + $0x30] sm:$0xff]
  %v144 = vld [vmem:[%s1 + $0x38] sm:$0xff]
  %v145 = vld [vmem:[%s1 + $0x48] sm:$0xff]
  %v146 = vld [vmem:[%s1 + $0x50] sm:$0xff]
  %v147 = vld [vmem:[%s1 + $0x60] sm:$0xff]
  %v148 = vld [vmem:[%s1 + $0x68] sm:$0xff]
  %v149 = vld [vmem:[%s1 + $0x78] sm:$0xff]
  %v150 = vld [vmem:[%s1 + $0x80] sm:$0xff]
  %v151 = vld [vmem:[%s1 + $0x90] sm:$0xff]
  %v152 = vld [vmem:[%s1 + $0x98] sm:$0xff]
  %v153 = vld [vmem:[%s1 + $0xa8] sm:$0xff]
  %v154 = vld [vmem:[%s1 + $0xb0] sm:$0xff]
  %v155 = vld [vmem:[%s1 + $0xc0] sm:$0xff]
  %v156 = vld [vmem:[%s1 + $0xc8] sm:$0xff]
  %v157 = vld [vmem:[%s1 + $0xd8] sm:$0xff]
  %v158 = vld [vmem:[%s1 + $0xe0] sm:$0xff]
  %v159 = vld [vmem:[%s1 + $0xf0] sm:$0xff]
  %v160 = vld [vmem:[%s1 + $0xf8] sm:$0xff]
  %v161 = vld [vmem:[%s1 + $0x108] sm:$0xff]
  %v162 = vld [vmem:[%s1 + $0x110] sm:$0xff]
  %v163 = vld [vmem:[%s1 + $0x120] sm:$0xff]
  %v164 = vld [vmem:[%s1 + $0x128] sm:$0xff]
  %v165 = vld [vmem:[%s1 + $0x138] sm:$0xff]
  %v166 = vld [vmem:[%s1 + $0x140] sm:$0xff]
  %v167 = vld [vmem:[%s1 + $0x150] sm:$0xff]
  %v168 = vld [vmem:[%s1 + $0x158] sm:$0xff]
  %v169 = vld [vmem:[%s1 + $0x168] sm:$0xff]
  %v170 = vld [vmem:[%s1 + $0x170] sm:$0xff]
  %v171 = vld [vmem:[%s1 + $0x198] sm:$0xff]
  %v172 = vld [vmem:[%s1 + $0x1a0] sm:$0xff]
  %v173 = vld [vmem:[%s1 + $0x1b0] sm:$0xff]
  %v174 = vld [vmem:[%s1 + $0x1b8] sm:$0xff]
  %v175 = vld [vmem:[%s1 + $0x1c8] sm:$0xff]
  %v176 = vld [vmem:[%s1 + $0x1d0] sm:$0xff]
  %v177 = vld [vmem:[%s1 + $0x1e0] sm:$0xff]
  %v178 = vld [vmem:[%s1 + $0x1e8] sm:$0xff]
  %v179 = vld [vmem:[%s1 + $0x1f8] sm:$0xff]
  %v180 = vld [vmem:[%s1 + $0x200] sm:$0xff]
  %v181 = vld [vmem:[%s1 + $0x210] sm:$0xff]
  %v182 = vld [vmem:[%s1 + $0x218] sm:$0xff]
  %v183 = vld [vmem:[%s1 + $0x228] sm:$0xff]
  %v184 = vld [vmem:[%s1 + $0x230] sm:$0xff]
  %v185 = vld [vmem:[%s1 + $0x240] sm:$0xff]
  %v186 = vld [vmem:[%s1 + $0x248] sm:$0xff]
  %v187 = vld [vmem:[%s1 + $0x258] sm:$0xff]
  %v188 = vld [vmem:[%s1 + $0x260] sm:$0xff]
  %v189 = vld [vmem:[%s1 + $0x270] sm:$0xff]
  %v190 = vld [vmem:[%s1 + $0x278] sm:$0xff]
  %v191 = vld [vmem:[%s1 + $0x288] sm:$0xff]
  %v192 = vld [vmem:[%s1 + $0x290] sm:$0xff]
  %v193 = vld [vmem:[%s1 + $0x2a0] sm:$0xff]
  %v194 = vld [vmem:[%s1 + $0x2a8] sm:$0xff]
  %v195 = vld [vmem:[%s1 + $0x2b8] sm:$0xff]
  %v196 = vld [vmem:[%s1 + $0x2c0] sm:$0xff]
  %v197 = vld [vmem:[%s1 + $0x2d0] sm:$0xff]
  %v198 = vld [vmem:[%s1 + $0x2d8] sm:$0xff]
  %v199 = vld [vmem:[%s1 + $0x2e8] sm:$0xff]
  %v200 = vld [vmem:[%s1 + $0x2f0] sm:$0xff]
  %v201 = vld [vmem:[%s1 + $0x300] sm:$0xff]
  %v202 = vld [vmem:[%s1 + $0x308] sm:$0xff]
  %v203 = vpack.c.bf16 %v140, %v139
  %v204 = vpack.c.bf16 %v142, %v141
  %v205 = vpack.c.bf16 %v144, %v143
  %v206 = vpack.c.bf16 %v146, %v145
  %v207 = vpack.c.bf16 %v148, %v147
  %v208 = vpack.c.bf16 %v150, %v149
  %v209 = vpack.c.bf16 %v152, %v151
  %v210 = vpack.c.bf16 %v154, %v153
  %v211 = vpack.c.bf16 %v156, %v155
  %v212 = vpack.c.bf16 %v158, %v157
  %v213 = vpack.c.bf16 %v160, %v159
  %v214 = vpack.c.bf16 %v162, %v161
  %v215 = vpack.c.bf16 %v164, %v163
  %v216 = vpack.c.bf16 %v166, %v165
  %v217 = vpack.c.bf16 %v168, %v167
  %v218 = vpack.c.bf16 %v170, %v169
  %v219 = vpack.c.bf16 %v172, %v171
  %v220 = vpack.c.bf16 %v174, %v173
  %v221 = vpack.c.bf16 %v176, %v175
  %v222 = vpack.c.bf16 %v178, %v177
  %v223 = vpack.c.bf16 %v180, %v179
  %v224 = vpack.c.bf16 %v182, %v181
  %v225 = vpack.c.bf16 %v184, %v183
  %v226 = vpack.c.bf16 %v186, %v185
  %v227 = vpack.c.bf16 %v188, %v187
  %v228 = vpack.c.bf16 %v190, %v189
  %v229 = vpack.c.bf16 %v192, %v191
  %v230 = vpack.c.bf16 %v194, %v193
  %v231 = vpack.c.bf16 %v196, %v195
  %v232 = vpack.c.bf16 %v198, %v197
  %v233 = vpack.c.bf16 %v200, %v199
  %v234 = vpack.c.bf16 %v202, %v201
  %s235 = scalar_lea.vmem %s4, 64
  %v236 = vld [vmem:[%s235] sm:$0xf]
  %v237 = vld [vmem:[%s235 + $0x4] sm:$0xf]
  %v238 = vld [vmem:[%s235 + $0x8] sm:$0xf]
  %v239 = vld [vmem:[%s235 + $0xc] sm:$0xf]
  %v240 = vld [vmem:[%s235 + $0x10] sm:$0xf]
  %v241 = vld [vmem:[%s235 + $0x14] sm:$0xf]
  %v242 = vld [vmem:[%s235 + $0x18] sm:$0xf]
  %v243 = vld [vmem:[%s235 + $0x1c] sm:$0xf]
  %v244 = vld [vmem:[%s235 + $0x20] sm:$0xf]
  %v245 = vld [vmem:[%s235 + $0x24] sm:$0xf]
  %v246 = vld [vmem:[%s235 + $0x28] sm:$0xf]
  %v247 = vld [vmem:[%s235 + $0x2c] sm:$0xf]
  %v248 = vld [vmem:[%s235 + $0x30] sm:$0xf]
  %v249 = vld [vmem:[%s235 + $0x34] sm:$0xf]
  %v250 = vld [vmem:[%s235 + $0x38] sm:$0xf]
  %v251 = vld [vmem:[%s235 + $0x3c] sm:$0xf]
  %v268 = vunpack.c.l.b16 %v236
  %v269 = vunpack.c.l.b16 %v237
  %v270 = vunpack.c.l.b16 %v238
  %v271 = vunpack.c.l.b16 %v239
  %v272 = vunpack.c.l.b16 %v240
  %v273 = vunpack.c.l.b16 %v241
  %v274 = vunpack.c.l.b16 %v242
  %v275 = vunpack.c.l.b16 %v243
  %v276 = vunpack.c.l.b16 %v244
  %v277 = vunpack.c.l.b16 %v245
  %v278 = vunpack.c.l.b16 %v246
  %v279 = vunpack.c.l.b16 %v247
  %v280 = vunpack.c.l.b16 %v248
  %v281 = vunpack.c.l.b16 %v249
  %v282 = vunpack.c.l.b16 %v250
  %v283 = vunpack.c.l.b16 %v251
  %v284 = vpack.c.b16 %v269, %v268
  %v285 = vpack.c.b16 %v271, %v270
  %v286 = vpack.c.b16 %v273, %v272
  %v287 = vpack.c.b16 %v275, %v274
  %v288 = vpack.c.b16 %v277, %v276
  %v289 = vpack.c.b16 %v279, %v278
  %v290 = vpack.c.b16 %v281, %v280
  %v291 = vpack.c.b16 %v283, %v282
  %300 = vmatprep.subr.bf16.mxu0 0
  %301 = vmatpush1.bf16.msra.mxu0 %v284
  %302 = vmatprep.subr.bf16.mxu0 0
  %303 = vmatpush1.bf16.msra.mxu0 %v285
  %304 = vmatprep.subr.bf16.mxu0 0
  %305 = vmatpush1.bf16.msra.mxu0 %v286
  %306 = vmatprep.subr.bf16.mxu0 0
  %307 = vmatpush1.bf16.msra.mxu0 %v287
  %308 = vmatprep.subr.bf16.mxu0 0
  %309 = vmatpush1.bf16.msra.mxu0 %v288
  %310 = vmatprep.subr.bf16.mxu0 0
  %311 = vmatpush1.bf16.msra.mxu0 %v289
  %312 = vmatprep.subr.bf16.mxu0 0
  %313 = vmatpush1.bf16.msra.mxu0 %v290
  %314 = vmatprep.subr.bf16.mxu0 0
  %315 = vmatpush1.bf16.msra.mxu0 %v291
  %316 = vmatprep.subr.bf16.mxu0 0
  %317 = vmatpush1.bf16.msra.mxu0 0
  %318 = vmatprep.subr.bf16.mxu0 0
  %319 = vmatpush1.bf16.msra.mxu0 0
  %320 = vmatprep.subr.bf16.mxu0 0
  %321 = vmatpush1.bf16.msra.mxu0 0
  %322 = vmatprep.subr.bf16.mxu0 0
  %323 = vmatpush1.bf16.msra.mxu0 0
  %324 = vmatprep.subr.bf16.mxu0 0
  %325 = vmatpush1.bf16.msra.mxu0 0
  %326 = vmatprep.subr.bf16.mxu0 0
  %327 = vmatpush1.bf16.msra.mxu0 0
  %328 = vmatprep.subr.bf16.mxu0 0
  %329 = vmatpush1.bf16.msra.mxu0 0
  %330 = vmatprep.subr.bf16.mxu0 0
  %331 = vmatpush1.bf16.msra.mxu0 0
  %332 = vmatprep.mubr.bf16.mxu0 0
  %333 = vmatmul.mubr.bf16.gmra.mrb[0].mxu0 %v203
  %v334 = vpop.f32.mrb[0].mxu0
  %v335 = vadd.f32 0.0, %v334
  %v336 = vpop.f32.mrb[0].mxu0
  %v337 = vpop.f32.mrb[0].mxu0
  %v338 = vadd.f32 0.0, %v337
  %v339 = vpop.f32.mrb[0].mxu0
  %340 = vmatprep.mubr.bf16.mxu0 0
  %341 = vmatmul.mubr.bf16.gmra.mrb[0].mxu0 %v204
  %v342 = vpop.f32.mrb[0].mxu0
  %v343 = vadd.f32 0.0, %v342
  %v344 = vpop.f32.mrb[0].mxu0
  %v345 = vpop.f32.mrb[0].mxu0
  %v346 = vadd.f32 0.0, %v345
  %v347 = vpop.f32.mrb[0].mxu0
  %348 = vmatprep.mubr.bf16.mxu0 0
  %349 = vmatmul.mubr.bf16.gmra.mrb[0].mxu0 %v205
  %v350 = vpop.f32.mrb[0].mxu0
  %v351 = vadd.f32 0.0, %v350
  %v352 = vpop.f32.mrb[0].mxu0
  %v353 = vpop.f32.mrb[0].mxu0
  %v354 = vadd.f32 0.0, %v353
  %v355 = vpop.f32.mrb[0].mxu0
  %356 = vmatprep.mubr.bf16.mxu0 0
  %357 = vmatmul.mubr.bf16.gmra.mrb[0].mxu0 %v206
  %v358 = vpop.f32.mrb[0].mxu0
  %v359 = vadd.f32 0.0, %v358
  %v360 = vpop.f32.mrb[0].mxu0
  %v361 = vpop.f32.mrb[0].mxu0
  %v362 = vadd.f32 0.0, %v361
  %v363 = vpop.f32.mrb[0].mxu0
  %364 = vmatprep.mubr.bf16.mxu0 0
  %365 = vmatmul.mubr.bf16.gmra.mrb[0].mxu0 %v207
  %v366 = vpop.f32.mrb[0].mxu0
  %v367 = vadd.f32 0.0, %v366
  %v368 = vpop.f32.mrb[0].mxu0
  %v369 = vpop.f32.mrb[0].mxu0
  %v370 = vadd.f32 0.0, %v369
  %v371 = vpop.f32.mrb[0].mxu0
  %372 = vmatprep.mubr.bf16.mxu0 0
  %373 = vmatmul.mubr.bf16.gmra.mrb[0].mxu0 %v208
  %v374 = vpop.f32.mrb[0].mxu0
  %v375 = vadd.f32 0.0, %v374
  %v376 = vpop.f32.mrb[0].mxu0
  %v377 = vpop.f32.mrb[0].mxu0
  %v378 = vadd.f32 0.0, %v377
  %v379 = vpop.f32.mrb[0].mxu0
  %380 = vmatprep.mubr.bf16.mxu0 0
  %381 = vmatmul.mubr.bf16.gmra.mrb[0].mxu0 %v209
  %v382 = vpop.f32.mrb[0].mxu0
  %v383 = vadd.f32 0.0, %v382
  %v384 = vpop.f32.mrb[0].mxu0
  %v385 = vpop.f32.mrb[0].mxu0
  %v386 = vadd.f32 0.0, %v385
  %v387 = vpop.f32.mrb[0].mxu0
  %388 = vmatprep.mubr.bf16.mxu0 0
  %389 = vmatmul.mubr.bf16.gmra.mrb[0].mxu0 %v210
  %v390 = vpop.f32.mrb[0].mxu0
  %v391 = vadd.f32 0.0, %v390
  %v392 = vpop.f32.mrb[0].mxu0
  %v393 = vpop.f32.mrb[0].mxu0
  %v394 = vadd.f32 0.0, %v393
  %v395 = vpop.f32.mrb[0].mxu0
  %396 = vmatprep.mubr.bf16.mxu0 0
  %397 = vmatmul.mubr.bf16.gmra.mrb[0].mxu0 %v211
  %v398 = vpop.f32.mrb[0].mxu0
  %v399 = vadd.f32 0.0, %v398
  %v400 = vpop.f32.mrb[0].mxu0
  %v401 = vpop.f32.mrb[0].mxu0
  %v402 = vadd.f32 0.0, %v401
  %v403 = vpop.f32.mrb[0].mxu0
  %404 = vmatprep.mubr.bf16.mxu0 0
  %405 = vmatmul.mubr.bf16.gmra.mrb[0].mxu0 %v212
  %v406 = vpop.f32.mrb[0].mxu0
  %v407 = vadd.f32 0.0, %v406
  %v408 = vpop.f32.mrb[0].mxu0
  %v409 = vpop.f32.mrb[0].mxu0
  %v410 = vadd.f32 0.0, %v409
  %v411 = vpop.f32.mrb[0].mxu0
  %412 = vmatprep.mubr.bf16.mxu0 0
  %413 = vmatmul.mubr.bf16.gmra.mrb[0].mxu0 %v213
  %v414 = vpop.f32.mrb[0].mxu0
  %v415 = vadd.f32 0.0, %v414
  %v416 = vpop.f32.mrb[0].mxu0
  %v417 = vpop.f32.mrb[0].mxu0
  %v418 = vadd.f32 0.0, %v417
  %v419 = vpop.f32.mrb[0].mxu0
  %420 = vmatprep.mubr.bf16.mxu0 0
  %421 = vmatmul.mubr.bf16.gmra.mrb[0].mxu0 %v214
  %v422 = vpop.f32.mrb[0].mxu0
  %v423 = vadd.f32 0.0, %v422
  %v424 = vpop.f32.mrb[0].mxu0
  %v425 = vpop.f32.mrb[0].mxu0
  %v426 = vadd.f32 0.0, %v425
  %v427 = vpop.f32.mrb[0].mxu0
  %428 = vmatprep.mubr.bf16.mxu0 0
  %429 = vmatmul.mubr.bf16.gmra.mrb[0].mxu0 %v215
  %v430 = vpop.f32.mrb[0].mxu0
  %v431 = vadd.f32 0.0, %v430
  %v432 = vpop.f32.mrb[0].mxu0
  %v433 = vpop.f32.mrb[0].mxu0
  %v434 = vadd.f32 0.0, %v433
  %v435 = vpop.f32.mrb[0].mxu0
  %436 = vmatprep.mubr.bf16.mxu0 0
  %437 = vmatmul.mubr.bf16.gmra.mrb[0].mxu0 %v216
  %v438 = vpop.f32.mrb[0].mxu0
  %v439 = vadd.f32 0.0, %v438
  %v440 = vpop.f32.mrb[0].mxu0
  %v441 = vpop.f32.mrb[0].mxu0
  %v442 = vadd.f32 0.0, %v441
  %v443 = vpop.f32.mrb[0].mxu0
  %444 = vmatprep.mubr.bf16.mxu0 0
  %445 = vmatmul.mubr.bf16.gmra.mrb[0].mxu0 %v217
  %v446 = vpop.f32.mrb[0].mxu0
  %v447 = vadd.f32 0.0, %v446
  %v448 = vpop.f32.mrb[0].mxu0
  %v449 = vpop.f32.mrb[0].mxu0
  %v450 = vadd.f32 0.0, %v449
  %v451 = vpop.f32.mrb[0].mxu0
  %452 = vmatprep.mubr.bf16.mxu0 0
  %453 = vmatmul.mubr.bf16.gmra.mrb[0].mxu0 %v218
  %v454 = vpop.f32.mrb[0].mxu0
  %v455 = vadd.f32 0.0, %v454
  %v456 = vpop.f32.mrb[0].mxu0
  %v457 = vpop.f32.mrb[0].mxu0
  %v458 = vadd.f32 0.0, %v457
  %v459 = vpop.f32.mrb[0].mxu0
  %460 = vmatprep.mubr.bf16.mxu0 0
  %461 = vmatmul.mubr.bf16.gmra.mrb[0].mxu0 %v219
  %v462 = vpop.f32.mrb[0].mxu0
  %v463 = vadd.f32 0.0, %v462
  %v464 = vpop.f32.mrb[0].mxu0
  %v465 = vpop.f32.mrb[0].mxu0
  %v466 = vadd.f32 0.0, %v465
  %v467 = vpop.f32.mrb[0].mxu0
  %468 = vmatprep.mubr.bf16.mxu0 0
  %469 = vmatmul.mubr.bf16.gmra.mrb[0].mxu0 %v220
  %v470 = vpop.f32.mrb[0].mxu0
  %v471 = vadd.f32 0.0, %v470
  %v472 = vpop.f32.mrb[0].mxu0
  %v473 = vpop.f32.mrb[0].mxu0
  %v474 = vadd.f32 0.0, %v473
  %v475 = vpop.f32.mrb[0].mxu0
  %476 = vmatprep.mubr.bf16.mxu0 0
  %477 = vmatmul.mubr.bf16.gmra.mrb[0].mxu0 %v221
  %v478 = vpop.f32.mrb[0].mxu0
  %v479 = vadd.f32 0.0, %v478
  %v480 = vpop.f32.mrb[0].mxu0
  %v481 = vpop.f32.mrb[0].mxu0
  %v482 = vadd.f32 0.0, %v481
  %v483 = vpop.f32.mrb[0].mxu0
  %484 = vmatprep.mubr.bf16.mxu0 0
  %485 = vmatmul.mubr.bf16.gmra.mrb[0].mxu0 %v222
  %v486 = vpop.f32.mrb[0].mxu0
  %v487 = vadd.f32 0.0, %v486
  %v488 = vpop.f32.mrb[0].mxu0
  %v489 = vpop.f32.mrb[0].mxu0
  %v490 = vadd.f32 0.0, %v489
  %v491 = vpop.f32.mrb[0].mxu0
  %492 = vmatprep.mubr.bf16.mxu0 0
  %493 = vmatmul.mubr.bf16.gmra.mrb[0].mxu0 %v223
  %v494 = vpop.f32.mrb[0].mxu0
  %v495 = vadd.f32 0.0, %v494
  %v496 = vpop.f32.mrb[0].mxu0
  %v497 = vpop.f32.mrb[0].mxu0
  %v498 = vadd.f32 0.0, %v497
  %v499 = vpop.f32.mrb[0].mxu0
  %500 = vmatprep.mubr.bf16.mxu0 0
  %501 = vmatmul.mubr.bf16.gmra.mrb[0].mxu0 %v224
  %v502 = vpop.f32.mrb[0].mxu0
  %v503 = vadd.f32 0.0, %v502
  %v504 = vpop.f32.mrb[0].mxu0
  %v505 = vpop.f32.mrb[0].mxu0
  %v506 = vadd.f32 0.0, %v505
  %v507 = vpop.f32.mrb[0].mxu0
  %508 = vmatprep.mubr.bf16.mxu0 0
  %509 = vmatmul.mubr.bf16.gmra.mrb[0].mxu0 %v225
  %v510 = vpop.f32.mrb[0].mxu0
  %v511 = vadd.f32 0.0, %v510
  %v512 = vpop.f32.mrb[0].mxu0
  %v513 = vpop.f32.mrb[0].mxu0
  %v514 = vadd.f32 0.0, %v513
  %v515 = vpop.f32.mrb[0].mxu0
  %516 = vmatprep.mubr.bf16.mxu0 0
  %517 = vmatmul.mubr.bf16.gmra.mrb[0].mxu0 %v226
  %v518 = vpop.f32.mrb[0].mxu0
  %v519 = vadd.f32 0.0, %v518
  %v520 = vpop.f32.mrb[0].mxu0
  %v521 = vpop.f32.mrb[0].mxu0
  %v522 = vadd.f32 0.0, %v521
  %v523 = vpop.f32.mrb[0].mxu0
  %524 = vmatprep.mubr.bf16.mxu0 0
  %525 = vmatmul.mubr.bf16.gmra.mrb[0].mxu0 %v227
  %v526 = vpop.f32.mrb[0].mxu0
  %v527 = vadd.f32 0.0, %v526
  %v528 = vpop.f32.mrb[0].mxu0
  %v529 = vpop.f32.mrb[0].mxu0
  %v530 = vadd.f32 0.0, %v529
  %v531 = vpop.f32.mrb[0].mxu0
  %532 = vmatprep.mubr.bf16.mxu0 0
  %533 = vmatmul.mubr.bf16.gmra.mrb[0].mxu0 %v228
  %v534 = vpop.f32.mrb[0].mxu0
  %v535 = vadd.f32 0.0, %v534
  %v536 = vpop.f32.mrb[0].mxu0
  %v537 = vpop.f32.mrb[0].mxu0
  %v538 = vadd.f32 0.0, %v537
  %v539 = vpop.f32.mrb[0].mxu0
  %540 = vmatprep.mubr.bf16.mxu0 0
  %541 = vmatmul.mubr.bf16.gmra.mrb[0].mxu0 %v229
  %v542 = vpop.f32.mrb[0].mxu0
  %v543 = vadd.f32 0.0, %v542
  %v544 = vpop.f32.mrb[0].mxu0
  %v545 = vpop.f32.mrb[0].mxu0
  %v546 = vadd.f32 0.0, %v545
  %v547 = vpop.f32.mrb[0].mxu0
  %548 = vmatprep.mubr.bf16.mxu0 0
  %549 = vmatmul.mubr.bf16.gmra.mrb[0].mxu0 %v230
  %v550 = vpop.f32.mrb[0].mxu0
  %v551 = vadd.f32 0.0, %v550
  %v552 = vpop.f32.mrb[0].mxu0
  %v553 = vpop.f32.mrb[0].mxu0
  %v554 = vadd.f32 0.0, %v553
  %v555 = vpop.f32.mrb[0].mxu0
  %556 = vmatprep.mubr.bf16.mxu0 0
  %557 = vmatmul.mubr.bf16.gmra.mrb[0].mxu0 %v231
  %v558 = vpop.f32.mrb[0].mxu0
  %v559 = vadd.f32 0.0, %v558
  %v560 = vpop.f32.mrb[0].mxu0
  %v561 = vpop.f32.mrb[0].mxu0
  %v562 = vadd.f32 0.0, %v561
  %v563 = vpop.f32.mrb[0].mxu0
  %564 = vmatprep.mubr.bf16.mxu0 0
  %565 = vmatmul.mubr.bf16.gmra.mrb[0].mxu0 %v232
  %v566 = vpop.f32.mrb[0].mxu0
  %v567 = vadd.f32 0.0, %v566
  %v568 = vpop.f32.mrb[0].mxu0
  %v569 = vpop.f32.mrb[0].mxu0
  %v570 = vadd.f32 0.0, %v569
  %v571 = vpop.f32.mrb[0].mxu0
  %572 = vmatprep.mubr.bf16.mxu0 0
  %573 = vmatmul.mubr.bf16.gmra.mrb[0].mxu0 %v233
  %v574 = vpop.f32.mrb[0].mxu0
  %v575 = vadd.f32 0.0, %v574
  %v576 = vpop.f32.mrb[0].mxu0
  %v577 = vpop.f32.mrb[0].mxu0
  %v578 = vadd.f32 0.0, %v577
  %v579 = vpop.f32.mrb[0].mxu0
  %580 = vmatprep.mubr.bf16.mxu0 0
  %581 = vmatmul.mubr.bf16.gmra.mrb[0].mxu0 %v234
  %v582 = vpop.f32.mrb[0].mxu0
  %v583 = vadd.f32 0.0, %v582
  %v584 = vpop.f32.mrb[0].mxu0
  %v585 = vpop.f32.mrb[0].mxu0
  %v586 = vadd.f32 0.0, %v585
  %v587 = vpop.f32.mrb[0].mxu0
  %588 = vdwg.mxu0
  %v605 = vunpack.c.l.b16 %v123
  %v606 = vunpack.c.l.b16 %v124
  %v607 = vunpack.c.l.b16 %v125
  %v608 = vunpack.c.l.b16 %v126
  %v609 = vunpack.c.l.b16 %v127
  %v610 = vunpack.c.l.b16 %v128
  %v611 = vunpack.c.l.b16 %v129
  %v612 = vunpack.c.l.b16 %v130
  %v613 = vunpack.c.l.b16 %v131
  %v614 = vunpack.c.l.b16 %v132
  %v615 = vunpack.c.l.b16 %v133
  %v616 = vunpack.c.l.b16 %v134
  %v617 = vunpack.c.l.b16 %v135
  %v618 = vunpack.c.l.b16 %v136
  %v619 = vunpack.c.l.b16 %v137
  %v620 = vunpack.c.l.b16 %v138
  %v621 = vpack.c.b16 %v606, %v605
  %v622 = vpack.c.b16 %v608, %v607
  %v623 = vpack.c.b16 %v610, %v609
  %v624 = vpack.c.b16 %v612, %v611
  %v625 = vpack.c.b16 %v614, %v613
  %v626 = vpack.c.b16 %v616, %v615
  %v627 = vpack.c.b16 %v618, %v617
  %v628 = vpack.c.b16 %v620, %v619
  %637 = vmatprep.subr.bf16.mxu0 0
  %638 = vmatpush1.bf16.msra.mxu0 %v621
  %639 = vmatprep.subr.bf16.mxu0 0
  %640 = vmatpush1.bf16.msra.mxu0 %v622
  %641 = vmatprep.subr.bf16.mxu0 0
  %642 = vmatpush1.bf16.msra.mxu0 %v623
  %643 = vmatprep.subr.bf16.mxu0 0
  %644 = vmatpush1.bf16.msra.mxu0 %v624
  %645 = vmatprep.subr.bf16.mxu0 0
  %646 = vmatpush1.bf16.msra.mxu0 %v625
  %647 = vmatprep.subr.bf16.mxu0 0
  %648 = vmatpush1.bf16.msra.mxu0 %v626
  %649 = vmatprep.subr.bf16.mxu0 0
  %650 = vmatpush1.bf16.msra.mxu0 %v627
  %651 = vmatprep.subr.bf16.mxu0 0
  %652 = vmatpush1.bf16.msra.mxu0 %v628
  %653 = vmatprep.subr.bf16.mxu0 0
  %654 = vmatpush1.bf16.msra.mxu0 0
  %655 = vmatprep.subr.bf16.mxu0 0
  %656 = vmatpush1.bf16.msra.mxu0 0
  %657 = vmatprep.subr.bf16.mxu0 0
  %658 = vmatpush1.bf16.msra.mxu0 0
  %659 = vmatprep.subr.bf16.mxu0 0
  %660 = vmatpush1.bf16.msra.mxu0 0
  %661 = vmatprep.subr.bf16.mxu0 0
  %662 = vmatpush1.bf16.msra.mxu0 0
  %663 = vmatprep.subr.bf16.mxu0 0
  %664 = vmatpush1.bf16.msra.mxu0 0
  %665 = vmatprep.subr.bf16.mxu0 0
  %666 = vmatpush1.bf16.msra.mxu0 0
  %667 = vmatprep.subr.bf16.mxu0 0
  %668 = vmatpush1.bf16.msra.mxu0 0
  %669 = vmatprep.mubr.bf16.mxu0 0
  %670 = vmatmul.mubr.bf16.gmra.mrb[0].mxu0 %v91
  %v671 = vpop.f32.mrb[0].mxu0
  %v672 = vadd.f32 %v335, %v671
  %v673 = vpop.f32.mrb[0].mxu0
  %v674 = vpop.f32.mrb[0].mxu0
  %v675 = vadd.f32 %v338, %v674
  %v676 = vpop.f32.mrb[0].mxu0
  %677 = vmatprep.mubr.bf16.mxu0 0
  %678 = vmatmul.mubr.bf16.gmra.mrb[0].mxu0 %v92
  %v679 = vpop.f32.mrb[0].mxu0
  %v680 = vadd.f32 %v343, %v679
  %v681 = vpop.f32.mrb[0].mxu0
  %v682 = vpop.f32.mrb[0].mxu0
  %v683 = vadd.f32 %v346, %v682
  %v684 = vpop.f32.mrb[0].mxu0
  %685 = vmatprep.mubr.bf16.mxu0 0
  %686 = vmatmul.mubr.bf16.gmra.mrb[0].mxu0 %v93
  %v687 = vpop.f32.mrb[0].mxu0
  %v688 = vadd.f32 %v351, %v687
  %v689 = vpop.f32.mrb[0].mxu0
  %v690 = vpop.f32.mrb[0].mxu0
  %v691 = vadd.f32 %v354, %v690
  %v692 = vpop.f32.mrb[0].mxu0
  %693 = vmatprep.mubr.bf16.mxu0 0
  %694 = vmatmul.mubr.bf16.gmra.mrb[0].mxu0 %v94
  %v695 = vpop.f32.mrb[0].mxu0
  %v696 = vadd.f32 %v359, %v695
  %v697 = vpop.f32.mrb[0].mxu0
  %v698 = vpop.f32.mrb[0].mxu0
  %v699 = vadd.f32 %v362, %v698
  %v700 = vpop.f32.mrb[0].mxu0
  %701 = vmatprep.mubr.bf16.mxu0 0
  %702 = vmatmul.mubr.bf16.gmra.mrb[0].mxu0 %v95
  %v703 = vpop.f32.mrb[0].mxu0
  %v704 = vadd.f32 %v367, %v703
  %v705 = vpop.f32.mrb[0].mxu0
  %v706 = vpop.f32.mrb[0].mxu0
  %v707 = vadd.f32 %v370, %v706
  %v708 = vpop.f32.mrb[0].mxu0
  %709 = vmatprep.mubr.bf16.mxu0 0
  %710 = vmatmul.mubr.bf16.gmra.mrb[0].mxu0 %v96
  %v711 = vpop.f32.mrb[0].mxu0
  %v712 = vadd.f32 %v375, %v711
  %v713 = vpop.f32.mrb[0].mxu0
  %v714 = vpop.f32.mrb[0].mxu0
  %v715 = vadd.f32 %v378, %v714
  %v716 = vpop.f32.mrb[0].mxu0
  %717 = vmatprep.mubr.bf16.mxu0 0
  %718 = vmatmul.mubr.bf16.gmra.mrb[0].mxu0 %v97
  %v719 = vpop.f32.mrb[0].mxu0
  %v720 = vadd.f32 %v383, %v719
  %v721 = vpop.f32.mrb[0].mxu0
  %v722 = vpop.f32.mrb[0].mxu0
  %v723 = vadd.f32 %v386, %v722
  %v724 = vpop.f32.mrb[0].mxu0
  %725 = vmatprep.mubr.bf16.mxu0 0
  %726 = vmatmul.mubr.bf16.gmra.mrb[0].mxu0 %v98
  %v727 = vpop.f32.mrb[0].mxu0
  %v728 = vadd.f32 %v391, %v727
  %v729 = vpop.f32.mrb[0].mxu0
  %v730 = vpop.f32.mrb[0].mxu0
  %v731 = vadd.f32 %v394, %v730
  %v732 = vpop.f32.mrb[0].mxu0
  %733 = vmatprep.mubr.bf16.mxu0 0
  %734 = vmatmul.mubr.bf16.gmra.mrb[0].mxu0 %v99
  %v735 = vpop.f32.mrb[0].mxu0
  %v736 = vadd.f32 %v399, %v735
  %v737 = vpop.f32.mrb[0].mxu0
  %v738 = vpop.f32.mrb[0].mxu0
  %v739 = vadd.f32 %v402, %v738
  %v740 = vpop.f32.mrb[0].mxu0
  %741 = vmatprep.mubr.bf16.mxu0 0
  %742 = vmatmul.mubr.bf16.gmra.mrb[0].mxu0 %v100
  %v743 = vpop.f32.mrb[0].mxu0
  %v744 = vadd.f32 %v407, %v743
  %v745 = vpop.f32.mrb[0].mxu0
  %v746 = vpop.f32.mrb[0].mxu0
  %v747 = vadd.f32 %v410, %v746
  %v748 = vpop.f32.mrb[0].mxu0
  %749 = vmatprep.mubr.bf16.mxu0 0
  %750 = vmatmul.mubr.bf16.gmra.mrb[0].mxu0 %v101
  %v751 = vpop.f32.mrb[0].mxu0
  %v752 = vadd.f32 %v415, %v751
  %v753 = vpop.f32.mrb[0].mxu0
  %v754 = vpop.f32.mrb[0].mxu0
  %v755 = vadd.f32 %v418, %v754
  %v756 = vpop.f32.mrb[0].mxu0
  %757 = vmatprep.mubr.bf16.mxu0 0
  %758 = vmatmul.mubr.bf16.gmra.mrb[0].mxu0 %v102
  %v759 = vpop.f32.mrb[0].mxu0
  %v760 = vadd.f32 %v423, %v759
  %v761 = vpop.f32.mrb[0].mxu0
  %v762 = vpop.f32.mrb[0].mxu0
  %v763 = vadd.f32 %v426, %v762
  %v764 = vpop.f32.mrb[0].mxu0
  %765 = vmatprep.mubr.bf16.mxu0 0
  %766 = vmatmul.mubr.bf16.gmra.mrb[0].mxu0 %v103
  %v767 = vpop.f32.mrb[0].mxu0
  %v768 = vadd.f32 %v431, %v767
  %v769 = vpop.f32.mrb[0].mxu0
  %v770 = vpop.f32.mrb[0].mxu0
  %v771 = vadd.f32 %v434, %v770
  %v772 = vpop.f32.mrb[0].mxu0
  %773 = vmatprep.mubr.bf16.mxu0 0
  %774 = vmatmul.mubr.bf16.gmra.mrb[0].mxu0 %v104
  %v775 = vpop.f32.mrb[0].mxu0
  %v776 = vadd.f32 %v439, %v775
  %v777 = vpop.f32.mrb[0].mxu0
  %v778 = vpop.f32.mrb[0].mxu0
  %v779 = vadd.f32 %v442, %v778
  %v780 = vpop.f32.mrb[0].mxu0
  %781 = vmatprep.mubr.bf16.mxu0 0
  %782 = vmatmul.mubr.bf16.gmra.mrb[0].mxu0 %v105
  %v783 = vpop.f32.mrb[0].mxu0
  %v784 = vadd.f32 %v447, %v783
  %v785 = vpop.f32.mrb[0].mxu0
  %v786 = vpop.f32.mrb[0].mxu0
  %v787 = vadd.f32 %v450, %v786
  %v788 = vpop.f32.mrb[0].mxu0
  %789 = vmatprep.mubr.bf16.mxu0 0
  %790 = vmatmul.mubr.bf16.gmra.mrb[0].mxu0 %v106
  %v791 = vpop.f32.mrb[0].mxu0
  %v792 = vadd.f32 %v455, %v791
  %v793 = vpop.f32.mrb[0].mxu0
  %v794 = vpop.f32.mrb[0].mxu0
  %v795 = vadd.f32 %v458, %v794
  %v796 = vpop.f32.mrb[0].mxu0
  %797 = vmatprep.mubr.bf16.mxu0 0
  %798 = vmatmul.mubr.bf16.gmra.mrb[0].mxu0 %v107
  %v799 = vpop.f32.mrb[0].mxu0
  %v800 = vadd.f32 %v463, %v799
  %v801 = vpop.f32.mrb[0].mxu0
  %v802 = vpop.f32.mrb[0].mxu0
  %v803 = vadd.f32 %v466, %v802
  %v804 = vpop.f32.mrb[0].mxu0
  %805 = vmatprep.mubr.bf16.mxu0 0
  %806 = vmatmul.mubr.bf16.gmra.mrb[0].mxu0 %v108
  %v807 = vpop.f32.mrb[0].mxu0
  %v808 = vadd.f32 %v471, %v807
  %v809 = vpop.f32.mrb[0].mxu0
  %v810 = vpop.f32.mrb[0].mxu0
  %v811 = vadd.f32 %v474, %v810
  %v812 = vpop.f32.mrb[0].mxu0
  %813 = vmatprep.mubr.bf16.mxu0 0
  %814 = vmatmul.mubr.bf16.gmra.mrb[0].mxu0 %v109
  %v815 = vpop.f32.mrb[0].mxu0
  %v816 = vadd.f32 %v479, %v815
  %v817 = vpop.f32.mrb[0].mxu0
  %v818 = vpop.f32.mrb[0].mxu0
  %v819 = vadd.f32 %v482, %v818
  %v820 = vpop.f32.mrb[0].mxu0
  %821 = vmatprep.mubr.bf16.mxu0 0
  %822 = vmatmul.mubr.bf16.gmra.mrb[0].mxu0 %v110
  %v823 = vpop.f32.mrb[0].mxu0
  %v824 = vadd.f32 %v487, %v823
  %v825 = vpop.f32.mrb[0].mxu0
  %v826 = vpop.f32.mrb[0].mxu0
  %v827 = vadd.f32 %v490, %v826
  %v828 = vpop.f32.mrb[0].mxu0
  %829 = vmatprep.mubr.bf16.mxu0 0
  %830 = vmatmul.mubr.bf16.gmra.mrb[0].mxu0 %v111
  %v831 = vpop.f32.mrb[0].mxu0
  %v832 = vadd.f32 %v495, %v831
  %v833 = vpop.f32.mrb[0].mxu0
  %v834 = vpop.f32.mrb[0].mxu0
  %v835 = vadd.f32 %v498, %v834
  %v836 = vpop.f32.mrb[0].mxu0
  %837 = vmatprep.mubr.bf16.mxu0 0
  %838 = vmatmul.mubr.bf16.gmra.mrb[0].mxu0 %v112
  %v839 = vpop.f32.mrb[0].mxu0
  %v840 = vadd.f32 %v503, %v839
  %v841 = vpop.f32.mrb[0].mxu0
  %v842 = vpop.f32.mrb[0].mxu0
  %v843 = vadd.f32 %v506, %v842
  %v844 = vpop.f32.mrb[0].mxu0
  %845 = vmatprep.mubr.bf16.mxu0 0
  %846 = vmatmul.mubr.bf16.gmra.mrb[0].mxu0 %v113
  %v847 = vpop.f32.mrb[0].mxu0
  %v848 = vadd.f32 %v511, %v847
  %v849 = vpop.f32.mrb[0].mxu0
  %v850 = vpop.f32.mrb[0].mxu0
  %v851 = vadd.f32 %v514, %v850
  %v852 = vpop.f32.mrb[0].mxu0
  %853 = vmatprep.mubr.bf16.mxu0 0
  %854 = vmatmul.mubr.bf16.gmra.mrb[0].mxu0 %v114
  %v855 = vpop.f32.mrb[0].mxu0
  %v856 = vadd.f32 %v519, %v855
  %v857 = vpop.f32.mrb[0].mxu0
  %v858 = vpop.f32.mrb[0].mxu0
  %v859 = vadd.f32 %v522, %v858
  %v860 = vpop.f32.mrb[0].mxu0
  %861 = vmatprep.mubr.bf16.mxu0 0
  %862 = vmatmul.mubr.bf16.gmra.mrb[0].mxu0 %v115
  %v863 = vpop.f32.mrb[0].mxu0
  %v864 = vadd.f32 %v527, %v863
  %v865 = vpop.f32.mrb[0].mxu0
  %v866 = vpop.f32.mrb[0].mxu0
  %v867 = vadd.f32 %v530, %v866
  %v868 = vpop.f32.mrb[0].mxu0
  %869 = vmatprep.mubr.bf16.mxu0 0
  %870 = vmatmul.mubr.bf16.gmra.mrb[0].mxu0 %v116
  %v871 = vpop.f32.mrb[0].mxu0
  %v872 = vadd.f32 %v535, %v871
  %v873 = vpop.f32.mrb[0].mxu0
  %v874 = vpop.f32.mrb[0].mxu0
  %v875 = vadd.f32 %v538, %v874
  %v876 = vpop.f32.mrb[0].mxu0
  %877 = vmatprep.mubr.bf16.mxu0 0
  %878 = vmatmul.mubr.bf16.gmra.mrb[0].mxu0 %v117
  %v879 = vpop.f32.mrb[0].mxu0
  %v880 = vadd.f32 %v543, %v879
  %v881 = vpop.f32.mrb[0].mxu0
  %v882 = vpop.f32.mrb[0].mxu0
  %v883 = vadd.f32 %v546, %v882
  %v884 = vpop.f32.mrb[0].mxu0
  %885 = vmatprep.mubr.bf16.mxu0 0
  %886 = vmatmul.mubr.bf16.gmra.mrb[0].mxu0 %v118
  %v887 = vpop.f32.mrb[0].mxu0
  %v888 = vadd.f32 %v551, %v887
  %v889 = vpop.f32.mrb[0].mxu0
  %v890 = vpop.f32.mrb[0].mxu0
  %v891 = vadd.f32 %v554, %v890
  %v892 = vpop.f32.mrb[0].mxu0
  %893 = vmatprep.mubr.bf16.mxu0 0
  %894 = vmatmul.mubr.bf16.gmra.mrb[0].mxu0 %v119
  %v895 = vpop.f32.mrb[0].mxu0
  %v896 = vadd.f32 %v559, %v895
  %v897 = vpop.f32.mrb[0].mxu0
  %v898 = vpop.f32.mrb[0].mxu0
  %v899 = vadd.f32 %v562, %v898
  %v900 = vpop.f32.mrb[0].mxu0
  %901 = vmatprep.mubr.bf16.mxu0 0
  %902 = vmatmul.mubr.bf16.gmra.mrb[0].mxu0 %v120
  %v903 = vpop.f32.mrb[0].mxu0
  %v904 = vadd.f32 %v567, %v903
  %v905 = vpop.f32.mrb[0].mxu0
  %v906 = vpop.f32.mrb[0].mxu0
  %v907 = vadd.f32 %v570, %v906
  %v908 = vpop.f32.mrb[0].mxu0
  %909 = vmatprep.mubr.bf16.mxu0 0
  %910 = vmatmul.mubr.bf16.gmra.mrb[0].mxu0 %v121
  %v911 = vpop.f32.mrb[0].mxu0
  %v912 = vadd.f32 %v575, %v911
  %v913 = vpop.f32.mrb[0].mxu0
  %v914 = vpop.f32.mrb[0].mxu0
  %v915 = vadd.f32 %v578, %v914
  %v916 = vpop.f32.mrb[0].mxu0
  %917 = vmatprep.mubr.bf16.mxu0 0
  %918 = vmatmul.mubr.bf16.gmra.mrb[0].mxu0 %v122
  %v919 = vpop.f32.mrb[0].mxu0
  %v920 = vadd.f32 %v583, %v919
  %v921 = vpop.f32.mrb[0].mxu0
  %v922 = vpop.f32.mrb[0].mxu0
  %v923 = vadd.f32 %v586, %v922
  %v924 = vpop.f32.mrb[0].mxu0
  %925 = vdwg.mxu0
  %v926 = vld [vmem:[%s0 + $0x1] sm:$0xff]
  %v927 = vld [vmem:[%s0 + $0x9] sm:$0xff]
  %v928 = vld [vmem:[%s0 + $0x19] sm:$0xff]
  %v929 = vld [vmem:[%s0 + $0x21] sm:$0xff]
  %v930 = vld [vmem:[%s0 + $0x31] sm:$0xff]
  %v931 = vld [vmem:[%s0 + $0x39] sm:$0xff]
  %v932 = vld [vmem:[%s0 + $0x49] sm:$0xff]
  %v933 = vld [vmem:[%s0 + $0x51] sm:$0xff]
  %v934 = vld [vmem:[%s0 + $0x61] sm:$0xff]
  %v935 = vld [vmem:[%s0 + $0x69] sm:$0xff]
  %v936 = vld [vmem:[%s0 + $0x79] sm:$0xff]
  %v937 = vld [vmem:[%s0 + $0x81] sm:$0xff]
  %v938 = vld [vmem:[%s0 + $0x91] sm:$0xff]
  %v939 = vld [vmem:[%s0 + $0x99] sm:$0xff]
  %v940 = vld [vmem:[%s0 + $0xa9] sm:$0xff]
  %v941 = vld [vmem:[%s0 + $0xb1] sm:$0xff]
  %v942 = vld [vmem:[%s0 + $0xc1] sm:$0xff]
  %v943 = vld [vmem:[%s0 + $0xc9] sm:$0xff]
  %v944 = vld [vmem:[%s0 + $0xd9] sm:$0xff]
  %v945 = vld [vmem:[%s0 + $0xe1] sm:$0xff]
  %v946 = vld [vmem:[%s0 + $0xf1] sm:$0xff]
  %v947 = vld [vmem:[%s0 + $0xf9] sm:$0xff]
  %v948 = vld [vmem:[%s0 + $0x109] sm:$0xff]
  %v949 = vld [vmem:[%s0 + $0x111] sm:$0xff]
  %v950 = vld [vmem:[%s0 + $0x121] sm:$0xff]
  %v951 = vld [vmem:[%s0 + $0x129] sm:$0xff]
  %v952 = vld [vmem:[%s0 + $0x139] sm:$0xff]
  %v953 = vld [vmem:[%s0 + $0x141] sm:$0xff]
  %v954 = vld [vmem:[%s0 + $0x151] sm:$0xff]
  %v955 = vld [vmem:[%s0 + $0x159] sm:$0xff]
  %v956 = vld [vmem:[%s0 + $0x169] sm:$0xff]
  %v957 = vld [vmem:[%s0 + $0x171] sm:$0xff]
  %v958 = vld [vmem:[%s0 + $0x199] sm:$0xff]
  %v959 = vld [vmem:[%s0 + $0x1a1] sm:$0xff]
  %v960 = vld [vmem:[%s0 + $0x1b1] sm:$0xff]
  %v961 = vld [vmem:[%s0 + $0x1b9] sm:$0xff]
  %v962 = vld [vmem:[%s0 + $0x1c9] sm:$0xff]
  %v963 = vld [vmem:[%s0 + $0x1d1] sm:$0xff]
  %v964 = vld [vmem:[%s0 + $0x1e1] sm:$0xff]
  %v965 = vld [vmem:[%s0 + $0x1e9] sm:$0xff]
  %v966 = vld [vmem:[%s0 + $0x1f9] sm:$0xff]
  %v967 = vld [vmem:[%s0 + $0x201] sm:$0xff]
  %v968 = vld [vmem:[%s0 + $0x211] sm:$0xff]
  %v969 = vld [vmem:[%s0 + $0x219] sm:$0xff]
  %v970 = vld [vmem:[%s0 + $0x229] sm:$0xff]
  %v971 = vld [vmem:[%s0 + $0x231] sm:$0xff]
  %v972 = vld [vmem:[%s0 + $0x241] sm:$0xff]
  %v973 = vld [vmem:[%s0 + $0x249] sm:$0xff]
  %v974 = vld [vmem:[%s0 + $0x259] sm:$0xff]
  %v975 = vld [vmem:[%s0 + $0x261] sm:$0xff]
  %v976 = vld [vmem:[%s0 + $0x271] sm:$0xff]
  %v977 = vld [vmem:[%s0 + $0x279] sm:$0xff]
  %v978 = vld [vmem:[%s0 + $0x289] sm:$0xff]
  %v979 = vld [vmem:[%s0 + $0x291] sm:$0xff]
  %v980 = vld [vmem:[%s0 + $0x2a1] sm:$0xff]
  %v981 = vld [vmem:[%s0 + $0x2a9] sm:$0xff]
  %v982 = vld [vmem:[%s0 + $0x2b9] sm:$0xff]
  %v983 = vld [vmem:[%s0 + $0x2c1] sm:$0xff]
  %v984 = vld [vmem:[%s0 + $0x2d1] sm:$0xff]
  %v985 = vld [vmem:[%s0 + $0x2d9] sm:$0xff]
  %v986 = vld [vmem:[%s0 + $0x2e9] sm:$0xff]
  %v987 = vld [vmem:[%s0 + $0x2f1] sm:$0xff]
  %v988 = vld [vmem:[%s0 + $0x301] sm:$0xff]
  %v989 = vld [vmem:[%s0 + $0x309] sm:$0xff]
  %v990 = vpack.c.bf16 %v927, %v926
  %v991 = vpack.c.bf16 %v929, %v928
  %v992 = vpack.c.bf16 %v931, %v930
  %v993 = vpack.c.bf16 %v933, %v932
  %v994 = vpack.c.bf16 %v935, %v934
  %v995 = vpack.c.bf16 %v937, %v936
  %v996 = vpack.c.bf16 %v939, %v938
  %v997 = vpack.c.bf16 %v941, %v940
  %v998 = vpack.c.bf16 %v943, %v942
  %v999 = vpack.c.bf16 %v945, %v944
  %v1000 = vpack.c.bf16 %v947, %v946
  %v1001 = vpack.c.bf16 %v949, %v948
  %v1002 = vpack.c.bf16 %v951, %v950
  %v1003 = vpack.c.bf16 %v953, %v952
  %v1004 = vpack.c.bf16 %v955, %v954
  %v1005 = vpack.c.bf16 %v957, %v956
  %v1006 = vpack.c.bf16 %v959, %v958
  %v1007 = vpack.c.bf16 %v961, %v960
  %v1008 = vpack.c.bf16 %v963, %v962
  %v1009 = vpack.c.bf16 %v965, %v964
  %v1010 = vpack.c.bf16 %v967, %v966
  %v1011 = vpack.c.bf16 %v969, %v968
  %v1012 = vpack.c.bf16 %v971, %v970
  %v1013 = vpack.c.bf16 %v973, %v972
  %v1014 = vpack.c.bf16 %v975, %v974
  %v1015 = vpack.c.bf16 %v977, %v976
  %v1016 = vpack.c.bf16 %v979, %v978
  %v1017 = vpack.c.bf16 %v981, %v980
  %v1018 = vpack.c.bf16 %v983, %v982
  %v1019 = vpack.c.bf16 %v985, %v984
  %v1020 = vpack.c.bf16 %v987, %v986
  %v1021 = vpack.c.bf16 %v989, %v988
  %s1022 = scalar_lea.vmem %s4, 128
  %v1023 = vld [vmem:[%s1022] sm:$0xf]
  %v1024 = vld [vmem:[%s1022 + $0x4] sm:$0xf]
  %v1025 = vld [vmem:[%s1022 + $0x8] sm:$0xf]
  %v1026 = vld [vmem:[%s1022 + $0xc] sm:$0xf]
  %v1027 = vld [vmem:[%s1022 + $0x10] sm:$0xf]
  %v1028 = vld [vmem:[%s1022 + $0x14] sm:$0xf]
  %v1029 = vld [vmem:[%s1022 + $0x18] sm:$0xf]
  %v1030 = vld [vmem:[%s1022 + $0x1c] sm:$0xf]
  %v1031 = vld [vmem:[%s1022 + $0x20] sm:$0xf]
  %v1032 = vld [vmem:[%s1022 + $0x24] sm:$0xf]
  %v1033 = vld [vmem:[%s1022 + $0x28] sm:$0xf]
  %v1034 = vld [vmem:[%s1022 + $0x2c] sm:$0xf]
  %v1035 = vld [vmem:[%s1022 + $0x30] sm:$0xf]
  %v1036 = vld [vmem:[%s1022 + $0x34] sm:$0xf]
  %v1037 = vld [vmem:[%s1022 + $0x38] sm:$0xf]
  %v1038 = vld [vmem:[%s1022 + $0x3c] sm:$0xf]
  %v1055 = vunpack.c.l.b16 %v1023
  %v1056 = vunpack.c.l.b16 %v1024
  %v1057 = vunpack.c.l.b16 %v1025
  %v1058 = vunpack.c.l.b16 %v1026
  %v1059 = vunpack.c.l.b16 %v1027
  %v1060 = vunpack.c.l.b16 %v1028
  %v1061 = vunpack.c.l.b16 %v1029
  %v1062 = vunpack.c.l.b16 %v1030
  %v1063 = vunpack.c.l.b16 %v1031
  %v1064 = vunpack.c.l.b16 %v1032
  %v1065 = vunpack.c.l.b16 %v1033
  %v1066 = vunpack.c.l.b16 %v1034
  %v1067 = vunpack.c.l.b16 %v1035
  %v1068 = vunpack.c.l.b16 %v1036
  %v1069 = vunpack.c.l.b16 %v1037
  %v1070 = vunpack.c.l.b16 %v1038
  %v1071 = vpack.c.b16 %v1056, %v1055
  %v1072 = vpack.c.b16 %v1058, %v1057
  %v1073 = vpack.c.b16 %v1060, %v1059
  %v1074 = vpack.c.b16 %v1062, %v1061
  %v1075 = vpack.c.b16 %v1064, %v1063
  %v1076 = vpack.c.b16 %v1066, %v1065
  %v1077 = vpack.c.b16 %v1068, %v1067
  %v1078 = vpack.c.b16 %v1070, %v1069
  %1087 = vmatprep.subr.bf16.mxu0 0
  %1088 = vmatpush1.bf16.msra.mxu0 %v1071
  %1089 = vmatprep.subr.bf16.mxu0 0
  %1090 = vmatpush1.bf16.msra.mxu0 %v1072
  %1091 = vmatprep.subr.bf16.mxu0 0
  %1092 = vmatpush1.bf16.msra.mxu0 %v1073
  %1093 = vmatprep.subr.bf16.mxu0 0
  %1094 = vmatpush1.bf16.msra.mxu0 %v1074
  %1095 = vmatprep.subr.bf16.mxu0 0
  %1096 = vmatpush1.bf16.msra.mxu0 %v1075
  %1097 = vmatprep.subr.bf16.mxu0 0
  %1098 = vmatpush1.bf16.msra.mxu0 %v1076
  %1099 = vmatprep.subr.bf16.mxu0 0
  %1100 = vmatpush1.bf16.msra.mxu0 %v1077
  %1101 = vmatprep.subr.bf16.mxu0 0
  %1102 = vmatpush1.bf16.msra.mxu0 %v1078
  %1103 = vmatprep.subr.bf16.mxu0 0
  %1104 = vmatpush1.bf16.msra.mxu0 0
  %1105 = vmatprep.subr.bf16.mxu0 0
  %1106 = vmatpush1.bf16.msra.mxu0 0
  %1107 = vmatprep.subr.bf16.mxu0 0
  %1108 = vmatpush1.bf16.msra.mxu0 0
  %1109 = vmatprep.subr.bf16.mxu0 0
  %1110 = vmatpush1.bf16.msra.mxu0 0
  %1111 = vmatprep.subr.bf16.mxu0 0
  %1112 = vmatpush1.bf16.msra.mxu0 0
  %1113 = vmatprep.subr.bf16.mxu0 0
  %1114 = vmatpush1.bf16.msra.mxu0 0
  %1115 = vmatprep.subr.bf16.mxu0 0
  %1116 = vmatpush1.bf16.msra.mxu0 0
  %1117 = vmatprep.subr.bf16.mxu0 0
  %1118 = vmatpush1.bf16.msra.mxu0 0
  %1119 = vmatprep.mubr.bf16.mxu0 0
  %1120 = vmatmul.mubr.bf16.gmra.mrb[0].mxu0 %v990
  %v1121 = vpop.f32.mrb[0].mxu0
  %v1122 = vadd.f32 0.0, %v1121
  %v1123 = vpop.f32.mrb[0].mxu0
  %v1124 = vpop.f32.mrb[0].mxu0
  %v1125 = vadd.f32 0.0, %v1124
  %v1126 = vpop.f32.mrb[0].mxu0
  %1127 = vmatprep.mubr.bf16.mxu0 0
  %1128 = vmatmul.mubr.bf16.gmra.mrb[0].mxu0 %v991
  %v1129 = vpop.f32.mrb[0].mxu0
  %v1130 = vadd.f32 0.0, %v1129
  %v1131 = vpop.f32.mrb[0].mxu0
  %v1132 = vpop.f32.mrb[0].mxu0
  %v1133 = vadd.f32 0.0, %v1132
  %v1134 = vpop.f32.mrb[0].mxu0
  %1135 = vmatprep.mubr.bf16.mxu0 0
  %1136 = vmatmul.mubr.bf16.gmra.mrb[0].mxu0 %v992
  %v1137 = vpop.f32.mrb[0].mxu0
  %v1138 = vadd.f32 0.0, %v1137
  %v1139 = vpop.f32.mrb[0].mxu0
  %v1140 = vpop.f32.mrb[0].mxu0
  %v1141 = vadd.f32 0.0, %v1140
  %v1142 = vpop.f32.mrb[0].mxu0
  %1143 = vmatprep.mubr.bf16.mxu0 0
  %1144 = vmatmul.mubr.bf16.gmra.mrb[0].mxu0 %v993
  %v1145 = vpop.f32.mrb[0].mxu0
  %v1146 = vadd.f32 0.0, %v1145
  %v1147 = vpop.f32.mrb[0].mxu0
  %v1148 = vpop.f32.mrb[0].mxu0
  %v1149 = vadd.f32 0.0, %v1148
  %v1150 = vpop.f32.mrb[0].mxu0
  %1151 = vmatprep.mubr.bf16.mxu0 0
  %1152 = vmatmul.mubr.bf16.gmra.mrb[0].mxu0 %v994
  %v1153 = vpop.f32.mrb[0].mxu0
  %v1154 = vadd.f32 0.0, %v1153
  %v1155 = vpop.f32.mrb[0].mxu0
  %v1156 = vpop.f32.mrb[0].mxu0
  %v1157 = vadd.f32 0.0, %v1156
  %v1158 = vpop.f32.mrb[0].mxu0
  %1159 = vmatprep.mubr.bf16.mxu0 0
  %1160 = vmatmul.mubr.bf16.gmra.mrb[0].mxu0 %v995
  %v1161 = vpop.f32.mrb[0].mxu0
  %v1162 = vadd.f32 0.0, %v1161
  %v1163 = vpop.f32.mrb[0].mxu0
  %v1164 = vpop.f32.mrb[0].mxu0
  %v1165 = vadd.f32 0.0, %v1164
  %v1166 = vpop.f32.mrb[0].mxu0
  %1167 = vmatprep.mubr.bf16.mxu0 0
  %1168 = vmatmul.mubr.bf16.gmra.mrb[0].mxu0 %v996
  %v1169 = vpop.f32.mrb[0].mxu0
  %v1170 = vadd.f32 0.0, %v1169
  %v1171 = vpop.f32.mrb[0].mxu0
  %v1172 = vpop.f32.mrb[0].mxu0
  %v1173 = vadd.f32 0.0, %v1172
  %v1174 = vpop.f32.mrb[0].mxu0
  %1175 = vmatprep.mubr.bf16.mxu0 0
  %1176 = vmatmul.mubr.bf16.gmra.mrb[0].mxu0 %v997
  %v1177 = vpop.f32.mrb[0].mxu0
  %v1178 = vadd.f32 0.0, %v1177
  %v1179 = vpop.f32.mrb[0].mxu0
  %v1180 = vpop.f32.mrb[0].mxu0
  %v1181 = vadd.f32 0.0, %v1180
  %v1182 = vpop.f32.mrb[0].mxu0
  %1183 = vmatprep.mubr.bf16.mxu0 0
  %1184 = vmatmul.mubr.bf16.gmra.mrb[0].mxu0 %v998
  %v1185 = vpop.f32.mrb[0].mxu0
  %v1186 = vadd.f32 0.0, %v1185
  %v1187 = vpop.f32.mrb[0].mxu0
  %v1188 = vpop.f32.mrb[0].mxu0
  %v1189 = vadd.f32 0.0, %v1188
  %v1190 = vpop.f32.mrb[0].mxu0
  %1191 = vmatprep.mubr.bf16.mxu0 0
  %1192 = vmatmul.mubr.bf16.gmra.mrb[0].mxu0 %v999
  %v1193 = vpop.f32.mrb[0].mxu0
  %v1194 = vadd.f32 0.0, %v1193
  %v1195 = vpop.f32.mrb[0].mxu0
  %v1196 = vpop.f32.mrb[0].mxu0
  %v1197 = vadd.f32 0.0, %v1196
  %v1198 = vpop.f32.mrb[0].mxu0
  %1199 = vmatprep.mubr.bf16.mxu0 0
  %1200 = vmatmul.mubr.bf16.gmra.mrb[0].mxu0 %v1000
  %v1201 = vpop.f32.mrb[0].mxu0
  %v1202 = vadd.f32 0.0, %v1201
  %v1203 = vpop.f32.mrb[0].mxu0
  %v1204 = vpop.f32.mrb[0].mxu0
  %v1205 = vadd.f32 0.0, %v1204
  %v1206 = vpop.f32.mrb[0].mxu0
  %1207 = vmatprep.mubr.bf16.mxu0 0
  %1208 = vmatmul.mubr.bf16.gmra.mrb[0].mxu0 %v1001
  %v1209 = vpop.f32.mrb[0].mxu0
  %v1210 = vadd.f32 0.0, %v1209
  %v1211 = vpop.f32.mrb[0].mxu0
  %v1212 = vpop.f32.mrb[0].mxu0
  %v1213 = vadd.f32 0.0, %v1212
  %v1214 = vpop.f32.mrb[0].mxu0
  %1215 = vmatprep.mubr.bf16.mxu0 0
  %1216 = vmatmul.mubr.bf16.gmra.mrb[0].mxu0 %v1002
  %v1217 = vpop.f32.mrb[0].mxu0
  %v1218 = vadd.f32 0.0, %v1217
  %v1219 = vpop.f32.mrb[0].mxu0
  %v1220 = vpop.f32.mrb[0].mxu0
  %v1221 = vadd.f32 0.0, %v1220
  %v1222 = vpop.f32.mrb[0].mxu0
  %1223 = vmatprep.mubr.bf16.mxu0 0
  %1224 = vmatmul.mubr.bf16.gmra.mrb[0].mxu0 %v1003
  %v1225 = vpop.f32.mrb[0].mxu0
  %v1226 = vadd.f32 0.0, %v1225
  %v1227 = vpop.f32.mrb[0].mxu0
  %v1228 = vpop.f32.mrb[0].mxu0
  %v1229 = vadd.f32 0.0, %v1228
  %v1230 = vpop.f32.mrb[0].mxu0
  %1231 = vmatprep.mubr.bf16.mxu0 0
  %1232 = vmatmul.mubr.bf16.gmra.mrb[0].mxu0 %v1004
  %v1233 = vpop.f32.mrb[0].mxu0
  %v1234 = vadd.f32 0.0, %v1233
  %v1235 = vpop.f32.mrb[0].mxu0
  %v1236 = vpop.f32.mrb[0].mxu0
  %v1237 = vadd.f32 0.0, %v1236
  %v1238 = vpop.f32.mrb[0].mxu0
  %1239 = vmatprep.mubr.bf16.mxu0 0
  %1240 = vmatmul.mubr.bf16.gmra.mrb[0].mxu0 %v1005
  %v1241 = vpop.f32.mrb[0].mxu0
  %v1242 = vadd.f32 0.0, %v1241
  %v1243 = vpop.f32.mrb[0].mxu0
  %v1244 = vpop.f32.mrb[0].mxu0
  %v1245 = vadd.f32 0.0, %v1244
  %v1246 = vpop.f32.mrb[0].mxu0
  %1247 = vmatprep.mubr.bf16.mxu0 0
  %1248 = vmatmul.mubr.bf16.gmra.mrb[0].mxu0 %v1006
  %v1249 = vpop.f32.mrb[0].mxu0
  %v1250 = vadd.f32 0.0, %v1249
  %v1251 = vpop.f32.mrb[0].mxu0
  %v1252 = vpop.f32.mrb[0].mxu0
  %v1253 = vadd.f32 0.0, %v1252
  %v1254 = vpop.f32.mrb[0].mxu0
  %1255 = vmatprep.mubr.bf16.mxu0 0
  %1256 = vmatmul.mubr.bf16.gmra.mrb[0].mxu0 %v1007
  %v1257 = vpop.f32.mrb[0].mxu0
  %v1258 = vadd.f32 0.0, %v1257
  %v1259 = vpop.f32.mrb[0].mxu0
  %v1260 = vpop.f32.mrb[0].mxu0
  %v1261 = vadd.f32 0.0, %v1260
  %v1262 = vpop.f32.mrb[0].mxu0
  %1263 = vmatprep.mubr.bf16.mxu0 0
  %1264 = vmatmul.mubr.bf16.gmra.mrb[0].mxu0 %v1008
  %v1265 = vpop.f32.mrb[0].mxu0
  %v1266 = vadd.f32 0.0, %v1265
  %v1267 = vpop.f32.mrb[0].mxu0
  %v1268 = vpop.f32.mrb[0].mxu0
  %v1269 = vadd.f32 0.0, %v1268
  %v1270 = vpop.f32.mrb[0].mxu0
  %1271 = vmatprep.mubr.bf16.mxu0 0
  %1272 = vmatmul.mubr.bf16.gmra.mrb[0].mxu0 %v1009
  %v1273 = vpop.f32.mrb[0].mxu0
  %v1274 = vadd.f32 0.0, %v1273
  %v1275 = vpop.f32.mrb[0].mxu0
  %v1276 = vpop.f32.mrb[0].mxu0
  %v1277 = vadd.f32 0.0, %v1276
  %v1278 = vpop.f32.mrb[0].mxu0
  %1279 = vmatprep.mubr.bf16.mxu0 0
  %1280 = vmatmul.mubr.bf16.gmra.mrb[0].mxu0 %v1010
  %v1281 = vpop.f32.mrb[0].mxu0
  %v1282 = vadd.f32 0.0, %v1281
  %v1283 = vpop.f32.mrb[0].mxu0
  %v1284 = vpop.f32.mrb[0].mxu0
  %v1285 = vadd.f32 0.0, %v1284
  %v1286 = vpop.f32.mrb[0].mxu0
  %1287 = vmatprep.mubr.bf16.mxu0 0
  %1288 = vmatmul.mubr.bf16.gmra.mrb[0].mxu0 %v1011
  %v1289 = vpop.f32.mrb[0].mxu0
  %v1290 = vadd.f32 0.0, %v1289
  %v1291 = vpop.f32.mrb[0].mxu0
  %v1292 = vpop.f32.mrb[0].mxu0
  %v1293 = vadd.f32 0.0, %v1292
  %v1294 = vpop.f32.mrb[0].mxu0
  %1295 = vmatprep.mubr.bf16.mxu0 0
  %1296 = vmatmul.mubr.bf16.gmra.mrb[0].mxu0 %v1012
  %v1297 = vpop.f32.mrb[0].mxu0
  %v1298 = vadd.f32 0.0, %v1297
  %v1299 = vpop.f32.mrb[0].mxu0
  %v1300 = vpop.f32.mrb[0].mxu0
  %v1301 = vadd.f32 0.0, %v1300
  %v1302 = vpop.f32.mrb[0].mxu0
  %1303 = vmatprep.mubr.bf16.mxu0 0
  %1304 = vmatmul.mubr.bf16.gmra.mrb[0].mxu0 %v1013
  %v1305 = vpop.f32.mrb[0].mxu0
  %v1306 = vadd.f32 0.0, %v1305
  %v1307 = vpop.f32.mrb[0].mxu0
  %v1308 = vpop.f32.mrb[0].mxu0
  %v1309 = vadd.f32 0.0, %v1308
  %v1310 = vpop.f32.mrb[0].mxu0
  %1311 = vmatprep.mubr.bf16.mxu0 0
  %1312 = vmatmul.mubr.bf16.gmra.mrb[0].mxu0 %v1014
  %v1313 = vpop.f32.mrb[0].mxu0
  %v1314 = vadd.f32 0.0, %v1313
  %v1315 = vpop.f32.mrb[0].mxu0
  %v1316 = vpop.f32.mrb[0].mxu0
  %v1317 = vadd.f32 0.0, %v1316
  %v1318 = vpop.f32.mrb[0].mxu0
  %1319 = vmatprep.mubr.bf16.mxu0 0
  %1320 = vmatmul.mubr.bf16.gmra.mrb[0].mxu0 %v1015
  %v1321 = vpop.f32.mrb[0].mxu0
  %v1322 = vadd.f32 0.0, %v1321
  %v1323 = vpop.f32.mrb[0].mxu0
  %v1324 = vpop.f32.mrb[0].mxu0
  %v1325 = vadd.f32 0.0, %v1324
  %v1326 = vpop.f32.mrb[0].mxu0
  %1327 = vmatprep.mubr.bf16.mxu0 0
  %1328 = vmatmul.mubr.bf16.gmra.mrb[0].mxu0 %v1016
  %v1329 = vpop.f32.mrb[0].mxu0
  %v1330 = vadd.f32 0.0, %v1329
  %v1331 = vpop.f32.mrb[0].mxu0
  %v1332 = vpop.f32.mrb[0].mxu0
  %v1333 = vadd.f32 0.0, %v1332
  %v1334 = vpop.f32.mrb[0].mxu0
  %1335 = vmatprep.mubr.bf16.mxu0 0
  %1336 = vmatmul.mubr.bf16.gmra.mrb[0].mxu0 %v1017
  %v1337 = vpop.f32.mrb[0].mxu0
  %v1338 = vadd.f32 0.0, %v1337
  %v1339 = vpop.f32.mrb[0].mxu0
  %v1340 = vpop.f32.mrb[0].mxu0
  %v1341 = vadd.f32 0.0, %v1340
  %v1342 = vpop.f32.mrb[0].mxu0
  %1343 = vmatprep.mubr.bf16.mxu0 0
  %1344 = vmatmul.mubr.bf16.gmra.mrb[0].mxu0 %v1018
  %v1345 = vpop.f32.mrb[0].mxu0
  %v1346 = vadd.f32 0.0, %v1345
  %v1347 = vpop.f32.mrb[0].mxu0
  %v1348 = vpop.f32.mrb[0].mxu0
  %v1349 = vadd.f32 0.0, %v1348
  %v1350 = vpop.f32.mrb[0].mxu0
  %1351 = vmatprep.mubr.bf16.mxu0 0
  %1352 = vmatmul.mubr.bf16.gmra.mrb[0].mxu0 %v1019
  %v1353 = vpop.f32.mrb[0].mxu0
  %v1354 = vadd.f32 0.0, %v1353
  %v1355 = vpop.f32.mrb[0].mxu0
  %v1356 = vpop.f32.mrb[0].mxu0
  %v1357 = vadd.f32 0.0, %v1356
  %v1358 = vpop.f32.mrb[0].mxu0
  %1359 = vmatprep.mubr.bf16.mxu0 0
  %1360 = vmatmul.mubr.bf16.gmra.mrb[0].mxu0 %v1020
  %v1361 = vpop.f32.mrb[0].mxu0
  %v1362 = vadd.f32 0.0, %v1361
  %v1363 = vpop.f32.mrb[0].mxu0
  %v1364 = vpop.f32.mrb[0].mxu0
  %v1365 = vadd.f32 0.0, %v1364
  %v1366 = vpop.f32.mrb[0].mxu0
  %1367 = vmatprep.mubr.bf16.mxu0 0
  %1368 = vmatmul.mubr.bf16.gmra.mrb[0].mxu0 %v1021
  %v1369 = vpop.f32.mrb[0].mxu0
  %v1370 = vadd.f32 0.0, %v1369
  %v1371 = vpop.f32.mrb[0].mxu0
  %v1372 = vpop.f32.mrb[0].mxu0
  %v1373 = vadd.f32 0.0, %v1372
  %v1374 = vpop.f32.mrb[0].mxu0
  %1375 = vdwg.mxu0
  %v1376 = vadd.f32 %v672, %v1122
  %v1377 = vadd.f32 %v675, %v1125
  %v1378 = vadd.f32 %v680, %v1130
  %v1379 = vadd.f32 %v683, %v1133
  %v1380 = vadd.f32 %v688, %v1138
  %v1381 = vadd.f32 %v691, %v1141
  %v1382 = vadd.f32 %v696, %v1146
  %v1383 = vadd.f32 %v699, %v1149
  %v1384 = vadd.f32 %v704, %v1154
  %v1385 = vadd.f32 %v707, %v1157
  %v1386 = vadd.f32 %v712, %v1162
  %v1387 = vadd.f32 %v715, %v1165
  %v1388 = vadd.f32 %v720, %v1170
  %v1389 = vadd.f32 %v723, %v1173
  %v1390 = vadd.f32 %v728, %v1178
  %v1391 = vadd.f32 %v731, %v1181
  %v1392 = vadd.f32 %v736, %v1186
  %v1393 = vadd.f32 %v739, %v1189
  %v1394 = vadd.f32 %v744, %v1194
  %v1395 = vadd.f32 %v747, %v1197
  %v1396 = vadd.f32 %v752, %v1202
  %v1397 = vadd.f32 %v755, %v1205
  %v1398 = vadd.f32 %v760, %v1210
  %v1399 = vadd.f32 %v763, %v1213
  %v1400 = vadd.f32 %v768, %v1218
  %v1401 = vadd.f32 %v771, %v1221
  %v1402 = vadd.f32 %v776, %v1226
  %v1403 = vadd.f32 %v779, %v1229
  %v1404 = vadd.f32 %v784, %v1234
  %v1405 = vadd.f32 %v787, %v1237
  %v1406 = vadd.f32 %v792, %v1242
  %v1407 = vadd.f32 %v795, %v1245
  %v1408 = vadd.f32 %v800, %v1250
  %v1409 = vadd.f32 %v803, %v1253
  %v1410 = vadd.f32 %v808, %v1258
  %v1411 = vadd.f32 %v811, %v1261
  %v1412 = vadd.f32 %v816, %v1266
  %v1413 = vadd.f32 %v819, %v1269
  %v1414 = vadd.f32 %v824, %v1274
  %v1415 = vadd.f32 %v827, %v1277
  %v1416 = vadd.f32 %v832, %v1282
  %v1417 = vadd.f32 %v835, %v1285
  %v1418 = vadd.f32 %v840, %v1290
  %v1419 = vadd.f32 %v843, %v1293
  %v1420 = vadd.f32 %v848, %v1298
  %v1421 = vadd.f32 %v851, %v1301
  %v1422 = vadd.f32 %v856, %v1306
  %v1423 = vadd.f32 %v859, %v1309
  %v1424 = vadd.f32 %v864, %v1314
  %v1425 = vadd.f32 %v867, %v1317
  %v1426 = vadd.f32 %v872, %v1322
  %v1427 = vadd.f32 %v875, %v1325
  %v1428 = vadd.f32 %v880, %v1330
  %v1429 = vadd.f32 %v883, %v1333
  %v1430 = vadd.f32 %v888, %v1338
  %v1431 = vadd.f32 %v891, %v1341
  %v1432 = vadd.f32 %v896, %v1346
  %v1433 = vadd.f32 %v899, %v1349
  %v1434 = vadd.f32 %v904, %v1354
  %v1435 = vadd.f32 %v907, %v1357
  %v1436 = vadd.f32 %v912, %v1362
  %v1437 = vadd.f32 %v915, %v1365
  %v1438 = vadd.f32 %v920, %v1370
  %v1439 = vadd.f32 %v923, %v1373
  %v1440 = vld [vmem:[%s2] sm:$0xff]
  %v1441 = vld [vmem:[%s2 + $0x8] sm:$0xff]
  %v1442 = vld [vmem:[%s2 + $0x18] sm:$0xff]
  %v1443 = vld [vmem:[%s2 + $0x20] sm:$0xff]
  %v1444 = vld [vmem:[%s2 + $0x30] sm:$0xff]
  %v1445 = vld [vmem:[%s2 + $0x38] sm:$0xff]
  %v1446 = vld [vmem:[%s2 + $0x48] sm:$0xff]
  %v1447 = vld [vmem:[%s2 + $0x50] sm:$0xff]
  %v1448 = vld [vmem:[%s2 + $0x60] sm:$0xff]
  %v1449 = vld [vmem:[%s2 + $0x68] sm:$0xff]
  %v1450 = vld [vmem:[%s2 + $0x78] sm:$0xff]
  %v1451 = vld [vmem:[%s2 + $0x80] sm:$0xff]
  %v1452 = vld [vmem:[%s2 + $0x90] sm:$0xff]
  %v1453 = vld [vmem:[%s2 + $0x98] sm:$0xff]
  %v1454 = vld [vmem:[%s2 + $0xa8] sm:$0xff]
  %v1455 = vld [vmem:[%s2 + $0xb0] sm:$0xff]
  %v1456 = vld [vmem:[%s2 + $0xc0] sm:$0xff]
  %v1457 = vld [vmem:[%s2 + $0xc8] sm:$0xff]
  %v1458 = vld [vmem:[%s2 + $0xd8] sm:$0xff]
  %v1459 = vld [vmem:[%s2 + $0xe0] sm:$0xff]
  %v1460 = vld [vmem:[%s2 + $0xf0] sm:$0xff]
  %v1461 = vld [vmem:[%s2 + $0xf8] sm:$0xff]
  %v1462 = vld [vmem:[%s2 + $0x108] sm:$0xff]
  %v1463 = vld [vmem:[%s2 + $0x110] sm:$0xff]
  %v1464 = vld [vmem:[%s2 + $0x120] sm:$0xff]
  %v1465 = vld [vmem:[%s2 + $0x128] sm:$0xff]
  %v1466 = vld [vmem:[%s2 + $0x138] sm:$0xff]
  %v1467 = vld [vmem:[%s2 + $0x140] sm:$0xff]
  %v1468 = vld [vmem:[%s2 + $0x150] sm:$0xff]
  %v1469 = vld [vmem:[%s2 + $0x158] sm:$0xff]
  %v1470 = vld [vmem:[%s2 + $0x168] sm:$0xff]
  %v1471 = vld [vmem:[%s2 + $0x170] sm:$0xff]
  %v1472 = vld [vmem:[%s2 + $0x198] sm:$0xff]
  %v1473 = vld [vmem:[%s2 + $0x1a0] sm:$0xff]
  %v1474 = vld [vmem:[%s2 + $0x1b0] sm:$0xff]
  %v1475 = vld [vmem:[%s2 + $0x1b8] sm:$0xff]
  %v1476 = vld [vmem:[%s2 + $0x1c8] sm:$0xff]
  %v1477 = vld [vmem:[%s2 + $0x1d0] sm:$0xff]
  %v1478 = vld [vmem:[%s2 + $0x1e0] sm:$0xff]
  %v1479 = vld [vmem:[%s2 + $0x1e8] sm:$0xff]
  %v1480 = vld [vmem:[%s2 + $0x1f8] sm:$0xff]
  %v1481 = vld [vmem:[%s2 + $0x200] sm:$0xff]
  %v1482 = vld [vmem:[%s2 + $0x210] sm:$0xff]
  %v1483 = vld [vmem:[%s2 + $0x218] sm:$0xff]
  %v1484 = vld [vmem:[%s2 + $0x228] sm:$0xff]
  %v1485 = vld [vmem:[%s2 + $0x230] sm:$0xff]
  %v1486 = vld [vmem:[%s2 + $0x240] sm:$0xff]
  %v1487 = vld [vmem:[%s2 + $0x248] sm:$0xff]
  %v1488 = vld [vmem:[%s2 + $0x258] sm:$0xff]
  %v1489 = vld [vmem:[%s2 + $0x260] sm:$0xff]
  %v1490 = vld [vmem:[%s2 + $0x270] sm:$0xff]
  %v1491 = vld [vmem:[%s2 + $0x278] sm:$0xff]
  %v1492 = vld [vmem:[%s2 + $0x288] sm:$0xff]
  %v1493 = vld [vmem:[%s2 + $0x290] sm:$0xff]
  %v1494 = vld [vmem:[%s2 + $0x2a0] sm:$0xff]
  %v1495 = vld [vmem:[%s2 + $0x2a8] sm:$0xff]
  %v1496 = vld [vmem:[%s2 + $0x2b8] sm:$0xff]
  %v1497 = vld [vmem:[%s2 + $0x2c0] sm:$0xff]
  %v1498 = vld [vmem:[%s2 + $0x2d0] sm:$0xff]
  %v1499 = vld [vmem:[%s2 + $0x2d8] sm:$0xff]
  %v1500 = vld [vmem:[%s2 + $0x2e8] sm:$0xff]
  %v1501 = vld [vmem:[%s2 + $0x2f0] sm:$0xff]
  %v1502 = vld [vmem:[%s2 + $0x300] sm:$0xff]
  %v1503 = vld [vmem:[%s2 + $0x308] sm:$0xff]
  %v1504 = vpack.c.bf16 %v1441, %v1440
  %v1505 = vpack.c.bf16 %v1443, %v1442
  %v1506 = vpack.c.bf16 %v1445, %v1444
  %v1507 = vpack.c.bf16 %v1447, %v1446
  %v1508 = vpack.c.bf16 %v1449, %v1448
  %v1509 = vpack.c.bf16 %v1451, %v1450
  %v1510 = vpack.c.bf16 %v1453, %v1452
  %v1511 = vpack.c.bf16 %v1455, %v1454
  %v1512 = vpack.c.bf16 %v1457, %v1456
  %v1513 = vpack.c.bf16 %v1459, %v1458
  %v1514 = vpack.c.bf16 %v1461, %v1460
  %v1515 = vpack.c.bf16 %v1463, %v1462
  %v1516 = vpack.c.bf16 %v1465, %v1464
  %v1517 = vpack.c.bf16 %v1467, %v1466
  %v1518 = vpack.c.bf16 %v1469, %v1468
  %v1519 = vpack.c.bf16 %v1471, %v1470
  %v1520 = vpack.c.bf16 %v1473, %v1472
  %v1521 = vpack.c.bf16 %v1475, %v1474
  %v1522 = vpack.c.bf16 %v1477, %v1476
  %v1523 = vpack.c.bf16 %v1479, %v1478
  %v1524 = vpack.c.bf16 %v1481, %v1480
  %v1525 = vpack.c.bf16 %v1483, %v1482
  %v1526 = vpack.c.bf16 %v1485, %v1484
  %v1527 = vpack.c.bf16 %v1487, %v1486
  %v1528 = vpack.c.bf16 %v1489, %v1488
  %v1529 = vpack.c.bf16 %v1491, %v1490
  %v1530 = vpack.c.bf16 %v1493, %v1492
  %v1531 = vpack.c.bf16 %v1495, %v1494
  %v1532 = vpack.c.bf16 %v1497, %v1496
  %v1533 = vpack.c.bf16 %v1499, %v1498
  %v1534 = vpack.c.bf16 %v1501, %v1500
  %v1535 = vpack.c.bf16 %v1503, %v1502
  %s1536 = scalar_lea.vmem %s4, 192
  %v1537 = vld [vmem:[%s1536] sm:$0xf]
  %v1538 = vld [vmem:[%s1536 + $0x4] sm:$0xf]
  %v1539 = vld [vmem:[%s1536 + $0x8] sm:$0xf]
  %v1540 = vld [vmem:[%s1536 + $0xc] sm:$0xf]
  %v1541 = vld [vmem:[%s1536 + $0x10] sm:$0xf]
  %v1542 = vld [vmem:[%s1536 + $0x14] sm:$0xf]
  %v1543 = vld [vmem:[%s1536 + $0x18] sm:$0xf]
  %v1544 = vld [vmem:[%s1536 + $0x1c] sm:$0xf]
  %v1545 = vld [vmem:[%s1536 + $0x20] sm:$0xf]
  %v1546 = vld [vmem:[%s1536 + $0x24] sm:$0xf]
  %v1547 = vld [vmem:[%s1536 + $0x28] sm:$0xf]
  %v1548 = vld [vmem:[%s1536 + $0x2c] sm:$0xf]
  %v1549 = vld [vmem:[%s1536 + $0x30] sm:$0xf]
  %v1550 = vld [vmem:[%s1536 + $0x34] sm:$0xf]
  %v1551 = vld [vmem:[%s1536 + $0x38] sm:$0xf]
  %v1552 = vld [vmem:[%s1536 + $0x3c] sm:$0xf]
  %v1569 = vunpack.c.l.b16 %v1537
  %v1570 = vunpack.c.l.b16 %v1538
  %v1571 = vunpack.c.l.b16 %v1539
  %v1572 = vunpack.c.l.b16 %v1540
  %v1573 = vunpack.c.l.b16 %v1541
  %v1574 = vunpack.c.l.b16 %v1542
  %v1575 = vunpack.c.l.b16 %v1543
  %v1576 = vunpack.c.l.b16 %v1544
  %v1577 = vunpack.c.l.b16 %v1545
  %v1578 = vunpack.c.l.b16 %v1546
  %v1579 = vunpack.c.l.b16 %v1547
  %v1580 = vunpack.c.l.b16 %v1548
  %v1581 = vunpack.c.l.b16 %v1549
  %v1582 = vunpack.c.l.b16 %v1550
  %v1583 = vunpack.c.l.b16 %v1551
  %v1584 = vunpack.c.l.b16 %v1552
  %v1585 = vpack.c.b16 %v1570, %v1569
  %v1586 = vpack.c.b16 %v1572, %v1571
  %v1587 = vpack.c.b16 %v1574, %v1573
  %v1588 = vpack.c.b16 %v1576, %v1575
  %v1589 = vpack.c.b16 %v1578, %v1577
  %v1590 = vpack.c.b16 %v1580, %v1579
  %v1591 = vpack.c.b16 %v1582, %v1581
  %v1592 = vpack.c.b16 %v1584, %v1583
  %1601 = vmatprep.subr.bf16.mxu0 0
  %1602 = vmatpush1.bf16.msra.mxu0 %v1585
  %1603 = vmatprep.subr.bf16.mxu0 0
  %1604 = vmatpush1.bf16.msra.mxu0 %v1586
  %1605 = vmatprep.subr.bf16.mxu0 0
  %1606 = vmatpush1.bf16.msra.mxu0 %v1587
  %1607 = vmatprep.subr.bf16.mxu0 0
  %1608 = vmatpush1.bf16.msra.mxu0 %v1588
  %1609 = vmatprep.subr.bf16.mxu0 0
  %1610 = vmatpush1.bf16.msra.mxu0 %v1589
  %1611 = vmatprep.subr.bf16.mxu0 0
  %1612 = vmatpush1.bf16.msra.mxu0 %v1590
  %1613 = vmatprep.subr.bf16.mxu0 0
  %1614 = vmatpush1.bf16.msra.mxu0 %v1591
  %1615 = vmatprep.subr.bf16.mxu0 0
  %1616 = vmatpush1.bf16.msra.mxu0 %v1592
  %1617 = vmatprep.subr.bf16.mxu0 0
  %1618 = vmatpush1.bf16.msra.mxu0 0
  %1619 = vmatprep.subr.bf16.mxu0 0
  %1620 = vmatpush1.bf16.msra.mxu0 0
  %1621 = vmatprep.subr.bf16.mxu0 0
  %1622 = vmatpush1.bf16.msra.mxu0 0
  %1623 = vmatprep.subr.bf16.mxu0 0
  %1624 = vmatpush1.bf16.msra.mxu0 0
  %1625 = vmatprep.subr.bf16.mxu0 0
  %1626 = vmatpush1.bf16.msra.mxu0 0
  %1627 = vmatprep.subr.bf16.mxu0 0
  %1628 = vmatpush1.bf16.msra.mxu0 0
  %1629 = vmatprep.subr.bf16.mxu0 0
  %1630 = vmatpush1.bf16.msra.mxu0 0
  %1631 = vmatprep.subr.bf16.mxu0 0
  %1632 = vmatpush1.bf16.msra.mxu0 0
  %1633 = vmatprep.mubr.bf16.mxu0 0
  %1634 = vmatmul.mubr.bf16.gmra.mrb[0].mxu0 %v1504
  %v1635 = vpop.f32.mrb[0].mxu0
  %v1636 = vadd.f32 0.0, %v1635
  %v1637 = vpop.f32.mrb[0].mxu0
  %v1638 = vpop.f32.mrb[0].mxu0
  %v1639 = vadd.f32 0.0, %v1638
  %v1640 = vpop.f32.mrb[0].mxu0
  %1641 = vmatprep.mubr.bf16.mxu0 0
  %1642 = vmatmul.mubr.bf16.gmra.mrb[0].mxu0 %v1505
  %v1643 = vpop.f32.mrb[0].mxu0
  %v1644 = vadd.f32 0.0, %v1643
  %v1645 = vpop.f32.mrb[0].mxu0
  %v1646 = vpop.f32.mrb[0].mxu0
  %v1647 = vadd.f32 0.0, %v1646
  %v1648 = vpop.f32.mrb[0].mxu0
  %1649 = vmatprep.mubr.bf16.mxu0 0
  %1650 = vmatmul.mubr.bf16.gmra.mrb[0].mxu0 %v1506
  %v1651 = vpop.f32.mrb[0].mxu0
  %v1652 = vadd.f32 0.0, %v1651
  %v1653 = vpop.f32.mrb[0].mxu0
  %v1654 = vpop.f32.mrb[0].mxu0
  %v1655 = vadd.f32 0.0, %v1654
  %v1656 = vpop.f32.mrb[0].mxu0
  %1657 = vmatprep.mubr.bf16.mxu0 0
  %1658 = vmatmul.mubr.bf16.gmra.mrb[0].mxu0 %v1507
  %v1659 = vpop.f32.mrb[0].mxu0
  %v1660 = vadd.f32 0.0, %v1659
  %v1661 = vpop.f32.mrb[0].mxu0
  %v1662 = vpop.f32.mrb[0].mxu0
  %v1663 = vadd.f32 0.0, %v1662
  %v1664 = vpop.f32.mrb[0].mxu0
  %1665 = vmatprep.mubr.bf16.mxu0 0
  %1666 = vmatmul.mubr.bf16.gmra.mrb[0].mxu0 %v1508
  %v1667 = vpop.f32.mrb[0].mxu0
  %v1668 = vadd.f32 0.0, %v1667
  %v1669 = vpop.f32.mrb[0].mxu0
  %v1670 = vpop.f32.mrb[0].mxu0
  %v1671 = vadd.f32 0.0, %v1670
  %v1672 = vpop.f32.mrb[0].mxu0
  %1673 = vmatprep.mubr.bf16.mxu0 0
  %1674 = vmatmul.mubr.bf16.gmra.mrb[0].mxu0 %v1509
  %v1675 = vpop.f32.mrb[0].mxu0
  %v1676 = vadd.f32 0.0, %v1675
  %v1677 = vpop.f32.mrb[0].mxu0
  %v1678 = vpop.f32.mrb[0].mxu0
  %v1679 = vadd.f32 0.0, %v1678
  %v1680 = vpop.f32.mrb[0].mxu0
  %1681 = vmatprep.mubr.bf16.mxu0 0
  %1682 = vmatmul.mubr.bf16.gmra.mrb[0].mxu0 %v1510
  %v1683 = vpop.f32.mrb[0].mxu0
  %v1684 = vadd.f32 0.0, %v1683
  %v1685 = vpop.f32.mrb[0].mxu0
  %v1686 = vpop.f32.mrb[0].mxu0
  %v1687 = vadd.f32 0.0, %v1686
  %v1688 = vpop.f32.mrb[0].mxu0
  %1689 = vmatprep.mubr.bf16.mxu0 0
  %1690 = vmatmul.mubr.bf16.gmra.mrb[0].mxu0 %v1511
  %v1691 = vpop.f32.mrb[0].mxu0
  %v1692 = vadd.f32 0.0, %v1691
  %v1693 = vpop.f32.mrb[0].mxu0
  %v1694 = vpop.f32.mrb[0].mxu0
  %v1695 = vadd.f32 0.0, %v1694
  %v1696 = vpop.f32.mrb[0].mxu0
  %1697 = vmatprep.mubr.bf16.mxu0 0
  %1698 = vmatmul.mubr.bf16.gmra.mrb[0].mxu0 %v1512
  %v1699 = vpop.f32.mrb[0].mxu0
  %v1700 = vadd.f32 0.0, %v1699
  %v1701 = vpop.f32.mrb[0].mxu0
  %v1702 = vpop.f32.mrb[0].mxu0
  %v1703 = vadd.f32 0.0, %v1702
  %v1704 = vpop.f32.mrb[0].mxu0
  %1705 = vmatprep.mubr.bf16.mxu0 0
  %1706 = vmatmul.mubr.bf16.gmra.mrb[0].mxu0 %v1513
  %v1707 = vpop.f32.mrb[0].mxu0
  %v1708 = vadd.f32 0.0, %v1707
  %v1709 = vpop.f32.mrb[0].mxu0
  %v1710 = vpop.f32.mrb[0].mxu0
  %v1711 = vadd.f32 0.0, %v1710
  %v1712 = vpop.f32.mrb[0].mxu0
  %1713 = vmatprep.mubr.bf16.mxu0 0
  %1714 = vmatmul.mubr.bf16.gmra.mrb[0].mxu0 %v1514
  %v1715 = vpop.f32.mrb[0].mxu0
  %v1716 = vadd.f32 0.0, %v1715
  %v1717 = vpop.f32.mrb[0].mxu0
  %v1718 = vpop.f32.mrb[0].mxu0
  %v1719 = vadd.f32 0.0, %v1718
  %v1720 = vpop.f32.mrb[0].mxu0
  %1721 = vmatprep.mubr.bf16.mxu0 0
  %1722 = vmatmul.mubr.bf16.gmra.mrb[0].mxu0 %v1515
  %v1723 = vpop.f32.mrb[0].mxu0
  %v1724 = vadd.f32 0.0, %v1723
  %v1725 = vpop.f32.mrb[0].mxu0
  %v1726 = vpop.f32.mrb[0].mxu0
  %v1727 = vadd.f32 0.0, %v1726
  %v1728 = vpop.f32.mrb[0].mxu0
  %1729 = vmatprep.mubr.bf16.mxu0 0
  %1730 = vmatmul.mubr.bf16.gmra.mrb[0].mxu0 %v1516
  %v1731 = vpop.f32.mrb[0].mxu0
  %v1732 = vadd.f32 0.0, %v1731
  %v1733 = vpop.f32.mrb[0].mxu0
  %v1734 = vpop.f32.mrb[0].mxu0
  %v1735 = vadd.f32 0.0, %v1734
  %v1736 = vpop.f32.mrb[0].mxu0
  %1737 = vmatprep.mubr.bf16.mxu0 0
  %1738 = vmatmul.mubr.bf16.gmra.mrb[0].mxu0 %v1517
  %v1739 = vpop.f32.mrb[0].mxu0
  %v1740 = vadd.f32 0.0, %v1739
  %v1741 = vpop.f32.mrb[0].mxu0
  %v1742 = vpop.f32.mrb[0].mxu0
  %v1743 = vadd.f32 0.0, %v1742
  %v1744 = vpop.f32.mrb[0].mxu0
  %1745 = vmatprep.mubr.bf16.mxu0 0
  %1746 = vmatmul.mubr.bf16.gmra.mrb[0].mxu0 %v1518
  %v1747 = vpop.f32.mrb[0].mxu0
  %v1748 = vadd.f32 0.0, %v1747
  %v1749 = vpop.f32.mrb[0].mxu0
  %v1750 = vpop.f32.mrb[0].mxu0
  %v1751 = vadd.f32 0.0, %v1750
  %v1752 = vpop.f32.mrb[0].mxu0
  %1753 = vmatprep.mubr.bf16.mxu0 0
  %1754 = vmatmul.mubr.bf16.gmra.mrb[0].mxu0 %v1519
  %v1755 = vpop.f32.mrb[0].mxu0
  %v1756 = vadd.f32 0.0, %v1755
  %v1757 = vpop.f32.mrb[0].mxu0
  %v1758 = vpop.f32.mrb[0].mxu0
  %v1759 = vadd.f32 0.0, %v1758
  %v1760 = vpop.f32.mrb[0].mxu0
  %1761 = vmatprep.mubr.bf16.mxu0 0
  %1762 = vmatmul.mubr.bf16.gmra.mrb[0].mxu0 %v1520
  %v1763 = vpop.f32.mrb[0].mxu0
  %v1764 = vadd.f32 0.0, %v1763
  %v1765 = vpop.f32.mrb[0].mxu0
  %v1766 = vpop.f32.mrb[0].mxu0
  %v1767 = vadd.f32 0.0, %v1766
  %v1768 = vpop.f32.mrb[0].mxu0
  %1769 = vmatprep.mubr.bf16.mxu0 0
  %1770 = vmatmul.mubr.bf16.gmra.mrb[0].mxu0 %v1521
  %v1771 = vpop.f32.mrb[0].mxu0
  %v1772 = vadd.f32 0.0, %v1771
  %v1773 = vpop.f32.mrb[0].mxu0
  %v1774 = vpop.f32.mrb[0].mxu0
  %v1775 = vadd.f32 0.0, %v1774
  %v1776 = vpop.f32.mrb[0].mxu0
  %1777 = vmatprep.mubr.bf16.mxu0 0
  %1778 = vmatmul.mubr.bf16.gmra.mrb[0].mxu0 %v1522
  %v1779 = vpop.f32.mrb[0].mxu0
  %v1780 = vadd.f32 0.0, %v1779
  %v1781 = vpop.f32.mrb[0].mxu0
  %v1782 = vpop.f32.mrb[0].mxu0
  %v1783 = vadd.f32 0.0, %v1782
  %v1784 = vpop.f32.mrb[0].mxu0
  %1785 = vmatprep.mubr.bf16.mxu0 0
  %1786 = vmatmul.mubr.bf16.gmra.mrb[0].mxu0 %v1523
  %v1787 = vpop.f32.mrb[0].mxu0
  %v1788 = vadd.f32 0.0, %v1787
  %v1789 = vpop.f32.mrb[0].mxu0
  %v1790 = vpop.f32.mrb[0].mxu0
  %v1791 = vadd.f32 0.0, %v1790
  %v1792 = vpop.f32.mrb[0].mxu0
  %1793 = vmatprep.mubr.bf16.mxu0 0
  %1794 = vmatmul.mubr.bf16.gmra.mrb[0].mxu0 %v1524
  %v1795 = vpop.f32.mrb[0].mxu0
  %v1796 = vadd.f32 0.0, %v1795
  %v1797 = vpop.f32.mrb[0].mxu0
  %v1798 = vpop.f32.mrb[0].mxu0
  %v1799 = vadd.f32 0.0, %v1798
  %v1800 = vpop.f32.mrb[0].mxu0
  %1801 = vmatprep.mubr.bf16.mxu0 0
  %1802 = vmatmul.mubr.bf16.gmra.mrb[0].mxu0 %v1525
  %v1803 = vpop.f32.mrb[0].mxu0
  %v1804 = vadd.f32 0.0, %v1803
  %v1805 = vpop.f32.mrb[0].mxu0
  %v1806 = vpop.f32.mrb[0].mxu0
  %v1807 = vadd.f32 0.0, %v1806
  %v1808 = vpop.f32.mrb[0].mxu0
  %1809 = vmatprep.mubr.bf16.mxu0 0
  %1810 = vmatmul.mubr.bf16.gmra.mrb[0].mxu0 %v1526
  %v1811 = vpop.f32.mrb[0].mxu0
  %v1812 = vadd.f32 0.0, %v1811
  %v1813 = vpop.f32.mrb[0].mxu0
  %v1814 = vpop.f32.mrb[0].mxu0
  %v1815 = vadd.f32 0.0, %v1814
  %v1816 = vpop.f32.mrb[0].mxu0
  %1817 = vmatprep.mubr.bf16.mxu0 0
  %1818 = vmatmul.mubr.bf16.gmra.mrb[0].mxu0 %v1527
  %v1819 = vpop.f32.mrb[0].mxu0
  %v1820 = vadd.f32 0.0, %v1819
  %v1821 = vpop.f32.mrb[0].mxu0
  %v1822 = vpop.f32.mrb[0].mxu0
  %v1823 = vadd.f32 0.0, %v1822
  %v1824 = vpop.f32.mrb[0].mxu0
  %1825 = vmatprep.mubr.bf16.mxu0 0
  %1826 = vmatmul.mubr.bf16.gmra.mrb[0].mxu0 %v1528
  %v1827 = vpop.f32.mrb[0].mxu0
  %v1828 = vadd.f32 0.0, %v1827
  %v1829 = vpop.f32.mrb[0].mxu0
  %v1830 = vpop.f32.mrb[0].mxu0
  %v1831 = vadd.f32 0.0, %v1830
  %v1832 = vpop.f32.mrb[0].mxu0
  %1833 = vmatprep.mubr.bf16.mxu0 0
  %1834 = vmatmul.mubr.bf16.gmra.mrb[0].mxu0 %v1529
  %v1835 = vpop.f32.mrb[0].mxu0
  %v1836 = vadd.f32 0.0, %v1835
  %v1837 = vpop.f32.mrb[0].mxu0
  %v1838 = vpop.f32.mrb[0].mxu0
  %v1839 = vadd.f32 0.0, %v1838
  %v1840 = vpop.f32.mrb[0].mxu0
  %1841 = vmatprep.mubr.bf16.mxu0 0
  %1842 = vmatmul.mubr.bf16.gmra.mrb[0].mxu0 %v1530
  %v1843 = vpop.f32.mrb[0].mxu0
  %v1844 = vadd.f32 0.0, %v1843
  %v1845 = vpop.f32.mrb[0].mxu0
  %v1846 = vpop.f32.mrb[0].mxu0
  %v1847 = vadd.f32 0.0, %v1846
  %v1848 = vpop.f32.mrb[0].mxu0
  %1849 = vmatprep.mubr.bf16.mxu0 0
  %1850 = vmatmul.mubr.bf16.gmra.mrb[0].mxu0 %v1531
  %v1851 = vpop.f32.mrb[0].mxu0
  %v1852 = vadd.f32 0.0, %v1851
  %v1853 = vpop.f32.mrb[0].mxu0
  %v1854 = vpop.f32.mrb[0].mxu0
  %v1855 = vadd.f32 0.0, %v1854
  %v1856 = vpop.f32.mrb[0].mxu0
  %1857 = vmatprep.mubr.bf16.mxu0 0
  %1858 = vmatmul.mubr.bf16.gmra.mrb[0].mxu0 %v1532
  %v1859 = vpop.f32.mrb[0].mxu0
  %v1860 = vadd.f32 0.0, %v1859
  %v1861 = vpop.f32.mrb[0].mxu0
  %v1862 = vpop.f32.mrb[0].mxu0
  %v1863 = vadd.f32 0.0, %v1862
  %v1864 = vpop.f32.mrb[0].mxu0
  %1865 = vmatprep.mubr.bf16.mxu0 0
  %1866 = vmatmul.mubr.bf16.gmra.mrb[0].mxu0 %v1533
  %v1867 = vpop.f32.mrb[0].mxu0
  %v1868 = vadd.f32 0.0, %v1867
  %v1869 = vpop.f32.mrb[0].mxu0
  %v1870 = vpop.f32.mrb[0].mxu0
  %v1871 = vadd.f32 0.0, %v1870
  %v1872 = vpop.f32.mrb[0].mxu0
  %1873 = vmatprep.mubr.bf16.mxu0 0
  %1874 = vmatmul.mubr.bf16.gmra.mrb[0].mxu0 %v1534
  %v1875 = vpop.f32.mrb[0].mxu0
  %v1876 = vadd.f32 0.0, %v1875
  %v1877 = vpop.f32.mrb[0].mxu0
  %v1878 = vpop.f32.mrb[0].mxu0
  %v1879 = vadd.f32 0.0, %v1878
  %v1880 = vpop.f32.mrb[0].mxu0
  %1881 = vmatprep.mubr.bf16.mxu0 0
  %1882 = vmatmul.mubr.bf16.gmra.mrb[0].mxu0 %v1535
  %v1883 = vpop.f32.mrb[0].mxu0
  %v1884 = vadd.f32 0.0, %v1883
  %v1885 = vpop.f32.mrb[0].mxu0
  %v1886 = vpop.f32.mrb[0].mxu0
  %v1887 = vadd.f32 0.0, %v1886
  %v1888 = vpop.f32.mrb[0].mxu0
  %1889 = vdwg.mxu0
  %v1890 = vadd.f32 %v1376, %v1636
  %v1891 = vadd.f32 %v1377, %v1639
  %v1892 = vadd.f32 %v1378, %v1644
  %v1893 = vadd.f32 %v1379, %v1647
  %v1894 = vadd.f32 %v1380, %v1652
  %v1895 = vadd.f32 %v1381, %v1655
  %v1896 = vadd.f32 %v1382, %v1660
  %v1897 = vadd.f32 %v1383, %v1663
  %v1898 = vadd.f32 %v1384, %v1668
  %v1899 = vadd.f32 %v1385, %v1671
  %v1900 = vadd.f32 %v1386, %v1676
  %v1901 = vadd.f32 %v1387, %v1679
  %v1902 = vadd.f32 %v1388, %v1684
  %v1903 = vadd.f32 %v1389, %v1687
  %v1904 = vadd.f32 %v1390, %v1692
  %v1905 = vadd.f32 %v1391, %v1695
  %v1906 = vadd.f32 %v1392, %v1700
  %v1907 = vadd.f32 %v1393, %v1703
  %v1908 = vadd.f32 %v1394, %v1708
  %v1909 = vadd.f32 %v1395, %v1711
  %v1910 = vadd.f32 %v1396, %v1716
  %v1911 = vadd.f32 %v1397, %v1719
  %v1912 = vadd.f32 %v1398, %v1724
  %v1913 = vadd.f32 %v1399, %v1727
  %v1914 = vadd.f32 %v1400, %v1732
  %v1915 = vadd.f32 %v1401, %v1735
  %v1916 = vadd.f32 %v1402, %v1740
  %v1917 = vadd.f32 %v1403, %v1743
  %v1918 = vadd.f32 %v1404, %v1748
  %v1919 = vadd.f32 %v1405, %v1751
  %v1920 = vadd.f32 %v1406, %v1756
  %v1921 = vadd.f32 %v1407, %v1759
  %v1922 = vadd.f32 %v1408, %v1764
  %v1923 = vadd.f32 %v1409, %v1767
  %v1924 = vadd.f32 %v1410, %v1772
  %v1925 = vadd.f32 %v1411, %v1775
  %v1926 = vadd.f32 %v1412, %v1780
  %v1927 = vadd.f32 %v1413, %v1783
  %v1928 = vadd.f32 %v1414, %v1788
  %v1929 = vadd.f32 %v1415, %v1791
  %v1930 = vadd.f32 %v1416, %v1796
  %v1931 = vadd.f32 %v1417, %v1799
  %v1932 = vadd.f32 %v1418, %v1804
  %v1933 = vadd.f32 %v1419, %v1807
  %v1934 = vadd.f32 %v1420, %v1812
  %v1935 = vadd.f32 %v1421, %v1815
  %v1936 = vadd.f32 %v1422, %v1820
  %v1937 = vadd.f32 %v1423, %v1823
  %v1938 = vadd.f32 %v1424, %v1828
  %v1939 = vadd.f32 %v1425, %v1831
  %v1940 = vadd.f32 %v1426, %v1836
  %v1941 = vadd.f32 %v1427, %v1839
  %v1942 = vadd.f32 %v1428, %v1844
  %v1943 = vadd.f32 %v1429, %v1847
  %v1944 = vadd.f32 %v1430, %v1852
  %v1945 = vadd.f32 %v1431, %v1855
  %v1946 = vadd.f32 %v1432, %v1860
  %v1947 = vadd.f32 %v1433, %v1863
  %v1948 = vadd.f32 %v1434, %v1868
  %v1949 = vadd.f32 %v1435, %v1871
  %v1950 = vadd.f32 %v1436, %v1876
  %v1951 = vadd.f32 %v1437, %v1879
  %v1952 = vadd.f32 %v1438, %v1884
  %v1953 = vadd.f32 %v1439, %v1887
  %v1954 = vld [vmem:[%s3] sm:$0xff]
  %v1955 = vld [vmem:[%s3 + $0x8] sm:$0xff]
  %v1956 = vld [vmem:[%s3 + $0x18] sm:$0xff]
  %v1957 = vld [vmem:[%s3 + $0x20] sm:$0xff]
  %v1958 = vld [vmem:[%s3 + $0x30] sm:$0xff]
  %v1959 = vld [vmem:[%s3 + $0x38] sm:$0xff]
  %v1960 = vld [vmem:[%s3 + $0x48] sm:$0xff]
  %v1961 = vld [vmem:[%s3 + $0x50] sm:$0xff]
  %v1962 = vld [vmem:[%s3 + $0x60] sm:$0xff]
  %v1963 = vld [vmem:[%s3 + $0x68] sm:$0xff]
  %v1964 = vld [vmem:[%s3 + $0x78] sm:$0xff]
  %v1965 = vld [vmem:[%s3 + $0x80] sm:$0xff]
  %v1966 = vld [vmem:[%s3 + $0x90] sm:$0xff]
  %v1967 = vld [vmem:[%s3 + $0x98] sm:$0xff]
  %v1968 = vld [vmem:[%s3 + $0xa8] sm:$0xff]
  %v1969 = vld [vmem:[%s3 + $0xb0] sm:$0xff]
  %v1970 = vld [vmem:[%s3 + $0xc0] sm:$0xff]
  %v1971 = vld [vmem:[%s3 + $0xc8] sm:$0xff]
  %v1972 = vld [vmem:[%s3 + $0xd8] sm:$0xff]
  %v1973 = vld [vmem:[%s3 + $0xe0] sm:$0xff]
  %v1974 = vld [vmem:[%s3 + $0xf0] sm:$0xff]
  %v1975 = vld [vmem:[%s3 + $0xf8] sm:$0xff]
  %v1976 = vld [vmem:[%s3 + $0x108] sm:$0xff]
  %v1977 = vld [vmem:[%s3 + $0x110] sm:$0xff]
  %v1978 = vld [vmem:[%s3 + $0x120] sm:$0xff]
  %v1979 = vld [vmem:[%s3 + $0x128] sm:$0xff]
  %v1980 = vld [vmem:[%s3 + $0x138] sm:$0xff]
  %v1981 = vld [vmem:[%s3 + $0x140] sm:$0xff]
  %v1982 = vld [vmem:[%s3 + $0x150] sm:$0xff]
  %v1983 = vld [vmem:[%s3 + $0x158] sm:$0xff]
  %v1984 = vld [vmem:[%s3 + $0x168] sm:$0xff]
  %v1985 = vld [vmem:[%s3 + $0x170] sm:$0xff]
  %v1986 = vld [vmem:[%s3 + $0x198] sm:$0xff]
  %v1987 = vld [vmem:[%s3 + $0x1a0] sm:$0xff]
  %v1988 = vld [vmem:[%s3 + $0x1b0] sm:$0xff]
  %v1989 = vld [vmem:[%s3 + $0x1b8] sm:$0xff]
  %v1990 = vld [vmem:[%s3 + $0x1c8] sm:$0xff]
  %v1991 = vld [vmem:[%s3 + $0x1d0] sm:$0xff]
  %v1992 = vld [vmem:[%s3 + $0x1e0] sm:$0xff]
  %v1993 = vld [vmem:[%s3 + $0x1e8] sm:$0xff]
  %v1994 = vld [vmem:[%s3 + $0x1f8] sm:$0xff]
  %v1995 = vld [vmem:[%s3 + $0x200] sm:$0xff]
  %v1996 = vld [vmem:[%s3 + $0x210] sm:$0xff]
  %v1997 = vld [vmem:[%s3 + $0x218] sm:$0xff]
  %v1998 = vld [vmem:[%s3 + $0x228] sm:$0xff]
  %v1999 = vld [vmem:[%s3 + $0x230] sm:$0xff]
  %v2000 = vld [vmem:[%s3 + $0x240] sm:$0xff]
  %v2001 = vld [vmem:[%s3 + $0x248] sm:$0xff]
  %v2002 = vld [vmem:[%s3 + $0x258] sm:$0xff]
  %v2003 = vld [vmem:[%s3 + $0x260] sm:$0xff]
  %v2004 = vld [vmem:[%s3 + $0x270] sm:$0xff]
  %v2005 = vld [vmem:[%s3 + $0x278] sm:$0xff]
  %v2006 = vld [vmem:[%s3 + $0x288] sm:$0xff]
  %v2007 = vld [vmem:[%s3 + $0x290] sm:$0xff]
  %v2008 = vld [vmem:[%s3 + $0x2a0] sm:$0xff]
  %v2009 = vld [vmem:[%s3 + $0x2a8] sm:$0xff]
  %v2010 = vld [vmem:[%s3 + $0x2b8] sm:$0xff]
  %v2011 = vld [vmem:[%s3 + $0x2c0] sm:$0xff]
  %v2012 = vld [vmem:[%s3 + $0x2d0] sm:$0xff]
  %v2013 = vld [vmem:[%s3 + $0x2d8] sm:$0xff]
  %v2014 = vld [vmem:[%s3 + $0x2e8] sm:$0xff]
  %v2015 = vld [vmem:[%s3 + $0x2f0] sm:$0xff]
  %v2016 = vld [vmem:[%s3 + $0x300] sm:$0xff]
  %v2017 = vld [vmem:[%s3 + $0x308] sm:$0xff]
  %v2018 = vpack.c.bf16 %v1955, %v1954
  %v2019 = vpack.c.bf16 %v1957, %v1956
  %v2020 = vpack.c.bf16 %v1959, %v1958
  %v2021 = vpack.c.bf16 %v1961, %v1960
  %v2022 = vpack.c.bf16 %v1963, %v1962
  %v2023 = vpack.c.bf16 %v1965, %v1964
  %v2024 = vpack.c.bf16 %v1967, %v1966
  %v2025 = vpack.c.bf16 %v1969, %v1968
  %v2026 = vpack.c.bf16 %v1971, %v1970
  %v2027 = vpack.c.bf16 %v1973, %v1972
  %v2028 = vpack.c.bf16 %v1975, %v1974
  %v2029 = vpack.c.bf16 %v1977, %v1976
  %v2030 = vpack.c.bf16 %v1979, %v1978
  %v2031 = vpack.c.bf16 %v1981, %v1980
  %v2032 = vpack.c.bf16 %v1983, %v1982
  %v2033 = vpack.c.bf16 %v1985, %v1984
  %v2034 = vpack.c.bf16 %v1987, %v1986
  %v2035 = vpack.c.bf16 %v1989, %v1988
  %v2036 = vpack.c.bf16 %v1991, %v1990
  %v2037 = vpack.c.bf16 %v1993, %v1992
  %v2038 = vpack.c.bf16 %v1995, %v1994
  %v2039 = vpack.c.bf16 %v1997, %v1996
  %v2040 = vpack.c.bf16 %v1999, %v1998
  %v2041 = vpack.c.bf16 %v2001, %v2000
  %v2042 = vpack.c.bf16 %v2003, %v2002
  %v2043 = vpack.c.bf16 %v2005, %v2004
  %v2044 = vpack.c.bf16 %v2007, %v2006
  %v2045 = vpack.c.bf16 %v2009, %v2008
  %v2046 = vpack.c.bf16 %v2011, %v2010
  %v2047 = vpack.c.bf16 %v2013, %v2012
  %v2048 = vpack.c.bf16 %v2015, %v2014
  %v2049 = vpack.c.bf16 %v2017, %v2016
  %s2050 = scalar_lea.vmem %s4, 256
  %v2051 = vld [vmem:[%s2050] sm:$0xf]
  %v2052 = vld [vmem:[%s2050 + $0x4] sm:$0xf]
  %v2053 = vld [vmem:[%s2050 + $0x8] sm:$0xf]
  %v2054 = vld [vmem:[%s2050 + $0xc] sm:$0xf]
  %v2055 = vld [vmem:[%s2050 + $0x10] sm:$0xf]
  %v2056 = vld [vmem:[%s2050 + $0x14] sm:$0xf]
  %v2057 = vld [vmem:[%s2050 + $0x18] sm:$0xf]
  %v2058 = vld [vmem:[%s2050 + $0x1c] sm:$0xf]
  %v2059 = vld [vmem:[%s2050 + $0x20] sm:$0xf]
  %v2060 = vld [vmem:[%s2050 + $0x24] sm:$0xf]
  %v2061 = vld [vmem:[%s2050 + $0x28] sm:$0xf]
  %v2062 = vld [vmem:[%s2050 + $0x2c] sm:$0xf]
  %v2063 = vld [vmem:[%s2050 + $0x30] sm:$0xf]
  %v2064 = vld [vmem:[%s2050 + $0x34] sm:$0xf]
  %v2065 = vld [vmem:[%s2050 + $0x38] sm:$0xf]
  %v2066 = vld [vmem:[%s2050 + $0x3c] sm:$0xf]
  %v2083 = vunpack.c.l.b16 %v2051
  %v2084 = vunpack.c.l.b16 %v2052
  %v2085 = vunpack.c.l.b16 %v2053
  %v2086 = vunpack.c.l.b16 %v2054
  %v2087 = vunpack.c.l.b16 %v2055
  %v2088 = vunpack.c.l.b16 %v2056
  %v2089 = vunpack.c.l.b16 %v2057
  %v2090 = vunpack.c.l.b16 %v2058
  %v2091 = vunpack.c.l.b16 %v2059
  %v2092 = vunpack.c.l.b16 %v2060
  %v2093 = vunpack.c.l.b16 %v2061
  %v2094 = vunpack.c.l.b16 %v2062
  %v2095 = vunpack.c.l.b16 %v2063
  %v2096 = vunpack.c.l.b16 %v2064
  %v2097 = vunpack.c.l.b16 %v2065
  %v2098 = vunpack.c.l.b16 %v2066
  %v2099 = vpack.c.b16 %v2084, %v2083
  %v2100 = vpack.c.b16 %v2086, %v2085
  %v2101 = vpack.c.b16 %v2088, %v2087
  %v2102 = vpack.c.b16 %v2090, %v2089
  %v2103 = vpack.c.b16 %v2092, %v2091
  %v2104 = vpack.c.b16 %v2094, %v2093
  %v2105 = vpack.c.b16 %v2096, %v2095
  %v2106 = vpack.c.b16 %v2098, %v2097
  %2115 = vmatprep.subr.bf16.mxu0 0
  %2116 = vmatpush1.bf16.msra.mxu0 %v2099
  %2117 = vmatprep.subr.bf16.mxu0 0
  %2118 = vmatpush1.bf16.msra.mxu0 %v2100
  %2119 = vmatprep.subr.bf16.mxu0 0
  %2120 = vmatpush1.bf16.msra.mxu0 %v2101
  %2121 = vmatprep.subr.bf16.mxu0 0
  %2122 = vmatpush1.bf16.msra.mxu0 %v2102
  %2123 = vmatprep.subr.bf16.mxu0 0
  %2124 = vmatpush1.bf16.msra.mxu0 %v2103
  %2125 = vmatprep.subr.bf16.mxu0 0
  %2126 = vmatpush1.bf16.msra.mxu0 %v2104
  %2127 = vmatprep.subr.bf16.mxu0 0
  %2128 = vmatpush1.bf16.msra.mxu0 %v2105
  %2129 = vmatprep.subr.bf16.mxu0 0
  %2130 = vmatpush1.bf16.msra.mxu0 %v2106
  %2131 = vmatprep.subr.bf16.mxu0 0
  %2132 = vmatpush1.bf16.msra.mxu0 0
  %2133 = vmatprep.subr.bf16.mxu0 0
  %2134 = vmatpush1.bf16.msra.mxu0 0
  %2135 = vmatprep.subr.bf16.mxu0 0
  %2136 = vmatpush1.bf16.msra.mxu0 0
  %2137 = vmatprep.subr.bf16.mxu0 0
  %2138 = vmatpush1.bf16.msra.mxu0 0
  %2139 = vmatprep.subr.bf16.mxu0 0
  %2140 = vmatpush1.bf16.msra.mxu0 0
  %2141 = vmatprep.subr.bf16.mxu0 0
  %2142 = vmatpush1.bf16.msra.mxu0 0
  %2143 = vmatprep.subr.bf16.mxu0 0
  %2144 = vmatpush1.bf16.msra.mxu0 0
  %2145 = vmatprep.subr.bf16.mxu0 0
  %2146 = vmatpush1.bf16.msra.mxu0 0
  %2147 = vmatprep.mubr.bf16.mxu0 0
  %2148 = vmatmul.mubr.bf16.gmra.mrb[0].mxu0 %v2018
  %v2149 = vpop.f32.mrb[0].mxu0
  %v2150 = vadd.f32 0.0, %v2149
  %v2151 = vpop.f32.mrb[0].mxu0
  %v2152 = vpop.f32.mrb[0].mxu0
  %v2153 = vadd.f32 0.0, %v2152
  %v2154 = vpop.f32.mrb[0].mxu0
  %2155 = vmatprep.mubr.bf16.mxu0 0
  %2156 = vmatmul.mubr.bf16.gmra.mrb[0].mxu0 %v2019
  %v2157 = vpop.f32.mrb[0].mxu0
  %v2158 = vadd.f32 0.0, %v2157
  %v2159 = vpop.f32.mrb[0].mxu0
  %v2160 = vpop.f32.mrb[0].mxu0
  %v2161 = vadd.f32 0.0, %v2160
  %v2162 = vpop.f32.mrb[0].mxu0
  %2163 = vmatprep.mubr.bf16.mxu0 0
  %2164 = vmatmul.mubr.bf16.gmra.mrb[0].mxu0 %v2020
  %v2165 = vpop.f32.mrb[0].mxu0
  %v2166 = vadd.f32 0.0, %v2165
  %v2167 = vpop.f32.mrb[0].mxu0
  %v2168 = vpop.f32.mrb[0].mxu0
  %v2169 = vadd.f32 0.0, %v2168
  %v2170 = vpop.f32.mrb[0].mxu0
  %2171 = vmatprep.mubr.bf16.mxu0 0
  %2172 = vmatmul.mubr.bf16.gmra.mrb[0].mxu0 %v2021
  %v2173 = vpop.f32.mrb[0].mxu0
  %v2174 = vadd.f32 0.0, %v2173
  %v2175 = vpop.f32.mrb[0].mxu0
  %v2176 = vpop.f32.mrb[0].mxu0
  %v2177 = vadd.f32 0.0, %v2176
  %v2178 = vpop.f32.mrb[0].mxu0
  %2179 = vmatprep.mubr.bf16.mxu0 0
  %2180 = vmatmul.mubr.bf16.gmra.mrb[0].mxu0 %v2022
  %v2181 = vpop.f32.mrb[0].mxu0
  %v2182 = vadd.f32 0.0, %v2181
  %v2183 = vpop.f32.mrb[0].mxu0
  %v2184 = vpop.f32.mrb[0].mxu0
  %v2185 = vadd.f32 0.0, %v2184
  %v2186 = vpop.f32.mrb[0].mxu0
  %2187 = vmatprep.mubr.bf16.mxu0 0
  %2188 = vmatmul.mubr.bf16.gmra.mrb[0].mxu0 %v2023
  %v2189 = vpop.f32.mrb[0].mxu0
  %v2190 = vadd.f32 0.0, %v2189
  %v2191 = vpop.f32.mrb[0].mxu0
  %v2192 = vpop.f32.mrb[0].mxu0
  %v2193 = vadd.f32 0.0, %v2192
  %v2194 = vpop.f32.mrb[0].mxu0
  %2195 = vmatprep.mubr.bf16.mxu0 0
  %2196 = vmatmul.mubr.bf16.gmra.mrb[0].mxu0 %v2024
  %v2197 = vpop.f32.mrb[0].mxu0
  %v2198 = vadd.f32 0.0, %v2197
  %v2199 = vpop.f32.mrb[0].mxu0
  %v2200 = vpop.f32.mrb[0].mxu0
  %v2201 = vadd.f32 0.0, %v2200
  %v2202 = vpop.f32.mrb[0].mxu0
  %2203 = vmatprep.mubr.bf16.mxu0 0
  %2204 = vmatmul.mubr.bf16.gmra.mrb[0].mxu0 %v2025
  %v2205 = vpop.f32.mrb[0].mxu0
  %v2206 = vadd.f32 0.0, %v2205
  %v2207 = vpop.f32.mrb[0].mxu0
  %v2208 = vpop.f32.mrb[0].mxu0
  %v2209 = vadd.f32 0.0, %v2208
  %v2210 = vpop.f32.mrb[0].mxu0
  %2211 = vmatprep.mubr.bf16.mxu0 0
  %2212 = vmatmul.mubr.bf16.gmra.mrb[0].mxu0 %v2026
  %v2213 = vpop.f32.mrb[0].mxu0
  %v2214 = vadd.f32 0.0, %v2213
  %v2215 = vpop.f32.mrb[0].mxu0
  %v2216 = vpop.f32.mrb[0].mxu0
  %v2217 = vadd.f32 0.0, %v2216
  %v2218 = vpop.f32.mrb[0].mxu0
  %2219 = vmatprep.mubr.bf16.mxu0 0
  %2220 = vmatmul.mubr.bf16.gmra.mrb[0].mxu0 %v2027
  %v2221 = vpop.f32.mrb[0].mxu0
  %v2222 = vadd.f32 0.0, %v2221
  %v2223 = vpop.f32.mrb[0].mxu0
  %v2224 = vpop.f32.mrb[0].mxu0
  %v2225 = vadd.f32 0.0, %v2224
  %v2226 = vpop.f32.mrb[0].mxu0
  %2227 = vmatprep.mubr.bf16.mxu0 0
  %2228 = vmatmul.mubr.bf16.gmra.mrb[0].mxu0 %v2028
  %v2229 = vpop.f32.mrb[0].mxu0
  %v2230 = vadd.f32 0.0, %v2229
  %v2231 = vpop.f32.mrb[0].mxu0
  %v2232 = vpop.f32.mrb[0].mxu0
  %v2233 = vadd.f32 0.0, %v2232
  %v2234 = vpop.f32.mrb[0].mxu0
  %2235 = vmatprep.mubr.bf16.mxu0 0
  %2236 = vmatmul.mubr.bf16.gmra.mrb[0].mxu0 %v2029
  %v2237 = vpop.f32.mrb[0].mxu0
  %v2238 = vadd.f32 0.0, %v2237
  %v2239 = vpop.f32.mrb[0].mxu0
  %v2240 = vpop.f32.mrb[0].mxu0
  %v2241 = vadd.f32 0.0, %v2240
  %v2242 = vpop.f32.mrb[0].mxu0
  %2243 = vmatprep.mubr.bf16.mxu0 0
  %2244 = vmatmul.mubr.bf16.gmra.mrb[0].mxu0 %v2030
  %v2245 = vpop.f32.mrb[0].mxu0
  %v2246 = vadd.f32 0.0, %v2245
  %v2247 = vpop.f32.mrb[0].mxu0
  %v2248 = vpop.f32.mrb[0].mxu0
  %v2249 = vadd.f32 0.0, %v2248
  %v2250 = vpop.f32.mrb[0].mxu0
  %2251 = vmatprep.mubr.bf16.mxu0 0
  %2252 = vmatmul.mubr.bf16.gmra.mrb[0].mxu0 %v2031
  %v2253 = vpop.f32.mrb[0].mxu0
  %v2254 = vadd.f32 0.0, %v2253
  %v2255 = vpop.f32.mrb[0].mxu0
  %v2256 = vpop.f32.mrb[0].mxu0
  %v2257 = vadd.f32 0.0, %v2256
  %v2258 = vpop.f32.mrb[0].mxu0
  %2259 = vmatprep.mubr.bf16.mxu0 0
  %2260 = vmatmul.mubr.bf16.gmra.mrb[0].mxu0 %v2032
  %v2261 = vpop.f32.mrb[0].mxu0
  %v2262 = vadd.f32 0.0, %v2261
  %v2263 = vpop.f32.mrb[0].mxu0
  %v2264 = vpop.f32.mrb[0].mxu0
  %v2265 = vadd.f32 0.0, %v2264
  %v2266 = vpop.f32.mrb[0].mxu0
  %2267 = vmatprep.mubr.bf16.mxu0 0
  %2268 = vmatmul.mubr.bf16.gmra.mrb[0].mxu0 %v2033
  %v2269 = vpop.f32.mrb[0].mxu0
  %v2270 = vadd.f32 0.0, %v2269
  %v2271 = vpop.f32.mrb[0].mxu0
  %v2272 = vpop.f32.mrb[0].mxu0
  %v2273 = vadd.f32 0.0, %v2272
  %v2274 = vpop.f32.mrb[0].mxu0
  %2275 = vmatprep.mubr.bf16.mxu0 0
  %2276 = vmatmul.mubr.bf16.gmra.mrb[0].mxu0 %v2034
  %v2277 = vpop.f32.mrb[0].mxu0
  %v2278 = vadd.f32 0.0, %v2277
  %v2279 = vpop.f32.mrb[0].mxu0
  %v2280 = vpop.f32.mrb[0].mxu0
  %v2281 = vadd.f32 0.0, %v2280
  %v2282 = vpop.f32.mrb[0].mxu0
  %2283 = vmatprep.mubr.bf16.mxu0 0
  %2284 = vmatmul.mubr.bf16.gmra.mrb[0].mxu0 %v2035
  %v2285 = vpop.f32.mrb[0].mxu0
  %v2286 = vadd.f32 0.0, %v2285
  %v2287 = vpop.f32.mrb[0].mxu0
  %v2288 = vpop.f32.mrb[0].mxu0
  %v2289 = vadd.f32 0.0, %v2288
  %v2290 = vpop.f32.mrb[0].mxu0
  %2291 = vmatprep.mubr.bf16.mxu0 0
  %2292 = vmatmul.mubr.bf16.gmra.mrb[0].mxu0 %v2036
  %v2293 = vpop.f32.mrb[0].mxu0
  %v2294 = vadd.f32 0.0, %v2293
  %v2295 = vpop.f32.mrb[0].mxu0
  %v2296 = vpop.f32.mrb[0].mxu0
  %v2297 = vadd.f32 0.0, %v2296
  %v2298 = vpop.f32.mrb[0].mxu0
  %2299 = vmatprep.mubr.bf16.mxu0 0
  %2300 = vmatmul.mubr.bf16.gmra.mrb[0].mxu0 %v2037
  %v2301 = vpop.f32.mrb[0].mxu0
  %v2302 = vadd.f32 0.0, %v2301
  %v2303 = vpop.f32.mrb[0].mxu0
  %v2304 = vpop.f32.mrb[0].mxu0
  %v2305 = vadd.f32 0.0, %v2304
  %v2306 = vpop.f32.mrb[0].mxu0
  %2307 = vmatprep.mubr.bf16.mxu0 0
  %2308 = vmatmul.mubr.bf16.gmra.mrb[0].mxu0 %v2038
  %v2309 = vpop.f32.mrb[0].mxu0
  %v2310 = vadd.f32 0.0, %v2309
  %v2311 = vpop.f32.mrb[0].mxu0
  %v2312 = vpop.f32.mrb[0].mxu0
  %v2313 = vadd.f32 0.0, %v2312
  %v2314 = vpop.f32.mrb[0].mxu0
  %2315 = vmatprep.mubr.bf16.mxu0 0
  %2316 = vmatmul.mubr.bf16.gmra.mrb[0].mxu0 %v2039
  %v2317 = vpop.f32.mrb[0].mxu0
  %v2318 = vadd.f32 0.0, %v2317
  %v2319 = vpop.f32.mrb[0].mxu0
  %v2320 = vpop.f32.mrb[0].mxu0
  %v2321 = vadd.f32 0.0, %v2320
  %v2322 = vpop.f32.mrb[0].mxu0
  %2323 = vmatprep.mubr.bf16.mxu0 0
  %2324 = vmatmul.mubr.bf16.gmra.mrb[0].mxu0 %v2040
  %v2325 = vpop.f32.mrb[0].mxu0
  %v2326 = vadd.f32 0.0, %v2325
  %v2327 = vpop.f32.mrb[0].mxu0
  %v2328 = vpop.f32.mrb[0].mxu0
  %v2329 = vadd.f32 0.0, %v2328
  %v2330 = vpop.f32.mrb[0].mxu0
  %2331 = vmatprep.mubr.bf16.mxu0 0
  %2332 = vmatmul.mubr.bf16.gmra.mrb[0].mxu0 %v2041
  %v2333 = vpop.f32.mrb[0].mxu0
  %v2334 = vadd.f32 0.0, %v2333
  %v2335 = vpop.f32.mrb[0].mxu0
  %v2336 = vpop.f32.mrb[0].mxu0
  %v2337 = vadd.f32 0.0, %v2336
  %v2338 = vpop.f32.mrb[0].mxu0
  %2339 = vmatprep.mubr.bf16.mxu0 0
  %2340 = vmatmul.mubr.bf16.gmra.mrb[0].mxu0 %v2042
  %v2341 = vpop.f32.mrb[0].mxu0
  %v2342 = vadd.f32 0.0, %v2341
  %v2343 = vpop.f32.mrb[0].mxu0
  %v2344 = vpop.f32.mrb[0].mxu0
  %v2345 = vadd.f32 0.0, %v2344
  %v2346 = vpop.f32.mrb[0].mxu0
  %2347 = vmatprep.mubr.bf16.mxu0 0
  %2348 = vmatmul.mubr.bf16.gmra.mrb[0].mxu0 %v2043
  %v2349 = vpop.f32.mrb[0].mxu0
  %v2350 = vadd.f32 0.0, %v2349
  %v2351 = vpop.f32.mrb[0].mxu0
  %v2352 = vpop.f32.mrb[0].mxu0
  %v2353 = vadd.f32 0.0, %v2352
  %v2354 = vpop.f32.mrb[0].mxu0
  %2355 = vmatprep.mubr.bf16.mxu0 0
  %2356 = vmatmul.mubr.bf16.gmra.mrb[0].mxu0 %v2044
  %v2357 = vpop.f32.mrb[0].mxu0
  %v2358 = vadd.f32 0.0, %v2357
  %v2359 = vpop.f32.mrb[0].mxu0
  %v2360 = vpop.f32.mrb[0].mxu0
  %v2361 = vadd.f32 0.0, %v2360
  %v2362 = vpop.f32.mrb[0].mxu0
  %2363 = vmatprep.mubr.bf16.mxu0 0
  %2364 = vmatmul.mubr.bf16.gmra.mrb[0].mxu0 %v2045
  %v2365 = vpop.f32.mrb[0].mxu0
  %v2366 = vadd.f32 0.0, %v2365
  %v2367 = vpop.f32.mrb[0].mxu0
  %v2368 = vpop.f32.mrb[0].mxu0
  %v2369 = vadd.f32 0.0, %v2368
  %v2370 = vpop.f32.mrb[0].mxu0
  %2371 = vmatprep.mubr.bf16.mxu0 0
  %2372 = vmatmul.mubr.bf16.gmra.mrb[0].mxu0 %v2046
  %v2373 = vpop.f32.mrb[0].mxu0
  %v2374 = vadd.f32 0.0, %v2373
  %v2375 = vpop.f32.mrb[0].mxu0
  %v2376 = vpop.f32.mrb[0].mxu0
  %v2377 = vadd.f32 0.0, %v2376
  %v2378 = vpop.f32.mrb[0].mxu0
  %2379 = vmatprep.mubr.bf16.mxu0 0
  %2380 = vmatmul.mubr.bf16.gmra.mrb[0].mxu0 %v2047
  %v2381 = vpop.f32.mrb[0].mxu0
  %v2382 = vadd.f32 0.0, %v2381
  %v2383 = vpop.f32.mrb[0].mxu0
  %v2384 = vpop.f32.mrb[0].mxu0
  %v2385 = vadd.f32 0.0, %v2384
  %v2386 = vpop.f32.mrb[0].mxu0
  %2387 = vmatprep.mubr.bf16.mxu0 0
  %2388 = vmatmul.mubr.bf16.gmra.mrb[0].mxu0 %v2048
  %v2389 = vpop.f32.mrb[0].mxu0
  %v2390 = vadd.f32 0.0, %v2389
  %v2391 = vpop.f32.mrb[0].mxu0
  %v2392 = vpop.f32.mrb[0].mxu0
  %v2393 = vadd.f32 0.0, %v2392
  %v2394 = vpop.f32.mrb[0].mxu0
  %2395 = vmatprep.mubr.bf16.mxu0 0
  %2396 = vmatmul.mubr.bf16.gmra.mrb[0].mxu0 %v2049
  %v2397 = vpop.f32.mrb[0].mxu0
  %v2398 = vadd.f32 0.0, %v2397
  %v2399 = vpop.f32.mrb[0].mxu0
  %v2400 = vpop.f32.mrb[0].mxu0
  %v2401 = vadd.f32 0.0, %v2400
  %v2402 = vpop.f32.mrb[0].mxu0
  %2403 = vdwg.mxu0
  %v2404 = vadd.f32 %v1890, %v2150
  %v2405 = vadd.f32 %v1891, %v2153
  %v2406 = vadd.f32 %v1892, %v2158
  %v2407 = vadd.f32 %v1893, %v2161
  %v2408 = vadd.f32 %v1894, %v2166
  %v2409 = vadd.f32 %v1895, %v2169
  %v2410 = vadd.f32 %v1896, %v2174
  %v2411 = vadd.f32 %v1897, %v2177
  %v2412 = vadd.f32 %v1898, %v2182
  %v2413 = vadd.f32 %v1899, %v2185
  %v2414 = vadd.f32 %v1900, %v2190
  %v2415 = vadd.f32 %v1901, %v2193
  %v2416 = vadd.f32 %v1902, %v2198
  %v2417 = vadd.f32 %v1903, %v2201
  %v2418 = vadd.f32 %v1904, %v2206
  %v2419 = vadd.f32 %v1905, %v2209
  %v2420 = vadd.f32 %v1906, %v2214
  %v2421 = vadd.f32 %v1907, %v2217
  %v2422 = vadd.f32 %v1908, %v2222
  %v2423 = vadd.f32 %v1909, %v2225
  %v2424 = vadd.f32 %v1910, %v2230
  %v2425 = vadd.f32 %v1911, %v2233
  %v2426 = vadd.f32 %v1912, %v2238
  %v2427 = vadd.f32 %v1913, %v2241
  %v2428 = vadd.f32 %v1914, %v2246
  %v2429 = vadd.f32 %v1915, %v2249
  %v2430 = vadd.f32 %v1916, %v2254
  %v2431 = vadd.f32 %v1917, %v2257
  %v2432 = vadd.f32 %v1918, %v2262
  %v2433 = vadd.f32 %v1919, %v2265
  %v2434 = vadd.f32 %v1920, %v2270
  %v2435 = vadd.f32 %v1921, %v2273
  %v2436 = vadd.f32 %v1922, %v2278
  %v2437 = vadd.f32 %v1923, %v2281
  %v2438 = vadd.f32 %v1924, %v2286
  %v2439 = vadd.f32 %v1925, %v2289
  %v2440 = vadd.f32 %v1926, %v2294
  %v2441 = vadd.f32 %v1927, %v2297
  %v2442 = vadd.f32 %v1928, %v2302
  %v2443 = vadd.f32 %v1929, %v2305
  %v2444 = vadd.f32 %v1930, %v2310
  %v2445 = vadd.f32 %v1931, %v2313
  %v2446 = vadd.f32 %v1932, %v2318
  %v2447 = vadd.f32 %v1933, %v2321
  %v2448 = vadd.f32 %v1934, %v2326
  %v2449 = vadd.f32 %v1935, %v2329
  %v2450 = vadd.f32 %v1936, %v2334
  %v2451 = vadd.f32 %v1937, %v2337
  %v2452 = vadd.f32 %v1938, %v2342
  %v2453 = vadd.f32 %v1939, %v2345
  %v2454 = vadd.f32 %v1940, %v2350
  %v2455 = vadd.f32 %v1941, %v2353
  %v2456 = vadd.f32 %v1942, %v2358
  %v2457 = vadd.f32 %v1943, %v2361
  %v2458 = vadd.f32 %v1944, %v2366
  %v2459 = vadd.f32 %v1945, %v2369
  %v2460 = vadd.f32 %v1946, %v2374
  %v2461 = vadd.f32 %v1947, %v2377
  %v2462 = vadd.f32 %v1948, %v2382
  %v2463 = vadd.f32 %v1949, %v2385
  %v2464 = vadd.f32 %v1950, %v2390
  %v2465 = vadd.f32 %v1951, %v2393
  %v2466 = vadd.f32 %v1952, %v2398
  %v2467 = vadd.f32 %v1953, %v2401
  %v2468 = vld [vmem:[%s2 + $0x1] sm:$0xff]
  %v2469 = vld [vmem:[%s2 + $0x9] sm:$0xff]
  %v2470 = vld [vmem:[%s2 + $0x19] sm:$0xff]
  %v2471 = vld [vmem:[%s2 + $0x21] sm:$0xff]
  %v2472 = vld [vmem:[%s2 + $0x31] sm:$0xff]
  %v2473 = vld [vmem:[%s2 + $0x39] sm:$0xff]
  %v2474 = vld [vmem:[%s2 + $0x49] sm:$0xff]
  %v2475 = vld [vmem:[%s2 + $0x51] sm:$0xff]
  %v2476 = vld [vmem:[%s2 + $0x61] sm:$0xff]
  %v2477 = vld [vmem:[%s2 + $0x69] sm:$0xff]
  %v2478 = vld [vmem:[%s2 + $0x79] sm:$0xff]
  %v2479 = vld [vmem:[%s2 + $0x81] sm:$0xff]
  %v2480 = vld [vmem:[%s2 + $0x91] sm:$0xff]
  %v2481 = vld [vmem:[%s2 + $0x99] sm:$0xff]
  %v2482 = vld [vmem:[%s2 + $0xa9] sm:$0xff]
  %v2483 = vld [vmem:[%s2 + $0xb1] sm:$0xff]
  %v2484 = vld [vmem:[%s2 + $0xc1] sm:$0xff]
  %v2485 = vld [vmem:[%s2 + $0xc9] sm:$0xff]
  %v2486 = vld [vmem:[%s2 + $0xd9] sm:$0xff]
  %v2487 = vld [vmem:[%s2 + $0xe1] sm:$0xff]
  %v2488 = vld [vmem:[%s2 + $0xf1] sm:$0xff]
  %v2489 = vld [vmem:[%s2 + $0xf9] sm:$0xff]
  %v2490 = vld [vmem:[%s2 + $0x109] sm:$0xff]
  %v2491 = vld [vmem:[%s2 + $0x111] sm:$0xff]
  %v2492 = vld [vmem:[%s2 + $0x121] sm:$0xff]
  %v2493 = vld [vmem:[%s2 + $0x129] sm:$0xff]
  %v2494 = vld [vmem:[%s2 + $0x139] sm:$0xff]
  %v2495 = vld [vmem:[%s2 + $0x141] sm:$0xff]
  %v2496 = vld [vmem:[%s2 + $0x151] sm:$0xff]
  %v2497 = vld [vmem:[%s2 + $0x159] sm:$0xff]
  %v2498 = vld [vmem:[%s2 + $0x169] sm:$0xff]
  %v2499 = vld [vmem:[%s2 + $0x171] sm:$0xff]
  %v2500 = vld [vmem:[%s2 + $0x199] sm:$0xff]
  %v2501 = vld [vmem:[%s2 + $0x1a1] sm:$0xff]
  %v2502 = vld [vmem:[%s2 + $0x1b1] sm:$0xff]
  %v2503 = vld [vmem:[%s2 + $0x1b9] sm:$0xff]
  %v2504 = vld [vmem:[%s2 + $0x1c9] sm:$0xff]
  %v2505 = vld [vmem:[%s2 + $0x1d1] sm:$0xff]
  %v2506 = vld [vmem:[%s2 + $0x1e1] sm:$0xff]
  %v2507 = vld [vmem:[%s2 + $0x1e9] sm:$0xff]
  %v2508 = vld [vmem:[%s2 + $0x1f9] sm:$0xff]
  %v2509 = vld [vmem:[%s2 + $0x201] sm:$0xff]
  %v2510 = vld [vmem:[%s2 + $0x211] sm:$0xff]
  %v2511 = vld [vmem:[%s2 + $0x219] sm:$0xff]
  %v2512 = vld [vmem:[%s2 + $0x229] sm:$0xff]
  %v2513 = vld [vmem:[%s2 + $0x231] sm:$0xff]
  %v2514 = vld [vmem:[%s2 + $0x241] sm:$0xff]
  %v2515 = vld [vmem:[%s2 + $0x249] sm:$0xff]
  %v2516 = vld [vmem:[%s2 + $0x259] sm:$0xff]
  %v2517 = vld [vmem:[%s2 + $0x261] sm:$0xff]
  %v2518 = vld [vmem:[%s2 + $0x271] sm:$0xff]
  %v2519 = vld [vmem:[%s2 + $0x279] sm:$0xff]
  %v2520 = vld [vmem:[%s2 + $0x289] sm:$0xff]
  %v2521 = vld [vmem:[%s2 + $0x291] sm:$0xff]
  %v2522 = vld [vmem:[%s2 + $0x2a1] sm:$0xff]
  %v2523 = vld [vmem:[%s2 + $0x2a9] sm:$0xff]
  %v2524 = vld [vmem:[%s2 + $0x2b9] sm:$0xff]
  %v2525 = vld [vmem:[%s2 + $0x2c1] sm:$0xff]
  %v2526 = vld [vmem:[%s2 + $0x2d1] sm:$0xff]
  %v2527 = vld [vmem:[%s2 + $0x2d9] sm:$0xff]
  %v2528 = vld [vmem:[%s2 + $0x2e9] sm:$0xff]
  %v2529 = vld [vmem:[%s2 + $0x2f1] sm:$0xff]
  %v2530 = vld [vmem:[%s2 + $0x301] sm:$0xff]
  %v2531 = vld [vmem:[%s2 + $0x309] sm:$0xff]
  %v2532 = vpack.c.bf16 %v2469, %v2468
  %v2533 = vpack.c.bf16 %v2471, %v2470
  %v2534 = vpack.c.bf16 %v2473, %v2472
  %v2535 = vpack.c.bf16 %v2475, %v2474
  %v2536 = vpack.c.bf16 %v2477, %v2476
  %v2537 = vpack.c.bf16 %v2479, %v2478
  %v2538 = vpack.c.bf16 %v2481, %v2480
  %v2539 = vpack.c.bf16 %v2483, %v2482
  %v2540 = vpack.c.bf16 %v2485, %v2484
  %v2541 = vpack.c.bf16 %v2487, %v2486
  %v2542 = vpack.c.bf16 %v2489, %v2488
  %v2543 = vpack.c.bf16 %v2491, %v2490
  %v2544 = vpack.c.bf16 %v2493, %v2492
  %v2545 = vpack.c.bf16 %v2495, %v2494
  %v2546 = vpack.c.bf16 %v2497, %v2496
  %v2547 = vpack.c.bf16 %v2499, %v2498
  %v2548 = vpack.c.bf16 %v2501, %v2500
  %v2549 = vpack.c.bf16 %v2503, %v2502
  %v2550 = vpack.c.bf16 %v2505, %v2504
  %v2551 = vpack.c.bf16 %v2507, %v2506
  %v2552 = vpack.c.bf16 %v2509, %v2508
  %v2553 = vpack.c.bf16 %v2511, %v2510
  %v2554 = vpack.c.bf16 %v2513, %v2512
  %v2555 = vpack.c.bf16 %v2515, %v2514
  %v2556 = vpack.c.bf16 %v2517, %v2516
  %v2557 = vpack.c.bf16 %v2519, %v2518
  %v2558 = vpack.c.bf16 %v2521, %v2520
  %v2559 = vpack.c.bf16 %v2523, %v2522
  %v2560 = vpack.c.bf16 %v2525, %v2524
  %v2561 = vpack.c.bf16 %v2527, %v2526
  %v2562 = vpack.c.bf16 %v2529, %v2528
  %v2563 = vpack.c.bf16 %v2531, %v2530
  %s2564 = scalar_lea.vmem %s4, 320
  %v2565 = vld [vmem:[%s2564] sm:$0xf]
  %v2566 = vld [vmem:[%s2564 + $0x4] sm:$0xf]
  %v2567 = vld [vmem:[%s2564 + $0x8] sm:$0xf]
  %v2568 = vld [vmem:[%s2564 + $0xc] sm:$0xf]
  %v2569 = vld [vmem:[%s2564 + $0x10] sm:$0xf]
  %v2570 = vld [vmem:[%s2564 + $0x14] sm:$0xf]
  %v2571 = vld [vmem:[%s2564 + $0x18] sm:$0xf]
  %v2572 = vld [vmem:[%s2564 + $0x1c] sm:$0xf]
  %v2573 = vld [vmem:[%s2564 + $0x20] sm:$0xf]
  %v2574 = vld [vmem:[%s2564 + $0x24] sm:$0xf]
  %v2575 = vld [vmem:[%s2564 + $0x28] sm:$0xf]
  %v2576 = vld [vmem:[%s2564 + $0x2c] sm:$0xf]
  %v2577 = vld [vmem:[%s2564 + $0x30] sm:$0xf]
  %v2578 = vld [vmem:[%s2564 + $0x34] sm:$0xf]
  %v2579 = vld [vmem:[%s2564 + $0x38] sm:$0xf]
  %v2580 = vld [vmem:[%s2564 + $0x3c] sm:$0xf]
  %v2597 = vunpack.c.l.b16 %v2565
  %v2598 = vunpack.c.l.b16 %v2566
  %v2599 = vunpack.c.l.b16 %v2567
  %v2600 = vunpack.c.l.b16 %v2568
  %v2601 = vunpack.c.l.b16 %v2569
  %v2602 = vunpack.c.l.b16 %v2570
  %v2603 = vunpack.c.l.b16 %v2571
  %v2604 = vunpack.c.l.b16 %v2572
  %v2605 = vunpack.c.l.b16 %v2573
  %v2606 = vunpack.c.l.b16 %v2574
  %v2607 = vunpack.c.l.b16 %v2575
  %v2608 = vunpack.c.l.b16 %v2576
  %v2609 = vunpack.c.l.b16 %v2577
  %v2610 = vunpack.c.l.b16 %v2578
  %v2611 = vunpack.c.l.b16 %v2579
  %v2612 = vunpack.c.l.b16 %v2580
  %v2613 = vpack.c.b16 %v2598, %v2597
  %v2614 = vpack.c.b16 %v2600, %v2599
  %v2615 = vpack.c.b16 %v2602, %v2601
  %v2616 = vpack.c.b16 %v2604, %v2603
  %v2617 = vpack.c.b16 %v2606, %v2605
  %v2618 = vpack.c.b16 %v2608, %v2607
  %v2619 = vpack.c.b16 %v2610, %v2609
  %v2620 = vpack.c.b16 %v2612, %v2611
  %2629 = vmatprep.subr.bf16.mxu0 0
  %2630 = vmatpush1.bf16.msra.mxu0 %v2613
  %2631 = vmatprep.subr.bf16.mxu0 0
  %2632 = vmatpush1.bf16.msra.mxu0 %v2614
  %2633 = vmatprep.subr.bf16.mxu0 0
  %2634 = vmatpush1.bf16.msra.mxu0 %v2615
  %2635 = vmatprep.subr.bf16.mxu0 0
  %2636 = vmatpush1.bf16.msra.mxu0 %v2616
  %2637 = vmatprep.subr.bf16.mxu0 0
  %2638 = vmatpush1.bf16.msra.mxu0 %v2617
  %2639 = vmatprep.subr.bf16.mxu0 0
  %2640 = vmatpush1.bf16.msra.mxu0 %v2618
  %2641 = vmatprep.subr.bf16.mxu0 0
  %2642 = vmatpush1.bf16.msra.mxu0 %v2619
  %2643 = vmatprep.subr.bf16.mxu0 0
  %2644 = vmatpush1.bf16.msra.mxu0 %v2620
  %2645 = vmatprep.subr.bf16.mxu0 0
  %2646 = vmatpush1.bf16.msra.mxu0 0
  %2647 = vmatprep.subr.bf16.mxu0 0
  %2648 = vmatpush1.bf16.msra.mxu0 0
  %2649 = vmatprep.subr.bf16.mxu0 0
  %2650 = vmatpush1.bf16.msra.mxu0 0
  %2651 = vmatprep.subr.bf16.mxu0 0
  %2652 = vmatpush1.bf16.msra.mxu0 0
  %2653 = vmatprep.subr.bf16.mxu0 0
  %2654 = vmatpush1.bf16.msra.mxu0 0
  %2655 = vmatprep.subr.bf16.mxu0 0
  %2656 = vmatpush1.bf16.msra.mxu0 0
  %2657 = vmatprep.subr.bf16.mxu0 0
  %2658 = vmatpush1.bf16.msra.mxu0 0
  %2659 = vmatprep.subr.bf16.mxu0 0
  %2660 = vmatpush1.bf16.msra.mxu0 0
  %2661 = vmatprep.mubr.bf16.mxu0 0
  %2662 = vmatmul.mubr.bf16.gmra.mrb[0].mxu0 %v2532
  %v2663 = vpop.f32.mrb[0].mxu0
  %v2664 = vadd.f32 0.0, %v2663
  %v2665 = vpop.f32.mrb[0].mxu0
  %v2666 = vpop.f32.mrb[0].mxu0
  %v2667 = vadd.f32 0.0, %v2666
  %v2668 = vpop.f32.mrb[0].mxu0
  %2669 = vmatprep.mubr.bf16.mxu0 0
  %2670 = vmatmul.mubr.bf16.gmra.mrb[0].mxu0 %v2533
  %v2671 = vpop.f32.mrb[0].mxu0
  %v2672 = vadd.f32 0.0, %v2671
  %v2673 = vpop.f32.mrb[0].mxu0
  %v2674 = vpop.f32.mrb[0].mxu0
  %v2675 = vadd.f32 0.0, %v2674
  %v2676 = vpop.f32.mrb[0].mxu0
  %2677 = vmatprep.mubr.bf16.mxu0 0
  %2678 = vmatmul.mubr.bf16.gmra.mrb[0].mxu0 %v2534
  %v2679 = vpop.f32.mrb[0].mxu0
  %v2680 = vadd.f32 0.0, %v2679
  %v2681 = vpop.f32.mrb[0].mxu0
  %v2682 = vpop.f32.mrb[0].mxu0
  %v2683 = vadd.f32 0.0, %v2682
  %v2684 = vpop.f32.mrb[0].mxu0
  %2685 = vmatprep.mubr.bf16.mxu0 0
  %2686 = vmatmul.mubr.bf16.gmra.mrb[0].mxu0 %v2535
  %v2687 = vpop.f32.mrb[0].mxu0
  %v2688 = vadd.f32 0.0, %v2687
  %v2689 = vpop.f32.mrb[0].mxu0
  %v2690 = vpop.f32.mrb[0].mxu0
  %v2691 = vadd.f32 0.0, %v2690
  %v2692 = vpop.f32.mrb[0].mxu0
  %2693 = vmatprep.mubr.bf16.mxu0 0
  %2694 = vmatmul.mubr.bf16.gmra.mrb[0].mxu0 %v2536
  %v2695 = vpop.f32.mrb[0].mxu0
  %v2696 = vadd.f32 0.0, %v2695
  %v2697 = vpop.f32.mrb[0].mxu0
  %v2698 = vpop.f32.mrb[0].mxu0
  %v2699 = vadd.f32 0.0, %v2698
  %v2700 = vpop.f32.mrb[0].mxu0
  %2701 = vmatprep.mubr.bf16.mxu0 0
  %2702 = vmatmul.mubr.bf16.gmra.mrb[0].mxu0 %v2537
  %v2703 = vpop.f32.mrb[0].mxu0
  %v2704 = vadd.f32 0.0, %v2703
  %v2705 = vpop.f32.mrb[0].mxu0
  %v2706 = vpop.f32.mrb[0].mxu0
  %v2707 = vadd.f32 0.0, %v2706
  %v2708 = vpop.f32.mrb[0].mxu0
  %2709 = vmatprep.mubr.bf16.mxu0 0
  %2710 = vmatmul.mubr.bf16.gmra.mrb[0].mxu0 %v2538
  %v2711 = vpop.f32.mrb[0].mxu0
  %v2712 = vadd.f32 0.0, %v2711
  %v2713 = vpop.f32.mrb[0].mxu0
  %v2714 = vpop.f32.mrb[0].mxu0
  %v2715 = vadd.f32 0.0, %v2714
  %v2716 = vpop.f32.mrb[0].mxu0
  %2717 = vmatprep.mubr.bf16.mxu0 0
  %2718 = vmatmul.mubr.bf16.gmra.mrb[0].mxu0 %v2539
  %v2719 = vpop.f32.mrb[0].mxu0
  %v2720 = vadd.f32 0.0, %v2719
  %v2721 = vpop.f32.mrb[0].mxu0
  %v2722 = vpop.f32.mrb[0].mxu0
  %v2723 = vadd.f32 0.0, %v2722
  %v2724 = vpop.f32.mrb[0].mxu0
  %2725 = vmatprep.mubr.bf16.mxu0 0
  %2726 = vmatmul.mubr.bf16.gmra.mrb[0].mxu0 %v2540
  %v2727 = vpop.f32.mrb[0].mxu0
  %v2728 = vadd.f32 0.0, %v2727
  %v2729 = vpop.f32.mrb[0].mxu0
  %v2730 = vpop.f32.mrb[0].mxu0
  %v2731 = vadd.f32 0.0, %v2730
  %v2732 = vpop.f32.mrb[0].mxu0
  %2733 = vmatprep.mubr.bf16.mxu0 0
  %2734 = vmatmul.mubr.bf16.gmra.mrb[0].mxu0 %v2541
  %v2735 = vpop.f32.mrb[0].mxu0
  %v2736 = vadd.f32 0.0, %v2735
  %v2737 = vpop.f32.mrb[0].mxu0
  %v2738 = vpop.f32.mrb[0].mxu0
  %v2739 = vadd.f32 0.0, %v2738
  %v2740 = vpop.f32.mrb[0].mxu0
  %2741 = vmatprep.mubr.bf16.mxu0 0
  %2742 = vmatmul.mubr.bf16.gmra.mrb[0].mxu0 %v2542
  %v2743 = vpop.f32.mrb[0].mxu0
  %v2744 = vadd.f32 0.0, %v2743
  %v2745 = vpop.f32.mrb[0].mxu0
  %v2746 = vpop.f32.mrb[0].mxu0
  %v2747 = vadd.f32 0.0, %v2746
  %v2748 = vpop.f32.mrb[0].mxu0
  %2749 = vmatprep.mubr.bf16.mxu0 0
  %2750 = vmatmul.mubr.bf16.gmra.mrb[0].mxu0 %v2543
  %v2751 = vpop.f32.mrb[0].mxu0
  %v2752 = vadd.f32 0.0, %v2751
  %v2753 = vpop.f32.mrb[0].mxu0
  %v2754 = vpop.f32.mrb[0].mxu0
  %v2755 = vadd.f32 0.0, %v2754
  %v2756 = vpop.f32.mrb[0].mxu0
  %2757 = vmatprep.mubr.bf16.mxu0 0
  %2758 = vmatmul.mubr.bf16.gmra.mrb[0].mxu0 %v2544
  %v2759 = vpop.f32.mrb[0].mxu0
  %v2760 = vadd.f32 0.0, %v2759
  %v2761 = vpop.f32.mrb[0].mxu0
  %v2762 = vpop.f32.mrb[0].mxu0
  %v2763 = vadd.f32 0.0, %v2762
  %v2764 = vpop.f32.mrb[0].mxu0
  %2765 = vmatprep.mubr.bf16.mxu0 0
  %2766 = vmatmul.mubr.bf16.gmra.mrb[0].mxu0 %v2545
  %v2767 = vpop.f32.mrb[0].mxu0
  %v2768 = vadd.f32 0.0, %v2767
  %v2769 = vpop.f32.mrb[0].mxu0
  %v2770 = vpop.f32.mrb[0].mxu0
  %v2771 = vadd.f32 0.0, %v2770
  %v2772 = vpop.f32.mrb[0].mxu0
  %2773 = vmatprep.mubr.bf16.mxu0 0
  %2774 = vmatmul.mubr.bf16.gmra.mrb[0].mxu0 %v2546
  %v2775 = vpop.f32.mrb[0].mxu0
  %v2776 = vadd.f32 0.0, %v2775
  %v2777 = vpop.f32.mrb[0].mxu0
  %v2778 = vpop.f32.mrb[0].mxu0
  %v2779 = vadd.f32 0.0, %v2778
  %v2780 = vpop.f32.mrb[0].mxu0
  %2781 = vmatprep.mubr.bf16.mxu0 0
  %2782 = vmatmul.mubr.bf16.gmra.mrb[0].mxu0 %v2547
  %v2783 = vpop.f32.mrb[0].mxu0
  %v2784 = vadd.f32 0.0, %v2783
  %v2785 = vpop.f32.mrb[0].mxu0
  %v2786 = vpop.f32.mrb[0].mxu0
  %v2787 = vadd.f32 0.0, %v2786
  %v2788 = vpop.f32.mrb[0].mxu0
  %2789 = vmatprep.mubr.bf16.mxu0 0
  %2790 = vmatmul.mubr.bf16.gmra.mrb[0].mxu0 %v2548
  %v2791 = vpop.f32.mrb[0].mxu0
  %v2792 = vadd.f32 0.0, %v2791
  %v2793 = vpop.f32.mrb[0].mxu0
  %v2794 = vpop.f32.mrb[0].mxu0
  %v2795 = vadd.f32 0.0, %v2794
  %v2796 = vpop.f32.mrb[0].mxu0
  %2797 = vmatprep.mubr.bf16.mxu0 0
  %2798 = vmatmul.mubr.bf16.gmra.mrb[0].mxu0 %v2549
  %v2799 = vpop.f32.mrb[0].mxu0
  %v2800 = vadd.f32 0.0, %v2799
  %v2801 = vpop.f32.mrb[0].mxu0
  %v2802 = vpop.f32.mrb[0].mxu0
  %v2803 = vadd.f32 0.0, %v2802
  %v2804 = vpop.f32.mrb[0].mxu0
  %2805 = vmatprep.mubr.bf16.mxu0 0
  %2806 = vmatmul.mubr.bf16.gmra.mrb[0].mxu0 %v2550
  %v2807 = vpop.f32.mrb[0].mxu0
  %v2808 = vadd.f32 0.0, %v2807
  %v2809 = vpop.f32.mrb[0].mxu0
  %v2810 = vpop.f32.mrb[0].mxu0
  %v2811 = vadd.f32 0.0, %v2810
  %v2812 = vpop.f32.mrb[0].mxu0
  %2813 = vmatprep.mubr.bf16.mxu0 0
  %2814 = vmatmul.mubr.bf16.gmra.mrb[0].mxu0 %v2551
  %v2815 = vpop.f32.mrb[0].mxu0
  %v2816 = vadd.f32 0.0, %v2815
  %v2817 = vpop.f32.mrb[0].mxu0
  %v2818 = vpop.f32.mrb[0].mxu0
  %v2819 = vadd.f32 0.0, %v2818
  %v2820 = vpop.f32.mrb[0].mxu0
  %2821 = vmatprep.mubr.bf16.mxu0 0
  %2822 = vmatmul.mubr.bf16.gmra.mrb[0].mxu0 %v2552
  %v2823 = vpop.f32.mrb[0].mxu0
  %v2824 = vadd.f32 0.0, %v2823
  %v2825 = vpop.f32.mrb[0].mxu0
  %v2826 = vpop.f32.mrb[0].mxu0
  %v2827 = vadd.f32 0.0, %v2826
  %v2828 = vpop.f32.mrb[0].mxu0
  %2829 = vmatprep.mubr.bf16.mxu0 0
  %2830 = vmatmul.mubr.bf16.gmra.mrb[0].mxu0 %v2553
  %v2831 = vpop.f32.mrb[0].mxu0
  %v2832 = vadd.f32 0.0, %v2831
  %v2833 = vpop.f32.mrb[0].mxu0
  %v2834 = vpop.f32.mrb[0].mxu0
  %v2835 = vadd.f32 0.0, %v2834
  %v2836 = vpop.f32.mrb[0].mxu0
  %2837 = vmatprep.mubr.bf16.mxu0 0
  %2838 = vmatmul.mubr.bf16.gmra.mrb[0].mxu0 %v2554
  %v2839 = vpop.f32.mrb[0].mxu0
  %v2840 = vadd.f32 0.0, %v2839
  %v2841 = vpop.f32.mrb[0].mxu0
  %v2842 = vpop.f32.mrb[0].mxu0
  %v2843 = vadd.f32 0.0, %v2842
  %v2844 = vpop.f32.mrb[0].mxu0
  %2845 = vmatprep.mubr.bf16.mxu0 0
  %2846 = vmatmul.mubr.bf16.gmra.mrb[0].mxu0 %v2555
  %v2847 = vpop.f32.mrb[0].mxu0
  %v2848 = vadd.f32 0.0, %v2847
  %v2849 = vpop.f32.mrb[0].mxu0
  %v2850 = vpop.f32.mrb[0].mxu0
  %v2851 = vadd.f32 0.0, %v2850
  %v2852 = vpop.f32.mrb[0].mxu0
  %2853 = vmatprep.mubr.bf16.mxu0 0
  %2854 = vmatmul.mubr.bf16.gmra.mrb[0].mxu0 %v2556
  %v2855 = vpop.f32.mrb[0].mxu0
  %v2856 = vadd.f32 0.0, %v2855
  %v2857 = vpop.f32.mrb[0].mxu0
  %v2858 = vpop.f32.mrb[0].mxu0
  %v2859 = vadd.f32 0.0, %v2858
  %v2860 = vpop.f32.mrb[0].mxu0
  %2861 = vmatprep.mubr.bf16.mxu0 0
  %2862 = vmatmul.mubr.bf16.gmra.mrb[0].mxu0 %v2557
  %v2863 = vpop.f32.mrb[0].mxu0
  %v2864 = vadd.f32 0.0, %v2863
  %v2865 = vpop.f32.mrb[0].mxu0
  %v2866 = vpop.f32.mrb[0].mxu0
  %v2867 = vadd.f32 0.0, %v2866
  %v2868 = vpop.f32.mrb[0].mxu0
  %2869 = vmatprep.mubr.bf16.mxu0 0
  %2870 = vmatmul.mubr.bf16.gmra.mrb[0].mxu0 %v2558
  %v2871 = vpop.f32.mrb[0].mxu0
  %v2872 = vadd.f32 0.0, %v2871
  %v2873 = vpop.f32.mrb[0].mxu0
  %v2874 = vpop.f32.mrb[0].mxu0
  %v2875 = vadd.f32 0.0, %v2874
  %v2876 = vpop.f32.mrb[0].mxu0
  %2877 = vmatprep.mubr.bf16.mxu0 0
  %2878 = vmatmul.mubr.bf16.gmra.mrb[0].mxu0 %v2559
  %v2879 = vpop.f32.mrb[0].mxu0
  %v2880 = vadd.f32 0.0, %v2879
  %v2881 = vpop.f32.mrb[0].mxu0
  %v2882 = vpop.f32.mrb[0].mxu0
  %v2883 = vadd.f32 0.0, %v2882
  %v2884 = vpop.f32.mrb[0].mxu0
  %2885 = vmatprep.mubr.bf16.mxu0 0
  %2886 = vmatmul.mubr.bf16.gmra.mrb[0].mxu0 %v2560
  %v2887 = vpop.f32.mrb[0].mxu0
  %v2888 = vadd.f32 0.0, %v2887
  %v2889 = vpop.f32.mrb[0].mxu0
  %v2890 = vpop.f32.mrb[0].mxu0
  %v2891 = vadd.f32 0.0, %v2890
  %v2892 = vpop.f32.mrb[0].mxu0
  %2893 = vmatprep.mubr.bf16.mxu0 0
  %2894 = vmatmul.mubr.bf16.gmra.mrb[0].mxu0 %v2561
  %v2895 = vpop.f32.mrb[0].mxu0
  %v2896 = vadd.f32 0.0, %v2895
  %v2897 = vpop.f32.mrb[0].mxu0
  %v2898 = vpop.f32.mrb[0].mxu0
  %v2899 = vadd.f32 0.0, %v2898
  %v2900 = vpop.f32.mrb[0].mxu0
  %2901 = vmatprep.mubr.bf16.mxu0 0
  %2902 = vmatmul.mubr.bf16.gmra.mrb[0].mxu0 %v2562
  %v2903 = vpop.f32.mrb[0].mxu0
  %v2904 = vadd.f32 0.0, %v2903
  %v2905 = vpop.f32.mrb[0].mxu0
  %v2906 = vpop.f32.mrb[0].mxu0
  %v2907 = vadd.f32 0.0, %v2906
  %v2908 = vpop.f32.mrb[0].mxu0
  %2909 = vmatprep.mubr.bf16.mxu0 0
  %2910 = vmatmul.mubr.bf16.gmra.mrb[0].mxu0 %v2563
  %v2911 = vpop.f32.mrb[0].mxu0
  %v2912 = vadd.f32 0.0, %v2911
  %v2913 = vpop.f32.mrb[0].mxu0
  %v2914 = vpop.f32.mrb[0].mxu0
  %v2915 = vadd.f32 0.0, %v2914
  %v2916 = vpop.f32.mrb[0].mxu0
  %2917 = vdwg.mxu0
  %v2918 = vadd.f32 %v2404, %v2664
  %v2919 = vadd.f32 %v2405, %v2667
  %v2920 = vadd.f32 %v2406, %v2672
  %v2921 = vadd.f32 %v2407, %v2675
  %v2922 = vadd.f32 %v2408, %v2680
  %v2923 = vadd.f32 %v2409, %v2683
  %v2924 = vadd.f32 %v2410, %v2688
  %v2925 = vadd.f32 %v2411, %v2691
  %v2926 = vadd.f32 %v2412, %v2696
  %v2927 = vadd.f32 %v2413, %v2699
  %v2928 = vadd.f32 %v2414, %v2704
  %v2929 = vadd.f32 %v2415, %v2707
  %v2930 = vadd.f32 %v2416, %v2712
  %v2931 = vadd.f32 %v2417, %v2715
  %v2932 = vadd.f32 %v2418, %v2720
  %v2933 = vadd.f32 %v2419, %v2723
  %v2934 = vadd.f32 %v2420, %v2728
  %v2935 = vadd.f32 %v2421, %v2731
  %v2936 = vadd.f32 %v2422, %v2736
  %v2937 = vadd.f32 %v2423, %v2739
  %v2938 = vadd.f32 %v2424, %v2744
  %v2939 = vadd.f32 %v2425, %v2747
  %v2940 = vadd.f32 %v2426, %v2752
  %v2941 = vadd.f32 %v2427, %v2755
  %v2942 = vadd.f32 %v2428, %v2760
  %v2943 = vadd.f32 %v2429, %v2763
  %v2944 = vadd.f32 %v2430, %v2768
  %v2945 = vadd.f32 %v2431, %v2771
  %v2946 = vadd.f32 %v2432, %v2776
  %v2947 = vadd.f32 %v2433, %v2779
  %v2948 = vadd.f32 %v2434, %v2784
  %v2949 = vadd.f32 %v2435, %v2787
  %v2950 = vadd.f32 %v2436, %v2792
  %v2951 = vadd.f32 %v2437, %v2795
  %v2952 = vadd.f32 %v2438, %v2800
  %v2953 = vadd.f32 %v2439, %v2803
  %v2954 = vadd.f32 %v2440, %v2808
  %v2955 = vadd.f32 %v2441, %v2811
  %v2956 = vadd.f32 %v2442, %v2816
  %v2957 = vadd.f32 %v2443, %v2819
  %v2958 = vadd.f32 %v2444, %v2824
  %v2959 = vadd.f32 %v2445, %v2827
  %v2960 = vadd.f32 %v2446, %v2832
  %v2961 = vadd.f32 %v2447, %v2835
  %v2962 = vadd.f32 %v2448, %v2840
  %v2963 = vadd.f32 %v2449, %v2843
  %v2964 = vadd.f32 %v2450, %v2848
  %v2965 = vadd.f32 %v2451, %v2851
  %v2966 = vadd.f32 %v2452, %v2856
  %v2967 = vadd.f32 %v2453, %v2859
  %v2968 = vadd.f32 %v2454, %v2864
  %v2969 = vadd.f32 %v2455, %v2867
  %v2970 = vadd.f32 %v2456, %v2872
  %v2971 = vadd.f32 %v2457, %v2875
  %v2972 = vadd.f32 %v2458, %v2880
  %v2973 = vadd.f32 %v2459, %v2883
  %v2974 = vadd.f32 %v2460, %v2888
  %v2975 = vadd.f32 %v2461, %v2891
  %v2976 = vadd.f32 %v2462, %v2896
  %v2977 = vadd.f32 %v2463, %v2899
  %v2978 = vadd.f32 %v2464, %v2904
  %v2979 = vadd.f32 %v2465, %v2907
  %v2980 = vadd.f32 %v2466, %v2912
  %v2981 = vadd.f32 %v2467, %v2915
  %s2982 = scalar_lea.vmem %s0, 24
  %v2983 = vld [vmem:[%s2982] sm:$0xff]
  %v2984 = vld [vmem:[%s2982 + $0x8] sm:$0xff]
  %v2985 = vld [vmem:[%s2982 + $0x18] sm:$0xff]
  %v2986 = vld [vmem:[%s2982 + $0x20] sm:$0xff]
  %v2987 = vld [vmem:[%s2982 + $0x30] sm:$0xff]
  %v2988 = vld [vmem:[%s2982 + $0x38] sm:$0xff]
  %v2989 = vld [vmem:[%s2982 + $0x48] sm:$0xff]
  %v2990 = vld [vmem:[%s2982 + $0x50] sm:$0xff]
  %v2991 = vld [vmem:[%s2982 + $0x60] sm:$0xff]
  %v2992 = vld [vmem:[%s2982 + $0x68] sm:$0xff]
  %v2993 = vld [vmem:[%s2982 + $0x78] sm:$0xff]
  %v2994 = vld [vmem:[%s2982 + $0x80] sm:$0xff]
  %v2995 = vld [vmem:[%s2982 + $0x90] sm:$0xff]
  %v2996 = vld [vmem:[%s2982 + $0x98] sm:$0xff]
  %v2997 = vld [vmem:[%s2982 + $0xa8] sm:$0xff]
  %v2998 = vld [vmem:[%s2982 + $0xb0] sm:$0xff]
  %v2999 = vld [vmem:[%s2982 + $0xc0] sm:$0xff]
  %v3000 = vld [vmem:[%s2982 + $0xc8] sm:$0xff]
  %v3001 = vld [vmem:[%s2982 + $0xd8] sm:$0xff]
  %v3002 = vld [vmem:[%s2982 + $0xe0] sm:$0xff]
  %v3003 = vld [vmem:[%s2982 + $0xf0] sm:$0xff]
  %v3004 = vld [vmem:[%s2982 + $0xf8] sm:$0xff]
  %v3005 = vld [vmem:[%s2982 + $0x108] sm:$0xff]
  %v3006 = vld [vmem:[%s2982 + $0x110] sm:$0xff]
  %v3007 = vld [vmem:[%s2982 + $0x120] sm:$0xff]
  %v3008 = vld [vmem:[%s2982 + $0x128] sm:$0xff]
  %v3009 = vld [vmem:[%s2982 + $0x138] sm:$0xff]
  %v3010 = vld [vmem:[%s2982 + $0x140] sm:$0xff]
  %v3011 = vld [vmem:[%s2982 + $0x150] sm:$0xff]
  %v3012 = vld [vmem:[%s2982 + $0x158] sm:$0xff]
  %v3013 = vld [vmem:[%s2982 + $0x168] sm:$0xff]
  %v3014 = vld [vmem:[%s2982 + $0x170] sm:$0xff]
  %v3015 = vld [vmem:[%s2982 + $0x198] sm:$0xff]
  %v3016 = vld [vmem:[%s2982 + $0x1a0] sm:$0xff]
  %v3017 = vld [vmem:[%s2982 + $0x1b0] sm:$0xff]
  %v3018 = vld [vmem:[%s2982 + $0x1b8] sm:$0xff]
  %v3019 = vld [vmem:[%s2982 + $0x1c8] sm:$0xff]
  %v3020 = vld [vmem:[%s2982 + $0x1d0] sm:$0xff]
  %v3021 = vld [vmem:[%s2982 + $0x1e0] sm:$0xff]
  %v3022 = vld [vmem:[%s2982 + $0x1e8] sm:$0xff]
  %v3023 = vld [vmem:[%s2982 + $0x1f8] sm:$0xff]
  %v3024 = vld [vmem:[%s2982 + $0x200] sm:$0xff]
  %v3025 = vld [vmem:[%s2982 + $0x210] sm:$0xff]
  %v3026 = vld [vmem:[%s2982 + $0x218] sm:$0xff]
  %v3027 = vld [vmem:[%s2982 + $0x228] sm:$0xff]
  %v3028 = vld [vmem:[%s2982 + $0x230] sm:$0xff]
  %v3029 = vld [vmem:[%s2982 + $0x240] sm:$0xff]
  %v3030 = vld [vmem:[%s2982 + $0x248] sm:$0xff]
  %v3031 = vld [vmem:[%s2982 + $0x258] sm:$0xff]
  %v3032 = vld [vmem:[%s2982 + $0x260] sm:$0xff]
  %v3033 = vld [vmem:[%s2982 + $0x270] sm:$0xff]
  %v3034 = vld [vmem:[%s2982 + $0x278] sm:$0xff]
  %v3035 = vld [vmem:[%s2982 + $0x288] sm:$0xff]
  %v3036 = vld [vmem:[%s2982 + $0x290] sm:$0xff]
  %v3037 = vld [vmem:[%s2982 + $0x2a0] sm:$0xff]
  %v3038 = vld [vmem:[%s2982 + $0x2a8] sm:$0xff]
  %v3039 = vld [vmem:[%s2982 + $0x2b8] sm:$0xff]
  %v3040 = vld [vmem:[%s2982 + $0x2c0] sm:$0xff]
  %v3041 = vld [vmem:[%s2982 + $0x2d0] sm:$0xff]
  %v3042 = vld [vmem:[%s2982 + $0x2d8] sm:$0xff]
  %v3043 = vld [vmem:[%s2982 + $0x2e8] sm:$0xff]
  %v3044 = vld [vmem:[%s2982 + $0x2f0] sm:$0xff]
  %v3045 = vld [vmem:[%s2982 + $0x300] sm:$0xff]
  %v3046 = vld [vmem:[%s2982 + $0x308] sm:$0xff]
  %v3047 = vpack.c.bf16 %v2984, %v2983
  %v3048 = vpack.c.bf16 %v2986, %v2985
  %v3049 = vpack.c.bf16 %v2988, %v2987
  %v3050 = vpack.c.bf16 %v2990, %v2989
  %v3051 = vpack.c.bf16 %v2992, %v2991
  %v3052 = vpack.c.bf16 %v2994, %v2993
  %v3053 = vpack.c.bf16 %v2996, %v2995
  %v3054 = vpack.c.bf16 %v2998, %v2997
  %v3055 = vpack.c.bf16 %v3000, %v2999
  %v3056 = vpack.c.bf16 %v3002, %v3001
  %v3057 = vpack.c.bf16 %v3004, %v3003
  %v3058 = vpack.c.bf16 %v3006, %v3005
  %v3059 = vpack.c.bf16 %v3008, %v3007
  %v3060 = vpack.c.bf16 %v3010, %v3009
  %v3061 = vpack.c.bf16 %v3012, %v3011
  %v3062 = vpack.c.bf16 %v3014, %v3013
  %v3063 = vpack.c.bf16 %v3016, %v3015
  %v3064 = vpack.c.bf16 %v3018, %v3017
  %v3065 = vpack.c.bf16 %v3020, %v3019
  %v3066 = vpack.c.bf16 %v3022, %v3021
  %v3067 = vpack.c.bf16 %v3024, %v3023
  %v3068 = vpack.c.bf16 %v3026, %v3025
  %v3069 = vpack.c.bf16 %v3028, %v3027
  %v3070 = vpack.c.bf16 %v3030, %v3029
  %v3071 = vpack.c.bf16 %v3032, %v3031
  %v3072 = vpack.c.bf16 %v3034, %v3033
  %v3073 = vpack.c.bf16 %v3036, %v3035
  %v3074 = vpack.c.bf16 %v3038, %v3037
  %v3075 = vpack.c.bf16 %v3040, %v3039
  %v3076 = vpack.c.bf16 %v3042, %v3041
  %v3077 = vpack.c.bf16 %v3044, %v3043
  %v3078 = vpack.c.bf16 %v3046, %v3045
  %s3079 = scalar_lea.vmem %s4, 384
  %v3080 = vld [vmem:[%s3079] sm:$0xf]
  %v3081 = vld [vmem:[%s3079 + $0x4] sm:$0xf]
  %v3082 = vld [vmem:[%s3079 + $0x8] sm:$0xf]
  %v3083 = vld [vmem:[%s3079 + $0xc] sm:$0xf]
  %v3084 = vld [vmem:[%s3079 + $0x10] sm:$0xf]
  %v3085 = vld [vmem:[%s3079 + $0x14] sm:$0xf]
  %v3086 = vld [vmem:[%s3079 + $0x18] sm:$0xf]
  %v3087 = vld [vmem:[%s3079 + $0x1c] sm:$0xf]
  %v3088 = vld [vmem:[%s3079 + $0x20] sm:$0xf]
  %v3089 = vld [vmem:[%s3079 + $0x24] sm:$0xf]
  %v3090 = vld [vmem:[%s3079 + $0x28] sm:$0xf]
  %v3091 = vld [vmem:[%s3079 + $0x2c] sm:$0xf]
  %v3092 = vld [vmem:[%s3079 + $0x30] sm:$0xf]
  %v3093 = vld [vmem:[%s3079 + $0x34] sm:$0xf]
  %v3094 = vld [vmem:[%s3079 + $0x38] sm:$0xf]
  %v3095 = vld [vmem:[%s3079 + $0x3c] sm:$0xf]
  %v3112 = vunpack.c.l.b16 %v3080
  %v3113 = vunpack.c.l.b16 %v3081
  %v3114 = vunpack.c.l.b16 %v3082
  %v3115 = vunpack.c.l.b16 %v3083
  %v3116 = vunpack.c.l.b16 %v3084
  %v3117 = vunpack.c.l.b16 %v3085
  %v3118 = vunpack.c.l.b16 %v3086
  %v3119 = vunpack.c.l.b16 %v3087
  %v3120 = vunpack.c.l.b16 %v3088
  %v3121 = vunpack.c.l.b16 %v3089
  %v3122 = vunpack.c.l.b16 %v3090
  %v3123 = vunpack.c.l.b16 %v3091
  %v3124 = vunpack.c.l.b16 %v3092
  %v3125 = vunpack.c.l.b16 %v3093
  %v3126 = vunpack.c.l.b16 %v3094
  %v3127 = vunpack.c.l.b16 %v3095
  %v3128 = vpack.c.b16 %v3113, %v3112
  %v3129 = vpack.c.b16 %v3115, %v3114
  %v3130 = vpack.c.b16 %v3117, %v3116
  %v3131 = vpack.c.b16 %v3119, %v3118
  %v3132 = vpack.c.b16 %v3121, %v3120
  %v3133 = vpack.c.b16 %v3123, %v3122
  %v3134 = vpack.c.b16 %v3125, %v3124
  %v3135 = vpack.c.b16 %v3127, %v3126
  %3144 = vmatprep.subr.bf16.mxu0 0
  %3145 = vmatpush1.bf16.msra.mxu0 %v3128
  %3146 = vmatprep.subr.bf16.mxu0 0
  %3147 = vmatpush1.bf16.msra.mxu0 %v3129
  %3148 = vmatprep.subr.bf16.mxu0 0
  %3149 = vmatpush1.bf16.msra.mxu0 %v3130
  %3150 = vmatprep.subr.bf16.mxu0 0
  %3151 = vmatpush1.bf16.msra.mxu0 %v3131
  %3152 = vmatprep.subr.bf16.mxu0 0
  %3153 = vmatpush1.bf16.msra.mxu0 %v3132
  %3154 = vmatprep.subr.bf16.mxu0 0
  %3155 = vmatpush1.bf16.msra.mxu0 %v3133
  %3156 = vmatprep.subr.bf16.mxu0 0
  %3157 = vmatpush1.bf16.msra.mxu0 %v3134
  %3158 = vmatprep.subr.bf16.mxu0 0
  %3159 = vmatpush1.bf16.msra.mxu0 %v3135
  %3160 = vmatprep.subr.bf16.mxu0 0
  %3161 = vmatpush1.bf16.msra.mxu0 0
  %3162 = vmatprep.subr.bf16.mxu0 0
  %3163 = vmatpush1.bf16.msra.mxu0 0
  %3164 = vmatprep.subr.bf16.mxu0 0
  %3165 = vmatpush1.bf16.msra.mxu0 0
  %3166 = vmatprep.subr.bf16.mxu0 0
  %3167 = vmatpush1.bf16.msra.mxu0 0
  %3168 = vmatprep.subr.bf16.mxu0 0
  %3169 = vmatpush1.bf16.msra.mxu0 0
  %3170 = vmatprep.subr.bf16.mxu0 0
  %3171 = vmatpush1.bf16.msra.mxu0 0
  %3172 = vmatprep.subr.bf16.mxu0 0
  %3173 = vmatpush1.bf16.msra.mxu0 0
  %3174 = vmatprep.subr.bf16.mxu0 0
  %3175 = vmatpush1.bf16.msra.mxu0 0
  %3176 = vmatprep.mubr.bf16.mxu0 0
  %3177 = vmatmul.mubr.bf16.gmra.mrb[0].mxu0 %v3047
  %v3178 = vpop.f32.mrb[0].mxu0
  %v3179 = vadd.f32 0.0, %v3178
  %v3180 = vpop.f32.mrb[0].mxu0
  %v3181 = vpop.f32.mrb[0].mxu0
  %v3182 = vadd.f32 0.0, %v3181
  %v3183 = vpop.f32.mrb[0].mxu0
  %3184 = vmatprep.mubr.bf16.mxu0 0
  %3185 = vmatmul.mubr.bf16.gmra.mrb[0].mxu0 %v3048
  %v3186 = vpop.f32.mrb[0].mxu0
  %v3187 = vadd.f32 0.0, %v3186
  %v3188 = vpop.f32.mrb[0].mxu0
  %v3189 = vpop.f32.mrb[0].mxu0
  %v3190 = vadd.f32 0.0, %v3189
  %v3191 = vpop.f32.mrb[0].mxu0
  %3192 = vmatprep.mubr.bf16.mxu0 0
  %3193 = vmatmul.mubr.bf16.gmra.mrb[0].mxu0 %v3049
  %v3194 = vpop.f32.mrb[0].mxu0
  %v3195 = vadd.f32 0.0, %v3194
  %v3196 = vpop.f32.mrb[0].mxu0
  %v3197 = vpop.f32.mrb[0].mxu0
  %v3198 = vadd.f32 0.0, %v3197
  %v3199 = vpop.f32.mrb[0].mxu0
  %3200 = vmatprep.mubr.bf16.mxu0 0
  %3201 = vmatmul.mubr.bf16.gmra.mrb[0].mxu0 %v3050
  %v3202 = vpop.f32.mrb[0].mxu0
  %v3203 = vadd.f32 0.0, %v3202
  %v3204 = vpop.f32.mrb[0].mxu0
  %v3205 = vpop.f32.mrb[0].mxu0
  %v3206 = vadd.f32 0.0, %v3205
  %v3207 = vpop.f32.mrb[0].mxu0
  %3208 = vmatprep.mubr.bf16.mxu0 0
  %3209 = vmatmul.mubr.bf16.gmra.mrb[0].mxu0 %v3051
  %v3210 = vpop.f32.mrb[0].mxu0
  %v3211 = vadd.f32 0.0, %v3210
  %v3212 = vpop.f32.mrb[0].mxu0
  %v3213 = vpop.f32.mrb[0].mxu0
  %v3214 = vadd.f32 0.0, %v3213
  %v3215 = vpop.f32.mrb[0].mxu0
  %3216 = vmatprep.mubr.bf16.mxu0 0
  %3217 = vmatmul.mubr.bf16.gmra.mrb[0].mxu0 %v3052
  %v3218 = vpop.f32.mrb[0].mxu0
  %v3219 = vadd.f32 0.0, %v3218
  %v3220 = vpop.f32.mrb[0].mxu0
  %v3221 = vpop.f32.mrb[0].mxu0
  %v3222 = vadd.f32 0.0, %v3221
  %v3223 = vpop.f32.mrb[0].mxu0
  %3224 = vmatprep.mubr.bf16.mxu0 0
  %3225 = vmatmul.mubr.bf16.gmra.mrb[0].mxu0 %v3053
  %v3226 = vpop.f32.mrb[0].mxu0
  %v3227 = vadd.f32 0.0, %v3226
  %v3228 = vpop.f32.mrb[0].mxu0
  %v3229 = vpop.f32.mrb[0].mxu0
  %v3230 = vadd.f32 0.0, %v3229
  %v3231 = vpop.f32.mrb[0].mxu0
  %3232 = vmatprep.mubr.bf16.mxu0 0
  %3233 = vmatmul.mubr.bf16.gmra.mrb[0].mxu0 %v3054
  %v3234 = vpop.f32.mrb[0].mxu0
  %v3235 = vadd.f32 0.0, %v3234
  %v3236 = vpop.f32.mrb[0].mxu0
  %v3237 = vpop.f32.mrb[0].mxu0
  %v3238 = vadd.f32 0.0, %v3237
  %v3239 = vpop.f32.mrb[0].mxu0
  %3240 = vmatprep.mubr.bf16.mxu0 0
  %3241 = vmatmul.mubr.bf16.gmra.mrb[0].mxu0 %v3055
  %v3242 = vpop.f32.mrb[0].mxu0
  %v3243 = vadd.f32 0.0, %v3242
  %v3244 = vpop.f32.mrb[0].mxu0
  %v3245 = vpop.f32.mrb[0].mxu0
  %v3246 = vadd.f32 0.0, %v3245
  %v3247 = vpop.f32.mrb[0].mxu0
  %3248 = vmatprep.mubr.bf16.mxu0 0
  %3249 = vmatmul.mubr.bf16.gmra.mrb[0].mxu0 %v3056
  %v3250 = vpop.f32.mrb[0].mxu0
  %v3251 = vadd.f32 0.0, %v3250
  %v3252 = vpop.f32.mrb[0].mxu0
  %v3253 = vpop.f32.mrb[0].mxu0
  %v3254 = vadd.f32 0.0, %v3253
  %v3255 = vpop.f32.mrb[0].mxu0
  %3256 = vmatprep.mubr.bf16.mxu0 0
  %3257 = vmatmul.mubr.bf16.gmra.mrb[0].mxu0 %v3057
  %v3258 = vpop.f32.mrb[0].mxu0
  %v3259 = vadd.f32 0.0, %v3258
  %v3260 = vpop.f32.mrb[0].mxu0
  %v3261 = vpop.f32.mrb[0].mxu0
  %v3262 = vadd.f32 0.0, %v3261
  %v3263 = vpop.f32.mrb[0].mxu0
  %3264 = vmatprep.mubr.bf16.mxu0 0
  %3265 = vmatmul.mubr.bf16.gmra.mrb[0].mxu0 %v3058
  %v3266 = vpop.f32.mrb[0].mxu0
  %v3267 = vadd.f32 0.0, %v3266
  %v3268 = vpop.f32.mrb[0].mxu0
  %v3269 = vpop.f32.mrb[0].mxu0
  %v3270 = vadd.f32 0.0, %v3269
  %v3271 = vpop.f32.mrb[0].mxu0
  %3272 = vmatprep.mubr.bf16.mxu0 0
  %3273 = vmatmul.mubr.bf16.gmra.mrb[0].mxu0 %v3059
  %v3274 = vpop.f32.mrb[0].mxu0
  %v3275 = vadd.f32 0.0, %v3274
  %v3276 = vpop.f32.mrb[0].mxu0
  %v3277 = vpop.f32.mrb[0].mxu0
  %v3278 = vadd.f32 0.0, %v3277
  %v3279 = vpop.f32.mrb[0].mxu0
  %3280 = vmatprep.mubr.bf16.mxu0 0
  %3281 = vmatmul.mubr.bf16.gmra.mrb[0].mxu0 %v3060
  %v3282 = vpop.f32.mrb[0].mxu0
  %v3283 = vadd.f32 0.0, %v3282
  %v3284 = vpop.f32.mrb[0].mxu0
  %v3285 = vpop.f32.mrb[0].mxu0
  %v3286 = vadd.f32 0.0, %v3285
  %v3287 = vpop.f32.mrb[0].mxu0
  %3288 = vmatprep.mubr.bf16.mxu0 0
  %3289 = vmatmul.mubr.bf16.gmra.mrb[0].mxu0 %v3061
  %v3290 = vpop.f32.mrb[0].mxu0
  %v3291 = vadd.f32 0.0, %v3290
  %v3292 = vpop.f32.mrb[0].mxu0
  %v3293 = vpop.f32.mrb[0].mxu0
  %v3294 = vadd.f32 0.0, %v3293
  %v3295 = vpop.f32.mrb[0].mxu0
  %3296 = vmatprep.mubr.bf16.mxu0 0
  %3297 = vmatmul.mubr.bf16.gmra.mrb[0].mxu0 %v3062
  %v3298 = vpop.f32.mrb[0].mxu0
  %v3299 = vadd.f32 0.0, %v3298
  %v3300 = vpop.f32.mrb[0].mxu0
  %v3301 = vpop.f32.mrb[0].mxu0
  %v3302 = vadd.f32 0.0, %v3301
  %v3303 = vpop.f32.mrb[0].mxu0
  %3304 = vmatprep.mubr.bf16.mxu0 0
  %3305 = vmatmul.mubr.bf16.gmra.mrb[0].mxu0 %v3063
  %v3306 = vpop.f32.mrb[0].mxu0
  %v3307 = vadd.f32 0.0, %v3306
  %v3308 = vpop.f32.mrb[0].mxu0
  %v3309 = vpop.f32.mrb[0].mxu0
  %v3310 = vadd.f32 0.0, %v3309
  %v3311 = vpop.f32.mrb[0].mxu0
  %3312 = vmatprep.mubr.bf16.mxu0 0
  %3313 = vmatmul.mubr.bf16.gmra.mrb[0].mxu0 %v3064
  %v3314 = vpop.f32.mrb[0].mxu0
  %v3315 = vadd.f32 0.0, %v3314
  %v3316 = vpop.f32.mrb[0].mxu0
  %v3317 = vpop.f32.mrb[0].mxu0
  %v3318 = vadd.f32 0.0, %v3317
  %v3319 = vpop.f32.mrb[0].mxu0
  %3320 = vmatprep.mubr.bf16.mxu0 0
  %3321 = vmatmul.mubr.bf16.gmra.mrb[0].mxu0 %v3065
  %v3322 = vpop.f32.mrb[0].mxu0
  %v3323 = vadd.f32 0.0, %v3322
  %v3324 = vpop.f32.mrb[0].mxu0
  %v3325 = vpop.f32.mrb[0].mxu0
  %v3326 = vadd.f32 0.0, %v3325
  %v3327 = vpop.f32.mrb[0].mxu0
  %3328 = vmatprep.mubr.bf16.mxu0 0
  %3329 = vmatmul.mubr.bf16.gmra.mrb[0].mxu0 %v3066
  %v3330 = vpop.f32.mrb[0].mxu0
  %v3331 = vadd.f32 0.0, %v3330
  %v3332 = vpop.f32.mrb[0].mxu0
  %v3333 = vpop.f32.mrb[0].mxu0
  %v3334 = vadd.f32 0.0, %v3333
  %v3335 = vpop.f32.mrb[0].mxu0
  %3336 = vmatprep.mubr.bf16.mxu0 0
  %3337 = vmatmul.mubr.bf16.gmra.mrb[0].mxu0 %v3067
  %v3338 = vpop.f32.mrb[0].mxu0
  %v3339 = vadd.f32 0.0, %v3338
  %v3340 = vpop.f32.mrb[0].mxu0
  %v3341 = vpop.f32.mrb[0].mxu0
  %v3342 = vadd.f32 0.0, %v3341
  %v3343 = vpop.f32.mrb[0].mxu0
  %3344 = vmatprep.mubr.bf16.mxu0 0
  %3345 = vmatmul.mubr.bf16.gmra.mrb[0].mxu0 %v3068
  %v3346 = vpop.f32.mrb[0].mxu0
  %v3347 = vadd.f32 0.0, %v3346
  %v3348 = vpop.f32.mrb[0].mxu0
  %v3349 = vpop.f32.mrb[0].mxu0
  %v3350 = vadd.f32 0.0, %v3349
  %v3351 = vpop.f32.mrb[0].mxu0
  %3352 = vmatprep.mubr.bf16.mxu0 0
  %3353 = vmatmul.mubr.bf16.gmra.mrb[0].mxu0 %v3069
  %v3354 = vpop.f32.mrb[0].mxu0
  %v3355 = vadd.f32 0.0, %v3354
  %v3356 = vpop.f32.mrb[0].mxu0
  %v3357 = vpop.f32.mrb[0].mxu0
  %v3358 = vadd.f32 0.0, %v3357
  %v3359 = vpop.f32.mrb[0].mxu0
  %3360 = vmatprep.mubr.bf16.mxu0 0
  %3361 = vmatmul.mubr.bf16.gmra.mrb[0].mxu0 %v3070
  %v3362 = vpop.f32.mrb[0].mxu0
  %v3363 = vadd.f32 0.0, %v3362
  %v3364 = vpop.f32.mrb[0].mxu0
  %v3365 = vpop.f32.mrb[0].mxu0
  %v3366 = vadd.f32 0.0, %v3365
  %v3367 = vpop.f32.mrb[0].mxu0
  %3368 = vmatprep.mubr.bf16.mxu0 0
  %3369 = vmatmul.mubr.bf16.gmra.mrb[0].mxu0 %v3071
  %v3370 = vpop.f32.mrb[0].mxu0
  %v3371 = vadd.f32 0.0, %v3370
  %v3372 = vpop.f32.mrb[0].mxu0
  %v3373 = vpop.f32.mrb[0].mxu0
  %v3374 = vadd.f32 0.0, %v3373
  %v3375 = vpop.f32.mrb[0].mxu0
  %3376 = vmatprep.mubr.bf16.mxu0 0
  %3377 = vmatmul.mubr.bf16.gmra.mrb[0].mxu0 %v3072
  %v3378 = vpop.f32.mrb[0].mxu0
  %v3379 = vadd.f32 0.0, %v3378
  %v3380 = vpop.f32.mrb[0].mxu0
  %v3381 = vpop.f32.mrb[0].mxu0
  %v3382 = vadd.f32 0.0, %v3381
  %v3383 = vpop.f32.mrb[0].mxu0
  %3384 = vmatprep.mubr.bf16.mxu0 0
  %3385 = vmatmul.mubr.bf16.gmra.mrb[0].mxu0 %v3073
  %v3386 = vpop.f32.mrb[0].mxu0
  %v3387 = vadd.f32 0.0, %v3386
  %v3388 = vpop.f32.mrb[0].mxu0
  %v3389 = vpop.f32.mrb[0].mxu0
  %v3390 = vadd.f32 0.0, %v3389
  %v3391 = vpop.f32.mrb[0].mxu0
  %3392 = vmatprep.mubr.bf16.mxu0 0
  %3393 = vmatmul.mubr.bf16.gmra.mrb[0].mxu0 %v3074
  %v3394 = vpop.f32.mrb[0].mxu0
  %v3395 = vadd.f32 0.0, %v3394
  %v3396 = vpop.f32.mrb[0].mxu0
  %v3397 = vpop.f32.mrb[0].mxu0
  %v3398 = vadd.f32 0.0, %v3397
  %v3399 = vpop.f32.mrb[0].mxu0
  %3400 = vmatprep.mubr.bf16.mxu0 0
  %3401 = vmatmul.mubr.bf16.gmra.mrb[0].mxu0 %v3075
  %v3402 = vpop.f32.mrb[0].mxu0
  %v3403 = vadd.f32 0.0, %v3402
  %v3404 = vpop.f32.mrb[0].mxu0
  %v3405 = vpop.f32.mrb[0].mxu0
  %v3406 = vadd.f32 0.0, %v3405
  %v3407 = vpop.f32.mrb[0].mxu0
  %3408 = vmatprep.mubr.bf16.mxu0 0
  %3409 = vmatmul.mubr.bf16.gmra.mrb[0].mxu0 %v3076
  %v3410 = vpop.f32.mrb[0].mxu0
  %v3411 = vadd.f32 0.0, %v3410
  %v3412 = vpop.f32.mrb[0].mxu0
  %v3413 = vpop.f32.mrb[0].mxu0
  %v3414 = vadd.f32 0.0, %v3413
  %v3415 = vpop.f32.mrb[0].mxu0
  %3416 = vmatprep.mubr.bf16.mxu0 0
  %3417 = vmatmul.mubr.bf16.gmra.mrb[0].mxu0 %v3077
  %v3418 = vpop.f32.mrb[0].mxu0
  %v3419 = vadd.f32 0.0, %v3418
  %v3420 = vpop.f32.mrb[0].mxu0
  %v3421 = vpop.f32.mrb[0].mxu0
  %v3422 = vadd.f32 0.0, %v3421
  %v3423 = vpop.f32.mrb[0].mxu0
  %3424 = vmatprep.mubr.bf16.mxu0 0
  %3425 = vmatmul.mubr.bf16.gmra.mrb[0].mxu0 %v3078
  %v3426 = vpop.f32.mrb[0].mxu0
  %v3427 = vadd.f32 0.0, %v3426
  %v3428 = vpop.f32.mrb[0].mxu0
  %v3429 = vpop.f32.mrb[0].mxu0
  %v3430 = vadd.f32 0.0, %v3429
  %v3431 = vpop.f32.mrb[0].mxu0
  %3432 = vdwg.mxu0
  %v3433 = vadd.f32 %v2918, %v3179
  %v3434 = vadd.f32 %v2919, %v3182
  %v3435 = vadd.f32 %v2920, %v3187
  %v3436 = vadd.f32 %v2921, %v3190
  %v3437 = vadd.f32 %v2922, %v3195
  %v3438 = vadd.f32 %v2923, %v3198
  %v3439 = vadd.f32 %v2924, %v3203
  %v3440 = vadd.f32 %v2925, %v3206
  %v3441 = vadd.f32 %v2926, %v3211
  %v3442 = vadd.f32 %v2927, %v3214
  %v3443 = vadd.f32 %v2928, %v3219
  %v3444 = vadd.f32 %v2929, %v3222
  %v3445 = vadd.f32 %v2930, %v3227
  %v3446 = vadd.f32 %v2931, %v3230
  %v3447 = vadd.f32 %v2932, %v3235
  %v3448 = vadd.f32 %v2933, %v3238
  %v3449 = vadd.f32 %v2934, %v3243
  %v3450 = vadd.f32 %v2935, %v3246
  %v3451 = vadd.f32 %v2936, %v3251
  %v3452 = vadd.f32 %v2937, %v3254
  %v3453 = vadd.f32 %v2938, %v3259
  %v3454 = vadd.f32 %v2939, %v3262
  %v3455 = vadd.f32 %v2940, %v3267
  %v3456 = vadd.f32 %v2941, %v3270
  %v3457 = vadd.f32 %v2942, %v3275
  %v3458 = vadd.f32 %v2943, %v3278
  %v3459 = vadd.f32 %v2944, %v3283
  %v3460 = vadd.f32 %v2945, %v3286
  %v3461 = vadd.f32 %v2946, %v3291
  %v3462 = vadd.f32 %v2947, %v3294
  %v3463 = vadd.f32 %v2948, %v3299
  %v3464 = vadd.f32 %v2949, %v3302
  %v3465 = vadd.f32 %v2950, %v3307
  %v3466 = vadd.f32 %v2951, %v3310
  %v3467 = vadd.f32 %v2952, %v3315
  %v3468 = vadd.f32 %v2953, %v3318
  %v3469 = vadd.f32 %v2954, %v3323
  %v3470 = vadd.f32 %v2955, %v3326
  %v3471 = vadd.f32 %v2956, %v3331
  %v3472 = vadd.f32 %v2957, %v3334
  %v3473 = vadd.f32 %v2958, %v3339
  %v3474 = vadd.f32 %v2959, %v3342
  %v3475 = vadd.f32 %v2960, %v3347
  %v3476 = vadd.f32 %v2961, %v3350
  %v3477 = vadd.f32 %v2962, %v3355
  %v3478 = vadd.f32 %v2963, %v3358
  %v3479 = vadd.f32 %v2964, %v3363
  %v3480 = vadd.f32 %v2965, %v3366
  %v3481 = vadd.f32 %v2966, %v3371
  %v3482 = vadd.f32 %v2967, %v3374
  %v3483 = vadd.f32 %v2968, %v3379
  %v3484 = vadd.f32 %v2969, %v3382
  %v3485 = vadd.f32 %v2970, %v3387
  %v3486 = vadd.f32 %v2971, %v3390
  %v3487 = vadd.f32 %v2972, %v3395
  %v3488 = vadd.f32 %v2973, %v3398
  %v3489 = vadd.f32 %v2974, %v3403
  %v3490 = vadd.f32 %v2975, %v3406
  %v3491 = vadd.f32 %v2976, %v3411
  %v3492 = vadd.f32 %v2977, %v3414
  %v3493 = vadd.f32 %v2978, %v3419
  %v3494 = vadd.f32 %v2979, %v3422
  %v3495 = vadd.f32 %v2980, %v3427
  %v3496 = vadd.f32 %v2981, %v3430
  %s3497 = scalar_lea.vmem %s1, 24
  %v3498 = vld [vmem:[%s3497] sm:$0xff]
  %v3499 = vld [vmem:[%s3497 + $0x8] sm:$0xff]
  %v3500 = vld [vmem:[%s3497 + $0x18] sm:$0xff]
  %v3501 = vld [vmem:[%s3497 + $0x20] sm:$0xff]
  %v3502 = vld [vmem:[%s3497 + $0x30] sm:$0xff]
  %v3503 = vld [vmem:[%s3497 + $0x38] sm:$0xff]
  %v3504 = vld [vmem:[%s3497 + $0x48] sm:$0xff]
  %v3505 = vld [vmem:[%s3497 + $0x50] sm:$0xff]
  %v3506 = vld [vmem:[%s3497 + $0x60] sm:$0xff]
  %v3507 = vld [vmem:[%s3497 + $0x68] sm:$0xff]
  %v3508 = vld [vmem:[%s3497 + $0x78] sm:$0xff]
  %v3509 = vld [vmem:[%s3497 + $0x80] sm:$0xff]
  %v3510 = vld [vmem:[%s3497 + $0x90] sm:$0xff]
  %v3511 = vld [vmem:[%s3497 + $0x98] sm:$0xff]
  %v3512 = vld [vmem:[%s3497 + $0xa8] sm:$0xff]
  %v3513 = vld [vmem:[%s3497 + $0xb0] sm:$0xff]
  %v3514 = vld [vmem:[%s3497 + $0xc0] sm:$0xff]
  %v3515 = vld [vmem:[%s3497 + $0xc8] sm:$0xff]
  %v3516 = vld [vmem:[%s3497 + $0xd8] sm:$0xff]
  %v3517 = vld [vmem:[%s3497 + $0xe0] sm:$0xff]
  %v3518 = vld [vmem:[%s3497 + $0xf0] sm:$0xff]
  %v3519 = vld [vmem:[%s3497 + $0xf8] sm:$0xff]
  %v3520 = vld [vmem:[%s3497 + $0x108] sm:$0xff]
  %v3521 = vld [vmem:[%s3497 + $0x110] sm:$0xff]
  %v3522 = vld [vmem:[%s3497 + $0x120] sm:$0xff]
  %v3523 = vld [vmem:[%s3497 + $0x128] sm:$0xff]
  %v3524 = vld [vmem:[%s3497 + $0x138] sm:$0xff]
  %v3525 = vld [vmem:[%s3497 + $0x140] sm:$0xff]
  %v3526 = vld [vmem:[%s3497 + $0x150] sm:$0xff]
  %v3527 = vld [vmem:[%s3497 + $0x158] sm:$0xff]
  %v3528 = vld [vmem:[%s3497 + $0x168] sm:$0xff]
  %v3529 = vld [vmem:[%s3497 + $0x170] sm:$0xff]
  %v3530 = vld [vmem:[%s3497 + $0x198] sm:$0xff]
  %v3531 = vld [vmem:[%s3497 + $0x1a0] sm:$0xff]
  %v3532 = vld [vmem:[%s3497 + $0x1b0] sm:$0xff]
  %v3533 = vld [vmem:[%s3497 + $0x1b8] sm:$0xff]
  %v3534 = vld [vmem:[%s3497 + $0x1c8] sm:$0xff]
  %v3535 = vld [vmem:[%s3497 + $0x1d0] sm:$0xff]
  %v3536 = vld [vmem:[%s3497 + $0x1e0] sm:$0xff]
  %v3537 = vld [vmem:[%s3497 + $0x1e8] sm:$0xff]
  %v3538 = vld [vmem:[%s3497 + $0x1f8] sm:$0xff]
  %v3539 = vld [vmem:[%s3497 + $0x200] sm:$0xff]
  %v3540 = vld [vmem:[%s3497 + $0x210] sm:$0xff]
  %v3541 = vld [vmem:[%s3497 + $0x218] sm:$0xff]
  %v3542 = vld [vmem:[%s3497 + $0x228] sm:$0xff]
  %v3543 = vld [vmem:[%s3497 + $0x230] sm:$0xff]
  %v3544 = vld [vmem:[%s3497 + $0x240] sm:$0xff]
  %v3545 = vld [vmem:[%s3497 + $0x248] sm:$0xff]
  %v3546 = vld [vmem:[%s3497 + $0x258] sm:$0xff]
  %v3547 = vld [vmem:[%s3497 + $0x260] sm:$0xff]
  %v3548 = vld [vmem:[%s3497 + $0x270] sm:$0xff]
  %v3549 = vld [vmem:[%s3497 + $0x278] sm:$0xff]
  %v3550 = vld [vmem:[%s3497 + $0x288] sm:$0xff]
  %v3551 = vld [vmem:[%s3497 + $0x290] sm:$0xff]
  %v3552 = vld [vmem:[%s3497 + $0x2a0] sm:$0xff]
  %v3553 = vld [vmem:[%s3497 + $0x2a8] sm:$0xff]
  %v3554 = vld [vmem:[%s3497 + $0x2b8] sm:$0xff]
  %v3555 = vld [vmem:[%s3497 + $0x2c0] sm:$0xff]
  %v3556 = vld [vmem:[%s3497 + $0x2d0] sm:$0xff]
  %v3557 = vld [vmem:[%s3497 + $0x2d8] sm:$0xff]
  %v3558 = vld [vmem:[%s3497 + $0x2e8] sm:$0xff]
  %v3559 = vld [vmem:[%s3497 + $0x2f0] sm:$0xff]
  %v3560 = vld [vmem:[%s3497 + $0x300] sm:$0xff]
  %v3561 = vld [vmem:[%s3497 + $0x308] sm:$0xff]
  %v3562 = vpack.c.bf16 %v3499, %v3498
  %v3563 = vpack.c.bf16 %v3501, %v3500
  %v3564 = vpack.c.bf16 %v3503, %v3502
  %v3565 = vpack.c.bf16 %v3505, %v3504
  %v3566 = vpack.c.bf16 %v3507, %v3506
  %v3567 = vpack.c.bf16 %v3509, %v3508
  %v3568 = vpack.c.bf16 %v3511, %v3510
  %v3569 = vpack.c.bf16 %v3513, %v3512
  %v3570 = vpack.c.bf16 %v3515, %v3514
  %v3571 = vpack.c.bf16 %v3517, %v3516
  %v3572 = vpack.c.bf16 %v3519, %v3518
  %v3573 = vpack.c.bf16 %v3521, %v3520
  %v3574 = vpack.c.bf16 %v3523, %v3522
  %v3575 = vpack.c.bf16 %v3525, %v3524
  %v3576 = vpack.c.bf16 %v3527, %v3526
  %v3577 = vpack.c.bf16 %v3529, %v3528
  %v3578 = vpack.c.bf16 %v3531, %v3530
  %v3579 = vpack.c.bf16 %v3533, %v3532
  %v3580 = vpack.c.bf16 %v3535, %v3534
  %v3581 = vpack.c.bf16 %v3537, %v3536
  %v3582 = vpack.c.bf16 %v3539, %v3538
  %v3583 = vpack.c.bf16 %v3541, %v3540
  %v3584 = vpack.c.bf16 %v3543, %v3542
  %v3585 = vpack.c.bf16 %v3545, %v3544
  %v3586 = vpack.c.bf16 %v3547, %v3546
  %v3587 = vpack.c.bf16 %v3549, %v3548
  %v3588 = vpack.c.bf16 %v3551, %v3550
  %v3589 = vpack.c.bf16 %v3553, %v3552
  %v3590 = vpack.c.bf16 %v3555, %v3554
  %v3591 = vpack.c.bf16 %v3557, %v3556
  %v3592 = vpack.c.bf16 %v3559, %v3558
  %v3593 = vpack.c.bf16 %v3561, %v3560
  %s3594 = scalar_lea.vmem %s4, 448
  %v3595 = vld [vmem:[%s3594] sm:$0xf]
  %v3596 = vld [vmem:[%s3594 + $0x4] sm:$0xf]
  %v3597 = vld [vmem:[%s3594 + $0x8] sm:$0xf]
  %v3598 = vld [vmem:[%s3594 + $0xc] sm:$0xf]
  %v3599 = vld [vmem:[%s3594 + $0x10] sm:$0xf]
  %v3600 = vld [vmem:[%s3594 + $0x14] sm:$0xf]
  %v3601 = vld [vmem:[%s3594 + $0x18] sm:$0xf]
  %v3602 = vld [vmem:[%s3594 + $0x1c] sm:$0xf]
  %v3603 = vld [vmem:[%s3594 + $0x20] sm:$0xf]
  %v3604 = vld [vmem:[%s3594 + $0x24] sm:$0xf]
  %v3605 = vld [vmem:[%s3594 + $0x28] sm:$0xf]
  %v3606 = vld [vmem:[%s3594 + $0x2c] sm:$0xf]
  %v3607 = vld [vmem:[%s3594 + $0x30] sm:$0xf]
  %v3608 = vld [vmem:[%s3594 + $0x34] sm:$0xf]
  %v3609 = vld [vmem:[%s3594 + $0x38] sm:$0xf]
  %v3610 = vld [vmem:[%s3594 + $0x3c] sm:$0xf]
  %v3627 = vunpack.c.l.b16 %v3595
  %v3628 = vunpack.c.l.b16 %v3596
  %v3629 = vunpack.c.l.b16 %v3597
  %v3630 = vunpack.c.l.b16 %v3598
  %v3631 = vunpack.c.l.b16 %v3599
  %v3632 = vunpack.c.l.b16 %v3600
  %v3633 = vunpack.c.l.b16 %v3601
  %v3634 = vunpack.c.l.b16 %v3602
  %v3635 = vunpack.c.l.b16 %v3603
  %v3636 = vunpack.c.l.b16 %v3604
  %v3637 = vunpack.c.l.b16 %v3605
  %v3638 = vunpack.c.l.b16 %v3606
  %v3639 = vunpack.c.l.b16 %v3607
  %v3640 = vunpack.c.l.b16 %v3608
  %v3641 = vunpack.c.l.b16 %v3609
  %v3642 = vunpack.c.l.b16 %v3610
  %v3643 = vpack.c.b16 %v3628, %v3627
  %v3644 = vpack.c.b16 %v3630, %v3629
  %v3645 = vpack.c.b16 %v3632, %v3631
  %v3646 = vpack.c.b16 %v3634, %v3633
  %v3647 = vpack.c.b16 %v3636, %v3635
  %v3648 = vpack.c.b16 %v3638, %v3637
  %v3649 = vpack.c.b16 %v3640, %v3639
  %v3650 = vpack.c.b16 %v3642, %v3641
  %3659 = vmatprep.subr.bf16.mxu0 0
  %3660 = vmatpush1.bf16.msra.mxu0 %v3643
  %3661 = vmatprep.subr.bf16.mxu0 0
  %3662 = vmatpush1.bf16.msra.mxu0 %v3644
  %3663 = vmatprep.subr.bf16.mxu0 0
  %3664 = vmatpush1.bf16.msra.mxu0 %v3645
  %3665 = vmatprep.subr.bf16.mxu0 0
  %3666 = vmatpush1.bf16.msra.mxu0 %v3646
  %3667 = vmatprep.subr.bf16.mxu0 0
  %3668 = vmatpush1.bf16.msra.mxu0 %v3647
  %3669 = vmatprep.subr.bf16.mxu0 0
  %3670 = vmatpush1.bf16.msra.mxu0 %v3648
  %3671 = vmatprep.subr.bf16.mxu0 0
  %3672 = vmatpush1.bf16.msra.mxu0 %v3649
  %3673 = vmatprep.subr.bf16.mxu0 0
  %3674 = vmatpush1.bf16.msra.mxu0 %v3650
  %3675 = vmatprep.subr.bf16.mxu0 0
  %3676 = vmatpush1.bf16.msra.mxu0 0
  %3677 = vmatprep.subr.bf16.mxu0 0
  %3678 = vmatpush1.bf16.msra.mxu0 0
  %3679 = vmatprep.subr.bf16.mxu0 0
  %3680 = vmatpush1.bf16.msra.mxu0 0
  %3681 = vmatprep.subr.bf16.mxu0 0
  %3682 = vmatpush1.bf16.msra.mxu0 0
  %3683 = vmatprep.subr.bf16.mxu0 0
  %3684 = vmatpush1.bf16.msra.mxu0 0
  %3685 = vmatprep.subr.bf16.mxu0 0
  %3686 = vmatpush1.bf16.msra.mxu0 0
  %3687 = vmatprep.subr.bf16.mxu0 0
  %3688 = vmatpush1.bf16.msra.mxu0 0
  %3689 = vmatprep.subr.bf16.mxu0 0
  %3690 = vmatpush1.bf16.msra.mxu0 0
  %3691 = vmatprep.mubr.bf16.mxu0 0
  %3692 = vmatmul.mubr.bf16.gmra.mrb[0].mxu0 %v3562
  %v3693 = vpop.f32.mrb[0].mxu0
  %v3694 = vadd.f32 0.0, %v3693
  %v3695 = vpop.f32.mrb[0].mxu0
  %v3696 = vpop.f32.mrb[0].mxu0
  %v3697 = vadd.f32 0.0, %v3696
  %v3698 = vpop.f32.mrb[0].mxu0
  %3699 = vmatprep.mubr.bf16.mxu0 0
  %3700 = vmatmul.mubr.bf16.gmra.mrb[0].mxu0 %v3563
  %v3701 = vpop.f32.mrb[0].mxu0
  %v3702 = vadd.f32 0.0, %v3701
  %v3703 = vpop.f32.mrb[0].mxu0
  %v3704 = vpop.f32.mrb[0].mxu0
  %v3705 = vadd.f32 0.0, %v3704
  %v3706 = vpop.f32.mrb[0].mxu0
  %3707 = vmatprep.mubr.bf16.mxu0 0
  %3708 = vmatmul.mubr.bf16.gmra.mrb[0].mxu0 %v3564
  %v3709 = vpop.f32.mrb[0].mxu0
  %v3710 = vadd.f32 0.0, %v3709
  %v3711 = vpop.f32.mrb[0].mxu0
  %v3712 = vpop.f32.mrb[0].mxu0
  %v3713 = vadd.f32 0.0, %v3712
  %v3714 = vpop.f32.mrb[0].mxu0
  %3715 = vmatprep.mubr.bf16.mxu0 0
  %3716 = vmatmul.mubr.bf16.gmra.mrb[0].mxu0 %v3565
  %v3717 = vpop.f32.mrb[0].mxu0
  %v3718 = vadd.f32 0.0, %v3717
  %v3719 = vpop.f32.mrb[0].mxu0
  %v3720 = vpop.f32.mrb[0].mxu0
  %v3721 = vadd.f32 0.0, %v3720
  %v3722 = vpop.f32.mrb[0].mxu0
  %3723 = vmatprep.mubr.bf16.mxu0 0
  %3724 = vmatmul.mubr.bf16.gmra.mrb[0].mxu0 %v3566
  %v3725 = vpop.f32.mrb[0].mxu0
  %v3726 = vadd.f32 0.0, %v3725
  %v3727 = vpop.f32.mrb[0].mxu0
  %v3728 = vpop.f32.mrb[0].mxu0
  %v3729 = vadd.f32 0.0, %v3728
  %v3730 = vpop.f32.mrb[0].mxu0
  %3731 = vmatprep.mubr.bf16.mxu0 0
  %3732 = vmatmul.mubr.bf16.gmra.mrb[0].mxu0 %v3567
  %v3733 = vpop.f32.mrb[0].mxu0
  %v3734 = vadd.f32 0.0, %v3733
  %v3735 = vpop.f32.mrb[0].mxu0
  %v3736 = vpop.f32.mrb[0].mxu0
  %v3737 = vadd.f32 0.0, %v3736
  %v3738 = vpop.f32.mrb[0].mxu0
  %3739 = vmatprep.mubr.bf16.mxu0 0
  %3740 = vmatmul.mubr.bf16.gmra.mrb[0].mxu0 %v3568
  %v3741 = vpop.f32.mrb[0].mxu0
  %v3742 = vadd.f32 0.0, %v3741
  %v3743 = vpop.f32.mrb[0].mxu0
  %v3744 = vpop.f32.mrb[0].mxu0
  %v3745 = vadd.f32 0.0, %v3744
  %v3746 = vpop.f32.mrb[0].mxu0
  %3747 = vmatprep.mubr.bf16.mxu0 0
  %3748 = vmatmul.mubr.bf16.gmra.mrb[0].mxu0 %v3569
  %v3749 = vpop.f32.mrb[0].mxu0
  %v3750 = vadd.f32 0.0, %v3749
  %v3751 = vpop.f32.mrb[0].mxu0
  %v3752 = vpop.f32.mrb[0].mxu0
  %v3753 = vadd.f32 0.0, %v3752
  %v3754 = vpop.f32.mrb[0].mxu0
  %3755 = vmatprep.mubr.bf16.mxu0 0
  %3756 = vmatmul.mubr.bf16.gmra.mrb[0].mxu0 %v3570
  %v3757 = vpop.f32.mrb[0].mxu0
  %v3758 = vadd.f32 0.0, %v3757
  %v3759 = vpop.f32.mrb[0].mxu0
  %v3760 = vpop.f32.mrb[0].mxu0
  %v3761 = vadd.f32 0.0, %v3760
  %v3762 = vpop.f32.mrb[0].mxu0
  %3763 = vmatprep.mubr.bf16.mxu0 0
  %3764 = vmatmul.mubr.bf16.gmra.mrb[0].mxu0 %v3571
  %v3765 = vpop.f32.mrb[0].mxu0
  %v3766 = vadd.f32 0.0, %v3765
  %v3767 = vpop.f32.mrb[0].mxu0
  %v3768 = vpop.f32.mrb[0].mxu0
  %v3769 = vadd.f32 0.0, %v3768
  %v3770 = vpop.f32.mrb[0].mxu0
  %3771 = vmatprep.mubr.bf16.mxu0 0
  %3772 = vmatmul.mubr.bf16.gmra.mrb[0].mxu0 %v3572
  %v3773 = vpop.f32.mrb[0].mxu0
  %v3774 = vadd.f32 0.0, %v3773
  %v3775 = vpop.f32.mrb[0].mxu0
  %v3776 = vpop.f32.mrb[0].mxu0
  %v3777 = vadd.f32 0.0, %v3776
  %v3778 = vpop.f32.mrb[0].mxu0
  %3779 = vmatprep.mubr.bf16.mxu0 0
  %3780 = vmatmul.mubr.bf16.gmra.mrb[0].mxu0 %v3573
  %v3781 = vpop.f32.mrb[0].mxu0
  %v3782 = vadd.f32 0.0, %v3781
  %v3783 = vpop.f32.mrb[0].mxu0
  %v3784 = vpop.f32.mrb[0].mxu0
  %v3785 = vadd.f32 0.0, %v3784
  %v3786 = vpop.f32.mrb[0].mxu0
  %3787 = vmatprep.mubr.bf16.mxu0 0
  %3788 = vmatmul.mubr.bf16.gmra.mrb[0].mxu0 %v3574
  %v3789 = vpop.f32.mrb[0].mxu0
  %v3790 = vadd.f32 0.0, %v3789
  %v3791 = vpop.f32.mrb[0].mxu0
  %v3792 = vpop.f32.mrb[0].mxu0
  %v3793 = vadd.f32 0.0, %v3792
  %v3794 = vpop.f32.mrb[0].mxu0
  %3795 = vmatprep.mubr.bf16.mxu0 0
  %3796 = vmatmul.mubr.bf16.gmra.mrb[0].mxu0 %v3575
  %v3797 = vpop.f32.mrb[0].mxu0
  %v3798 = vadd.f32 0.0, %v3797
  %v3799 = vpop.f32.mrb[0].mxu0
  %v3800 = vpop.f32.mrb[0].mxu0
  %v3801 = vadd.f32 0.0, %v3800
  %v3802 = vpop.f32.mrb[0].mxu0
  %3803 = vmatprep.mubr.bf16.mxu0 0
  %3804 = vmatmul.mubr.bf16.gmra.mrb[0].mxu0 %v3576
  %v3805 = vpop.f32.mrb[0].mxu0
  %v3806 = vadd.f32 0.0, %v3805
  %v3807 = vpop.f32.mrb[0].mxu0
  %v3808 = vpop.f32.mrb[0].mxu0
  %v3809 = vadd.f32 0.0, %v3808
  %v3810 = vpop.f32.mrb[0].mxu0
  %3811 = vmatprep.mubr.bf16.mxu0 0
  %3812 = vmatmul.mubr.bf16.gmra.mrb[0].mxu0 %v3577
  %v3813 = vpop.f32.mrb[0].mxu0
  %v3814 = vadd.f32 0.0, %v3813
  %v3815 = vpop.f32.mrb[0].mxu0
  %v3816 = vpop.f32.mrb[0].mxu0
  %v3817 = vadd.f32 0.0, %v3816
  %v3818 = vpop.f32.mrb[0].mxu0
  %3819 = vmatprep.mubr.bf16.mxu0 0
  %3820 = vmatmul.mubr.bf16.gmra.mrb[0].mxu0 %v3578
  %v3821 = vpop.f32.mrb[0].mxu0
  %v3822 = vadd.f32 0.0, %v3821
  %v3823 = vpop.f32.mrb[0].mxu0
  %v3824 = vpop.f32.mrb[0].mxu0
  %v3825 = vadd.f32 0.0, %v3824
  %v3826 = vpop.f32.mrb[0].mxu0
  %3827 = vmatprep.mubr.bf16.mxu0 0
  %3828 = vmatmul.mubr.bf16.gmra.mrb[0].mxu0 %v3579
  %v3829 = vpop.f32.mrb[0].mxu0
  %v3830 = vadd.f32 0.0, %v3829
  %v3831 = vpop.f32.mrb[0].mxu0
  %v3832 = vpop.f32.mrb[0].mxu0
  %v3833 = vadd.f32 0.0, %v3832
  %v3834 = vpop.f32.mrb[0].mxu0
  %3835 = vmatprep.mubr.bf16.mxu0 0
  %3836 = vmatmul.mubr.bf16.gmra.mrb[0].mxu0 %v3580
  %v3837 = vpop.f32.mrb[0].mxu0
  %v3838 = vadd.f32 0.0, %v3837
  %v3839 = vpop.f32.mrb[0].mxu0
  %v3840 = vpop.f32.mrb[0].mxu0
  %v3841 = vadd.f32 0.0, %v3840
  %v3842 = vpop.f32.mrb[0].mxu0
  %3843 = vmatprep.mubr.bf16.mxu0 0
  %3844 = vmatmul.mubr.bf16.gmra.mrb[0].mxu0 %v3581
  %v3845 = vpop.f32.mrb[0].mxu0
  %v3846 = vadd.f32 0.0, %v3845
  %v3847 = vpop.f32.mrb[0].mxu0
  %v3848 = vpop.f32.mrb[0].mxu0
  %v3849 = vadd.f32 0.0, %v3848
  %v3850 = vpop.f32.mrb[0].mxu0
  %3851 = vmatprep.mubr.bf16.mxu0 0
  %3852 = vmatmul.mubr.bf16.gmra.mrb[0].mxu0 %v3582
  %v3853 = vpop.f32.mrb[0].mxu0
  %v3854 = vadd.f32 0.0, %v3853
  %v3855 = vpop.f32.mrb[0].mxu0
  %v3856 = vpop.f32.mrb[0].mxu0
  %v3857 = vadd.f32 0.0, %v3856
  %v3858 = vpop.f32.mrb[0].mxu0
  %3859 = vmatprep.mubr.bf16.mxu0 0
  %3860 = vmatmul.mubr.bf16.gmra.mrb[0].mxu0 %v3583
  %v3861 = vpop.f32.mrb[0].mxu0
  %v3862 = vadd.f32 0.0, %v3861
  %v3863 = vpop.f32.mrb[0].mxu0
  %v3864 = vpop.f32.mrb[0].mxu0
  %v3865 = vadd.f32 0.0, %v3864
  %v3866 = vpop.f32.mrb[0].mxu0
  %3867 = vmatprep.mubr.bf16.mxu0 0
  %3868 = vmatmul.mubr.bf16.gmra.mrb[0].mxu0 %v3584
  %v3869 = vpop.f32.mrb[0].mxu0
  %v3870 = vadd.f32 0.0, %v3869
  %v3871 = vpop.f32.mrb[0].mxu0
  %v3872 = vpop.f32.mrb[0].mxu0
  %v3873 = vadd.f32 0.0, %v3872
  %v3874 = vpop.f32.mrb[0].mxu0
  %3875 = vmatprep.mubr.bf16.mxu0 0
  %3876 = vmatmul.mubr.bf16.gmra.mrb[0].mxu0 %v3585
  %v3877 = vpop.f32.mrb[0].mxu0
  %v3878 = vadd.f32 0.0, %v3877
  %v3879 = vpop.f32.mrb[0].mxu0
  %v3880 = vpop.f32.mrb[0].mxu0
  %v3881 = vadd.f32 0.0, %v3880
  %v3882 = vpop.f32.mrb[0].mxu0
  %3883 = vmatprep.mubr.bf16.mxu0 0
  %3884 = vmatmul.mubr.bf16.gmra.mrb[0].mxu0 %v3586
  %v3885 = vpop.f32.mrb[0].mxu0
  %v3886 = vadd.f32 0.0, %v3885
  %v3887 = vpop.f32.mrb[0].mxu0
  %v3888 = vpop.f32.mrb[0].mxu0
  %v3889 = vadd.f32 0.0, %v3888
  %v3890 = vpop.f32.mrb[0].mxu0
  %3891 = vmatprep.mubr.bf16.mxu0 0
  %3892 = vmatmul.mubr.bf16.gmra.mrb[0].mxu0 %v3587
  %v3893 = vpop.f32.mrb[0].mxu0
  %v3894 = vadd.f32 0.0, %v3893
  %v3895 = vpop.f32.mrb[0].mxu0
  %v3896 = vpop.f32.mrb[0].mxu0
  %v3897 = vadd.f32 0.0, %v3896
  %v3898 = vpop.f32.mrb[0].mxu0
  %3899 = vmatprep.mubr.bf16.mxu0 0
  %3900 = vmatmul.mubr.bf16.gmra.mrb[0].mxu0 %v3588
  %v3901 = vpop.f32.mrb[0].mxu0
  %v3902 = vadd.f32 0.0, %v3901
  %v3903 = vpop.f32.mrb[0].mxu0
  %v3904 = vpop.f32.mrb[0].mxu0
  %v3905 = vadd.f32 0.0, %v3904
  %v3906 = vpop.f32.mrb[0].mxu0
  %3907 = vmatprep.mubr.bf16.mxu0 0
  %3908 = vmatmul.mubr.bf16.gmra.mrb[0].mxu0 %v3589
  %v3909 = vpop.f32.mrb[0].mxu0
  %v3910 = vadd.f32 0.0, %v3909
  %v3911 = vpop.f32.mrb[0].mxu0
  %v3912 = vpop.f32.mrb[0].mxu0
  %v3913 = vadd.f32 0.0, %v3912
  %v3914 = vpop.f32.mrb[0].mxu0
  %3915 = vmatprep.mubr.bf16.mxu0 0
  %3916 = vmatmul.mubr.bf16.gmra.mrb[0].mxu0 %v3590
  %v3917 = vpop.f32.mrb[0].mxu0
  %v3918 = vadd.f32 0.0, %v3917
  %v3919 = vpop.f32.mrb[0].mxu0
  %v3920 = vpop.f32.mrb[0].mxu0
  %v3921 = vadd.f32 0.0, %v3920
  %v3922 = vpop.f32.mrb[0].mxu0
  %3923 = vmatprep.mubr.bf16.mxu0 0
  %3924 = vmatmul.mubr.bf16.gmra.mrb[0].mxu0 %v3591
  %v3925 = vpop.f32.mrb[0].mxu0
  %v3926 = vadd.f32 0.0, %v3925
  %v3927 = vpop.f32.mrb[0].mxu0
  %v3928 = vpop.f32.mrb[0].mxu0
  %v3929 = vadd.f32 0.0, %v3928
  %v3930 = vpop.f32.mrb[0].mxu0
  %3931 = vmatprep.mubr.bf16.mxu0 0
  %3932 = vmatmul.mubr.bf16.gmra.mrb[0].mxu0 %v3592
  %v3933 = vpop.f32.mrb[0].mxu0
  %v3934 = vadd.f32 0.0, %v3933
  %v3935 = vpop.f32.mrb[0].mxu0
  %v3936 = vpop.f32.mrb[0].mxu0
  %v3937 = vadd.f32 0.0, %v3936
  %v3938 = vpop.f32.mrb[0].mxu0
  %3939 = vmatprep.mubr.bf16.mxu0 0
  %3940 = vmatmul.mubr.bf16.gmra.mrb[0].mxu0 %v3593
  %v3941 = vpop.f32.mrb[0].mxu0
  %v3942 = vadd.f32 0.0, %v3941
  %v3943 = vpop.f32.mrb[0].mxu0
  %v3944 = vpop.f32.mrb[0].mxu0
  %v3945 = vadd.f32 0.0, %v3944
  %v3946 = vpop.f32.mrb[0].mxu0
  %3947 = vdwg.mxu0
  %v3948 = vadd.f32 %v3433, %v3694
  %v3949 = vadd.f32 %v3434, %v3697
  %v3950 = vadd.f32 %v3435, %v3702
  %v3951 = vadd.f32 %v3436, %v3705
  %v3952 = vadd.f32 %v3437, %v3710
  %v3953 = vadd.f32 %v3438, %v3713
  %v3954 = vadd.f32 %v3439, %v3718
  %v3955 = vadd.f32 %v3440, %v3721
  %v3956 = vadd.f32 %v3441, %v3726
  %v3957 = vadd.f32 %v3442, %v3729
  %v3958 = vadd.f32 %v3443, %v3734
  %v3959 = vadd.f32 %v3444, %v3737
  %v3960 = vadd.f32 %v3445, %v3742
  %v3961 = vadd.f32 %v3446, %v3745
  %v3962 = vadd.f32 %v3447, %v3750
  %v3963 = vadd.f32 %v3448, %v3753
  %v3964 = vadd.f32 %v3449, %v3758
  %v3965 = vadd.f32 %v3450, %v3761
  %v3966 = vadd.f32 %v3451, %v3766
  %v3967 = vadd.f32 %v3452, %v3769
  %v3968 = vadd.f32 %v3453, %v3774
  %v3969 = vadd.f32 %v3454, %v3777
  %v3970 = vadd.f32 %v3455, %v3782
  %v3971 = vadd.f32 %v3456, %v3785
  %v3972 = vadd.f32 %v3457, %v3790
  %v3973 = vadd.f32 %v3458, %v3793
  %v3974 = vadd.f32 %v3459, %v3798
  %v3975 = vadd.f32 %v3460, %v3801
  %v3976 = vadd.f32 %v3461, %v3806
  %v3977 = vadd.f32 %v3462, %v3809
  %v3978 = vadd.f32 %v3463, %v3814
  %v3979 = vadd.f32 %v3464, %v3817
  %v3980 = vadd.f32 %v3465, %v3822
  %v3981 = vadd.f32 %v3466, %v3825
  %v3982 = vadd.f32 %v3467, %v3830
  %v3983 = vadd.f32 %v3468, %v3833
  %v3984 = vadd.f32 %v3469, %v3838
  %v3985 = vadd.f32 %v3470, %v3841
  %v3986 = vadd.f32 %v3471, %v3846
  %v3987 = vadd.f32 %v3472, %v3849
  %v3988 = vadd.f32 %v3473, %v3854
  %v3989 = vadd.f32 %v3474, %v3857
  %v3990 = vadd.f32 %v3475, %v3862
  %v3991 = vadd.f32 %v3476, %v3865
  %v3992 = vadd.f32 %v3477, %v3870
  %v3993 = vadd.f32 %v3478, %v3873
  %v3994 = vadd.f32 %v3479, %v3878
  %v3995 = vadd.f32 %v3480, %v3881
  %v3996 = vadd.f32 %v3481, %v3886
  %v3997 = vadd.f32 %v3482, %v3889
  %v3998 = vadd.f32 %v3483, %v3894
  %v3999 = vadd.f32 %v3484, %v3897
  %v4000 = vadd.f32 %v3485, %v3902
  %v4001 = vadd.f32 %v3486, %v3905
  %v4002 = vadd.f32 %v3487, %v3910
  %v4003 = vadd.f32 %v3488, %v3913
  %v4004 = vadd.f32 %v3489, %v3918
  %v4005 = vadd.f32 %v3490, %v3921
  %v4006 = vadd.f32 %v3491, %v3926
  %v4007 = vadd.f32 %v3492, %v3929
  %v4008 = vadd.f32 %v3493, %v3934
  %v4009 = vadd.f32 %v3494, %v3937
  %v4010 = vadd.f32 %v3495, %v3942
  %v4011 = vadd.f32 %v3496, %v3945
  %v4012 = vld [vmem:[%s2982 + $0x1] sm:$0xff]
  %v4013 = vld [vmem:[%s2982 + $0x9] sm:$0xff]
  %v4014 = vld [vmem:[%s2982 + $0x19] sm:$0xff]
  %v4015 = vld [vmem:[%s2982 + $0x21] sm:$0xff]
  %v4016 = vld [vmem:[%s2982 + $0x31] sm:$0xff]
  %v4017 = vld [vmem:[%s2982 + $0x39] sm:$0xff]
  %v4018 = vld [vmem:[%s2982 + $0x49] sm:$0xff]
  %v4019 = vld [vmem:[%s2982 + $0x51] sm:$0xff]
  %v4020 = vld [vmem:[%s2982 + $0x61] sm:$0xff]
  %v4021 = vld [vmem:[%s2982 + $0x69] sm:$0xff]
  %v4022 = vld [vmem:[%s2982 + $0x79] sm:$0xff]
  %v4023 = vld [vmem:[%s2982 + $0x81] sm:$0xff]
  %v4024 = vld [vmem:[%s2982 + $0x91] sm:$0xff]
  %v4025 = vld [vmem:[%s2982 + $0x99] sm:$0xff]
  %v4026 = vld [vmem:[%s2982 + $0xa9] sm:$0xff]
  %v4027 = vld [vmem:[%s2982 + $0xb1] sm:$0xff]
  %v4028 = vld [vmem:[%s2982 + $0xc1] sm:$0xff]
  %v4029 = vld [vmem:[%s2982 + $0xc9] sm:$0xff]
  %v4030 = vld [vmem:[%s2982 + $0xd9] sm:$0xff]
  %v4031 = vld [vmem:[%s2982 + $0xe1] sm:$0xff]
  %v4032 = vld [vmem:[%s2982 + $0xf1] sm:$0xff]
  %v4033 = vld [vmem:[%s2982 + $0xf9] sm:$0xff]
  %v4034 = vld [vmem:[%s2982 + $0x109] sm:$0xff]
  %v4035 = vld [vmem:[%s2982 + $0x111] sm:$0xff]
  %v4036 = vld [vmem:[%s2982 + $0x121] sm:$0xff]
  %v4037 = vld [vmem:[%s2982 + $0x129] sm:$0xff]
  %v4038 = vld [vmem:[%s2982 + $0x139] sm:$0xff]
  %v4039 = vld [vmem:[%s2982 + $0x141] sm:$0xff]
  %v4040 = vld [vmem:[%s2982 + $0x151] sm:$0xff]
  %v4041 = vld [vmem:[%s2982 + $0x159] sm:$0xff]
  %v4042 = vld [vmem:[%s2982 + $0x169] sm:$0xff]
  %v4043 = vld [vmem:[%s2982 + $0x171] sm:$0xff]
  %v4044 = vld [vmem:[%s2982 + $0x199] sm:$0xff]
  %v4045 = vld [vmem:[%s2982 + $0x1a1] sm:$0xff]
  %v4046 = vld [vmem:[%s2982 + $0x1b1] sm:$0xff]
  %v4047 = vld [vmem:[%s2982 + $0x1b9] sm:$0xff]
  %v4048 = vld [vmem:[%s2982 + $0x1c9] sm:$0xff]
  %v4049 = vld [vmem:[%s2982 + $0x1d1] sm:$0xff]
  %v4050 = vld [vmem:[%s2982 + $0x1e1] sm:$0xff]
  %v4051 = vld [vmem:[%s2982 + $0x1e9] sm:$0xff]
  %v4052 = vld [vmem:[%s2982 + $0x1f9] sm:$0xff]
  %v4053 = vld [vmem:[%s2982 + $0x201] sm:$0xff]
  %v4054 = vld [vmem:[%s2982 + $0x211] sm:$0xff]
  %v4055 = vld [vmem:[%s2982 + $0x219] sm:$0xff]
  %v4056 = vld [vmem:[%s2982 + $0x229] sm:$0xff]
  %v4057 = vld [vmem:[%s2982 + $0x231] sm:$0xff]
  %v4058 = vld [vmem:[%s2982 + $0x241] sm:$0xff]
  %v4059 = vld [vmem:[%s2982 + $0x249] sm:$0xff]
  %v4060 = vld [vmem:[%s2982 + $0x259] sm:$0xff]
  %v4061 = vld [vmem:[%s2982 + $0x261] sm:$0xff]
  %v4062 = vld [vmem:[%s2982 + $0x271] sm:$0xff]
  %v4063 = vld [vmem:[%s2982 + $0x279] sm:$0xff]
  %v4064 = vld [vmem:[%s2982 + $0x289] sm:$0xff]
  %v4065 = vld [vmem:[%s2982 + $0x291] sm:$0xff]
  %v4066 = vld [vmem:[%s2982 + $0x2a1] sm:$0xff]
  %v4067 = vld [vmem:[%s2982 + $0x2a9] sm:$0xff]
  %v4068 = vld [vmem:[%s2982 + $0x2b9] sm:$0xff]
  %v4069 = vld [vmem:[%s2982 + $0x2c1] sm:$0xff]
  %v4070 = vld [vmem:[%s2982 + $0x2d1] sm:$0xff]
  %v4071 = vld [vmem:[%s2982 + $0x2d9] sm:$0xff]
  %v4072 = vld [vmem:[%s2982 + $0x2e9] sm:$0xff]
  %v4073 = vld [vmem:[%s2982 + $0x2f1] sm:$0xff]
  %v4074 = vld [vmem:[%s2982 + $0x301] sm:$0xff]
  %v4075 = vld [vmem:[%s2982 + $0x309] sm:$0xff]
  %v4076 = vpack.c.bf16 %v4013, %v4012
  %v4077 = vpack.c.bf16 %v4015, %v4014
  %v4078 = vpack.c.bf16 %v4017, %v4016
  %v4079 = vpack.c.bf16 %v4019, %v4018
  %v4080 = vpack.c.bf16 %v4021, %v4020
  %v4081 = vpack.c.bf16 %v4023, %v4022
  %v4082 = vpack.c.bf16 %v4025, %v4024
  %v4083 = vpack.c.bf16 %v4027, %v4026
  %v4084 = vpack.c.bf16 %v4029, %v4028
  %v4085 = vpack.c.bf16 %v4031, %v4030
  %v4086 = vpack.c.bf16 %v4033, %v4032
  %v4087 = vpack.c.bf16 %v4035, %v4034
  %v4088 = vpack.c.bf16 %v4037, %v4036
  %v4089 = vpack.c.bf16 %v4039, %v4038
  %v4090 = vpack.c.bf16 %v4041, %v4040
  %v4091 = vpack.c.bf16 %v4043, %v4042
  %v4092 = vpack.c.bf16 %v4045, %v4044
  %v4093 = vpack.c.bf16 %v4047, %v4046
  %v4094 = vpack.c.bf16 %v4049, %v4048
  %v4095 = vpack.c.bf16 %v4051, %v4050
  %v4096 = vpack.c.bf16 %v4053, %v4052
  %v4097 = vpack.c.bf16 %v4055, %v4054
  %v4098 = vpack.c.bf16 %v4057, %v4056
  %v4099 = vpack.c.bf16 %v4059, %v4058
  %v4100 = vpack.c.bf16 %v4061, %v4060
  %v4101 = vpack.c.bf16 %v4063, %v4062
  %v4102 = vpack.c.bf16 %v4065, %v4064
  %v4103 = vpack.c.bf16 %v4067, %v4066
  %v4104 = vpack.c.bf16 %v4069, %v4068
  %v4105 = vpack.c.bf16 %v4071, %v4070
  %v4106 = vpack.c.bf16 %v4073, %v4072
  %v4107 = vpack.c.bf16 %v4075, %v4074
  %s4108 = scalar_lea.vmem %s4, 512
  %v4109 = vld [vmem:[%s4108] sm:$0xf]
  %v4110 = vld [vmem:[%s4108 + $0x4] sm:$0xf]
  %v4111 = vld [vmem:[%s4108 + $0x8] sm:$0xf]
  %v4112 = vld [vmem:[%s4108 + $0xc] sm:$0xf]
  %v4113 = vld [vmem:[%s4108 + $0x10] sm:$0xf]
  %v4114 = vld [vmem:[%s4108 + $0x14] sm:$0xf]
  %v4115 = vld [vmem:[%s4108 + $0x18] sm:$0xf]
  %v4116 = vld [vmem:[%s4108 + $0x1c] sm:$0xf]
  %v4117 = vld [vmem:[%s4108 + $0x20] sm:$0xf]
  %v4118 = vld [vmem:[%s4108 + $0x24] sm:$0xf]
  %v4119 = vld [vmem:[%s4108 + $0x28] sm:$0xf]
  %v4120 = vld [vmem:[%s4108 + $0x2c] sm:$0xf]
  %v4121 = vld [vmem:[%s4108 + $0x30] sm:$0xf]
  %v4122 = vld [vmem:[%s4108 + $0x34] sm:$0xf]
  %v4123 = vld [vmem:[%s4108 + $0x38] sm:$0xf]
  %v4124 = vld [vmem:[%s4108 + $0x3c] sm:$0xf]
  %v4141 = vunpack.c.l.b16 %v4109
  %v4142 = vunpack.c.l.b16 %v4110
  %v4143 = vunpack.c.l.b16 %v4111
  %v4144 = vunpack.c.l.b16 %v4112
  %v4145 = vunpack.c.l.b16 %v4113
  %v4146 = vunpack.c.l.b16 %v4114
  %v4147 = vunpack.c.l.b16 %v4115
  %v4148 = vunpack.c.l.b16 %v4116
  %v4149 = vunpack.c.l.b16 %v4117
  %v4150 = vunpack.c.l.b16 %v4118
  %v4151 = vunpack.c.l.b16 %v4119
  %v4152 = vunpack.c.l.b16 %v4120
  %v4153 = vunpack.c.l.b16 %v4121
  %v4154 = vunpack.c.l.b16 %v4122
  %v4155 = vunpack.c.l.b16 %v4123
  %v4156 = vunpack.c.l.b16 %v4124
  %v4157 = vpack.c.b16 %v4142, %v4141
  %v4158 = vpack.c.b16 %v4144, %v4143
  %v4159 = vpack.c.b16 %v4146, %v4145
  %v4160 = vpack.c.b16 %v4148, %v4147
  %v4161 = vpack.c.b16 %v4150, %v4149
  %v4162 = vpack.c.b16 %v4152, %v4151
  %v4163 = vpack.c.b16 %v4154, %v4153
  %v4164 = vpack.c.b16 %v4156, %v4155
  %4173 = vmatprep.subr.bf16.mxu0 0
  %4174 = vmatpush1.bf16.msra.mxu0 %v4157
  %4175 = vmatprep.subr.bf16.mxu0 0
  %4176 = vmatpush1.bf16.msra.mxu0 %v4158
  %4177 = vmatprep.subr.bf16.mxu0 0
  %4178 = vmatpush1.bf16.msra.mxu0 %v4159
  %4179 = vmatprep.subr.bf16.mxu0 0
  %4180 = vmatpush1.bf16.msra.mxu0 %v4160
  %4181 = vmatprep.subr.bf16.mxu0 0
  %4182 = vmatpush1.bf16.msra.mxu0 %v4161
  %4183 = vmatprep.subr.bf16.mxu0 0
  %4184 = vmatpush1.bf16.msra.mxu0 %v4162
  %4185 = vmatprep.subr.bf16.mxu0 0
  %4186 = vmatpush1.bf16.msra.mxu0 %v4163
  %4187 = vmatprep.subr.bf16.mxu0 0
  %4188 = vmatpush1.bf16.msra.mxu0 %v4164
  %4189 = vmatprep.subr.bf16.mxu0 0
  %4190 = vmatpush1.bf16.msra.mxu0 0
  %4191 = vmatprep.subr.bf16.mxu0 0
  %4192 = vmatpush1.bf16.msra.mxu0 0
  %4193 = vmatprep.subr.bf16.mxu0 0
  %4194 = vmatpush1.bf16.msra.mxu0 0
  %4195 = vmatprep.subr.bf16.mxu0 0
  %4196 = vmatpush1.bf16.msra.mxu0 0
  %4197 = vmatprep.subr.bf16.mxu0 0
  %4198 = vmatpush1.bf16.msra.mxu0 0
  %4199 = vmatprep.subr.bf16.mxu0 0
  %4200 = vmatpush1.bf16.msra.mxu0 0
  %4201 = vmatprep.subr.bf16.mxu0 0
  %4202 = vmatpush1.bf16.msra.mxu0 0
  %4203 = vmatprep.subr.bf16.mxu0 0
  %4204 = vmatpush1.bf16.msra.mxu0 0
  %4205 = vmatprep.mubr.bf16.mxu0 0
  %4206 = vmatmul.mubr.bf16.gmra.mrb[0].mxu0 %v4076
  %v4207 = vpop.f32.mrb[0].mxu0
  %v4208 = vadd.f32 0.0, %v4207
  %v4209 = vpop.f32.mrb[0].mxu0
  %v4210 = vpop.f32.mrb[0].mxu0
  %v4211 = vadd.f32 0.0, %v4210
  %v4212 = vpop.f32.mrb[0].mxu0
  %4213 = vmatprep.mubr.bf16.mxu0 0
  %4214 = vmatmul.mubr.bf16.gmra.mrb[0].mxu0 %v4077
  %v4215 = vpop.f32.mrb[0].mxu0
  %v4216 = vadd.f32 0.0, %v4215
  %v4217 = vpop.f32.mrb[0].mxu0
  %v4218 = vpop.f32.mrb[0].mxu0
  %v4219 = vadd.f32 0.0, %v4218
  %v4220 = vpop.f32.mrb[0].mxu0
  %4221 = vmatprep.mubr.bf16.mxu0 0
  %4222 = vmatmul.mubr.bf16.gmra.mrb[0].mxu0 %v4078
  %v4223 = vpop.f32.mrb[0].mxu0
  %v4224 = vadd.f32 0.0, %v4223
  %v4225 = vpop.f32.mrb[0].mxu0
  %v4226 = vpop.f32.mrb[0].mxu0
  %v4227 = vadd.f32 0.0, %v4226
  %v4228 = vpop.f32.mrb[0].mxu0
  %4229 = vmatprep.mubr.bf16.mxu0 0
  %4230 = vmatmul.mubr.bf16.gmra.mrb[0].mxu0 %v4079
  %v4231 = vpop.f32.mrb[0].mxu0
  %v4232 = vadd.f32 0.0, %v4231
  %v4233 = vpop.f32.mrb[0].mxu0
  %v4234 = vpop.f32.mrb[0].mxu0
  %v4235 = vadd.f32 0.0, %v4234
  %v4236 = vpop.f32.mrb[0].mxu0
  %4237 = vmatprep.mubr.bf16.mxu0 0
  %4238 = vmatmul.mubr.bf16.gmra.mrb[0].mxu0 %v4080
  %v4239 = vpop.f32.mrb[0].mxu0
  %v4240 = vadd.f32 0.0, %v4239
  %v4241 = vpop.f32.mrb[0].mxu0
  %v4242 = vpop.f32.mrb[0].mxu0
  %v4243 = vadd.f32 0.0, %v4242
  %v4244 = vpop.f32.mrb[0].mxu0
  %4245 = vmatprep.mubr.bf16.mxu0 0
  %4246 = vmatmul.mubr.bf16.gmra.mrb[0].mxu0 %v4081
  %v4247 = vpop.f32.mrb[0].mxu0
  %v4248 = vadd.f32 0.0, %v4247
  %v4249 = vpop.f32.mrb[0].mxu0
  %v4250 = vpop.f32.mrb[0].mxu0
  %v4251 = vadd.f32 0.0, %v4250
  %v4252 = vpop.f32.mrb[0].mxu0
  %4253 = vmatprep.mubr.bf16.mxu0 0
  %4254 = vmatmul.mubr.bf16.gmra.mrb[0].mxu0 %v4082
  %v4255 = vpop.f32.mrb[0].mxu0
  %v4256 = vadd.f32 0.0, %v4255
  %v4257 = vpop.f32.mrb[0].mxu0
  %v4258 = vpop.f32.mrb[0].mxu0
  %v4259 = vadd.f32 0.0, %v4258
  %v4260 = vpop.f32.mrb[0].mxu0
  %4261 = vmatprep.mubr.bf16.mxu0 0
  %4262 = vmatmul.mubr.bf16.gmra.mrb[0].mxu0 %v4083
  %v4263 = vpop.f32.mrb[0].mxu0
  %v4264 = vadd.f32 0.0, %v4263
  %v4265 = vpop.f32.mrb[0].mxu0
  %v4266 = vpop.f32.mrb[0].mxu0
  %v4267 = vadd.f32 0.0, %v4266
  %v4268 = vpop.f32.mrb[0].mxu0
  %4269 = vmatprep.mubr.bf16.mxu0 0
  %4270 = vmatmul.mubr.bf16.gmra.mrb[0].mxu0 %v4084
  %v4271 = vpop.f32.mrb[0].mxu0
  %v4272 = vadd.f32 0.0, %v4271
  %v4273 = vpop.f32.mrb[0].mxu0
  %v4274 = vpop.f32.mrb[0].mxu0
  %v4275 = vadd.f32 0.0, %v4274
  %v4276 = vpop.f32.mrb[0].mxu0
  %4277 = vmatprep.mubr.bf16.mxu0 0
  %4278 = vmatmul.mubr.bf16.gmra.mrb[0].mxu0 %v4085
  %v4279 = vpop.f32.mrb[0].mxu0
  %v4280 = vadd.f32 0.0, %v4279
  %v4281 = vpop.f32.mrb[0].mxu0
  %v4282 = vpop.f32.mrb[0].mxu0
  %v4283 = vadd.f32 0.0, %v4282
  %v4284 = vpop.f32.mrb[0].mxu0
  %4285 = vmatprep.mubr.bf16.mxu0 0
  %4286 = vmatmul.mubr.bf16.gmra.mrb[0].mxu0 %v4086
  %v4287 = vpop.f32.mrb[0].mxu0
  %v4288 = vadd.f32 0.0, %v4287
  %v4289 = vpop.f32.mrb[0].mxu0
  %v4290 = vpop.f32.mrb[0].mxu0
  %v4291 = vadd.f32 0.0, %v4290
  %v4292 = vpop.f32.mrb[0].mxu0
  %4293 = vmatprep.mubr.bf16.mxu0 0
  %4294 = vmatmul.mubr.bf16.gmra.mrb[0].mxu0 %v4087
  %v4295 = vpop.f32.mrb[0].mxu0
  %v4296 = vadd.f32 0.0, %v4295
  %v4297 = vpop.f32.mrb[0].mxu0
  %v4298 = vpop.f32.mrb[0].mxu0
  %v4299 = vadd.f32 0.0, %v4298
  %v4300 = vpop.f32.mrb[0].mxu0
  %4301 = vmatprep.mubr.bf16.mxu0 0
  %4302 = vmatmul.mubr.bf16.gmra.mrb[0].mxu0 %v4088
  %v4303 = vpop.f32.mrb[0].mxu0
  %v4304 = vadd.f32 0.0, %v4303
  %v4305 = vpop.f32.mrb[0].mxu0
  %v4306 = vpop.f32.mrb[0].mxu0
  %v4307 = vadd.f32 0.0, %v4306
  %v4308 = vpop.f32.mrb[0].mxu0
  %4309 = vmatprep.mubr.bf16.mxu0 0
  %4310 = vmatmul.mubr.bf16.gmra.mrb[0].mxu0 %v4089
  %v4311 = vpop.f32.mrb[0].mxu0
  %v4312 = vadd.f32 0.0, %v4311
  %v4313 = vpop.f32.mrb[0].mxu0
  %v4314 = vpop.f32.mrb[0].mxu0
  %v4315 = vadd.f32 0.0, %v4314
  %v4316 = vpop.f32.mrb[0].mxu0
  %4317 = vmatprep.mubr.bf16.mxu0 0
  %4318 = vmatmul.mubr.bf16.gmra.mrb[0].mxu0 %v4090
  %v4319 = vpop.f32.mrb[0].mxu0
  %v4320 = vadd.f32 0.0, %v4319
  %v4321 = vpop.f32.mrb[0].mxu0
  %v4322 = vpop.f32.mrb[0].mxu0
  %v4323 = vadd.f32 0.0, %v4322
  %v4324 = vpop.f32.mrb[0].mxu0
  %4325 = vmatprep.mubr.bf16.mxu0 0
  %4326 = vmatmul.mubr.bf16.gmra.mrb[0].mxu0 %v4091
  %v4327 = vpop.f32.mrb[0].mxu0
  %v4328 = vadd.f32 0.0, %v4327
  %v4329 = vpop.f32.mrb[0].mxu0
  %v4330 = vpop.f32.mrb[0].mxu0
  %v4331 = vadd.f32 0.0, %v4330
  %v4332 = vpop.f32.mrb[0].mxu0
  %4333 = vmatprep.mubr.bf16.mxu0 0
  %4334 = vmatmul.mubr.bf16.gmra.mrb[0].mxu0 %v4092
  %v4335 = vpop.f32.mrb[0].mxu0
  %v4336 = vadd.f32 0.0, %v4335
  %v4337 = vpop.f32.mrb[0].mxu0
  %v4338 = vpop.f32.mrb[0].mxu0
  %v4339 = vadd.f32 0.0, %v4338
  %v4340 = vpop.f32.mrb[0].mxu0
  %4341 = vmatprep.mubr.bf16.mxu0 0
  %4342 = vmatmul.mubr.bf16.gmra.mrb[0].mxu0 %v4093
  %v4343 = vpop.f32.mrb[0].mxu0
  %v4344 = vadd.f32 0.0, %v4343
  %v4345 = vpop.f32.mrb[0].mxu0
  %v4346 = vpop.f32.mrb[0].mxu0
  %v4347 = vadd.f32 0.0, %v4346
  %v4348 = vpop.f32.mrb[0].mxu0
  %4349 = vmatprep.mubr.bf16.mxu0 0
  %4350 = vmatmul.mubr.bf16.gmra.mrb[0].mxu0 %v4094
  %v4351 = vpop.f32.mrb[0].mxu0
  %v4352 = vadd.f32 0.0, %v4351
  %v4353 = vpop.f32.mrb[0].mxu0
  %v4354 = vpop.f32.mrb[0].mxu0
  %v4355 = vadd.f32 0.0, %v4354
  %v4356 = vpop.f32.mrb[0].mxu0
  %4357 = vmatprep.mubr.bf16.mxu0 0
  %4358 = vmatmul.mubr.bf16.gmra.mrb[0].mxu0 %v4095
  %v4359 = vpop.f32.mrb[0].mxu0
  %v4360 = vadd.f32 0.0, %v4359
  %v4361 = vpop.f32.mrb[0].mxu0
  %v4362 = vpop.f32.mrb[0].mxu0
  %v4363 = vadd.f32 0.0, %v4362
  %v4364 = vpop.f32.mrb[0].mxu0
  %4365 = vmatprep.mubr.bf16.mxu0 0
  %4366 = vmatmul.mubr.bf16.gmra.mrb[0].mxu0 %v4096
  %v4367 = vpop.f32.mrb[0].mxu0
  %v4368 = vadd.f32 0.0, %v4367
  %v4369 = vpop.f32.mrb[0].mxu0
  %v4370 = vpop.f32.mrb[0].mxu0
  %v4371 = vadd.f32 0.0, %v4370
  %v4372 = vpop.f32.mrb[0].mxu0
  %4373 = vmatprep.mubr.bf16.mxu0 0
  %4374 = vmatmul.mubr.bf16.gmra.mrb[0].mxu0 %v4097
  %v4375 = vpop.f32.mrb[0].mxu0
  %v4376 = vadd.f32 0.0, %v4375
  %v4377 = vpop.f32.mrb[0].mxu0
  %v4378 = vpop.f32.mrb[0].mxu0
  %v4379 = vadd.f32 0.0, %v4378
  %v4380 = vpop.f32.mrb[0].mxu0
  %4381 = vmatprep.mubr.bf16.mxu0 0
  %4382 = vmatmul.mubr.bf16.gmra.mrb[0].mxu0 %v4098
  %v4383 = vpop.f32.mrb[0].mxu0
  %v4384 = vadd.f32 0.0, %v4383
  %v4385 = vpop.f32.mrb[0].mxu0
  %v4386 = vpop.f32.mrb[0].mxu0
  %v4387 = vadd.f32 0.0, %v4386
  %v4388 = vpop.f32.mrb[0].mxu0
  %4389 = vmatprep.mubr.bf16.mxu0 0
  %4390 = vmatmul.mubr.bf16.gmra.mrb[0].mxu0 %v4099
  %v4391 = vpop.f32.mrb[0].mxu0
  %v4392 = vadd.f32 0.0, %v4391
  %v4393 = vpop.f32.mrb[0].mxu0
  %v4394 = vpop.f32.mrb[0].mxu0
  %v4395 = vadd.f32 0.0, %v4394
  %v4396 = vpop.f32.mrb[0].mxu0
  %4397 = vmatprep.mubr.bf16.mxu0 0
  %4398 = vmatmul.mubr.bf16.gmra.mrb[0].mxu0 %v4100
  %v4399 = vpop.f32.mrb[0].mxu0
  %v4400 = vadd.f32 0.0, %v4399
  %v4401 = vpop.f32.mrb[0].mxu0
  %v4402 = vpop.f32.mrb[0].mxu0
  %v4403 = vadd.f32 0.0, %v4402
  %v4404 = vpop.f32.mrb[0].mxu0
  %4405 = vmatprep.mubr.bf16.mxu0 0
  %4406 = vmatmul.mubr.bf16.gmra.mrb[0].mxu0 %v4101
  %v4407 = vpop.f32.mrb[0].mxu0
  %v4408 = vadd.f32 0.0, %v4407
  %v4409 = vpop.f32.mrb[0].mxu0
  %v4410 = vpop.f32.mrb[0].mxu0
  %v4411 = vadd.f32 0.0, %v4410
  %v4412 = vpop.f32.mrb[0].mxu0
  %4413 = vmatprep.mubr.bf16.mxu0 0
  %4414 = vmatmul.mubr.bf16.gmra.mrb[0].mxu0 %v4102
  %v4415 = vpop.f32.mrb[0].mxu0
  %v4416 = vadd.f32 0.0, %v4415
  %v4417 = vpop.f32.mrb[0].mxu0
  %v4418 = vpop.f32.mrb[0].mxu0
  %v4419 = vadd.f32 0.0, %v4418
  %v4420 = vpop.f32.mrb[0].mxu0
  %4421 = vmatprep.mubr.bf16.mxu0 0
  %4422 = vmatmul.mubr.bf16.gmra.mrb[0].mxu0 %v4103
  %v4423 = vpop.f32.mrb[0].mxu0
  %v4424 = vadd.f32 0.0, %v4423
  %v4425 = vpop.f32.mrb[0].mxu0
  %v4426 = vpop.f32.mrb[0].mxu0
  %v4427 = vadd.f32 0.0, %v4426
  %v4428 = vpop.f32.mrb[0].mxu0
  %4429 = vmatprep.mubr.bf16.mxu0 0
  %4430 = vmatmul.mubr.bf16.gmra.mrb[0].mxu0 %v4104
  %v4431 = vpop.f32.mrb[0].mxu0
  %v4432 = vadd.f32 0.0, %v4431
  %v4433 = vpop.f32.mrb[0].mxu0
  %v4434 = vpop.f32.mrb[0].mxu0
  %v4435 = vadd.f32 0.0, %v4434
  %v4436 = vpop.f32.mrb[0].mxu0
  %4437 = vmatprep.mubr.bf16.mxu0 0
  %4438 = vmatmul.mubr.bf16.gmra.mrb[0].mxu0 %v4105
  %v4439 = vpop.f32.mrb[0].mxu0
  %v4440 = vadd.f32 0.0, %v4439
  %v4441 = vpop.f32.mrb[0].mxu0
  %v4442 = vpop.f32.mrb[0].mxu0
  %v4443 = vadd.f32 0.0, %v4442
  %v4444 = vpop.f32.mrb[0].mxu0
  %4445 = vmatprep.mubr.bf16.mxu0 0
  %4446 = vmatmul.mubr.bf16.gmra.mrb[0].mxu0 %v4106
  %v4447 = vpop.f32.mrb[0].mxu0
  %v4448 = vadd.f32 0.0, %v4447
  %v4449 = vpop.f32.mrb[0].mxu0
  %v4450 = vpop.f32.mrb[0].mxu0
  %v4451 = vadd.f32 0.0, %v4450
  %v4452 = vpop.f32.mrb[0].mxu0
  %4453 = vmatprep.mubr.bf16.mxu0 0
  %4454 = vmatmul.mubr.bf16.gmra.mrb[0].mxu0 %v4107
  %v4455 = vpop.f32.mrb[0].mxu0
  %v4456 = vadd.f32 0.0, %v4455
  %v4457 = vpop.f32.mrb[0].mxu0
  %v4458 = vpop.f32.mrb[0].mxu0
  %v4459 = vadd.f32 0.0, %v4458
  %v4460 = vpop.f32.mrb[0].mxu0
  %4461 = vdwg.mxu0
  %v4462 = vadd.f32 %v3948, %v4208
  %v4463 = vadd.f32 %v3949, %v4211
  %v4464 = vadd.f32 %v3950, %v4216
  %v4465 = vadd.f32 %v3951, %v4219
  %v4466 = vadd.f32 %v3952, %v4224
  %v4467 = vadd.f32 %v3953, %v4227
  %v4468 = vadd.f32 %v3954, %v4232
  %v4469 = vadd.f32 %v3955, %v4235
  %v4470 = vadd.f32 %v3956, %v4240
  %v4471 = vadd.f32 %v3957, %v4243
  %v4472 = vadd.f32 %v3958, %v4248
  %v4473 = vadd.f32 %v3959, %v4251
  %v4474 = vadd.f32 %v3960, %v4256
  %v4475 = vadd.f32 %v3961, %v4259
  %v4476 = vadd.f32 %v3962, %v4264
  %v4477 = vadd.f32 %v3963, %v4267
  %v4478 = vadd.f32 %v3964, %v4272
  %v4479 = vadd.f32 %v3965, %v4275
  %v4480 = vadd.f32 %v3966, %v4280
  %v4481 = vadd.f32 %v3967, %v4283
  %v4482 = vadd.f32 %v3968, %v4288
  %v4483 = vadd.f32 %v3969, %v4291
  %v4484 = vadd.f32 %v3970, %v4296
  %v4485 = vadd.f32 %v3971, %v4299
  %v4486 = vadd.f32 %v3972, %v4304
  %v4487 = vadd.f32 %v3973, %v4307
  %v4488 = vadd.f32 %v3974, %v4312
  %v4489 = vadd.f32 %v3975, %v4315
  %v4490 = vadd.f32 %v3976, %v4320
  %v4491 = vadd.f32 %v3977, %v4323
  %v4492 = vadd.f32 %v3978, %v4328
  %v4493 = vadd.f32 %v3979, %v4331
  %v4494 = vadd.f32 %v3980, %v4336
  %v4495 = vadd.f32 %v3981, %v4339
  %v4496 = vadd.f32 %v3982, %v4344
  %v4497 = vadd.f32 %v3983, %v4347
  %v4498 = vadd.f32 %v3984, %v4352
  %v4499 = vadd.f32 %v3985, %v4355
  %v4500 = vadd.f32 %v3986, %v4360
  %v4501 = vadd.f32 %v3987, %v4363
  %v4502 = vadd.f32 %v3988, %v4368
  %v4503 = vadd.f32 %v3989, %v4371
  %v4504 = vadd.f32 %v3990, %v4376
  %v4505 = vadd.f32 %v3991, %v4379
  %v4506 = vadd.f32 %v3992, %v4384
  %v4507 = vadd.f32 %v3993, %v4387
  %v4508 = vadd.f32 %v3994, %v4392
  %v4509 = vadd.f32 %v3995, %v4395
  %v4510 = vadd.f32 %v3996, %v4400
  %v4511 = vadd.f32 %v3997, %v4403
  %v4512 = vadd.f32 %v3998, %v4408
  %v4513 = vadd.f32 %v3999, %v4411
  %v4514 = vadd.f32 %v4000, %v4416
  %v4515 = vadd.f32 %v4001, %v4419
  %v4516 = vadd.f32 %v4002, %v4424
  %v4517 = vadd.f32 %v4003, %v4427
  %v4518 = vadd.f32 %v4004, %v4432
  %v4519 = vadd.f32 %v4005, %v4435
  %v4520 = vadd.f32 %v4006, %v4440
  %v4521 = vadd.f32 %v4007, %v4443
  %v4522 = vadd.f32 %v4008, %v4448
  %v4523 = vadd.f32 %v4009, %v4451
  %v4524 = vadd.f32 %v4010, %v4456
  %v4525 = vadd.f32 %v4011, %v4459
  %v4526 = vadd.f32 %v4462, %v4463
  %v4527 = vadd.f32 %v4526, %v4464
  %v4528 = vadd.f32 %v4527, %v4465
  %v4529 = vadd.f32 %v4528, %v4466
  %v4530 = vadd.f32 %v4529, %v4467
  %v4531 = vadd.f32 %v4530, %v4468
  %v4532 = vadd.f32 %v4531, %v4469
  %v4533 = vadd.f32 %v4532, %v4470
  %v4534 = vadd.f32 %v4533, %v4471
  %v4535 = vadd.f32 %v4534, %v4472
  %v4536 = vadd.f32 %v4535, %v4473
  %v4537 = vadd.f32 %v4536, %v4474
  %v4538 = vadd.f32 %v4537, %v4475
  %v4539 = vadd.f32 %v4538, %v4476
  %v4540 = vadd.f32 %v4539, %v4477
  %v4541 = vadd.f32 %v4540, %v4478
  %v4542 = vadd.f32 %v4541, %v4479
  %v4543 = vadd.f32 %v4542, %v4480
  %v4544 = vadd.f32 %v4543, %v4481
  %v4545 = vadd.f32 %v4544, %v4482
  %v4546 = vadd.f32 %v4545, %v4483
  %v4547 = vadd.f32 %v4546, %v4484
  %v4548 = vadd.f32 %v4547, %v4485
  %v4549 = vadd.f32 %v4548, %v4486
  %v4550 = vadd.f32 %v4549, %v4487
  %v4551 = vadd.f32 %v4550, %v4488
  %v4552 = vadd.f32 %v4551, %v4489
  %v4553 = vadd.f32 %v4552, %v4490
  %v4554 = vadd.f32 %v4553, %v4491
  %v4555 = vadd.f32 %v4554, %v4492
  %v4556 = vadd.f32 %v4555, %v4493
  %v4557 = vadd.f32 %v4556, %v4494
  %v4558 = vadd.f32 %v4557, %v4495
  %v4559 = vadd.f32 %v4558, %v4496
  %v4560 = vadd.f32 %v4559, %v4497
  %v4561 = vadd.f32 %v4560, %v4498
  %v4562 = vadd.f32 %v4561, %v4499
  %v4563 = vadd.f32 %v4562, %v4500
  %v4564 = vadd.f32 %v4563, %v4501
  %v4565 = vadd.f32 %v4564, %v4502
  %v4566 = vadd.f32 %v4565, %v4503
  %v4567 = vadd.f32 %v4566, %v4504
  %v4568 = vadd.f32 %v4567, %v4505
  %v4569 = vadd.f32 %v4568, %v4506
  %v4570 = vadd.f32 %v4569, %v4507
  %v4571 = vadd.f32 %v4570, %v4508
  %v4572 = vadd.f32 %v4571, %v4509
  %v4573 = vadd.f32 %v4572, %v4510
  %v4574 = vadd.f32 %v4573, %v4511
  %v4575 = vadd.f32 %v4574, %v4512
  %v4576 = vadd.f32 %v4575, %v4513
  %v4577 = vadd.f32 %v4576, %v4514
  %v4578 = vadd.f32 %v4577, %v4515
  %v4579 = vadd.f32 %v4578, %v4516
  %v4580 = vadd.f32 %v4579, %v4517
  %v4581 = vadd.f32 %v4580, %v4518
  %v4582 = vadd.f32 %v4581, %v4519
  %v4583 = vadd.f32 %v4582, %v4520
  %v4584 = vadd.f32 %v4583, %v4521
  %v4585 = vadd.f32 %v4584, %v4522
  %v4586 = vadd.f32 %v4585, %v4523
  %v4587 = vadd.f32 %v4586, %v4524
  %v4588 = vadd.f32 %v4587, %v4525
  %v4589 = vrot.slane %v4588, 4
  %v4590 = vadd.f32 %v4588, %v4589
  %v4591 = vrot.slane %v4590, 2
  %v4592 = vadd.f32 %v4590, %v4591
  %v4593 = vrot.slane %v4592, 1
  %v4594 = vadd.f32 %v4592, %v4593
  %v4595 = vmul.f32 %v4462, %v4462
  %v4596 = vmul.f32 %v4463, %v4463
  %v4597 = vmul.f32 %v4464, %v4464
  %v4598 = vmul.f32 %v4465, %v4465
  %v4599 = vmul.f32 %v4466, %v4466
  %v4600 = vmul.f32 %v4467, %v4467
  %v4601 = vmul.f32 %v4468, %v4468
  %v4602 = vmul.f32 %v4469, %v4469
  %v4603 = vmul.f32 %v4470, %v4470
  %v4604 = vmul.f32 %v4471, %v4471
  %v4605 = vmul.f32 %v4472, %v4472
  %v4606 = vmul.f32 %v4473, %v4473
  %v4607 = vmul.f32 %v4474, %v4474
  %v4608 = vmul.f32 %v4475, %v4475
  %v4609 = vmul.f32 %v4476, %v4476
  %v4610 = vmul.f32 %v4477, %v4477
  %v4611 = vmul.f32 %v4478, %v4478
  %v4612 = vmul.f32 %v4479, %v4479
  %v4613 = vmul.f32 %v4480, %v4480
  %v4614 = vmul.f32 %v4481, %v4481
  %v4615 = vmul.f32 %v4482, %v4482
  %v4616 = vmul.f32 %v4483, %v4483
  %v4617 = vmul.f32 %v4484, %v4484
  %v4618 = vmul.f32 %v4485, %v4485
  %v4619 = vmul.f32 %v4486, %v4486
  %v4620 = vmul.f32 %v4487, %v4487
  %v4621 = vmul.f32 %v4488, %v4488
  %v4622 = vmul.f32 %v4489, %v4489
  %v4623 = vmul.f32 %v4490, %v4490
  %v4624 = vmul.f32 %v4491, %v4491
  %v4625 = vmul.f32 %v4492, %v4492
  %v4626 = vmul.f32 %v4493, %v4493
  %v4627 = vmul.f32 %v4494, %v4494
  %v4628 = vmul.f32 %v4495, %v4495
  %v4629 = vmul.f32 %v4496, %v4496
  %v4630 = vmul.f32 %v4497, %v4497
  %v4631 = vmul.f32 %v4498, %v4498
  %v4632 = vmul.f32 %v4499, %v4499
  %v4633 = vmul.f32 %v4500, %v4500
  %v4634 = vmul.f32 %v4501, %v4501
  %v4635 = vmul.f32 %v4502, %v4502
  %v4636 = vmul.f32 %v4503, %v4503
  %v4637 = vmul.f32 %v4504, %v4504
  %v4638 = vmul.f32 %v4505, %v4505
  %v4639 = vmul.f32 %v4506, %v4506
  %v4640 = vmul.f32 %v4507, %v4507
  %v4641 = vmul.f32 %v4508, %v4508
  %v4642 = vmul.f32 %v4509, %v4509
  %v4643 = vmul.f32 %v4510, %v4510
  %v4644 = vmul.f32 %v4511, %v4511
  %v4645 = vmul.f32 %v4512, %v4512
  %v4646 = vmul.f32 %v4513, %v4513
  %v4647 = vmul.f32 %v4514, %v4514
  %v4648 = vmul.f32 %v4515, %v4515
  %v4649 = vmul.f32 %v4516, %v4516
  %v4650 = vmul.f32 %v4517, %v4517
  %v4651 = vmul.f32 %v4518, %v4518
  %v4652 = vmul.f32 %v4519, %v4519
  %v4653 = vmul.f32 %v4520, %v4520
  %v4654 = vmul.f32 %v4521, %v4521
  %v4655 = vmul.f32 %v4522, %v4522
  %v4656 = vmul.f32 %v4523, %v4523
  %v4657 = vmul.f32 %v4524, %v4524
  %v4658 = vmul.f32 %v4525, %v4525
  %v4659 = vadd.f32 %v4595, %v4596
  %v4660 = vadd.f32 %v4659, %v4597
  %v4661 = vadd.f32 %v4660, %v4598
  %v4662 = vadd.f32 %v4661, %v4599
  %v4663 = vadd.f32 %v4662, %v4600
  %v4664 = vadd.f32 %v4663, %v4601
  %v4665 = vadd.f32 %v4664, %v4602
  %v4666 = vadd.f32 %v4665, %v4603
  %v4667 = vadd.f32 %v4666, %v4604
  %v4668 = vadd.f32 %v4667, %v4605
  %v4669 = vadd.f32 %v4668, %v4606
  %v4670 = vadd.f32 %v4669, %v4607
  %v4671 = vadd.f32 %v4670, %v4608
  %v4672 = vadd.f32 %v4671, %v4609
  %v4673 = vadd.f32 %v4672, %v4610
  %v4674 = vadd.f32 %v4673, %v4611
  %v4675 = vadd.f32 %v4674, %v4612
  %v4676 = vadd.f32 %v4675, %v4613
  %v4677 = vadd.f32 %v4676, %v4614
  %v4678 = vadd.f32 %v4677, %v4615
  %v4679 = vadd.f32 %v4678, %v4616
  %v4680 = vadd.f32 %v4679, %v4617
  %v4681 = vadd.f32 %v4680, %v4618
  %v4682 = vadd.f32 %v4681, %v4619
  %v4683 = vadd.f32 %v4682, %v4620
  %v4684 = vadd.f32 %v4683, %v4621
  %v4685 = vadd.f32 %v4684, %v4622
  %v4686 = vadd.f32 %v4685, %v4623
  %v4687 = vadd.f32 %v4686, %v4624
  %v4688 = vadd.f32 %v4687, %v4625
  %v4689 = vadd.f32 %v4688, %v4626
  %v4690 = vadd.f32 %v4689, %v4627
  %v4691 = vadd.f32 %v4690, %v4628
  %v4692 = vadd.f32 %v4691, %v4629
  %v4693 = vadd.f32 %v4692, %v4630
  %v4694 = vadd.f32 %v4693, %v4631
  %v4695 = vadd.f32 %v4694, %v4632
  %v4696 = vadd.f32 %v4695, %v4633
  %v4697 = vadd.f32 %v4696, %v4634
  %v4698 = vadd.f32 %v4697, %v4635
  %v4699 = vadd.f32 %v4698, %v4636
  %v4700 = vadd.f32 %v4699, %v4637
  %v4701 = vadd.f32 %v4700, %v4638
  %v4702 = vadd.f32 %v4701, %v4639
  %v4703 = vadd.f32 %v4702, %v4640
  %v4704 = vadd.f32 %v4703, %v4641
  %v4705 = vadd.f32 %v4704, %v4642
  %v4706 = vadd.f32 %v4705, %v4643
  %v4707 = vadd.f32 %v4706, %v4644
  %v4708 = vadd.f32 %v4707, %v4645
  %v4709 = vadd.f32 %v4708, %v4646
  %v4710 = vadd.f32 %v4709, %v4647
  %v4711 = vadd.f32 %v4710, %v4648
  %v4712 = vadd.f32 %v4711, %v4649
  %v4713 = vadd.f32 %v4712, %v4650
  %v4714 = vadd.f32 %v4713, %v4651
  %v4715 = vadd.f32 %v4714, %v4652
  %v4716 = vadd.f32 %v4715, %v4653
  %v4717 = vadd.f32 %v4716, %v4654
  %v4718 = vadd.f32 %v4717, %v4655
  %v4719 = vadd.f32 %v4718, %v4656
  %v4720 = vadd.f32 %v4719, %v4657
  %v4721 = vadd.f32 %v4720, %v4658
  %v4722 = vrot.slane %v4721, 4
  %v4723 = vadd.f32 %v4721, %v4722
  %v4724 = vrot.slane %v4723, 2
  %v4725 = vadd.f32 %v4723, %v4724
  %v4726 = vrot.slane %v4725, 1
  %v4727 = vadd.f32 %v4725, %v4726
  %v4728 = vmul.f32 %v4594, 0.001953125
  %v4729 = vmul.f32 %v4727, 0.001953125
  %v4730 = vmul.f32 %v4728, %v4728
  %v4731 = vsub.f32 %v4729, %v4730
  %v4732 = vld [vmem:[%s5] sm:$0x1]
  %v4733 = vadd.f32 %v4731, 1e-05
  %v4734 = vrsqrt.pop %v4733
  %v4735 = vmul.f32 %v4732, %v4734
  %v4736 = vld [vmem:[%s6] sm:$0x1]
  %v4737 = vmul.f32 %v4728, %v4735
  %v4738 = vsub.f32 %v4736, %v4737
  %v4740 = vlaneseq
  %v4741 = vshrl.u32 %v4740, 7
  %v4742 = vsub.s32 0, %v4741
  %v4743 = vrot.slane %v4735, %v4742
  %v4745 = vmul.f32 %v4462, %v4743
  %v4746 = vmul.f32 %v4463, %v4743
  %v4747 = vmul.f32 %v4464, %v4743
  %v4748 = vmul.f32 %v4465, %v4743
  %v4749 = vmul.f32 %v4466, %v4743
  %v4750 = vmul.f32 %v4467, %v4743
  %v4751 = vmul.f32 %v4468, %v4743
  %v4752 = vmul.f32 %v4469, %v4743
  %v4753 = vmul.f32 %v4470, %v4743
  %v4754 = vmul.f32 %v4471, %v4743
  %v4755 = vmul.f32 %v4472, %v4743
  %v4756 = vmul.f32 %v4473, %v4743
  %v4757 = vmul.f32 %v4474, %v4743
  %v4758 = vmul.f32 %v4475, %v4743
  %v4759 = vmul.f32 %v4476, %v4743
  %v4760 = vmul.f32 %v4477, %v4743
  %v4761 = vmul.f32 %v4478, %v4743
  %v4762 = vmul.f32 %v4479, %v4743
  %v4763 = vmul.f32 %v4480, %v4743
  %v4764 = vmul.f32 %v4481, %v4743
  %v4765 = vmul.f32 %v4482, %v4743
  %v4766 = vmul.f32 %v4483, %v4743
  %v4767 = vmul.f32 %v4484, %v4743
  %v4768 = vmul.f32 %v4485, %v4743
  %v4769 = vmul.f32 %v4486, %v4743
  %v4770 = vmul.f32 %v4487, %v4743
  %v4771 = vmul.f32 %v4488, %v4743
  %v4772 = vmul.f32 %v4489, %v4743
  %v4773 = vmul.f32 %v4490, %v4743
  %v4774 = vmul.f32 %v4491, %v4743
  %v4775 = vmul.f32 %v4492, %v4743
  %v4776 = vmul.f32 %v4493, %v4743
  %v4777 = vmul.f32 %v4494, %v4743
  %v4778 = vmul.f32 %v4495, %v4743
  %v4779 = vmul.f32 %v4496, %v4743
  %v4780 = vmul.f32 %v4497, %v4743
  %v4781 = vmul.f32 %v4498, %v4743
  %v4782 = vmul.f32 %v4499, %v4743
  %v4783 = vmul.f32 %v4500, %v4743
  %v4784 = vmul.f32 %v4501, %v4743
  %v4785 = vmul.f32 %v4502, %v4743
  %v4786 = vmul.f32 %v4503, %v4743
  %v4787 = vmul.f32 %v4504, %v4743
  %v4788 = vmul.f32 %v4505, %v4743
  %v4789 = vmul.f32 %v4506, %v4743
  %v4790 = vmul.f32 %v4507, %v4743
  %v4791 = vmul.f32 %v4508, %v4743
  %v4792 = vmul.f32 %v4509, %v4743
  %v4793 = vmul.f32 %v4510, %v4743
  %v4794 = vmul.f32 %v4511, %v4743
  %v4795 = vmul.f32 %v4512, %v4743
  %v4796 = vmul.f32 %v4513, %v4743
  %v4797 = vmul.f32 %v4514, %v4743
  %v4798 = vmul.f32 %v4515, %v4743
  %v4799 = vmul.f32 %v4516, %v4743
  %v4800 = vmul.f32 %v4517, %v4743
  %v4801 = vmul.f32 %v4518, %v4743
  %v4802 = vmul.f32 %v4519, %v4743
  %v4803 = vmul.f32 %v4520, %v4743
  %v4804 = vmul.f32 %v4521, %v4743
  %v4805 = vmul.f32 %v4522, %v4743
  %v4806 = vmul.f32 %v4523, %v4743
  %v4807 = vmul.f32 %v4524, %v4743
  %v4808 = vmul.f32 %v4525, %v4743
  %v4810 = vlaneseq
  %v4811 = vshrl.u32 %v4810, 7
  %v4812 = vsub.s32 0, %v4811
  %v4813 = vrot.slane %v4738, %v4812
  %v4815 = vadd.f32 %v4745, %v4813
  %v4816 = vadd.f32 %v4746, %v4813
  %v4817 = vadd.f32 %v4747, %v4813
  %v4818 = vadd.f32 %v4748, %v4813
  %v4819 = vadd.f32 %v4749, %v4813
  %v4820 = vadd.f32 %v4750, %v4813
  %v4821 = vadd.f32 %v4751, %v4813
  %v4822 = vadd.f32 %v4752, %v4813
  %v4823 = vadd.f32 %v4753, %v4813
  %v4824 = vadd.f32 %v4754, %v4813
  %v4825 = vadd.f32 %v4755, %v4813
  %v4826 = vadd.f32 %v4756, %v4813
  %v4827 = vadd.f32 %v4757, %v4813
  %v4828 = vadd.f32 %v4758, %v4813
  %v4829 = vadd.f32 %v4759, %v4813
  %v4830 = vadd.f32 %v4760, %v4813
  %v4831 = vadd.f32 %v4761, %v4813
  %v4832 = vadd.f32 %v4762, %v4813
  %v4833 = vadd.f32 %v4763, %v4813
  %v4834 = vadd.f32 %v4764, %v4813
  %v4835 = vadd.f32 %v4765, %v4813
  %v4836 = vadd.f32 %v4766, %v4813
  %v4837 = vadd.f32 %v4767, %v4813
  %v4838 = vadd.f32 %v4768, %v4813
  %v4839 = vadd.f32 %v4769, %v4813
  %v4840 = vadd.f32 %v4770, %v4813
  %v4841 = vadd.f32 %v4771, %v4813
  %v4842 = vadd.f32 %v4772, %v4813
  %v4843 = vadd.f32 %v4773, %v4813
  %v4844 = vadd.f32 %v4774, %v4813
  %v4845 = vadd.f32 %v4775, %v4813
  %v4846 = vadd.f32 %v4776, %v4813
  %v4847 = vadd.f32 %v4777, %v4813
  %v4848 = vadd.f32 %v4778, %v4813
  %v4849 = vadd.f32 %v4779, %v4813
  %v4850 = vadd.f32 %v4780, %v4813
  %v4851 = vadd.f32 %v4781, %v4813
  %v4852 = vadd.f32 %v4782, %v4813
  %v4853 = vadd.f32 %v4783, %v4813
  %v4854 = vadd.f32 %v4784, %v4813
  %v4855 = vadd.f32 %v4785, %v4813
  %v4856 = vadd.f32 %v4786, %v4813
  %v4857 = vadd.f32 %v4787, %v4813
  %v4858 = vadd.f32 %v4788, %v4813
  %v4859 = vadd.f32 %v4789, %v4813
  %v4860 = vadd.f32 %v4790, %v4813
  %v4861 = vadd.f32 %v4791, %v4813
  %v4862 = vadd.f32 %v4792, %v4813
  %v4863 = vadd.f32 %v4793, %v4813
  %v4864 = vadd.f32 %v4794, %v4813
  %v4865 = vadd.f32 %v4795, %v4813
  %v4866 = vadd.f32 %v4796, %v4813
  %v4867 = vadd.f32 %v4797, %v4813
  %v4868 = vadd.f32 %v4798, %v4813
  %v4869 = vadd.f32 %v4799, %v4813
  %v4870 = vadd.f32 %v4800, %v4813
  %v4871 = vadd.f32 %v4801, %v4813
  %v4872 = vadd.f32 %v4802, %v4813
  %v4873 = vadd.f32 %v4803, %v4813
  %v4874 = vadd.f32 %v4804, %v4813
  %v4875 = vadd.f32 %v4805, %v4813
  %v4876 = vadd.f32 %v4806, %v4813
  %v4877 = vadd.f32 %v4807, %v4813
  %v4878 = vadd.f32 %v4808, %v4813
  %v4879 = vmax.f32 %v4815, 0.0
  %v4880 = vmax.f32 %v4816, 0.0
  %v4881 = vmax.f32 %v4817, 0.0
  %v4882 = vmax.f32 %v4818, 0.0
  %v4883 = vmax.f32 %v4819, 0.0
  %v4884 = vmax.f32 %v4820, 0.0
  %v4885 = vmax.f32 %v4821, 0.0
  %v4886 = vmax.f32 %v4822, 0.0
  %v4887 = vmax.f32 %v4823, 0.0
  %v4888 = vmax.f32 %v4824, 0.0
  %v4889 = vmax.f32 %v4825, 0.0
  %v4890 = vmax.f32 %v4826, 0.0
  %v4891 = vmax.f32 %v4827, 0.0
  %v4892 = vmax.f32 %v4828, 0.0
  %v4893 = vmax.f32 %v4829, 0.0
  %v4894 = vmax.f32 %v4830, 0.0
  %v4895 = vmax.f32 %v4831, 0.0
  %v4896 = vmax.f32 %v4832, 0.0
  %v4897 = vmax.f32 %v4833, 0.0
  %v4898 = vmax.f32 %v4834, 0.0
  %v4899 = vmax.f32 %v4835, 0.0
  %v4900 = vmax.f32 %v4836, 0.0
  %v4901 = vmax.f32 %v4837, 0.0
  %v4902 = vmax.f32 %v4838, 0.0
  %v4903 = vmax.f32 %v4839, 0.0
  %v4904 = vmax.f32 %v4840, 0.0
  %v4905 = vmax.f32 %v4841, 0.0
  %v4906 = vmax.f32 %v4842, 0.0
  %v4907 = vmax.f32 %v4843, 0.0
  %v4908 = vmax.f32 %v4844, 0.0
  %v4909 = vmax.f32 %v4845, 0.0
  %v4910 = vmax.f32 %v4846, 0.0
  %v4911 = vmax.f32 %v4847, 0.0
  %v4912 = vmax.f32 %v4848, 0.0
  %v4913 = vmax.f32 %v4849, 0.0
  %v4914 = vmax.f32 %v4850, 0.0
  %v4915 = vmax.f32 %v4851, 0.0
  %v4916 = vmax.f32 %v4852, 0.0
  %v4917 = vmax.f32 %v4853, 0.0
  %v4918 = vmax.f32 %v4854, 0.0
  %v4919 = vmax.f32 %v4855, 0.0
  %v4920 = vmax.f32 %v4856, 0.0
  %v4921 = vmax.f32 %v4857, 0.0
  %v4922 = vmax.f32 %v4858, 0.0
  %v4923 = vmax.f32 %v4859, 0.0
  %v4924 = vmax.f32 %v4860, 0.0
  %v4925 = vmax.f32 %v4861, 0.0
  %v4926 = vmax.f32 %v4862, 0.0
  %v4927 = vmax.f32 %v4863, 0.0
  %v4928 = vmax.f32 %v4864, 0.0
  %v4929 = vmax.f32 %v4865, 0.0
  %v4930 = vmax.f32 %v4866, 0.0
  %v4931 = vmax.f32 %v4867, 0.0
  %v4932 = vmax.f32 %v4868, 0.0
  %v4933 = vmax.f32 %v4869, 0.0
  %v4934 = vmax.f32 %v4870, 0.0
  %v4935 = vmax.f32 %v4871, 0.0
  %v4936 = vmax.f32 %v4872, 0.0
  %v4937 = vmax.f32 %v4873, 0.0
  %v4938 = vmax.f32 %v4874, 0.0
  %v4939 = vmax.f32 %v4875, 0.0
  %v4940 = vmax.f32 %v4876, 0.0
  %v4941 = vmax.f32 %v4877, 0.0
  %v4942 = vmax.f32 %v4878, 0.0
  %4943 = vst [vmem:[#allocation2] sm:$0xff] 0.0
  %4944 = vst [vmem:[#allocation2 + $0x8] sm:$0xff] 0.0
  %4945 = vst [vmem:[#allocation2 + $0x10] sm:$0xff] 0.0
  %4946 = vst [vmem:[#allocation2 + $0x18] sm:$0xff] 0.0
  %4947 = vst [vmem:[#allocation2 + $0x20] sm:$0xff] 0.0
  %4948 = vst [vmem:[#allocation2 + $0x28] sm:$0xff] 0.0
  %4949 = vst [vmem:[#allocation2 + $0x30] sm:$0xff] 0.0
  %4950 = vst [vmem:[#allocation2 + $0x38] sm:$0xff] 0.0
  %4951 = vst [vmem:[#allocation2 + $0x40] sm:$0xff] 0.0
  %4952 = vst [vmem:[#allocation2 + $0x48] sm:$0xff] 0.0
  %4953 = vst [vmem:[#allocation2 + $0x50] sm:$0xff] 0.0
  %4954 = vst [vmem:[#allocation2 + $0x58] sm:$0xff] 0.0
  %4955 = vst [vmem:[#allocation2 + $0x60] sm:$0xff] 0.0
  %4956 = vst [vmem:[#allocation2 + $0x68] sm:$0xff] 0.0
  %4957 = vst [vmem:[#allocation2 + $0x70] sm:$0xff] 0.0
  %4958 = vst [vmem:[#allocation2 + $0x78] sm:$0xff] 0.0
  %4959 = vst [vmem:[#allocation2 + $0x80] sm:$0xff] 0.0
  %4960 = vst [vmem:[#allocation2 + $0x88] sm:$0xff] 0.0
  %4961 = vst [vmem:[#allocation2 + $0x90] sm:$0xff] 0.0
  %4962 = vst [vmem:[#allocation2 + $0x98] sm:$0xff] 0.0
  %4963 = vst [vmem:[#allocation2 + $0xa0] sm:$0xff] 0.0
  %4964 = vst [vmem:[#allocation2 + $0xa8] sm:$0xff] 0.0
  %4965 = vst [vmem:[#allocation2 + $0xb0] sm:$0xff] 0.0
  %4966 = vst [vmem:[#allocation2 + $0xb8] sm:$0xff] 0.0
  %4967 = vst [vmem:[#allocation2 + $0xc0] sm:$0xff] 0.0
  %4968 = vst [vmem:[#allocation2 + $0xc8] sm:$0xff] 0.0
  %4969 = vst [vmem:[#allocation2 + $0xd0] sm:$0xff] 0.0
  %4970 = vst [vmem:[#allocation2 + $0xd8] sm:$0xff] 0.0
  %4971 = vst [vmem:[#allocation2 + $0xe0] sm:$0xff] 0.0
  %4972 = vst [vmem:[#allocation2 + $0xe8] sm:$0xff] 0.0
  %4973 = vst [vmem:[#allocation2 + $0xf0] sm:$0xff] 0.0
  %4974 = vst [vmem:[#allocation2 + $0xf8] sm:$0xff] 0.0
  %4975 = vst [vmem:[#allocation2 + $0x100] sm:$0xff] 0.0
  %4976 = vst [vmem:[#allocation2 + $0x108] sm:$0xff] 0.0
  %4977 = vst [vmem:[#allocation2 + $0x110] sm:$0xff] 0.0
  %4978 = vst [vmem:[#allocation2 + $0x118] sm:$0xff] 0.0
  %4979 = vst [vmem:[#allocation2 + $0x120] sm:$0xff] 0.0
  %4980 = vst [vmem:[#allocation2 + $0x128] sm:$0xff] 0.0
  %4981 = vst [vmem:[#allocation2 + $0x130] sm:$0xff] 0.0
  %4982 = vst [vmem:[#allocation2 + $0x138] sm:$0xff] 0.0
  %4983 = vst [vmem:[#allocation2 + $0x140] sm:$0xff] 0.0
  %4984 = vst [vmem:[#allocation2 + $0x148] sm:$0xff] 0.0
  %4985 = vst [vmem:[#allocation2 + $0x150] sm:$0xff] 0.0
  %4986 = vst [vmem:[#allocation2 + $0x158] sm:$0xff] 0.0
  %4987 = vst [vmem:[#allocation2 + $0x160] sm:$0xff] 0.0
  %4988 = vst [vmem:[#allocation2 + $0x168] sm:$0xff] 0.0
  %4989 = vst [vmem:[#allocation2 + $0x170] sm:$0xff] 0.0
  %4990 = vst [vmem:[#allocation2 + $0x178] sm:$0xff] 0.0
  %4991 = vst [vmem:[#allocation2 + $0x180] sm:$0xff] 0.0
  %4992 = vst [vmem:[#allocation2 + $0x188] sm:$0xff] 0.0
  %4993 = vst [vmem:[#allocation2 + $0x190] sm:$0xff] 0.0
  %4994 = vst [vmem:[#allocation2 + $0x198] sm:$0xff] 0.0
  %4995 = vst [vmem:[#allocation2 + $0x1a0] sm:$0xff] 0.0
  %4996 = vst [vmem:[#allocation2 + $0x1a8] sm:$0xff] 0.0
  %4997 = vst [vmem:[#allocation2 + $0x1b0] sm:$0xff] 0.0
  %4998 = vst [vmem:[#allocation2 + $0x1b8] sm:$0xff] 0.0
  %4999 = vst [vmem:[#allocation2 + $0x1c0] sm:$0xff] 0.0
  %5000 = vst [vmem:[#allocation2 + $0x1c8] sm:$0xff] 0.0
  %5001 = vst [vmem:[#allocation2 + $0x1d0] sm:$0xff] 0.0
  %5002 = vst [vmem:[#allocation2 + $0x1d8] sm:$0xff] 0.0
  %5003 = vst [vmem:[#allocation2 + $0x1e0] sm:$0xff] 0.0
  %5004 = vst [vmem:[#allocation2 + $0x1e8] sm:$0xff] 0.0
  %5005 = vst [vmem:[#allocation2 + $0x1f0] sm:$0xff] 0.0
  %5006 = vst [vmem:[#allocation2 + $0x1f8] sm:$0xff] 0.0
  %5007 = vst [vmem:[#allocation2 + $0x200] sm:$0xff] 0.0
  %5008 = vst [vmem:[#allocation2 + $0x208] sm:$0xff] 0.0
  %5009 = vst [vmem:[#allocation2 + $0x210] sm:$0xff] 0.0
  %5010 = vst [vmem:[#allocation2 + $0x218] sm:$0xff] 0.0
  %5011 = vst [vmem:[#allocation2 + $0x220] sm:$0xff] 0.0
  %5012 = vst [vmem:[#allocation2 + $0x228] sm:$0xff] 0.0
  %5013 = vst [vmem:[#allocation2 + $0x230] sm:$0xff] 0.0
  %5014 = vst [vmem:[#allocation2 + $0x238] sm:$0xff] 0.0
  %5015 = vst [vmem:[#allocation2 + $0x240] sm:$0xff] 0.0
  %5016 = vst [vmem:[#allocation2 + $0x248] sm:$0xff] 0.0
  %5017 = vst [vmem:[#allocation2 + $0x250] sm:$0xff] 0.0
  %5018 = vst [vmem:[#allocation2 + $0x258] sm:$0xff] 0.0
  %5019 = vst [vmem:[#allocation2 + $0x260] sm:$0xff] 0.0
  %5020 = vst [vmem:[#allocation2 + $0x268] sm:$0xff] 0.0
  %5021 = vst [vmem:[#allocation2 + $0x270] sm:$0xff] 0.0
  %5022 = vst [vmem:[#allocation2 + $0x278] sm:$0xff] 0.0
  %5023 = vst [vmem:[#allocation2 + $0x280] sm:$0xff] 0.0
  %5024 = vst [vmem:[#allocation2 + $0x288] sm:$0xff] 0.0
  %5025 = vst [vmem:[#allocation2 + $0x290] sm:$0xff] 0.0
  %5026 = vst [vmem:[#allocation2 + $0x298] sm:$0xff] 0.0
  %5027 = vst [vmem:[#allocation2 + $0x2a0] sm:$0xff] 0.0
  %5028 = vst [vmem:[#allocation2 + $0x2a8] sm:$0xff] 0.0
  %5029 = vst [vmem:[#allocation2 + $0x2b0] sm:$0xff] 0.0
  %5030 = vst [vmem:[#allocation2 + $0x2b8] sm:$0xff] 0.0
  %5031 = vst [vmem:[#allocation2 + $0x2c0] sm:$0xff] 0.0
  %5032 = vst [vmem:[#allocation2 + $0x2c8] sm:$0xff] 0.0
  %5033 = vst [vmem:[#allocation2 + $0x2d0] sm:$0xff] 0.0
  %5034 = vst [vmem:[#allocation2 + $0x2d8] sm:$0xff] 0.0
  %5035 = vst [vmem:[#allocation2 + $0x2e0] sm:$0xff] 0.0
  %5036 = vst [vmem:[#allocation2 + $0x2e8] sm:$0xff] 0.0
  %5037 = vst [vmem:[#allocation2 + $0x2f0] sm:$0xff] 0.0
  %5038 = vst [vmem:[#allocation2 + $0x2f8] sm:$0xff] 0.0
  %5039 = vst [vmem:[#allocation2 + $0x300] sm:$0xff] 0.0
  %5040 = vst [vmem:[#allocation2 + $0x308] sm:$0xff] 0.0
  %5041 = vst [vmem:[#allocation2 + $0x310] sm:$0xff] 0.0
  %5042 = vst [vmem:[#allocation2 + $0x318] sm:$0xff] 0.0
  %5043 = vst [vmem:[#allocation2 + $0x320] sm:$0xff] 0.0
  %5044 = vst [vmem:[#allocation2 + $0x328] sm:$0xff] 0.0
  %5045 = vst [vmem:[#allocation2 + $0x330] sm:$0xff] 0.0
  %5046 = vst [vmem:[#allocation2 + $0x338] sm:$0xff] 0.0
  %5047 = vst [vmem:[#allocation2 + $0x340] sm:$0xff] 0.0
  %5048 = vst [vmem:[#allocation2 + $0x348] sm:$0xff] 0.0
  %5049 = vst [vmem:[#allocation2 + $0x350] sm:$0xff] 0.0
  %5050 = vst [vmem:[#allocation2 + $0x358] sm:$0xff] 0.0
  %s5051 = scalar_lea.vmem [#allocation2], 24
  %5052 = vst [vmem:[%s5051 + $0x1] sm:$0xff] %v4879
  %5053 = vst [vmem:[%s5051 + $0x9] sm:$0xff] %v4880
  %5054 = vst [vmem:[%s5051 + $0x19] sm:$0xff] %v4881
  %5055 = vst [vmem:[%s5051 + $0x21] sm:$0xff] %v4882
  %5056 = vst [vmem:[%s5051 + $0x31] sm:$0xff] %v4883
  %5057 = vst [vmem:[%s5051 + $0x39] sm:$0xff] %v4884
  %5058 = vst [vmem:[%s5051 + $0x49] sm:$0xff] %v4885
  %5059 = vst [vmem:[%s5051 + $0x51] sm:$0xff] %v4886
  %5060 = vst [vmem:[%s5051 + $0x61] sm:$0xff] %v4887
  %5061 = vst [vmem:[%s5051 + $0x69] sm:$0xff] %v4888
  %5062 = vst [vmem:[%s5051 + $0x79] sm:$0xff] %v4889
  %5063 = vst [vmem:[%s5051 + $0x81] sm:$0xff] %v4890
  %5064 = vst [vmem:[%s5051 + $0x91] sm:$0xff] %v4891
  %5065 = vst [vmem:[%s5051 + $0x99] sm:$0xff] %v4892
  %5066 = vst [vmem:[%s5051 + $0xa9] sm:$0xff] %v4893
  %5067 = vst [vmem:[%s5051 + $0xb1] sm:$0xff] %v4894
  %5068 = vst [vmem:[%s5051 + $0xc1] sm:$0xff] %v4895
  %5069 = vst [vmem:[%s5051 + $0xc9] sm:$0xff] %v4896
  %5070 = vst [vmem:[%s5051 + $0xd9] sm:$0xff] %v4897
  %5071 = vst [vmem:[%s5051 + $0xe1] sm:$0xff] %v4898
  %5072 = vst [vmem:[%s5051 + $0xf1] sm:$0xff] %v4899
  %5073 = vst [vmem:[%s5051 + $0xf9] sm:$0xff] %v4900
  %5074 = vst [vmem:[%s5051 + $0x109] sm:$0xff] %v4901
  %5075 = vst [vmem:[%s5051 + $0x111] sm:$0xff] %v4902
  %5076 = vst [vmem:[%s5051 + $0x121] sm:$0xff] %v4903
  %5077 = vst [vmem:[%s5051 + $0x129] sm:$0xff] %v4904
  %5078 = vst [vmem:[%s5051 + $0x139] sm:$0xff] %v4905
  %5079 = vst [vmem:[%s5051 + $0x141] sm:$0xff] %v4906
  %5080 = vst [vmem:[%s5051 + $0x151] sm:$0xff] %v4907
  %5081 = vst [vmem:[%s5051 + $0x159] sm:$0xff] %v4908
  %5082 = vst [vmem:[%s5051 + $0x169] sm:$0xff] %v4909
  %5083 = vst [vmem:[%s5051 + $0x171] sm:$0xff] %v4910
  %5084 = vst [vmem:[%s5051 + $0x1b1] sm:$0xff] %v4911
  %5085 = vst [vmem:[%s5051 + $0x1b9] sm:$0xff] %v4912
  %5086 = vst [vmem:[%s5051 + $0x1c9] sm:$0xff] %v4913
  %5087 = vst [vmem:[%s5051 + $0x1d1] sm:$0xff] %v4914
  %5088 = vst [vmem:[%s5051 + $0x1e1] sm:$0xff] %v4915
  %5089 = vst [vmem:[%s5051 + $0x1e9] sm:$0xff] %v4916
  %5090 = vst [vmem:[%s5051 + $0x1f9] sm:$0xff] %v4917
  %5091 = vst [vmem:[%s5051 + $0x201] sm:$0xff] %v4918
  %5092 = vst [vmem:[%s5051 + $0x211] sm:$0xff] %v4919
  %5093 = vst [vmem:[%s5051 + $0x219] sm:$0xff] %v4920
  %5094 = vst [vmem:[%s5051 + $0x229] sm:$0xff] %v4921
  %5095 = vst [vmem:[%s5051 + $0x231] sm:$0xff] %v4922
  %5096 = vst [vmem:[%s5051 + $0x241] sm:$0xff] %v4923
  %5097 = vst [vmem:[%s5051 + $0x249] sm:$0xff] %v4924
  %5098 = vst [vmem:[%s5051 + $0x259] sm:$0xff] %v4925
  %5099 = vst [vmem:[%s5051 + $0x261] sm:$0xff] %v4926
  %5100 = vst [vmem:[%s5051 + $0x271] sm:$0xff] %v4927
  %5101 = vst [vmem:[%s5051 + $0x279] sm:$0xff] %v4928
  %5102 = vst [vmem:[%s5051 + $0x289] sm:$0xff] %v4929
  %5103 = vst [vmem:[%s5051 + $0x291] sm:$0xff] %v4930
  %5104 = vst [vmem:[%s5051 + $0x2a1] sm:$0xff] %v4931
  %5105 = vst [vmem:[%s5051 + $0x2a9] sm:$0xff] %v4932
  %5106 = vst [vmem:[%s5051 + $0x2b9] sm:$0xff] %v4933
  %5107 = vst [vmem:[%s5051 + $0x2c1] sm:$0xff] %v4934
  %5108 = vst [vmem:[%s5051 + $0x2d1] sm:$0xff] %v4935
  %5109 = vst [vmem:[%s5051 + $0x2d9] sm:$0xff] %v4936
  %5110 = vst [vmem:[%s5051 + $0x2e9] sm:$0xff] %v4937
  %5111 = vst [vmem:[%s5051 + $0x2f1] sm:$0xff] %v4938
  %5112 = vst [vmem:[%s5051 + $0x301] sm:$0xff] %v4939
  %5113 = vst [vmem:[%s5051 + $0x309] sm:$0xff] %v4940
  %5114 = vst [vmem:[%s5051 + $0x319] sm:$0xff] %v4941
  %5115 = vst [vmem:[%s5051 + $0x321] sm:$0xff] %v4942
  %v5116 = vld [vmem:[#allocation2] sm:$0xff]
  %v5117 = vld [vmem:[#allocation2 + $0x8] sm:$0xff]
  %v5118 = vld [vmem:[#allocation2 + $0x18] sm:$0xff]
  %v5119 = vld [vmem:[#allocation2 + $0x20] sm:$0xff]
  %v5120 = vld [vmem:[#allocation2 + $0x30] sm:$0xff]
  %v5121 = vld [vmem:[#allocation2 + $0x38] sm:$0xff]
  %v5122 = vld [vmem:[#allocation2 + $0x48] sm:$0xff]
  %v5123 = vld [vmem:[#allocation2 + $0x50] sm:$0xff]
  %v5124 = vld [vmem:[#allocation2 + $0x60] sm:$0xff]
  %v5125 = vld [vmem:[#allocation2 + $0x68] sm:$0xff]
  %v5126 = vld [vmem:[#allocation2 + $0x78] sm:$0xff]
  %v5127 = vld [vmem:[#allocation2 + $0x80] sm:$0xff]
  %v5128 = vld [vmem:[#allocation2 + $0x90] sm:$0xff]
  %v5129 = vld [vmem:[#allocation2 + $0x98] sm:$0xff]
  %v5130 = vld [vmem:[#allocation2 + $0xa8] sm:$0xff]
  %v5131 = vld [vmem:[#allocation2 + $0xb0] sm:$0xff]
  %v5132 = vld [vmem:[#allocation2 + $0xc0] sm:$0xff]
  %v5133 = vld [vmem:[#allocation2 + $0xc8] sm:$0xff]
  %v5134 = vld [vmem:[#allocation2 + $0xd8] sm:$0xff]
  %v5135 = vld [vmem:[#allocation2 + $0xe0] sm:$0xff]
  %v5136 = vld [vmem:[#allocation2 + $0xf0] sm:$0xff]
  %v5137 = vld [vmem:[#allocation2 + $0xf8] sm:$0xff]
  %v5138 = vld [vmem:[#allocation2 + $0x108] sm:$0xff]
  %v5139 = vld [vmem:[#allocation2 + $0x110] sm:$0xff]
  %v5140 = vld [vmem:[#allocation2 + $0x120] sm:$0xff]
  %v5141 = vld [vmem:[#allocation2 + $0x128] sm:$0xff]
  %v5142 = vld [vmem:[#allocation2 + $0x138] sm:$0xff]
  %v5143 = vld [vmem:[#allocation2 + $0x140] sm:$0xff]
  %v5144 = vld [vmem:[#allocation2 + $0x150] sm:$0xff]
  %v5145 = vld [vmem:[#allocation2 + $0x158] sm:$0xff]
  %v5146 = vld [vmem:[#allocation2 + $0x168] sm:$0xff]
  %v5147 = vld [vmem:[#allocation2 + $0x170] sm:$0xff]
  %v5148 = vld [vmem:[#allocation2 + $0x180] sm:$0xff]
  %v5149 = vld [vmem:[#allocation2 + $0x188] sm:$0xff]
  %v5150 = vld [vmem:[#allocation2 + $0x1b0] sm:$0xff]
  %v5151 = vld [vmem:[#allocation2 + $0x1b8] sm:$0xff]
  %v5152 = vld [vmem:[#allocation2 + $0x1c8] sm:$0xff]
  %v5153 = vld [vmem:[#allocation2 + $0x1d0] sm:$0xff]
  %v5154 = vld [vmem:[#allocation2 + $0x1e0] sm:$0xff]
  %v5155 = vld [vmem:[#allocation2 + $0x1e8] sm:$0xff]
  %v5156 = vld [vmem:[#allocation2 + $0x1f8] sm:$0xff]
  %v5157 = vld [vmem:[#allocation2 + $0x200] sm:$0xff]
  %v5158 = vld [vmem:[#allocation2 + $0x210] sm:$0xff]
  %v5159 = vld [vmem:[#allocation2 + $0x218] sm:$0xff]
  %v5160 = vld [vmem:[#allocation2 + $0x228] sm:$0xff]
  %v5161 = vld [vmem:[#allocation2 + $0x230] sm:$0xff]
  %v5162 = vld [vmem:[#allocation2 + $0x240] sm:$0xff]
  %v5163 = vld [vmem:[#allocation2 + $0x248] sm:$0xff]
  %v5164 = vld [vmem:[#allocation2 + $0x258] sm:$0xff]
  %v5165 = vld [vmem:[#allocation2 + $0x260] sm:$0xff]
  %v5166 = vld [vmem:[#allocation2 + $0x270] sm:$0xff]
  %v5167 = vld [vmem:[#allocation2 + $0x278] sm:$0xff]
  %v5168 = vld [vmem:[#allocation2 + $0x288] sm:$0xff]
  %v5169 = vld [vmem:[#allocation2 + $0x290] sm:$0xff]
  %v5170 = vld [vmem:[#allocation2 + $0x2a0] sm:$0xff]
  %v5171 = vld [vmem:[#allocation2 + $0x2a8] sm:$0xff]
  %v5172 = vld [vmem:[#allocation2 + $0x2b8] sm:$0xff]
  %v5173 = vld [vmem:[#allocation2 + $0x2c0] sm:$0xff]
  %v5174 = vld [vmem:[#allocation2 + $0x2d0] sm:$0xff]
  %v5175 = vld [vmem:[#allocation2 + $0x2d8] sm:$0xff]
  %v5176 = vld [vmem:[#allocation2 + $0x2e8] sm:$0xff]
  %v5177 = vld [vmem:[#allocation2 + $0x2f0] sm:$0xff]
  %v5178 = vld [vmem:[#allocation2 + $0x300] sm:$0xff]
  %v5179 = vld [vmem:[#allocation2 + $0x308] sm:$0xff]
  %v5180 = vld [vmem:[#allocation2 + $0x318] sm:$0xff]
  %v5181 = vld [vmem:[#allocation2 + $0x320] sm:$0xff]
  %v5182 = vld [vmem:[#allocation2 + $0x330] sm:$0xff]
  %v5183 = vld [vmem:[#allocation2 + $0x338] sm:$0xff]
  %v5184 = vld [vmem:[#allocation2 + $0x1] sm:$0xff]
  %v5185 = vld [vmem:[#allocation2 + $0x9] sm:$0xff]
  %v5186 = vld [vmem:[#allocation2 + $0x19] sm:$0xff]
  %v5187 = vld [vmem:[#allocation2 + $0x21] sm:$0xff]
  %v5188 = vld [vmem:[#allocation2 + $0x31] sm:$0xff]
  %v5189 = vld [vmem:[#allocation2 + $0x39] sm:$0xff]
  %v5190 = vld [vmem:[#allocation2 + $0x49] sm:$0xff]
  %v5191 = vld [vmem:[#allocation2 + $0x51] sm:$0xff]
  %v5192 = vld [vmem:[#allocation2 + $0x61] sm:$0xff]
  %v5193 = vld [vmem:[#allocation2 + $0x69] sm:$0xff]
  %v5194 = vld [vmem:[#allocation2 + $0x79] sm:$0xff]
  %v5195 = vld [vmem:[#allocation2 + $0x81] sm:$0xff]
  %v5196 = vld [vmem:[#allocation2 + $0x91] sm:$0xff]
  %v5197 = vld [vmem:[#allocation2 + $0x99] sm:$0xff]
  %v5198 = vld [vmem:[#allocation2 + $0xa9] sm:$0xff]
  %v5199 = vld [vmem:[#allocation2 + $0xb1] sm:$0xff]
  %v5200 = vld [vmem:[#allocation2 + $0xc1] sm:$0xff]
  %v5201 = vld [vmem:[#allocation2 + $0xc9] sm:$0xff]
  %v5202 = vld [vmem:[#allocation2 + $0xd9] sm:$0xff]
  %v5203 = vld [vmem:[#allocation2 + $0xe1] sm:$0xff]
  %v5204 = vld [vmem:[#allocation2 + $0xf1] sm:$0xff]
  %v5205 = vld [vmem:[#allocation2 + $0xf9] sm:$0xff]
  %v5206 = vld [vmem:[#allocation2 + $0x109] sm:$0xff]
  %v5207 = vld [vmem:[#allocation2 + $0x111] sm:$0xff]
  %v5208 = vld [vmem:[#allocation2 + $0x121] sm:$0xff]
  %v5209 = vld [vmem:[#allocation2 + $0x129] sm:$0xff]
  %v5210 = vld [vmem:[#allocation2 + $0x139] sm:$0xff]
  %v5211 = vld [vmem:[#allocation2 + $0x141] sm:$0xff]
  %v5212 = vld [vmem:[#allocation2 + $0x151] sm:$0xff]
  %v5213 = vld [vmem:[#allocation2 + $0x159] sm:$0xff]
  %v5214 = vld [vmem:[#allocation2 + $0x169] sm:$0xff]
  %v5215 = vld [vmem:[#allocation2 + $0x171] sm:$0xff]
  %v5216 = vld [vmem:[#allocation2 + $0x181] sm:$0xff]
  %v5217 = vld [vmem:[#allocation2 + $0x189] sm:$0xff]
  %v5218 = vld [vmem:[#allocation2 + $0x1b1] sm:$0xff]
  %v5219 = vld [vmem:[#allocation2 + $0x1b9] sm:$0xff]
  %v5220 = vld [vmem:[#allocation2 + $0x1c9] sm:$0xff]
  %v5221 = vld [vmem:[#allocation2 + $0x1d1] sm:$0xff]
  %v5222 = vld [vmem:[#allocation2 + $0x1e1] sm:$0xff]
  %v5223 = vld [vmem:[#allocation2 + $0x1e9] sm:$0xff]
  %v5224 = vld [vmem:[#allocation2 + $0x1f9] sm:$0xff]
  %v5225 = vld [vmem:[#allocation2 + $0x201] sm:$0xff]
  %v5226 = vld [vmem:[#allocation2 + $0x211] sm:$0xff]
  %v5227 = vld [vmem:[#allocation2 + $0x219] sm:$0xff]
  %v5228 = vld [vmem:[#allocation2 + $0x229] sm:$0xff]
  %v5229 = vld [vmem:[#allocation2 + $0x231] sm:$0xff]
  %v5230 = vld [vmem:[#allocation2 + $0x241] sm:$0xff]
  %v5231 = vld [vmem:[#allocation2 + $0x249] sm:$0xff]
  %v5232 = vld [vmem:[#allocation2 + $0x259] sm:$0xff]
  %v5233 = vld [vmem:[#allocation2 + $0x261] sm:$0xff]
  %v5234 = vld [vmem:[#allocation2 + $0x271] sm:$0xff]
  %v5235 = vld [vmem:[#allocation2 + $0x279] sm:$0xff]
  %v5236 = vld [vmem:[#allocation2 + $0x289] sm:$0xff]
  %v5237 = vld [vmem:[#allocation2 + $0x291] sm:$0xff]
  %v5238 = vld [vmem:[#allocation2 + $0x2a1] sm:$0xff]
  %v5239 = vld [vmem:[#allocation2 + $0x2a9] sm:$0xff]
  %v5240 = vld [vmem:[#allocation2 + $0x2b9] sm:$0xff]
  %v5241 = vld [vmem:[#allocation2 + $0x2c1] sm:$0xff]
  %v5242 = vld [vmem:[#allocation2 + $0x2d1] sm:$0xff]
  %v5243 = vld [vmem:[#allocation2 + $0x2d9] sm:$0xff]
  %v5244 = vld [vmem:[#allocation2 + $0x2e9] sm:$0xff]
  %v5245 = vld [vmem:[#allocation2 + $0x2f1] sm:$0xff]
  %v5246 = vld [vmem:[#allocation2 + $0x301] sm:$0xff]
  %v5247 = vld [vmem:[#allocation2 + $0x309] sm:$0xff]
  %v5248 = vld [vmem:[#allocation2 + $0x319] sm:$0xff]
  %v5249 = vld [vmem:[#allocation2 + $0x321] sm:$0xff]
  %v5250 = vld [vmem:[#allocation2 + $0x331] sm:$0xff]
  %v5251 = vld [vmem:[#allocation2 + $0x339] sm:$0xff]
  %v5252 = vmax.f32 %v5116, %v5184
  %v5253 = vmax.f32 %v5117, %v5185
  %v5254 = vmax.f32 %v5118, %v5186
  %v5255 = vmax.f32 %v5119, %v5187
  %v5256 = vmax.f32 %v5120, %v5188
  %v5257 = vmax.f32 %v5121, %v5189
  %v5258 = vmax.f32 %v5122, %v5190
  %v5259 = vmax.f32 %v5123, %v5191
  %v5260 = vmax.f32 %v5124, %v5192
  %v5261 = vmax.f32 %v5125, %v5193
  %v5262 = vmax.f32 %v5126, %v5194
  %v5263 = vmax.f32 %v5127, %v5195
  %v5264 = vmax.f32 %v5128, %v5196
  %v5265 = vmax.f32 %v5129, %v5197
  %v5266 = vmax.f32 %v5130, %v5198
  %v5267 = vmax.f32 %v5131, %v5199
  %v5268 = vmax.f32 %v5132, %v5200
  %v5269 = vmax.f32 %v5133, %v5201
  %v5270 = vmax.f32 %v5134, %v5202
  %v5271 = vmax.f32 %v5135, %v5203
  %v5272 = vmax.f32 %v5136, %v5204
  %v5273 = vmax.f32 %v5137, %v5205
  %v5274 = vmax.f32 %v5138, %v5206
  %v5275 = vmax.f32 %v5139, %v5207
  %v5276 = vmax.f32 %v5140, %v5208
  %v5277 = vmax.f32 %v5141, %v5209
  %v5278 = vmax.f32 %v5142, %v5210
  %v5279 = vmax.f32 %v5143, %v5211
  %v5280 = vmax.f32 %v5144, %v5212
  %v5281 = vmax.f32 %v5145, %v5213
  %v5282 = vmax.f32 %v5146, %v5214
  %v5283 = vmax.f32 %v5147, %v5215
  %v5284 = vmax.f32 %v5148, %v5216
  %v5285 = vmax.f32 %v5149, %v5217
  %v5286 = vmax.f32 %v5150, %v5218
  %v5287 = vmax.f32 %v5151, %v5219
  %v5288 = vmax.f32 %v5152, %v5220
  %v5289 = vmax.f32 %v5153, %v5221
  %v5290 = vmax.f32 %v5154, %v5222
  %v5291 = vmax.f32 %v5155, %v5223
  %v5292 = vmax.f32 %v5156, %v5224
  %v5293 = vmax.f32 %v5157, %v5225
  %v5294 = vmax.f32 %v5158, %v5226
  %v5295 = vmax.f32 %v5159, %v5227
  %v5296 = vmax.f32 %v5160, %v5228
  %v5297 = vmax.f32 %v5161, %v5229
  %v5298 = vmax.f32 %v5162, %v5230
  %v5299 = vmax.f32 %v5163, %v5231
  %v5300 = vmax.f32 %v5164, %v5232
  %v5301 = vmax.f32 %v5165, %v5233
  %v5302 = vmax.f32 %v5166, %v5234
  %v5303 = vmax.f32 %v5167, %v5235
  %v5304 = vmax.f32 %v5168, %v5236
  %v5305 = vmax.f32 %v5169, %v5237
  %v5306 = vmax.f32 %v5170, %v5238
  %v5307 = vmax.f32 %v5171, %v5239
  %v5308 = vmax.f32 %v5172, %v5240
  %v5309 = vmax.f32 %v5173, %v5241
  %v5310 = vmax.f32 %v5174, %v5242
  %v5311 = vmax.f32 %v5175, %v5243
  %v5312 = vmax.f32 %v5176, %v5244
  %v5313 = vmax.f32 %v5177, %v5245
  %v5314 = vmax.f32 %v5178, %v5246
  %v5315 = vmax.f32 %v5179, %v5247
  %v5316 = vmax.f32 %v5180, %v5248
  %v5317 = vmax.f32 %v5181, %v5249
  %v5318 = vmax.f32 %v5182, %v5250
  %v5319 = vmax.f32 %v5183, %v5251
  %v5320 = vld [vmem:[#allocation2 + $0x2] sm:$0xff]
  %v5321 = vld [vmem:[#allocation2 + $0xa] sm:$0xff]
  %v5322 = vld [vmem:[#allocation2 + $0x1a] sm:$0xff]
  %v5323 = vld [vmem:[#allocation2 + $0x22] sm:$0xff]
  %v5324 = vld [vmem:[#allocation2 + $0x32] sm:$0xff]
  %v5325 = vld [vmem:[#allocation2 + $0x3a] sm:$0xff]
  %v5326 = vld [vmem:[#allocation2 + $0x4a] sm:$0xff]
  %v5327 = vld [vmem:[#allocation2 + $0x52] sm:$0xff]
  %v5328 = vld [vmem:[#allocation2 + $0x62] sm:$0xff]
  %v5329 = vld [vmem:[#allocation2 + $0x6a] sm:$0xff]
  %v5330 = vld [vmem:[#allocation2 + $0x7a] sm:$0xff]
  %v5331 = vld [vmem:[#allocation2 + $0x82] sm:$0xff]
  %v5332 = vld [vmem:[#allocation2 + $0x92] sm:$0xff]
  %v5333 = vld [vmem:[#allocation2 + $0x9a] sm:$0xff]
  %v5334 = vld [vmem:[#allocation2 + $0xaa] sm:$0xff]
  %v5335 = vld [vmem:[#allocation2 + $0xb2] sm:$0xff]
  %v5336 = vld [vmem:[#allocation2 + $0xc2] sm:$0xff]
  %v5337 = vld [vmem:[#allocation2 + $0xca] sm:$0xff]
  %v5338 = vld [vmem:[#allocation2 + $0xda] sm:$0xff]
  %v5339 = vld [vmem:[#allocation2 + $0xe2] sm:$0xff]
  %v5340 = vld [vmem:[#allocation2 + $0xf2] sm:$0xff]
  %v5341 = vld [vmem:[#allocation2 + $0xfa] sm:$0xff]
  %v5342 = vld [vmem:[#allocation2 + $0x10a] sm:$0xff]
  %v5343 = vld [vmem:[#allocation2 + $0x112] sm:$0xff]
  %v5344 = vld [vmem:[#allocation2 + $0x122] sm:$0xff]
  %v5345 = vld [vmem:[#allocation2 + $0x12a] sm:$0xff]
  %v5346 = vld [vmem:[#allocation2 + $0x13a] sm:$0xff]
  %v5347 = vld [vmem:[#allocation2 + $0x142] sm:$0xff]
  %v5348 = vld [vmem:[#allocation2 + $0x152] sm:$0xff]
  %v5349 = vld [vmem:[#allocation2 + $0x15a] sm:$0xff]
  %v5350 = vld [vmem:[#allocation2 + $0x16a] sm:$0xff]
  %v5351 = vld [vmem:[#allocation2 + $0x172] sm:$0xff]
  %v5352 = vld [vmem:[#allocation2 + $0x182] sm:$0xff]
  %v5353 = vld [vmem:[#allocation2 + $0x18a] sm:$0xff]
  %v5354 = vld [vmem:[#allocation2 + $0x1b2] sm:$0xff]
  %v5355 = vld [vmem:[#allocation2 + $0x1ba] sm:$0xff]
  %v5356 = vld [vmem:[#allocation2 + $0x1ca] sm:$0xff]
  %v5357 = vld [vmem:[#allocation2 + $0x1d2] sm:$0xff]
  %v5358 = vld [vmem:[#allocation2 + $0x1e2] sm:$0xff]
  %v5359 = vld [vmem:[#allocation2 + $0x1ea] sm:$0xff]
  %v5360 = vld [vmem:[#allocation2 + $0x1fa] sm:$0xff]
  %v5361 = vld [vmem:[#allocation2 + $0x202] sm:$0xff]
  %v5362 = vld [vmem:[#allocation2 + $0x212] sm:$0xff]
  %v5363 = vld [vmem:[#allocation2 + $0x21a] sm:$0xff]
  %v5364 = vld [vmem:[#allocation2 + $0x22a] sm:$0xff]
  %v5365 = vld [vmem:[#allocation2 + $0x232] sm:$0xff]
  %v5366 = vld [vmem:[#allocation2 + $0x242] sm:$0xff]
  %v5367 = vld [vmem:[#allocation2 + $0x24a] sm:$0xff]
  %v5368 = vld [vmem:[#allocation2 + $0x25a] sm:$0xff]
  %v5369 = vld [vmem:[#allocation2 + $0x262] sm:$0xff]
  %v5370 = vld [vmem:[#allocation2 + $0x272] sm:$0xff]
  %v5371 = vld [vmem:[#allocation2 + $0x27a] sm:$0xff]
  %v5372 = vld [vmem:[#allocation2 + $0x28a] sm:$0xff]
  %v5373 = vld [vmem:[#allocation2 + $0x292] sm:$0xff]
  %v5374 = vld [vmem:[#allocation2 + $0x2a2] sm:$0xff]
  %v5375 = vld [vmem:[#allocation2 + $0x2aa] sm:$0xff]
  %v5376 = vld [vmem:[#allocation2 + $0x2ba] sm:$0xff]
  %v5377 = vld [vmem:[#allocation2 + $0x2c2] sm:$0xff]
  %v5378 = vld [vmem:[#allocation2 + $0x2d2] sm:$0xff]
  %v5379 = vld [vmem:[#allocation2 + $0x2da] sm:$0xff]
  %v5380 = vld [vmem:[#allocation2 + $0x2ea] sm:$0xff]
  %v5381 = vld [vmem:[#allocation2 + $0x2f2] sm:$0xff]
  %v5382 = vld [vmem:[#allocation2 + $0x302] sm:$0xff]
  %v5383 = vld [vmem:[#allocation2 + $0x30a] sm:$0xff]
  %v5384 = vld [vmem:[#allocation2 + $0x31a] sm:$0xff]
  %v5385 = vld [vmem:[#allocation2 + $0x322] sm:$0xff]
  %v5386 = vld [vmem:[#allocation2 + $0x332] sm:$0xff]
  %v5387 = vld [vmem:[#allocation2 + $0x33a] sm:$0xff]
  %v5388 = vmax.f32 %v5252, %v5320
  %v5389 = vmax.f32 %v5253, %v5321
  %v5390 = vmax.f32 %v5254, %v5322
  %v5391 = vmax.f32 %v5255, %v5323
  %v5392 = vmax.f32 %v5256, %v5324
  %v5393 = vmax.f32 %v5257, %v5325
  %v5394 = vmax.f32 %v5258, %v5326
  %v5395 = vmax.f32 %v5259, %v5327
  %v5396 = vmax.f32 %v5260, %v5328
  %v5397 = vmax.f32 %v5261, %v5329
  %v5398 = vmax.f32 %v5262, %v5330
  %v5399 = vmax.f32 %v5263, %v5331
  %v5400 = vmax.f32 %v5264, %v5332
  %v5401 = vmax.f32 %v5265, %v5333
  %v5402 = vmax.f32 %v5266, %v5334
  %v5403 = vmax.f32 %v5267, %v5335
  %v5404 = vmax.f32 %v5268, %v5336
  %v5405 = vmax.f32 %v5269, %v5337
  %v5406 = vmax.f32 %v5270, %v5338
  %v5407 = vmax.f32 %v5271, %v5339
  %v5408 = vmax.f32 %v5272, %v5340
  %v5409 = vmax.f32 %v5273, %v5341
  %v5410 = vmax.f32 %v5274, %v5342
  %v5411 = vmax.f32 %v5275, %v5343
  %v5412 = vmax.f32 %v5276, %v5344
  %v5413 = vmax.f32 %v5277, %v5345
  %v5414 = vmax.f32 %v5278, %v5346
  %v5415 = vmax.f32 %v5279, %v5347
  %v5416 = vmax.f32 %v5280, %v5348
  %v5417 = vmax.f32 %v5281, %v5349
  %v5418 = vmax.f32 %v5282, %v5350
  %v5419 = vmax.f32 %v5283, %v5351
  %v5420 = vmax.f32 %v5284, %v5352
  %v5421 = vmax.f32 %v5285, %v5353
  %v5422 = vmax.f32 %v5286, %v5354
  %v5423 = vmax.f32 %v5287, %v5355
  %v5424 = vmax.f32 %v5288, %v5356
  %v5425 = vmax.f32 %v5289, %v5357
  %v5426 = vmax.f32 %v5290, %v5358
  %v5427 = vmax.f32 %v5291, %v5359
  %v5428 = vmax.f32 %v5292, %v5360
  %v5429 = vmax.f32 %v5293, %v5361
  %v5430 = vmax.f32 %v5294, %v5362
  %v5431 = vmax.f32 %v5295, %v5363
  %v5432 = vmax.f32 %v5296, %v5364
  %v5433 = vmax.f32 %v5297, %v5365
  %v5434 = vmax.f32 %v5298, %v5366
  %v5435 = vmax.f32 %v5299, %v5367
  %v5436 = vmax.f32 %v5300, %v5368
  %v5437 = vmax.f32 %v5301, %v5369
  %v5438 = vmax.f32 %v5302, %v5370
  %v5439 = vmax.f32 %v5303, %v5371
  %v5440 = vmax.f32 %v5304, %v5372
  %v5441 = vmax.f32 %v5305, %v5373
  %v5442 = vmax.f32 %v5306, %v5374
  %v5443 = vmax.f32 %v5307, %v5375
  %v5444 = vmax.f32 %v5308, %v5376
  %v5445 = vmax.f32 %v5309, %v5377
  %v5446 = vmax.f32 %v5310, %v5378
  %v5447 = vmax.f32 %v5311, %v5379
  %v5448 = vmax.f32 %v5312, %v5380
  %v5449 = vmax.f32 %v5313, %v5381
  %v5450 = vmax.f32 %v5314, %v5382
  %v5451 = vmax.f32 %v5315, %v5383
  %v5452 = vmax.f32 %v5316, %v5384
  %v5453 = vmax.f32 %v5317, %v5385
  %v5454 = vmax.f32 %v5318, %v5386
  %v5455 = vmax.f32 %v5319, %v5387
  %v5456 = vmax.f32 %v5388, %v5390
  %v5457 = vmax.f32 %v5389, %v5391
  %v5458 = vmax.f32 %v5392, %v5394
  %v5459 = vmax.f32 %v5393, %v5395
  %v5460 = vmax.f32 %v5396, %v5398
  %v5461 = vmax.f32 %v5397, %v5399
  %v5462 = vmax.f32 %v5400, %v5402
  %v5463 = vmax.f32 %v5401, %v5403
  %v5464 = vmax.f32 %v5404, %v5406
  %v5465 = vmax.f32 %v5405, %v5407
  %v5466 = vmax.f32 %v5408, %v5410
  %v5467 = vmax.f32 %v5409, %v5411
  %v5468 = vmax.f32 %v5412, %v5414
  %v5469 = vmax.f32 %v5413, %v5415
  %v5470 = vmax.f32 %v5416, %v5418
  %v5471 = vmax.f32 %v5417, %v5419
  %v5472 = vmax.f32 %v5422, %v5424
  %v5473 = vmax.f32 %v5423, %v5425
  %v5474 = vmax.f32 %v5426, %v5428
  %v5475 = vmax.f32 %v5427, %v5429
  %v5476 = vmax.f32 %v5430, %v5432
  %v5477 = vmax.f32 %v5431, %v5433
  %v5478 = vmax.f32 %v5434, %v5436
  %v5479 = vmax.f32 %v5435, %v5437
  %v5480 = vmax.f32 %v5438, %v5440
  %v5481 = vmax.f32 %v5439, %v5441
  %v5482 = vmax.f32 %v5442, %v5444
  %v5483 = vmax.f32 %v5443, %v5445
  %v5484 = vmax.f32 %v5446, %v5448
  %v5485 = vmax.f32 %v5447, %v5449
  %v5486 = vmax.f32 %v5450, %v5452
  %v5487 = vmax.f32 %v5451, %v5453
  %v5488 = vmax.f32 %v5456, %v5392
  %v5489 = vmax.f32 %v5457, %v5393
  %v5490 = vmax.f32 %v5458, %v5396
  %v5491 = vmax.f32 %v5459, %v5397
  %v5492 = vmax.f32 %v5460, %v5400
  %v5493 = vmax.f32 %v5461, %v5401
  %v5494 = vmax.f32 %v5462, %v5404
  %v5495 = vmax.f32 %v5463, %v5405
  %v5496 = vmax.f32 %v5464, %v5408
  %v5497 = vmax.f32 %v5465, %v5409
  %v5498 = vmax.f32 %v5466, %v5412
  %v5499 = vmax.f32 %v5467, %v5413
  %v5500 = vmax.f32 %v5468, %v5416
  %v5501 = vmax.f32 %v5469, %v5417
  %v5502 = vmax.f32 %v5470, %v5420
  %v5503 = vmax.f32 %v5471, %v5421
  %v5504 = vmax.f32 %v5472, %v5426
  %v5505 = vmax.f32 %v5473, %v5427
  %v5506 = vmax.f32 %v5474, %v5430
  %v5507 = vmax.f32 %v5475, %v5431
  %v5508 = vmax.f32 %v5476, %v5434
  %v5509 = vmax.f32 %v5477, %v5435
  %v5510 = vmax.f32 %v5478, %v5438
  %v5511 = vmax.f32 %v5479, %v5439
  %v5512 = vmax.f32 %v5480, %v5442
  %v5513 = vmax.f32 %v5481, %v5443
  %v5514 = vmax.f32 %v5482, %v5446
  %v5515 = vmax.f32 %v5483, %v5447
  %v5516 = vmax.f32 %v5484, %v5450
  %v5517 = vmax.f32 %v5485, %v5451
  %v5518 = vmax.f32 %v5486, %v5454
  %v5519 = vmax.f32 %v5487, %v5455
  %5520 = vst [vmem:[%s7] sm:$0xff] %v5488
  %5521 = vst [vmem:[%s7 + $0x8] sm:$0xff] %v5489
  %5522 = vst [vmem:[%s7 + $0x10] sm:$0xff] %v5490
  %5523 = vst [vmem:[%s7 + $0x18] sm:$0xff] %v5491
  %5524 = vst [vmem:[%s7 + $0x20] sm:$0xff] %v5492
  %5525 = vst [vmem:[%s7 + $0x28] sm:$0xff] %v5493
  %5526 = vst [vmem:[%s7 + $0x30] sm:$0xff] %v5494
  %5527 = vst [vmem:[%s7 + $0x38] sm:$0xff] %v5495
  %5528 = vst [vmem:[%s7 + $0x40] sm:$0xff] %v5496
  %5529 = vst [vmem:[%s7 + $0x48] sm:$0xff] %v5497
  %5530 = vst [vmem:[%s7 + $0x50] sm:$0xff] %v5498
  %5531 = vst [vmem:[%s7 + $0x58] sm:$0xff] %v5499
  %5532 = vst [vmem:[%s7 + $0x60] sm:$0xff] %v5500
  %5533 = vst [vmem:[%s7 + $0x68] sm:$0xff] %v5501
  %5534 = vst [vmem:[%s7 + $0x70] sm:$0xff] %v5502
  %5535 = vst [vmem:[%s7 + $0x78] sm:$0xff] %v5503
  %5536 = vst [vmem:[%s7 + $0x80] sm:$0xff] %v5504
  %5537 = vst [vmem:[%s7 + $0x88] sm:$0xff] %v5505
  %5538 = vst [vmem:[%s7 + $0x90] sm:$0xff] %v5506
  %5539 = vst [vmem:[%s7 + $0x98] sm:$0xff] %v5507
  %5540 = vst [vmem:[%s7 + $0xa0] sm:$0xff] %v5508
  %5541 = vst [vmem:[%s7 + $0xa8] sm:$0xff] %v5509
  %5542 = vst [vmem:[%s7 + $0xb0] sm:$0xff] %v5510
  %5543 = vst [vmem:[%s7 + $0xb8] sm:$0xff] %v5511
  %5544 = vst [vmem:[%s7 + $0xc0] sm:$0xff] %v5512
  %5545 = vst [vmem:[%s7 + $0xc8] sm:$0xff] %v5513
  %5546 = vst [vmem:[%s7 + $0xd0] sm:$0xff] %v5514
  %5547 = vst [vmem:[%s7 + $0xd8] sm:$0xff] %v5515
  %5548 = vst [vmem:[%s7 + $0xe0] sm:$0xff] %v5516
  %5549 = vst [vmem:[%s7 + $0xe8] sm:$0xff] %v5517
  %5550 = vst [vmem:[%s7 + $0xf0] sm:$0xff] %v5518
  %5551 = vst [vmem:[%s7 + $0xf8] sm:$0xff] %v5519
  // Predicated region
  $region30: #{_lambda_.2} parent=0 // pred_check
    _
  $region31: #{_lambda_.2} parent=0 // pred_check_branch
    %5553 = sbr.rel (0) target = $region33
  $region32: #{_lambda_.2} parent=0 // pred_region
    _
  $region33: #{_lambda_.2} parent=0 // pred_fallthru
    _
  // Predicated region
  $region34: #{_lambda_.2} parent=0 // pred_check
    _
  $region35: #{_lambda_.2} parent=0 // pred_check_branch
    %5555 = sbr.rel (0) target = $region37
  $region36: #{_lambda_.2} parent=0 // pred_region
    _
  $region37: #{_lambda_.2} parent=0 // pred_fallthru
    _

</llo_original>
